<compile_context>
chip_gen: v7x
topology: tpu7x:2x2x1
jax: 0.10.0
libtpu: 0.0.40
codegen_flags: <defaults>
</compile_context>

<pallas_src>
import functools
import math

import numpy as np
import jax
import jax.numpy as jnp
from jax.experimental import pallas as pl
from jax.experimental.pallas import tpu as pltpu


LANE = 128
VMEM_LIMIT = 32 * 1024 * 1024     # explicit scoped-VMEM budget (>> actual ~3-8 MiB use)
MATMUL_DTYPE = jnp.bfloat16       # weights stored + MXU fed in bf16; f32 accumulation


def _round_up(n, m):
    return ((n + m - 1) // m) * m


def _pick_tile(rows):
    """Power-of-two row tile: <=512 (HBM-roofline sweet spot, amortizes per-step
    overhead) and <= rows/2 when possible so the 'parallel' row grid has >=2 steps
    (keeps both v7x TensorCores busy)."""
    t = 8
    while t * 2 <= min(512, max(rows // 2, 8)):
        t *= 2
    return t


def _dot(a, b):
    # b (weights) is already stored in MATMUL_DTYPE; cast only the activation tile.
    return jnp.dot(a.astype(MATMUL_DTYPE), b, preferred_element_type=jnp.float32)


def _swish(x):
    return x * jax.nn.sigmoid(x)


def _compiler_params(semantics):
    return pltpu.CompilerParams(dimension_semantics=semantics,
                                vmem_limit_bytes=VMEM_LIMIT)


def _full_spec(arr):
    """Constant (weight/bias/stat) block: full array, index map pinned to block 0."""
    idx = (0,) * arr.ndim
    return pl.BlockSpec(arr.shape, lambda m, _idx=idx: _idx)


# ----------------------------------------------------------------------------
# Pallas kernels
# ----------------------------------------------------------------------------
def _mlp_chain_kernel(x_ref, w_ref, b_ref, o_ref, *, acts):
    """h -> chain of (h @ W_k + b_k [+swish]) with all weights VMEM-resident (bf16)."""
    h = x_ref[...]
    for k, act in enumerate(acts):
        y = _dot(h, w_ref[k]) + b_ref[k:k + 1, :]
        h = _swish(y) if act else y
    o_ref[...] = h


def pallas_mlp_chain(x, wstack, bstack, acts, *, tile):
    rows, hp = x.shape
    row_spec = pl.BlockSpec((tile, hp), lambda m: (m, 0))
    return pl.pallas_call(
        functools.partial(_mlp_chain_kernel, acts=tuple(acts)),
        out_shape=jax.ShapeDtypeStruct((rows, hp), jnp.float32),
        grid=(rows // tile,),
        in_specs=[row_spec, _full_spec(wstack), _full_spec(bstack)],
        out_specs=row_spec,
        compiler_params=_compiler_params(("parallel",)),
    )(x, wstack, bstack)


def _edge_feature_kernel(b1_ref, b2_ref, er_ref, ep_ref, w1a_ref, w2a_ref,
                         wsq_ref, wcat1_ref, bv_ref, a1_ref, a2_ref, bond_ref):
    """Fused lin_feature1/2 (TwoLayerLinear) + shared edge_cat applied three ways.

    edge_cat's Linear(2H->H) is K-fused: one [2*HP, HP] weight on cat(u, v)."""
    er = er_ref[...]
    ep = ep_ref[...]

    def edge_cat(u, v):
        uv = jnp.concatenate([u.astype(MATMUL_DTYPE), v.astype(MATMUL_DTYPE)], axis=1)
        h = _swish(_dot(uv, wcat1_ref[...]) + bv_ref[4:5, :])
        return _dot(h, wsq_ref[2]) + bv_ref[5:6, :]

    g1 = _swish(_dot(b1_ref[...], w1a_ref[...]) + bv_ref[0:1, :])
    g1 = _swish(_dot(g1, wsq_ref[0]) + bv_ref[1:2, :])
    g2 = _swish(_dot(b2_ref[...], w2a_ref[...]) + bv_ref[2:3, :])
    g2 = _swish(_dot(g2, wsq_ref[1]) + bv_ref[3:4, :])

    a1_ref[...] = edge_cat(g1 * er, g1 * ep)
    a2_ref[...] = edge_cat(g2 * er, g2 * ep)
    bond_ref[...] = edge_cat(er, ep)


def pallas_edge_features(ef, basis1, basis2, emb_r, emb_p, *, tile):
    rows, hp = emb_r.shape
    f1 = basis1.shape[1]
    f2 = basis2.shape[1]
    row_spec = pl.BlockSpec((tile, hp), lambda m: (m, 0))
    out = jax.ShapeDtypeStruct((rows, hp), jnp.float32)
    return pl.pallas_call(
        _edge_feature_kernel,
        out_shape=(out, out, out),
        grid=(rows // tile,),
        in_specs=[
            pl.BlockSpec((tile, f1), lambda m: (m, 0)),
            pl.BlockSpec((tile, f2), lambda m: (m, 0)),
            row_spec, row_spec,
            _full_spec(ef["w1a"]), _full_spec(ef["w2a"]),
            _full_spec(ef["wsq"]), _full_spec(ef["wcat1"]), _full_spec(ef["bv"]),
        ],
        out_specs=(row_spec, row_spec, row_spec),
        compiler_params=_compiler_params(("parallel",)),
    )(basis1, basis2, emb_r, emb_p, ef["w1a"], ef["w2a"], ef["wsq"],
      ef["wcat1"], ef["bv"])


def _edge_message_kernel(bond_ref, g1_ref, g2_ref, xj_ref, wk_ref, w2_ref,
                         bv_ref, aw_ref, ab_ref, m1_ref, m2_ref, *, num_valid):
    """Both EdgeGraphConv message MLPs + attention gates in one pass over edges.

    edge_lin_1 (cat(bond, geom) -> H) is K-fused into a single [2*HP, HP] matmul.
    Padded edges (row >= num_valid) are masked to zero in-kernel."""
    tile = bond_ref.shape[0]
    bond = bond_ref[...].astype(MATMUL_DTYPE)     # cast once; shared by both convs
    xj = xj_ref[...]
    row0 = pl.program_id(0) * tile
    rid = jax.lax.broadcasted_iota(jnp.int32, (tile, 1), 0) + row0
    valid = (rid < num_valid).astype(jnp.float32)

    def conv_msg(c, geom):
        bg = jnp.concatenate([bond, geom.astype(MATMUL_DTYPE)], axis=1)
        ew = _swish(_dot(bg, wk_ref[c]) + bv_ref[2 * c:2 * c + 1, :])
        ew = _dot(ew, w2_ref[c]) + bv_ref[2 * c + 1:2 * c + 2, :]
        m = ew * xj
        # attention logit: cross-lane reduce rides the XLU slot, kept in f32
        logit = (jnp.sum(m * aw_ref[c:c + 1, :], axis=1, keepdims=True)
                 + ab_ref[c:c + 1, 0:1])
        return m * jax.nn.sigmoid(logit) * valid

    m1_ref[...] = conv_msg(0, g1_ref[...])
    m2_ref[...] = conv_msg(1, g2_ref[...])


def pallas_edge_messages(bp, bond, geom1, geom2, xj, *, num_valid, tile):
    rows, hp = bond.shape
    row_spec = pl.BlockSpec((tile, hp), lambda m: (m, 0))
    out = jax.ShapeDtypeStruct((rows, hp), jnp.float32)
    return pl.pallas_call(
        functools.partial(_edge_message_kernel, num_valid=num_valid),
        out_shape=(out, out),
        grid=(rows // tile,),
        in_specs=[
            row_spec, row_spec, row_spec, row_spec,
            _full_spec(bp["msg_wk"]), _full_spec(bp["msg_w2"]),
            _full_spec(bp["msg_b"]), _full_spec(bp["attn_w"]),
            _full_spec(bp["attn_b"]),
        ],
        out_specs=(row_spec, row_spec),
        compiler_params=_compiler_params(("parallel",)),
    )(bond, geom1, geom2, xj, bp["msg_wk"], bp["msg_w2"], bp["msg_b"],
      bp["attn_w"], bp["attn_b"])


def _node_block_kernel(x_ref, a1_ref, a2_ref, wrr_ref, brr_ref, w12_ref, b12_ref,
                       wcat_ref, bcat_ref, wl_ref, bl_ref, o_ref, *, num_lins):
    """Fused lin_rel/lin_root (K-fused) + lin1/lin2 + lin_cat (K-fused) + lins loop."""
    x = x_ref[...]
    xb = x.astype(MATMUL_DTYPE)

    def branch(agg, c):
        ax = jnp.concatenate([agg.astype(MATMUL_DTYPE), xb], axis=1)
        conv = _dot(ax, wrr_ref[c]) + brr_ref[c:c + 1, :]
        return _swish(_dot(conv, w12_ref[c]) + b12_ref[c:c + 1, :])

    h1 = branch(a1_ref[...], 0)
    h2 = branch(a2_ref[...], 1)
    h12 = jnp.concatenate([h1.astype(MATMUL_DTYPE), h2.astype(MATMUL_DTYPE)], axis=1)
    h = _dot(h12, wcat_ref[...]) + bcat_ref[0:1, :]
    h = h + x
    # Reference: lins = [CustomLinear, Dropout] * num_output_layers, applied as
    #   for lin in lins: h = act(lin(h)) + h
    # Dropout is identity at eval, so the Dropout entry contributes act(h) + h.
    for li in range(num_lins):
        h = _swish(_dot(h, wl_ref[li]) + bl_ref[li:li + 1, :]) + h   # CustomLinear entry
        h = _swish(h) + h                                            # Dropout entry (eval)
    o_ref[...] = h


def pallas_node_block(bp, x, agg1, agg2, *, tile):
    rows, hp = x.shape
    num_lins = bp["lins_w"].shape[0]
    row_spec = pl.BlockSpec((tile, hp), lambda m: (m, 0))
    return pl.pallas_call(
        functools.partial(_node_block_kernel, num_lins=num_lins),
        out_shape=jax.ShapeDtypeStruct((rows, hp), jnp.float32),
        grid=(rows // tile,),
        in_specs=[
            row_spec, row_spec, row_spec,
            _full_spec(bp["relroot_wk"]), _full_spec(bp["relroot_b"]),
            _full_spec(bp["lin12_w"]), _full_spec(bp["lin12_b"]),
            _full_spec(bp["cat_wk"]), _full_spec(bp["cat_b"]),
            _full_spec(bp["lins_w"]), _full_spec(bp["lins_b"]),
        ],
        out_specs=row_spec,
        compiler_params=_compiler_params(("parallel",)),
    )(x, agg1, agg2, bp["relroot_wk"], bp["relroot_b"], bp["lin12_w"], bp["lin12_b"],
      bp["cat_wk"], bp["cat_b"], bp["lins_w"], bp["lins_b"])


def _graph_stats_kernel(onehT_ref, h_ref, s1_ref, s2_ref):
    """Row-tiled reduction: per-graph sum(x) and sum(x^2), resident f32 accumulators."""
    @pl.when(pl.program_id(0) == 0)
    def _():
        s1_ref[...] = jnp.zeros_like(s1_ref)
        s2_ref[...] = jnp.zeros_like(s2_ref)

    o = onehT_ref[...]
    h = h_ref[...]
    # GraphNorm statistics stay in f32 even though the rest of the MXU work is bf16.
    s1_ref[...] += jnp.dot(o, h, preferred_element_type=jnp.float32)
    s2_ref[...] += jnp.dot(o, h * h, preferred_element_type=jnp.float32)


def pallas_graph_stats(h, onehT, *, tile):
    rows, hp = h.shape
    g = onehT.shape[0]
    out = jax.ShapeDtypeStruct((g, hp), jnp.float32)
    return pl.pallas_call(
        _graph_stats_kernel,
        out_shape=(out, out),
        grid=(rows // tile,),
        in_specs=[
            pl.BlockSpec((g, tile), lambda m: (0, m)),
            pl.BlockSpec((tile, hp), lambda m: (m, 0)),
        ],
        out_specs=(
            pl.BlockSpec((g, hp), lambda m: (0, 0)),
            pl.BlockSpec((g, hp), lambda m: (0, 0)),
        ),
        compiler_params=_compiler_params(("arbitrary",)),
    )(onehT, h)


def graph_stats(h, onehT, *, tile):
    """Per-graph sum / sum-of-squares. Pallas reduction for large graphs; for tiny
    graphs (tile not a lane multiple) the whole thing is a sub-MB XLA matmul."""
    if tile % LANE == 0:
        return pallas_graph_stats(h, onehT, tile=tile)
    s1 = jnp.dot(onehT, h, preferred_element_type=jnp.float32)
    s2 = jnp.dot(onehT, h * h, preferred_element_type=jnp.float32)
    return s1, s2


def _norm_final_kernel(h_ref, b_ref, mean_ref, istd_ref, gw_ref, gb_ref, ms_ref,
                       wf_ref, bf_ref, o_ref):
    """GraphNorm normalize + affine fused with the block's `final` linear.

    Per-row mean/istd are looked up on-chip: one-hot built from the batch-id column
    (no [Np,HP] gathered mean/istd arrays in HBM)."""
    h = h_ref[...]
    tile = h.shape[0]
    gp = mean_ref.shape[0]
    gid = jax.lax.broadcasted_iota(jnp.int32, (tile, gp), 1)
    oneh = (gid == b_ref[...]).astype(jnp.float32)                  # [tile, GP]
    mean_row = jnp.dot(oneh, mean_ref[...], preferred_element_type=jnp.float32)
    istd_row = jnp.dot(oneh, istd_ref[...], preferred_element_type=jnp.float32)
    out = (h - mean_row * ms_ref[...]) * istd_row * gw_ref[...] + gb_ref[...]
    o_ref[...] = _dot(out, wf_ref[...]) + bf_ref[...]


def pallas_norm_final(bp, h, batch_col, mean_gp, istd_gp, *, tile):
    rows, hp = h.shape
    row_spec = pl.BlockSpec((tile, hp), lambda m: (m, 0))
    return pl.pallas_call(
        _norm_final_kernel,
        out_shape=jax.ShapeDtypeStruct((rows, hp), jnp.float32),
        grid=(rows // tile,),
        in_specs=[
            row_spec,
            pl.BlockSpec((tile, 1), lambda m: (m, 0)),
            _full_spec(mean_gp), _full_spec(istd_gp),
            _full_spec(bp["norm_w"]), _full_spec(bp["norm_b"]), _full_spec(bp["norm_ms"]),
            _full_spec(bp["final_w"]), _full_spec(bp["final_b"]),
        ],
        out_specs=row_spec,
        compiler_params=_compiler_params(("parallel",)),
    )(h, batch_col, mean_gp, istd_gp, bp["norm_w"], bp["norm_b"], bp["norm_ms"],
      bp["final_w"], bp["final_b"])


# ----------------------------------------------------------------------------
# JAX glue: geometric features (segment_min based neighbor selection, O(E))
# ----------------------------------------------------------------------------
def _scatter_argmin(vals, index, num_segments):
    num_e = vals.shape[0]
    seg_min = jax.ops.segment_min(vals, index, num_segments=num_segments)
    is_min = vals <= seg_min[index]
    cand = jnp.where(is_min, jnp.arange(num_e, dtype=jnp.int32), num_e)
    argmin = jax.ops.segment_min(cand, index, num_segments=num_segments)
    return jnp.where(argmin >= num_e, 0, argmin)   # empty segments -> 0 (torch post-fix)


def get_features(dist, vecs, i, j, num_nodes, cutoff):
    argmin0 = _scatter_argmin(dist, i, num_nodes)
    add = jnp.zeros_like(dist).at[argmin0].set(cutoff)
    argmin1 = _scatter_argmin(dist + add, i, num_nodes)
    n0 = j[argmin0]
    n1 = j[argmin1]

    argmin0_j = _scatter_argmin(dist, j, num_nodes)
    add_j = jnp.zeros_like(dist).at[argmin0_j].set(cutoff)
    argmin1_j = _scatter_argmin(dist + add_j, j, num_nodes)
    n0_j = i[argmin0_j]
    n1_j = i[argmin1_j]

    n0, n1 = n0[i], n1[i]
    n0_j, n1_j = n0_j[j], n1_j[j]

    mask_iref = n0 == j
    idx_iref = jnp.where(mask_iref, argmin1[i], argmin0[i])
    mask_jref = n0_j == i
    idx_jref = jnp.where(mask_jref, argmin1_j[j], argmin0_j[j])

    pos_ji = vecs
    pos_in0 = vecs[argmin0][i]
    pos_in1 = vecs[argmin1][i]
    pos_iref = vecs[idx_iref]
    pos_jref_j = vecs[idx_jref]

    a = jnp.sum(-pos_ji * pos_in0, axis=-1)
    b = jnp.linalg.norm(jnp.cross(-pos_ji, pos_in0), axis=-1)
    theta = jnp.arctan2(b, a)
    theta = jnp.where(theta < 0, theta + math.pi, theta)

    dist_ji = jnp.maximum(jnp.sqrt(jnp.sum(pos_ji ** 2, axis=-1)), 1e-12)
    plane1 = jnp.cross(-pos_ji, pos_in0)
    plane2 = jnp.cross(-pos_ji, pos_in1)
    a = jnp.sum(plane1 * plane2, axis=-1)
    b = jnp.sum(jnp.cross(plane1, plane2) * pos_ji, axis=-1) / dist_ji
    phi = jnp.arctan2(b, a)
    phi = jnp.where(phi < 0, phi + math.pi, phi)

    plane1 = jnp.cross(pos_ji, pos_jref_j)
    plane2 = jnp.cross(pos_ji, pos_iref)
    a = jnp.sum(plane1 * plane2, axis=-1)
    b = jnp.sum(jnp.cross(plane1, plane2) * pos_ji, axis=-1) / dist_ji
    tau = jnp.arctan2(b, a)
    tau = jnp.where(tau < 0, tau + math.pi, tau)
    return theta, phi, tau


# ----------------------------------------------------------------------------
# JAX glue: torsion_emb / angle_emb basis (num_radial=3, num_spherical=2)
# ----------------------------------------------------------------------------
_J1_ZEROS = np.array([4.493409457909064, 7.725251836937707, 10.904121659428899])
_J0_ZEROS = np.array([math.pi, 2 * math.pi, 3 * math.pi])


def _np_j1(x):
    return np.sin(x) / x ** 2 - np.cos(x) / x


def _np_j2(x):
    return (3.0 / x ** 2 - 1.0) * np.sin(x) / x - 3.0 * np.cos(x) / x ** 2


_N0 = 1.0 / np.sqrt(0.5 * _np_j1(_J0_ZEROS) ** 2)
_N1 = 1.0 / np.sqrt(0.5 * _np_j2(_J1_ZEROS) ** 2)
_C00 = 0.28209479177387814          # 1/(2 sqrt(pi))
_C10 = 0.4886025119029199           # sqrt(3/(4 pi))


def _bessel_rbf(xn):
    xn = jnp.maximum(xn, 1e-6)      # guard degenerate zero-length edges
    cols = []
    for k in range(3):
        z = _J0_ZEROS[k]
        cols.append(_N0[k] * jnp.sin(z * xn) / (z * xn))
    for k in range(3):
        z = _J1_ZEROS[k]
        cols.append(_N1[k] * (jnp.sin(z * xn) / (z * xn) ** 2 - jnp.cos(z * xn) / (z * xn)))
    return jnp.stack(cols, axis=1)


def torsion_emb_features(dist, theta, phi, cutoff):
    xn = dist / cutoff
    rbf = _bessel_rbf(xn)                                            # [E, 6]
    cbf = jnp.stack([jnp.full_like(theta, _C00),
                     _C10 * jnp.cos(theta),
                     -_C10 * jnp.sin(theta) * jnp.cos(phi),
                     -_C10 * jnp.sin(theta) * jnp.sin(phi)], axis=1)  # [E, 4]
    n, k = 2, 3
    return (rbf.reshape(-1, n, k, 1) * cbf.reshape(-1, n, 1, n)).reshape(-1, n * n * k)


def angle_emb_features(dist, tau, cutoff):
    xn = dist / cutoff
    rbf = _bessel_rbf(xn)                                            # [E, 6]
    cbf = jnp.stack([jnp.full_like(tau, _C00), _C10 * jnp.cos(tau)], axis=1)  # [E, 2]
    n, k = 2, 3
    return (rbf.reshape(-1, n, k) * cbf.reshape(-1, n, 1)).reshape(-1, n * k)


# ----------------------------------------------------------------------------
# Parameters (deterministic synthetic init, zero-padded to lane width HP, bf16 weights)
# ----------------------------------------------------------------------------
def _glorot(key, fan_in, fan_out):
    limit = math.sqrt(6.0 / (fan_in + fan_out))
    return jax.random.uniform(key, (fan_in, fan_out), jnp.float32, -limit, limit)


def _pad_mat(w, rows, cols):
    return jnp.pad(w, ((0, rows - w.shape[0]), (0, cols - w.shape[1])))


def _pad_vec(v, cols):
    return jnp.pad(v, (0, cols - v.shape[0]))


def init_params(key, H, num_layers, num_output_layers, nr, ns, out_channels):
    HP = _round_up(H, LANE)
    F1 = nr * ns * ns
    F2 = nr * ns

    keys = iter(jax.random.split(key, 4096))
    nk = lambda: next(keys)

    def wmat(fi, fo=None):
        fo = H if fo is None else fo
        return _pad_mat(_glorot(nk(), fi, fo), _round_up(fi, LANE), HP).astype(MATMUL_DTYPE)

    def wsplit2(fi_each, fo):
        # torch Linear(2*fi_each -> fo) on cat(u, v): laid out as [2*HP, HP] so the
        # in-kernel lane concat of the zero-padded u | v tiles feeds one K=2*HP matmul.
        w = _glorot(nk(), 2 * fi_each, fo)
        return jnp.concatenate([_pad_mat(w[:fi_each], HP, HP),
                                _pad_mat(w[fi_each:], HP, HP)], axis=0).astype(MATMUL_DTYPE)

    def zvec():
        return jnp.zeros((HP,), jnp.float32)

    edge_feat = {
        "w1a": wmat(F1), "w2a": wmat(F2),
        "wsq": jnp.stack([wmat(H), wmat(H), wmat(H)]),     # lf1.lin2, lf2.lin2, edge_cat[2]
        "wcat1": wsplit2(H, H),                            # edge_cat[0], K-fused
        "bv": jnp.stack([zvec() for _ in range(6)]),
    }

    blocks = []
    for _ in range(num_layers):
        def conv():
            return dict(
                we1=wsplit2(H, H), be1=zvec(),             # edge_lin_1 on cat(bond, geom)
                we2=wmat(H), be2=zvec(),                   # edge_lin_2
                wattn=_pad_vec(_glorot(nk(), H, 1)[:, 0], HP),
                battn=jnp.zeros((HP,), jnp.float32),
                wrel=_glorot(nk(), H, H), brel=zvec(),
                wroot=_glorot(nk(), H, H),
            )
        c1, c2 = conv(), conv()

        def relroot(c):
            return jnp.concatenate([_pad_mat(c["wrel"], HP, HP),
                                    _pad_mat(c["wroot"], HP, HP)], axis=0).astype(MATMUL_DTYPE)

        blocks.append({
            "lin_w": jnp.stack([wmat(H)]), "lin_b": jnp.stack([zvec()]),
            "msg_wk": jnp.stack([c1["we1"], c2["we1"]]),
            "msg_w2": jnp.stack([c1["we2"], c2["we2"]]),
            "msg_b": jnp.stack([c1["be1"], c1["be2"], c2["be1"], c2["be2"]]),
            "attn_w": jnp.stack([c1["wattn"], c2["wattn"]]),
            "attn_b": jnp.stack([c1["battn"], c2["battn"]]),
            "relroot_wk": jnp.stack([relroot(c1), relroot(c2)]),
            "relroot_b": jnp.stack([c1["brel"], c2["brel"]]),
            "lin12_w": jnp.stack([wmat(H), wmat(H)]),
            "lin12_b": jnp.stack([zvec(), zvec()]),
            "cat_wk": wsplit2(H, H),
            "cat_b": zvec().reshape(1, HP),
            "lins_w": jnp.stack([wmat(H) for _ in range(num_output_layers)]),
            "lins_b": jnp.stack([zvec() for _ in range(num_output_layers)]),
            "norm_w": _pad_vec(jnp.ones((H,), jnp.float32), HP).reshape(1, HP),
            "norm_b": jnp.zeros((1, HP), jnp.float32),
            "norm_ms": _pad_vec(jnp.ones((H,), jnp.float32), HP).reshape(1, HP),
            "final_w": wmat(H),
            "final_b": jnp.zeros((1, HP), jnp.float32),
        })

    head_w = [wmat(H) for _ in range(num_output_layers)]
    head_b = [zvec() for _ in range(num_output_layers)]
    head_w.append(jnp.zeros((HP, HP), MATMUL_DTYPE))       # lin_out: weight_initializer='zeros'
    head_b.append(zvec())

    return {
        "edge_emb": _pad_mat(jax.random.normal(nk(), (100, H), jnp.float32), 100, HP),
        "edge_feat": edge_feat,
        "blocks": blocks,
        "head_w": jnp.stack(head_w),
        "head_b": jnp.stack(head_b),
    }


# ----------------------------------------------------------------------------
# Forward
# ----------------------------------------------------------------------------
def comenet_forward(params, z, pos, batch, edge_index, edge_type_r, edge_type_p,
                    *, cutoff, num_graphs, out_channels):
    N, H = z.shape
    HP = params["edge_emb"].shape[1]
    F1P = params["edge_feat"]["w1a"].shape[0]
    F2P = params["edge_feat"]["w2a"].shape[0]
    L = params["head_w"].shape[0] - 1

    j, i = edge_index[0], edge_index[1]
    E = j.shape[0]
    vecs = pos[j] - pos[i]
    dist = jnp.sqrt(jnp.sum(vecs ** 2, axis=-1))
    theta, phi, tau = get_features(dist, vecs, i, j, N, cutoff)

    basis1 = torsion_emb_features(dist, theta, phi, cutoff)       # [E, 12]
    basis2 = angle_emb_features(dist, tau, cutoff)                # [E, 6]

    # ---- sort edges by target once: sorted segment_sum every layer ---------------
    perm = jnp.argsort(i)
    inv_perm = jnp.argsort(perm)
    i_s, j_s = i[perm], j[perm]
    basis1, basis2 = basis1[perm], basis2[perm]
    emb_r = params["edge_emb"][edge_type_r[perm]]                 # [E, HP]
    emb_p = params["edge_emb"][edge_type_p[perm]]

    # ---- tiles / row + lane padding (done once) -----------------------------------
    TILE_N = _pick_tile(N)
    TILE_E = _pick_tile(E)
    Np = _round_up(N, TILE_N)
    Ep = _round_up(E, TILE_E)
    G = num_graphs
    GP = _round_up(G, LANE)

    basis1 = jnp.pad(basis1, ((0, Ep - E), (0, F1P - basis1.shape[1])))
    basis2 = jnp.pad(basis2, ((0, Ep - E), (0, F2P - basis2.shape[1])))
    emb_r = jnp.pad(emb_r, ((0, Ep - E), (0, 0)))
    emb_p = jnp.pad(emb_p, ((0, Ep - E), (0, 0)))
    j_p = jnp.pad(j_s, (0, Ep - E))                               # padded edges gather node 0
    i_p = jnp.pad(i_s, (0, Ep - E), constant_values=N - 1)        # keeps sortedness; msgs masked

    x = jnp.pad(z, ((0, Np - N), (0, HP - H)))
    batch_p = jnp.pad(batch, (0, Np - N), constant_values=num_graphs)
    oneh = (batch_p[:, None] == jnp.arange(num_graphs)[None, :]).astype(jnp.float32)
    onehT = oneh.T                                                # [G, Np]
    counts = jnp.maximum(jnp.sum(oneh, axis=0), 1.0)
    cinv = (1.0 / counts)[:, None]                                # [G, 1]
    batch_col = batch_p.astype(jnp.int32)[:, None]                # [Np, 1] (pad id == G -> no match)

    # ---- per-edge attributes: one fused pass over edges ---------------------------
    edge_geom_attr1, edge_geom_attr2, bond = pallas_edge_features(
        params["edge_feat"], basis1, basis2, emb_r, emb_p, tile=TILE_E)
    # TODO(synk): the torch reference calls interaction_block with one argument too few
    # (edge_attr missing -> TypeError); we supply edge_attr = edge_cat([emb_r, emb_p])
    # as the bond attribute so EdgeGraphConv stays well-defined.
    edge_attr = bond

    residual = x
    for bp in params["blocks"]:
        # x = act(lin(x))
        x_pre = pallas_mlp_chain(x, bp["lin_w"], bp["lin_b"], acts=(True,), tile=TILE_N)

        # gather source-node features, fused message MLPs (padded edges masked in-kernel)
        x_j = x_pre[j_p]                                          # [Ep, HP]
        msg1, msg2 = pallas_edge_messages(bp, edge_attr, edge_geom_attr1,
                                          edge_geom_attr2, x_j, num_valid=E, tile=TILE_E)
        agg1 = jax.ops.segment_sum(msg1, i_p, num_segments=Np, indices_are_sorted=True)
        agg2 = jax.ops.segment_sum(msg2, i_p, num_segments=Np, indices_are_sorted=True)

        # lin_rel/lin_root + lin1/lin2 + lin_cat + residual lins, all fused + K-fused
        h = pallas_node_block(bp, x_pre, agg1, agg2, tile=TILE_N)

        # GraphNorm statistics (f32), then normalize + `final` linear fused
        s1, s2 = graph_stats(h, onehT, tile=TILE_N)               # [G, HP] each
        mean = s1 * cinv
        ms = bp["norm_ms"]
        var = s2 * cinv + (ms * ms - 2.0 * ms) * mean * mean      # E[(x - ms*mean)^2]
        istd = jax.lax.rsqrt(var + 1e-5)
        mean_gp = jnp.pad(mean, ((0, GP - G), (0, 0)))
        istd_gp = jnp.pad(istd, ((0, GP - G), (0, 0)))
        _x = pallas_norm_final(bp, h, batch_col, mean_gp, istd_gp, tile=TILE_N)

        # Matches the reference exactly (x and residual coincide after the first block
        # in the reference as well):
        x = _x + residual
        residual = residual + _x

    # output head: lins (with act) + lin_out, fused chain
    head_acts = (True,) * L + (False,)
    x = pallas_mlp_chain(x, params["head_w"], params["head_b"], acts=head_acts, tile=TILE_N)

    x_out = x[:N, :out_channels]
    edges = [edge_geom_attr1[inv_perm, :H], edge_geom_attr2[inv_perm, :H]]
    return x_out, edges


# ----------------------------------------------------------------------------
if __name__ == "__main__":
    H = 32
    num_layers = 2
    num_output_layers = 2
    num_radial, num_spherical = 3, 2
    cutoff = 8.0
    out_channels = 1
    nodes_per_graph, num_graphs = 6, 2
    N = nodes_per_graph * num_graphs

    key = jax.random.PRNGKey(0)
    kz, kp, ker, kep, kparam = jax.random.split(key, 5)
    z = jax.random.normal(kz, (N, H), jnp.float32)
    pos = 2.0 * jax.random.normal(kp, (N, 3), jnp.float32)
    batch = jnp.repeat(jnp.arange(num_graphs, dtype=jnp.int32), nodes_per_graph)

    src, dst = [], []
    for g in range(num_graphs):
        off = g * nodes_per_graph
        for a in range(nodes_per_graph):
            for b in range(nodes_per_graph):
                if a != b:
                    src.append(off + a)
                    dst.append(off + b)
    edge_index = jnp.array([src, dst], dtype=jnp.int32)   # row 0 = j (source), row 1 = i (target)
    E = edge_index.shape[1]
    edge_type_r = jax.random.randint(ker, (E,), 0, 100)
    edge_type_p = jax.random.randint(kep, (E,), 0, 100)

    params = init_params(kparam, H, num_layers, num_output_layers,
                         num_radial, num_spherical, out_channels)

    fwd = jax.jit(functools.partial(comenet_forward, cutoff=cutoff,
                                    num_graphs=num_graphs, out_channels=out_channels))
    x_out, edges = fwd(params, z, pos, batch, edge_index, edge_type_r, edge_type_p)
    jax.block_until_ready(x_out)
    jax.block_until_ready(edges)

    assert x_out.shape == (N, out_channels)
    assert edges[0].shape == (E, H) and edges[1].shape == (E, H)
    assert not bool(jnp.isnan(edges[0]).any()) and not bool(jnp.isnan(edges[1]).any())
    assert not bool(jnp.isnan(x_out).any())
    print("KERNEL_OK")
</pallas_src>

<mosaic_0001>
module attributes {stable_mosaic.version = 11 : i64} {
  func.func @_edge_message_kernel(%arg0: i32, %arg1: memref<16x128xf32, #tpu.memory_space<vmem>>, %arg2: memref<16x128xf32, #tpu.memory_space<vmem>>, %arg3: memref<16x128xf32, #tpu.memory_space<vmem>>, %arg4: memref<16x128xf32, #tpu.memory_space<vmem>>, %arg5: memref<2x256x128xbf16, #tpu.memory_space<vmem>>, %arg6: memref<2x128x128xbf16, #tpu.memory_space<vmem>>, %arg7: memref<4x128xf32, #tpu.memory_space<vmem>>, %arg8: memref<2x128xf32, #tpu.memory_space<vmem>>, %arg9: memref<2x128xf32, #tpu.memory_space<vmem>>, %arg10: memref<16x128xf32, #tpu.memory_space<vmem>>, %arg11: memref<16x128xf32, #tpu.memory_space<vmem>>) attributes {dimension_semantics = [#tpu.dimension_semantics<parallel>], iteration_bounds = array<i64: 4>, scalar_prefetch = 0 : i64, scratch_operands = 0 : i64, tpu.core_type = #tpu.core_type<tc>, window_params = [{transform_indices = @transform_0, window_bounds = array<i64: 16, 128>}, {transform_indices = @transform_1, window_bounds = array<i64: 16, 128>}, {transform_indices = @transform_2, window_bounds = array<i64: 16, 128>}, {transform_indices = @transform_3, window_bounds = array<i64: 16, 128>}, {pipeline_mode = #tpu.pipeline_mode<synchronous>, transform_indices = @transform_4, window_bounds = array<i64: 2, 256, 128>}, {pipeline_mode = #tpu.pipeline_mode<synchronous>, transform_indices = @transform_5, window_bounds = array<i64: 2, 128, 128>}, {pipeline_mode = #tpu.pipeline_mode<synchronous>, transform_indices = @transform_6, window_bounds = array<i64: 4, 128>}, {pipeline_mode = #tpu.pipeline_mode<synchronous>, transform_indices = @transform_7, window_bounds = array<i64: 2, 128>}, {pipeline_mode = #tpu.pipeline_mode<synchronous>, transform_indices = @transform_8, window_bounds = array<i64: 2, 128>}, {transform_indices = @transform_9, window_bounds = array<i64: 16, 128>}, {transform_indices = @transform_10, window_bounds = array<i64: 16, 128>}]} {
    %c0 = arith.constant 0 : index
    %c0_0 = arith.constant 0 : index
    %0 = vector.load %arg1[%c0, %c0_0] : memref<16x128xf32, #tpu.memory_space<vmem>>, vector<16x128xf32>
    %1 = arith.truncf %0 : vector<16x128xf32> to vector<16x128xbf16>
    %c0_1 = arith.constant 0 : index
    %c0_2 = arith.constant 0 : index
    %2 = vector.load %arg4[%c0_1, %c0_2] : memref<16x128xf32, #tpu.memory_space<vmem>>, vector<16x128xf32>
    %c16_i32 = arith.constant 16 : i32
    %3 = arith.muli %arg0, %c16_i32 : i32
    %4 = tpu.iota {dimensions = array<i32: 0>} : vector<16x1xi32>
    %5 = vector.broadcast %3 : i32 to vector<16x1xi32>
    %6 = arith.addi %4, %5 : vector<16x1xi32>
    %c60_i32 = arith.constant 60 : i32
    %7 = vector.broadcast %c60_i32 : i32 to vector<16x1xi32>
    %8 = arith.cmpi slt, %6, %7 : vector<16x1xi32>
    %9 = arith.extui %8 : vector<16x1xi1> to vector<16x1xi32>
    %10 = arith.sitofp %9 : vector<16x1xi32> to vector<16x1xf32>
    %c0_3 = arith.constant 0 : index
    %c0_4 = arith.constant 0 : index
    %11 = vector.load %arg2[%c0_3, %c0_4] : memref<16x128xf32, #tpu.memory_space<vmem>>, vector<16x128xf32>
    %12 = arith.truncf %11 : vector<16x128xf32> to vector<16x128xbf16>
    %13 = tpu.concatenate %1, %12 in 1 : vector<16x128xbf16>, vector<16x128xbf16> -> vector<16x256xbf16>
    %c0_5 = arith.constant 0 : index
    %c0_6 = arith.constant 0 : index
    %c0_7 = arith.constant 0 : index
    %14 = vector.load %arg5[%c0_5, %c0_6, %c0_7] : memref<2x256x128xbf16, #tpu.memory_space<vmem>>, vector<1x256x128xbf16>
    %15 = vector.shape_cast %14 : vector<1x256x128xbf16> to vector<256x128xbf16>
    %cst = arith.constant dense<0.000000e+00> : vector<16x128xf32>
    %16 = tpu.matmul %13, %15, %cst {dimension_numbers = #tpu.dot_dimension_numbers<[1], [0], [0], [1], [0, 0, 1, 1], [], []>} : vector<16x256xbf16>, vector<256x128xbf16>, vector<16x128xf32> -> vector<16x128xf32>
    %c0_8 = arith.constant 0 : index
    %c0_9 = arith.constant 0 : index
    %17 = vector.load %arg7[%c0_8, %c0_9] : memref<4x128xf32, #tpu.memory_space<vmem>>, vector<1x128xf32>
    %18 = vector.broadcast %17 : vector<1x128xf32> to vector<16x128xf32>
    %19 = arith.addf %16, %18 : vector<16x128xf32>
    %20 = arith.negf %19 : vector<16x128xf32>
    %21 = math.exp %20 : vector<16x128xf32>
    %cst_10 = arith.constant 1.000000e+00 : f32
    %22 = vector.broadcast %cst_10 : f32 to vector<16x128xf32>
    %23 = arith.addf %22, %21 : vector<16x128xf32>
    %24 = arith.divf %22, %23 : vector<16x128xf32>
    %25 = arith.mulf %19, %24 : vector<16x128xf32>
    %c0_11 = arith.constant 0 : index
    %c0_12 = arith.constant 0 : index
    %c0_13 = arith.constant 0 : index
    %26 = vector.load %arg6[%c0_11, %c0_12, %c0_13] : memref<2x128x128xbf16, #tpu.memory_space<vmem>>, vector<1x128x128xbf16>
    %27 = vector.shape_cast %26 : vector<1x128x128xbf16> to vector<128x128xbf16>
    %28 = arith.truncf %25 : vector<16x128xf32> to vector<16x128xbf16>
    %cst_14 = arith.constant dense<0.000000e+00> : vector<16x128xf32>
    %29 = tpu.matmul %28, %27, %cst_14 {dimension_numbers = #tpu.dot_dimension_numbers<[1], [0], [0], [1], [0, 0, 1, 1], [], []>} : vector<16x128xbf16>, vector<128x128xbf16>, vector<16x128xf32> -> vector<16x128xf32>
    %c1 = arith.constant 1 : index
    %c0_15 = arith.constant 0 : index
    %30 = vector.load %arg7[%c1, %c0_15] : memref<4x128xf32, #tpu.memory_space<vmem>>, vector<1x128xf32>
    %31 = vector.broadcast %30 : vector<1x128xf32> to vector<16x128xf32>
    %32 = arith.addf %29, %31 : vector<16x128xf32>
    %33 = arith.mulf %32, %2 : vector<16x128xf32>
    %c0_16 = arith.constant 0 : index
    %c0_17 = arith.constant 0 : index
    %34 = vector.load %arg8[%c0_16, %c0_17] : memref<2x128xf32, #tpu.memory_space<vmem>>, vector<1x128xf32>
    %35 = vector.broadcast %34 : vector<1x128xf32> to vector<16x128xf32>
    %36 = arith.mulf %33, %35 : vector<16x128xf32>
    %cst_18 = arith.constant dense<0.000000e+00> : vector<16xf32>
    %37 = vector.multi_reduction <add>, %36, %cst_18 [1] : vector<16x128xf32> to vector<16xf32>
    %38 = vector.shape_cast %37 : vector<16xf32> to vector<16x1xf32>
    %c0_19 = arith.constant 0 : index
    %c0_20 = arith.constant 0 : index
    %39 = vector.load %arg9[%c0_19, %c0_20] : memref<2x128xf32, #tpu.memory_space<vmem>>, vector<1x1xf32>
    %40 = vector.broadcast %39 : vector<1x1xf32> to vector<16x1xf32>
    %41 = arith.addf %38, %40 : vector<16x1xf32>
    %42 = arith.negf %41 : vector<16x1xf32>
    %43 = math.exp %42 : vector<16x1xf32>
    %cst_21 = arith.constant 1.000000e+00 : f32
    %44 = vector.broadcast %cst_21 : f32 to vector<16x1xf32>
    %45 = arith.addf %44, %43 : vector<16x1xf32>
    %46 = arith.divf %44, %45 : vector<16x1xf32>
    %47 = vector.broadcast %46 : vector<16x1xf32> to vector<16x128xf32>
    %48 = arith.mulf %33, %47 : vector<16x128xf32>
    %49 = vector.broadcast %10 : vector<16x1xf32> to vector<16x128xf32>
    %50 = arith.mulf %48, %49 : vector<16x128xf32>
    %c0_22 = arith.constant 0 : index
    %c0_23 = arith.constant 0 : index
    %51 = vector.load %arg10[%c0_22, %c0_23] : memref<16x128xf32, #tpu.memory_space<vmem>>, vector<16x128xf32>
    tpu.vector_store %arg10[%c0_22, %c0_23], %50 {strides = array<i32>} : memref<16x128xf32, #tpu.memory_space<vmem>>, vector<16x128xf32>,
    %c0_24 = arith.constant 0 : index
    %c0_25 = arith.constant 0 : index
    %52 = vector.load %arg3[%c0_24, %c0_25] : memref<16x128xf32, #tpu.memory_space<vmem>>, vector<16x128xf32>
    %53 = arith.truncf %52 : vector<16x128xf32> to vector<16x128xbf16>
    %54 = tpu.concatenate %1, %53 in 1 : vector<16x128xbf16>, vector<16x128xbf16> -> vector<16x256xbf16>
    %c1_26 = arith.constant 1 : index
    %c0_27 = arith.constant 0 : index
    %c0_28 = arith.constant 0 : index
    %55 = vector.load %arg5[%c1_26, %c0_27, %c0_28] : memref<2x256x128xbf16, #tpu.memory_space<vmem>>, vector<1x256x128xbf16>
    %56 = vector.shape_cast %55 : vector<1x256x128xbf16> to vector<256x128xbf16>
    %cst_29 = arith.constant dense<0.000000e+00> : vector<16x128xf32>
    %57 = tpu.matmul %54, %56, %cst_29 {dimension_numbers = #tpu.dot_dimension_numbers<[1], [0], [0], [1], [0, 0, 1, 1], [], []>} : vector<16x256xbf16>, vector<256x128xbf16>, vector<16x128xf32> -> vector<16x128xf32>
    %c2 = arith.constant 2 : index
    %c0_30 = arith.constant 0 : index
    %58 = vector.load %arg7[%c2, %c0_30] : memref<4x128xf32, #tpu.memory_space<vmem>>, vector<1x128xf32>
    %59 = vector.broadcast %58 : vector<1x128xf32> to vector<16x128xf32>
    %60 = arith.addf %57, %59 : vector<16x128xf32>
    %61 = arith.negf %60 : vector<16x128xf32>
    %62 = math.exp %61 : vector<16x128xf32>
    %cst_31 = arith.constant 1.000000e+00 : f32
    %63 = vector.broadcast %cst_31 : f32 to vector<16x128xf32>
    %64 = arith.addf %63, %62 : vector<16x128xf32>
    %65 = arith.divf %63, %64 : vector<16x128xf32>
    %66 = arith.mulf %60, %65 : vector<16x128xf32>
    %c1_32 = arith.constant 1 : index
    %c0_33 = arith.constant 0 : index
    %c0_34 = arith.constant 0 : index
    %67 = vector.load %arg6[%c1_32, %c0_33, %c0_34] : memref<2x128x128xbf16, #tpu.memory_space<vmem>>, vector<1x128x128xbf16>
    %68 = vector.shape_cast %67 : vector<1x128x128xbf16> to vector<128x128xbf16>
    %69 = arith.truncf %66 : vector<16x128xf32> to vector<16x128xbf16>
    %cst_35 = arith.constant dense<0.000000e+00> : vector<16x128xf32>
    %70 = tpu.matmul %69, %68, %cst_35 {dimension_numbers = #tpu.dot_dimension_numbers<[1], [0], [0], [1], [0, 0, 1, 1], [], []>} : vector<16x128xbf16>, vector<128x128xbf16>, vector<16x128xf32> -> vector<16x128xf32>
    %c3 = arith.constant 3 : index
    %c0_36 = arith.constant 0 : index
    %71 = vector.load %arg7[%c3, %c0_36] : memref<4x128xf32, #tpu.memory_space<vmem>>, vector<1x128xf32>
    %72 = vector.broadcast %71 : vector<1x128xf32> to vector<16x128xf32>
    %73 = arith.addf %70, %72 : vector<16x128xf32>
    %74 = arith.mulf %73, %2 : vector<16x128xf32>
    %c1_37 = arith.constant 1 : index
    %c0_38 = arith.constant 0 : index
    %75 = vector.load %arg8[%c1_37, %c0_38] : memref<2x128xf32, #tpu.memory_space<vmem>>, vector<1x128xf32>
    %76 = vector.broadcast %75 : vector<1x128xf32> to vector<16x128xf32>
    %77 = arith.mulf %74, %76 : vector<16x128xf32>
    %cst_39 = arith.constant dense<0.000000e+00> : vector<16xf32>
    %78 = vector.multi_reduction <add>, %77, %cst_39 [1] : vector<16x128xf32> to vector<16xf32>
    %79 = vector.shape_cast %78 : vector<16xf32> to vector<16x1xf32>
    %c1_40 = arith.constant 1 : index
    %c0_41 = arith.constant 0 : index
    %80 = vector.load %arg9[%c1_40, %c0_41] : memref<2x128xf32, #tpu.memory_space<vmem>>, vector<1x1xf32>
    %81 = vector.broadcast %80 : vector<1x1xf32> to vector<16x1xf32>
    %82 = arith.addf %79, %81 : vector<16x1xf32>
    %83 = arith.negf %82 : vector<16x1xf32>
    %84 = math.exp %83 : vector<16x1xf32>
    %cst_42 = arith.constant 1.000000e+00 : f32
    %85 = vector.broadcast %cst_42 : f32 to vector<16x1xf32>
    %86 = arith.addf %85, %84 : vector<16x1xf32>
    %87 = arith.divf %85, %86 : vector<16x1xf32>
    %88 = vector.broadcast %87 : vector<16x1xf32> to vector<16x128xf32>
    %89 = arith.mulf %74, %88 : vector<16x128xf32>
    %90 = vector.broadcast %10 : vector<16x1xf32> to vector<16x128xf32>
    %91 = arith.mulf %89, %90 : vector<16x128xf32>
    %c0_43 = arith.constant 0 : index
    %c0_44 = arith.constant 0 : index
    %92 = vector.load %arg11[%c0_43, %c0_44] : memref<16x128xf32, #tpu.memory_space<vmem>>, vector<16x128xf32>
    tpu.vector_store %arg11[%c0_43, %c0_44], %91 {strides = array<i32>} : memref<16x128xf32, #tpu.memory_space<vmem>>, vector<16x128xf32>,
    return
  }
  func.func @transform_0(%arg0: i32) -> (i32, i32) {
    %c0_i32 = arith.constant 0 : i32
    %c0_i32_0 = arith.constant 0 : i32
    return %arg0, %c0_i32 : i32, i32
  }
  func.func @transform_1(%arg0: i32) -> (i32, i32) {
    %c0_i32 = arith.constant 0 : i32
    %c0_i32_0 = arith.constant 0 : i32
    return %arg0, %c0_i32 : i32, i32
  }
  func.func @transform_2(%arg0: i32) -> (i32, i32) {
    %c0_i32 = arith.constant 0 : i32
    %c0_i32_0 = arith.constant 0 : i32
    return %arg0, %c0_i32 : i32, i32
  }
  func.func @transform_3(%arg0: i32) -> (i32, i32) {
    %c0_i32 = arith.constant 0 : i32
    %c0_i32_0 = arith.constant 0 : i32
    return %arg0, %c0_i32 : i32, i32
  }
  func.func @transform_4(%arg0: i32) -> (i32, i32, i32) {
    %c0_i32 = arith.constant 0 : i32
    %c0_i32_0 = arith.constant 0 : i32
    %c0_i32_1 = arith.constant 0 : i32
    %c0_i32_2 = arith.constant 0 : i32
    return %c0_i32, %c0_i32_0, %c0_i32_1 : i32, i32, i32
  }
  func.func @transform_5(%arg0: i32) -> (i32, i32, i32) {
    %c0_i32 = arith.constant 0 : i32
    %c0_i32_0 = arith.constant 0 : i32
    %c0_i32_1 = arith.constant 0 : i32
    %c0_i32_2 = arith.constant 0 : i32
    return %c0_i32, %c0_i32_0, %c0_i32_1 : i32, i32, i32
  }
  func.func @transform_6(%arg0: i32) -> (i32, i32) {
    %c0_i32 = arith.constant 0 : i32
    %c0_i32_0 = arith.constant 0 : i32
    %c0_i32_1 = arith.constant 0 : i32
    return %c0_i32, %c0_i32_0 : i32, i32
  }
  func.func @transform_7(%arg0: i32) -> (i32, i32) {
    %c0_i32 = arith.constant 0 : i32
    %c0_i32_0 = arith.constant 0 : i32
    %c0_i32_1 = arith.constant 0 : i32
    return %c0_i32, %c0_i32_0 : i32, i32
  }
  func.func @transform_8(%arg0: i32) -> (i32, i32) {
    %c0_i32 = arith.constant 0 : i32
    %c0_i32_0 = arith.constant 0 : i32
    %c0_i32_1 = arith.constant 0 : i32
    return %c0_i32, %c0_i32_0 : i32, i32
  }
  func.func @transform_9(%arg0: i32) -> (i32, i32) {
    %c0_i32 = arith.constant 0 : i32
    %c0_i32_0 = arith.constant 0 : i32
    return %arg0, %c0_i32 : i32, i32
  }
  func.func @transform_10(%arg0: i32) -> (i32, i32) {
    %c0_i32 = arith.constant 0 : i32
    %c0_i32_0 = arith.constant 0 : i32
    return %arg0, %c0_i32 : i32, i32
  }
}

module attributes {stable_mosaic.version = 11 : i64} {
  func.func @_mlp_chain_kernel(%arg0: i32, %arg1: memref<8x128xf32, #tpu.memory_space<vmem>>, %arg2: memref<1x128x128xbf16, #tpu.memory_space<vmem>>, %arg3: memref<1x128xf32, #tpu.memory_space<vmem>>, %arg4: memref<8x128xf32, #tpu.memory_space<vmem>>) attributes {dimension_semantics = [#tpu.dimension_semantics<parallel>], iteration_bounds = array<i64: 2>, scalar_prefetch = 0 : i64, scratch_operands = 0 : i64, tpu.core_type = #tpu.core_type<tc>, window_params = [{transform_indices = @transform_0, window_bounds = array<i64: 8, 128>}, {pipeline_mode = #tpu.pipeline_mode<synchronous>, transform_indices = @transform_1, window_bounds = array<i64: 1, 128, 128>}, {pipeline_mode = #tpu.pipeline_mode<synchronous>, transform_indices = @transform_2, window_bounds = array<i64: 1, 128>}, {transform_indices = @transform_3, window_bounds = array<i64: 8, 128>}]} {
    %c0 = arith.constant 0 : index
    %c0_0 = arith.constant 0 : index
    %0 = vector.load %arg1[%c0, %c0_0] : memref<8x128xf32, #tpu.memory_space<vmem>>, vector<8x128xf32>
    %c0_1 = arith.constant 0 : index
    %c0_2 = arith.constant 0 : index
    %c0_3 = arith.constant 0 : index
    %1 = vector.load %arg2[%c0_1, %c0_2, %c0_3] : memref<1x128x128xbf16, #tpu.memory_space<vmem>>, vector<1x128x128xbf16>
    %2 = vector.shape_cast %1 : vector<1x128x128xbf16> to vector<128x128xbf16>
    %3 = arith.truncf %0 : vector<8x128xf32> to vector<8x128xbf16>
    %cst = arith.constant dense<0.000000e+00> : vector<8x128xf32>
    %4 = tpu.matmul %3, %2, %cst {dimension_numbers = #tpu.dot_dimension_numbers<[1], [0], [0], [1], [0, 0, 1, 1], [], []>} : vector<8x128xbf16>, vector<128x128xbf16>, vector<8x128xf32> -> vector<8x128xf32>
    %c0_4 = arith.constant 0 : index
    %c0_5 = arith.constant 0 : index
    %5 = vector.load %arg3[%c0_4, %c0_5] : memref<1x128xf32, #tpu.memory_space<vmem>>, vector<1x128xf32>
    %6 = vector.broadcast %5 : vector<1x128xf32> to vector<8x128xf32>
    %7 = arith.addf %4, %6 : vector<8x128xf32>
    %8 = arith.negf %7 : vector<8x128xf32>
    %9 = math.exp %8 : vector<8x128xf32>
    %cst_6 = arith.constant 1.000000e+00 : f32
    %10 = vector.broadcast %cst_6 : f32 to vector<8x128xf32>
    %11 = arith.addf %10, %9 : vector<8x128xf32>
    %12 = arith.divf %10, %11 : vector<8x128xf32>
    %13 = arith.mulf %7, %12 : vector<8x128xf32>
    %c0_7 = arith.constant 0 : index
    %c0_8 = arith.constant 0 : index
    %14 = vector.load %arg4[%c0_7, %c0_8] : memref<8x128xf32, #tpu.memory_space<vmem>>, vector<8x128xf32>
    tpu.vector_store %arg4[%c0_7, %c0_8], %13 {strides = array<i32>} : memref<8x128xf32, #tpu.memory_space<vmem>>, vector<8x128xf32>,
    return
  }
  func.func @transform_0(%arg0: i32) -> (i32, i32) {
    %c0_i32 = arith.constant 0 : i32
    %c0_i32_0 = arith.constant 0 : i32
    return %arg0, %c0_i32 : i32, i32
  }
  func.func @transform_1(%arg0: i32) -> (i32, i32, i32) {
    %c0_i32 = arith.constant 0 : i32
    %c0_i32_0 = arith.constant 0 : i32
    %c0_i32_1 = arith.constant 0 : i32
    %c0_i32_2 = arith.constant 0 : i32
    return %c0_i32, %c0_i32_0, %c0_i32_1 : i32, i32, i32
  }
  func.func @transform_2(%arg0: i32) -> (i32, i32) {
    %c0_i32 = arith.constant 0 : i32
    %c0_i32_0 = arith.constant 0 : i32
    %c0_i32_1 = arith.constant 0 : i32
    return %c0_i32, %c0_i32_0 : i32, i32
  }
  func.func @transform_3(%arg0: i32) -> (i32, i32) {
    %c0_i32 = arith.constant 0 : i32
    %c0_i32_0 = arith.constant 0 : i32
    return %arg0, %c0_i32 : i32, i32
  }
}

module attributes {stable_mosaic.version = 11 : i64} {
  func.func @_edge_feature_kernel(%arg0: i32, %arg1: memref<16x128xf32, #tpu.memory_space<vmem>>, %arg2: memref<16x128xf32, #tpu.memory_space<vmem>>, %arg3: memref<16x128xf32, #tpu.memory_space<vmem>>, %arg4: memref<16x128xf32, #tpu.memory_space<vmem>>, %arg5: memref<128x128xbf16, #tpu.memory_space<vmem>>, %arg6: memref<128x128xbf16, #tpu.memory_space<vmem>>, %arg7: memref<3x128x128xbf16, #tpu.memory_space<vmem>>, %arg8: memref<256x128xbf16, #tpu.memory_space<vmem>>, %arg9: memref<6x128xf32, #tpu.memory_space<vmem>>, %arg10: memref<16x128xf32, #tpu.memory_space<vmem>>, %arg11: memref<16x128xf32, #tpu.memory_space<vmem>>, %arg12: memref<16x128xf32, #tpu.memory_space<vmem>>) attributes {dimension_semantics = [#tpu.dimension_semantics<parallel>], iteration_bounds = array<i64: 4>, scalar_prefetch = 0 : i64, scratch_operands = 0 : i64, tpu.core_type = #tpu.core_type<tc>, window_params = [{transform_indices = @transform_0, window_bounds = array<i64: 16, 128>}, {transform_indices = @transform_1, window_bounds = array<i64: 16, 128>}, {transform_indices = @transform_2, window_bounds = array<i64: 16, 128>}, {transform_indices = @transform_3, window_bounds = array<i64: 16, 128>}, {pipeline_mode = #tpu.pipeline_mode<synchronous>, transform_indices = @transform_4, window_bounds = array<i64: 128, 128>}, {pipeline_mode = #tpu.pipeline_mode<synchronous>, transform_indices = @transform_5, window_bounds = array<i64: 128, 128>}, {pipeline_mode = #tpu.pipeline_mode<synchronous>, transform_indices = @transform_6, window_bounds = array<i64: 3, 128, 128>}, {pipeline_mode = #tpu.pipeline_mode<synchronous>, transform_indices = @transform_7, window_bounds = array<i64: 256, 128>}, {pipeline_mode = #tpu.pipeline_mode<synchronous>, transform_indices = @transform_8, window_bounds = array<i64: 6, 128>}, {transform_indices = @transform_9, window_bounds = array<i64: 16, 128>}, {transform_indices = @transform_10, window_bounds = array<i64: 16, 128>}, {transform_indices = @transform_11, window_bounds = array<i64: 16, 128>}]} {
    %c0 = arith.constant 0 : index
    %c0_0 = arith.constant 0 : index
    %0 = vector.load %arg3[%c0, %c0_0] : memref<16x128xf32, #tpu.memory_space<vmem>>, vector<16x128xf32>
    %c0_1 = arith.constant 0 : index
    %c0_2 = arith.constant 0 : index
    %1 = vector.load %arg4[%c0_1, %c0_2] : memref<16x128xf32, #tpu.memory_space<vmem>>, vector<16x128xf32>
    %c0_3 = arith.constant 0 : index
    %c0_4 = arith.constant 0 : index
    %2 = vector.load %arg1[%c0_3, %c0_4] : memref<16x128xf32, #tpu.memory_space<vmem>>, vector<16x128xf32>
    %c0_5 = arith.constant 0 : index
    %c0_6 = arith.constant 0 : index
    %3 = vector.load %arg5[%c0_5, %c0_6] : memref<128x128xbf16, #tpu.memory_space<vmem>>, vector<128x128xbf16>
    %4 = arith.truncf %2 : vector<16x128xf32> to vector<16x128xbf16>
    %cst = arith.constant dense<0.000000e+00> : vector<16x128xf32>
    %5 = tpu.matmul %4, %3, %cst {dimension_numbers = #tpu.dot_dimension_numbers<[1], [0], [0], [1], [0, 0, 1, 1], [], []>} : vector<16x128xbf16>, vector<128x128xbf16>, vector<16x128xf32> -> vector<16x128xf32>
    %c0_7 = arith.constant 0 : index
    %c0_8 = arith.constant 0 : index
    %6 = vector.load %arg9[%c0_7, %c0_8] : memref<6x128xf32, #tpu.memory_space<vmem>>, vector<1x128xf32>
    %7 = vector.broadcast %6 : vector<1x128xf32> to vector<16x128xf32>
    %8 = arith.addf %5, %7 : vector<16x128xf32>
    %9 = arith.negf %8 : vector<16x128xf32>
    %10 = math.exp %9 : vector<16x128xf32>
    %cst_9 = arith.constant 1.000000e+00 : f32
    %11 = vector.broadcast %cst_9 : f32 to vector<16x128xf32>
    %12 = arith.addf %11, %10 : vector<16x128xf32>
    %13 = arith.divf %11, %12 : vector<16x128xf32>
    %14 = arith.mulf %8, %13 : vector<16x128xf32>
    %c0_10 = arith.constant 0 : index
    %c0_11 = arith.constant 0 : index
    %c0_12 = arith.constant 0 : index
    %15 = vector.load %arg7[%c0_10, %c0_11, %c0_12] : memref<3x128x128xbf16, #tpu.memory_space<vmem>>, vector<1x128x128xbf16>
    %16 = vector.shape_cast %15 : vector<1x128x128xbf16> to vector<128x128xbf16>
    %17 = arith.truncf %14 : vector<16x128xf32> to vector<16x128xbf16>
    %cst_13 = arith.constant dense<0.000000e+00> : vector<16x128xf32>
    %18 = tpu.matmul %17, %16, %cst_13 {dimension_numbers = #tpu.dot_dimension_numbers<[1], [0], [0], [1], [0, 0, 1, 1], [], []>} : vector<16x128xbf16>, vector<128x128xbf16>, vector<16x128xf32> -> vector<16x128xf32>
    %c1 = arith.constant 1 : index
    %c0_14 = arith.constant 0 : index
    %19 = vector.load %arg9[%c1, %c0_14] : memref<6x128xf32, #tpu.memory_space<vmem>>, vector<1x128xf32>
    %20 = vector.broadcast %19 : vector<1x128xf32> to vector<16x128xf32>
    %21 = arith.addf %18, %20 : vector<16x128xf32>
    %22 = arith.negf %21 : vector<16x128xf32>
    %23 = math.exp %22 : vector<16x128xf32>
    %cst_15 = arith.constant 1.000000e+00 : f32
    %24 = vector.broadcast %cst_15 : f32 to vector<16x128xf32>
    %25 = arith.addf %24, %23 : vector<16x128xf32>
    %26 = arith.divf %24, %25 : vector<16x128xf32>
    %27 = arith.mulf %21, %26 : vector<16x128xf32>
    %c0_16 = arith.constant 0 : index
    %c0_17 = arith.constant 0 : index
    %28 = vector.load %arg2[%c0_16, %c0_17] : memref<16x128xf32, #tpu.memory_space<vmem>>, vector<16x128xf32>
    %c0_18 = arith.constant 0 : index
    %c0_19 = arith.constant 0 : index
    %29 = vector.load %arg6[%c0_18, %c0_19] : memref<128x128xbf16, #tpu.memory_space<vmem>>, vector<128x128xbf16>
    %30 = arith.truncf %28 : vector<16x128xf32> to vector<16x128xbf16>
    %cst_20 = arith.constant dense<0.000000e+00> : vector<16x128xf32>
    %31 = tpu.matmul %30, %29, %cst_20 {dimension_numbers = #tpu.dot_dimension_numbers<[1], [0], [0], [1], [0, 0, 1, 1], [], []>} : vector<16x128xbf16>, vector<128x128xbf16>, vector<16x128xf32> -> vector<16x128xf32>
    %c2 = arith.constant 2 : index
    %c0_21 = arith.constant 0 : index
    %32 = vector.load %arg9[%c2, %c0_21] : memref<6x128xf32, #tpu.memory_space<vmem>>, vector<1x128xf32>
    %33 = vector.broadcast %32 : vector<1x128xf32> to vector<16x128xf32>
    %34 = arith.addf %31, %33 : vector<16x128xf32>
    %35 = arith.negf %34 : vector<16x128xf32>
    %36 = math.exp %35 : vector<16x128xf32>
    %cst_22 = arith.constant 1.000000e+00 : f32
    %37 = vector.broadcast %cst_22 : f32 to vector<16x128xf32>
    %38 = arith.addf %37, %36 : vector<16x128xf32>
    %39 = arith.divf %37, %38 : vector<16x128xf32>
    %40 = arith.mulf %34, %39 : vector<16x128xf32>
    %c1_23 = arith.constant 1 : index
    %c0_24 = arith.constant 0 : index
    %c0_25 = arith.constant 0 : index
    %41 = vector.load %arg7[%c1_23, %c0_24, %c0_25] : memref<3x128x128xbf16, #tpu.memory_space<vmem>>, vector<1x128x128xbf16>
    %42 = vector.shape_cast %41 : vector<1x128x128xbf16> to vector<128x128xbf16>
    %43 = arith.truncf %40 : vector<16x128xf32> to vector<16x128xbf16>
    %cst_26 = arith.constant dense<0.000000e+00> : vector<16x128xf32>
    %44 = tpu.matmul %43, %42, %cst_26 {dimension_numbers = #tpu.dot_dimension_numbers<[1], [0], [0], [1], [0, 0, 1, 1], [], []>} : vector<16x128xbf16>, vector<128x128xbf16>, vector<16x128xf32> -> vector<16x128xf32>
    %c3 = arith.constant 3 : index
    %c0_27 = arith.constant 0 : index
    %45 = vector.load %arg9[%c3, %c0_27] : memref<6x128xf32, #tpu.memory_space<vmem>>, vector<1x128xf32>
    %46 = vector.broadcast %45 : vector<1x128xf32> to vector<16x128xf32>
    %47 = arith.addf %44, %46 : vector<16x128xf32>
    %48 = arith.negf %47 : vector<16x128xf32>
    %49 = math.exp %48 : vector<16x128xf32>
    %cst_28 = arith.constant 1.000000e+00 : f32
    %50 = vector.broadcast %cst_28 : f32 to vector<16x128xf32>
    %51 = arith.addf %50, %49 : vector<16x128xf32>
    %52 = arith.divf %50, %51 : vector<16x128xf32>
    %53 = arith.mulf %47, %52 : vector<16x128xf32>
    %54 = arith.mulf %27, %0 : vector<16x128xf32>
    %55 = arith.mulf %27, %1 : vector<16x128xf32>
    %56 = arith.truncf %54 : vector<16x128xf32> to vector<16x128xbf16>
    %57 = arith.truncf %55 : vector<16x128xf32> to vector<16x128xbf16>
    %58 = tpu.concatenate %56, %57 in 1 : vector<16x128xbf16>, vector<16x128xbf16> -> vector<16x256xbf16>
    %c0_29 = arith.constant 0 : index
    %c0_30 = arith.constant 0 : index
    %59 = vector.load %arg8[%c0_29, %c0_30] : memref<256x128xbf16, #tpu.memory_space<vmem>>, vector<256x128xbf16>
    %cst_31 = arith.constant dense<0.000000e+00> : vector<16x128xf32>
    %60 = tpu.matmul %58, %59, %cst_31 {dimension_numbers = #tpu.dot_dimension_numbers<[1], [0], [0], [1], [0, 0, 1, 1], [], []>} : vector<16x256xbf16>, vector<256x128xbf16>, vector<16x128xf32> -> vector<16x128xf32>
    %c4 = arith.constant 4 : index
    %c0_32 = arith.constant 0 : index
    %61 = vector.load %arg9[%c4, %c0_32] : memref<6x128xf32, #tpu.memory_space<vmem>>, vector<1x128xf32>
    %62 = vector.broadcast %61 : vector<1x128xf32> to vector<16x128xf32>
    %63 = arith.addf %60, %62 : vector<16x128xf32>
    %64 = arith.negf %63 : vector<16x128xf32>
    %65 = math.exp %64 : vector<16x128xf32>
    %cst_33 = arith.constant 1.000000e+00 : f32
    %66 = vector.broadcast %cst_33 : f32 to vector<16x128xf32>
    %67 = arith.addf %66, %65 : vector<16x128xf32>
    %68 = arith.divf %66, %67 : vector<16x128xf32>
    %69 = arith.mulf %63, %68 : vector<16x128xf32>
    %c2_34 = arith.constant 2 : index
    %c0_35 = arith.constant 0 : index
    %c0_36 = arith.constant 0 : index
    %70 = vector.load %arg7[%c2_34, %c0_35, %c0_36] : memref<3x128x128xbf16, #tpu.memory_space<vmem>>, vector<1x128x128xbf16>
    %71 = vector.shape_cast %70 : vector<1x128x128xbf16> to vector<128x128xbf16>
    %72 = arith.truncf %69 : vector<16x128xf32> to vector<16x128xbf16>
    %cst_37 = arith.constant dense<0.000000e+00> : vector<16x128xf32>
    %73 = tpu.matmul %72, %71, %cst_37 {dimension_numbers = #tpu.dot_dimension_numbers<[1], [0], [0], [1], [0, 0, 1, 1], [], []>} : vector<16x128xbf16>, vector<128x128xbf16>, vector<16x128xf32> -> vector<16x128xf32>
    %c5 = arith.constant 5 : index
    %c0_38 = arith.constant 0 : index
    %74 = vector.load %arg9[%c5, %c0_38] : memref<6x128xf32, #tpu.memory_space<vmem>>, vector<1x128xf32>
    %75 = vector.broadcast %74 : vector<1x128xf32> to vector<16x128xf32>
    %76 = arith.addf %73, %75 : vector<16x128xf32>
    %c0_39 = arith.constant 0 : index
    %c0_40 = arith.constant 0 : index
    %77 = vector.load %arg10[%c0_39, %c0_40] : memref<16x128xf32, #tpu.memory_space<vmem>>, vector<16x128xf32>
    tpu.vector_store %arg10[%c0_39, %c0_40], %76 {strides = array<i32>} : memref<16x128xf32, #tpu.memory_space<vmem>>, vector<16x128xf32>,
    %78 = arith.mulf %53, %0 : vector<16x128xf32>
    %79 = arith.mulf %53, %1 : vector<16x128xf32>
    %80 = arith.truncf %78 : vector<16x128xf32> to vector<16x128xbf16>
    %81 = arith.truncf %79 : vector<16x128xf32> to vector<16x128xbf16>
    %82 = tpu.concatenate %80, %81 in 1 : vector<16x128xbf16>, vector<16x128xbf16> -> vector<16x256xbf16>
    %c0_41 = arith.constant 0 : index
    %c0_42 = arith.constant 0 : index
    %83 = vector.load %arg8[%c0_41, %c0_42] : memref<256x128xbf16, #tpu.memory_space<vmem>>, vector<256x128xbf16>
    %cst_43 = arith.constant dense<0.000000e+00> : vector<16x128xf32>
    %84 = tpu.matmul %82, %83, %cst_43 {dimension_numbers = #tpu.dot_dimension_numbers<[1], [0], [0], [1], [0, 0, 1, 1], [], []>} : vector<16x256xbf16>, vector<256x128xbf16>, vector<16x128xf32> -> vector<16x128xf32>
    %c4_44 = arith.constant 4 : index
    %c0_45 = arith.constant 0 : index
    %85 = vector.load %arg9[%c4_44, %c0_45] : memref<6x128xf32, #tpu.memory_space<vmem>>, vector<1x128xf32>
    %86 = vector.broadcast %85 : vector<1x128xf32> to vector<16x128xf32>
    %87 = arith.addf %84, %86 : vector<16x128xf32>
    %88 = arith.negf %87 : vector<16x128xf32>
    %89 = math.exp %88 : vector<16x128xf32>
    %cst_46 = arith.constant 1.000000e+00 : f32
    %90 = vector.broadcast %cst_46 : f32 to vector<16x128xf32>
    %91 = arith.addf %90, %89 : vector<16x128xf32>
    %92 = arith.divf %90, %91 : vector<16x128xf32>
    %93 = arith.mulf %87, %92 : vector<16x128xf32>
    %c2_47 = arith.constant 2 : index
    %c0_48 = arith.constant 0 : index
    %c0_49 = arith.constant 0 : index
    %94 = vector.load %arg7[%c2_47, %c0_48, %c0_49] : memref<3x128x128xbf16, #tpu.memory_space<vmem>>, vector<1x128x128xbf16>
    %95 = vector.shape_cast %94 : vector<1x128x128xbf16> to vector<128x128xbf16>
    %96 = arith.truncf %93 : vector<16x128xf32> to vector<16x128xbf16>
    %cst_50 = arith.constant dense<0.000000e+00> : vector<16x128xf32>
    %97 = tpu.matmul %96, %95, %cst_50 {dimension_numbers = #tpu.dot_dimension_numbers<[1], [0], [0], [1], [0, 0, 1, 1], [], []>} : vector<16x128xbf16>, vector<128x128xbf16>, vector<16x128xf32> -> vector<16x128xf32>
    %c5_51 = arith.constant 5 : index
    %c0_52 = arith.constant 0 : index
    %98 = vector.load %arg9[%c5_51, %c0_52] : memref<6x128xf32, #tpu.memory_space<vmem>>, vector<1x128xf32>
    %99 = vector.broadcast %98 : vector<1x128xf32> to vector<16x128xf32>
    %100 = arith.addf %97, %99 : vector<16x128xf32>
    %c0_53 = arith.constant 0 : index
    %c0_54 = arith.constant 0 : index
    %101 = vector.load %arg11[%c0_53, %c0_54] : memref<16x128xf32, #tpu.memory_space<vmem>>, vector<16x128xf32>
    tpu.vector_store %arg11[%c0_53, %c0_54], %100 {strides = array<i32>} : memref<16x128xf32, #tpu.memory_space<vmem>>, vector<16x128xf32>,
    %102 = arith.truncf %0 : vector<16x128xf32> to vector<16x128xbf16>
    %103 = arith.truncf %1 : vector<16x128xf32> to vector<16x128xbf16>
    %104 = tpu.concatenate %102, %103 in 1 : vector<16x128xbf16>, vector<16x128xbf16> -> vector<16x256xbf16>
    %c0_55 = arith.constant 0 : index
    %c0_56 = arith.constant 0 : index
    %105 = vector.load %arg8[%c0_55, %c0_56] : memref<256x128xbf16, #tpu.memory_space<vmem>>, vector<256x128xbf16>
    %cst_57 = arith.constant dense<0.000000e+00> : vector<16x128xf32>
    %106 = tpu.matmul %104, %105, %cst_57 {dimension_numbers = #tpu.dot_dimension_numbers<[1], [0], [0], [1], [0, 0, 1, 1], [], []>} : vector<16x256xbf16>, vector<256x128xbf16>, vector<16x128xf32> -> vector<16x128xf32>
    %c4_58 = arith.constant 4 : index
    %c0_59 = arith.constant 0 : index
    %107 = vector.load %arg9[%c4_58, %c0_59] : memref<6x128xf32, #tpu.memory_space<vmem>>, vector<1x128xf32>
    %108 = vector.broadcast %107 : vector<1x128xf32> to vector<16x128xf32>
    %109 = arith.addf %106, %108 : vector<16x128xf32>
    %110 = arith.negf %109 : vector<16x128xf32>
    %111 = math.exp %110 : vector<16x128xf32>
    %cst_60 = arith.constant 1.000000e+00 : f32
    %112 = vector.broadcast %cst_60 : f32 to vector<16x128xf32>
    %113 = arith.addf %112, %111 : vector<16x128xf32>
    %114 = arith.divf %112, %113 : vector<16x128xf32>
    %115 = arith.mulf %109, %114 : vector<16x128xf32>
    %c2_61 = arith.constant 2 : index
    %c0_62 = arith.constant 0 : index
    %c0_63 = arith.constant 0 : index
    %116 = vector.load %arg7[%c2_61, %c0_62, %c0_63] : memref<3x128x128xbf16, #tpu.memory_space<vmem>>, vector<1x128x128xbf16>
    %117 = vector.shape_cast %116 : vector<1x128x128xbf16> to vector<128x128xbf16>
    %118 = arith.truncf %115 : vector<16x128xf32> to vector<16x128xbf16>
    %cst_64 = arith.constant dense<0.000000e+00> : vector<16x128xf32>
    %119 = tpu.matmul %118, %117, %cst_64 {dimension_numbers = #tpu.dot_dimension_numbers<[1], [0], [0], [1], [0, 0, 1, 1], [], []>} : vector<16x128xbf16>, vector<128x128xbf16>, vector<16x128xf32> -> vector<16x128xf32>
    %c5_65 = arith.constant 5 : index
    %c0_66 = arith.constant 0 : index
    %120 = vector.load %arg9[%c5_65, %c0_66] : memref<6x128xf32, #tpu.memory_space<vmem>>, vector<1x128xf32>
    %121 = vector.broadcast %120 : vector<1x128xf32> to vector<16x128xf32>
    %122 = arith.addf %119, %121 : vector<16x128xf32>
    %c0_67 = arith.constant 0 : index
    %c0_68 = arith.constant 0 : index
    %123 = vector.load %arg12[%c0_67, %c0_68] : memref<16x128xf32, #tpu.memory_space<vmem>>, vector<16x128xf32>
    tpu.vector_store %arg12[%c0_67, %c0_68], %122 {strides = array<i32>} : memref<16x128xf32, #tpu.memory_space<vmem>>, vector<16x128xf32>,
    return
  }
  func.func @transform_0(%arg0: i32) -> (i32, i32) {
    %c0_i32 = arith.constant 0 : i32
    %c0_i32_0 = arith.constant 0 : i32
    return %arg0, %c0_i32 : i32, i32
  }
  func.func @transform_1(%arg0: i32) -> (i32, i32) {
    %c0_i32 = arith.constant 0 : i32
    %c0_i32_0 = arith.constant 0 : i32
    return %arg0, %c0_i32 : i32, i32
  }
  func.func @transform_2(%arg0: i32) -> (i32, i32) {
    %c0_i32 = arith.constant 0 : i32
    %c0_i32_0 = arith.constant 0 : i32
    return %arg0, %c0_i32 : i32, i32
  }
  func.func @transform_3(%arg0: i32) -> (i32, i32) {
    %c0_i32 = arith.constant 0 : i32
    %c0_i32_0 = arith.constant 0 : i32
    return %arg0, %c0_i32 : i32, i32
  }
  func.func @transform_4(%arg0: i32) -> (i32, i32) {
    %c0_i32 = arith.constant 0 : i32
    %c0_i32_0 = arith.constant 0 : i32
    %c0_i32_1 = arith.constant 0 : i32
    return %c0_i32, %c0_i32_0 : i32, i32
  }
  func.func @transform_5(%arg0: i32) -> (i32, i32) {
    %c0_i32 = arith.constant 0 : i32
    %c0_i32_0 = arith.constant 0 : i32
    %c0_i32_1 = arith.constant 0 : i32
    return %c0_i32, %c0_i32_0 : i32, i32
  }
  func.func @transform_6(%arg0: i32) -> (i32, i32, i32) {
    %c0_i32 = arith.constant 0 : i32
    %c0_i32_0 = arith.constant 0 : i32
    %c0_i32_1 = arith.constant 0 : i32
    %c0_i32_2 = arith.constant 0 : i32
    return %c0_i32, %c0_i32_0, %c0_i32_1 : i32, i32, i32
  }
  func.func @transform_7(%arg0: i32) -> (i32, i32) {
    %c0_i32 = arith.constant 0 : i32
    %c0_i32_0 = arith.constant 0 : i32
    %c0_i32_1 = arith.constant 0 : i32
    return %c0_i32, %c0_i32_0 : i32, i32
  }
  func.func @transform_8(%arg0: i32) -> (i32, i32) {
    %c0_i32 = arith.constant 0 : i32
    %c0_i32_0 = arith.constant 0 : i32
    %c0_i32_1 = arith.constant 0 : i32
    return %c0_i32, %c0_i32_0 : i32, i32
  }
  func.func @transform_9(%arg0: i32) -> (i32, i32) {
    %c0_i32 = arith.constant 0 : i32
    %c0_i32_0 = arith.constant 0 : i32
    return %arg0, %c0_i32 : i32, i32
  }
  func.func @transform_10(%arg0: i32) -> (i32, i32) {
    %c0_i32 = arith.constant 0 : i32
    %c0_i32_0 = arith.constant 0 : i32
    return %arg0, %c0_i32 : i32, i32
  }
  func.func @transform_11(%arg0: i32) -> (i32, i32) {
    %c0_i32 = arith.constant 0 : i32
    %c0_i32_0 = arith.constant 0 : i32
    return %arg0, %c0_i32 : i32, i32
  }
}

module attributes {stable_mosaic.version = 11 : i64} {
  func.func @_node_block_kernel(%arg0: i32, %arg1: memref<8x128xf32, #tpu.memory_space<vmem>>, %arg2: memref<8x128xf32, #tpu.memory_space<vmem>>, %arg3: memref<8x128xf32, #tpu.memory_space<vmem>>, %arg4: memref<2x256x128xbf16, #tpu.memory_space<vmem>>, %arg5: memref<2x128xf32, #tpu.memory_space<vmem>>, %arg6: memref<2x128x128xbf16, #tpu.memory_space<vmem>>, %arg7: memref<2x128xf32, #tpu.memory_space<vmem>>, %arg8: memref<256x128xbf16, #tpu.memory_space<vmem>>, %arg9: memref<1x128xf32, #tpu.memory_space<vmem>>, %arg10: memref<2x128x128xbf16, #tpu.memory_space<vmem>>, %arg11: memref<2x128xf32, #tpu.memory_space<vmem>>, %arg12: memref<8x128xf32, #tpu.memory_space<vmem>>) attributes {dimension_semantics = [#tpu.dimension_semantics<parallel>], iteration_bounds = array<i64: 2>, scalar_prefetch = 0 : i64, scratch_operands = 0 : i64, tpu.core_type = #tpu.core_type<tc>, window_params = [{transform_indices = @transform_0, window_bounds = array<i64: 8, 128>}, {transform_indices = @transform_1, window_bounds = array<i64: 8, 128>}, {transform_indices = @transform_2, window_bounds = array<i64: 8, 128>}, {pipeline_mode = #tpu.pipeline_mode<synchronous>, transform_indices = @transform_3, window_bounds = array<i64: 2, 256, 128>}, {pipeline_mode = #tpu.pipeline_mode<synchronous>, transform_indices = @transform_4, window_bounds = array<i64: 2, 128>}, {pipeline_mode = #tpu.pipeline_mode<synchronous>, transform_indices = @transform_5, window_bounds = array<i64: 2, 128, 128>}, {pipeline_mode = #tpu.pipeline_mode<synchronous>, transform_indices = @transform_6, window_bounds = array<i64: 2, 128>}, {pipeline_mode = #tpu.pipeline_mode<synchronous>, transform_indices = @transform_7, window_bounds = array<i64: 256, 128>}, {pipeline_mode = #tpu.pipeline_mode<synchronous>, transform_indices = @transform_8, window_bounds = array<i64: 1, 128>}, {pipeline_mode = #tpu.pipeline_mode<synchronous>, transform_indices = @transform_9, window_bounds = array<i64: 2, 128, 128>}, {pipeline_mode = #tpu.pipeline_mode<synchronous>, transform_indices = @transform_10, window_bounds = array<i64: 2, 128>}, {transform_indices = @transform_11, window_bounds = array<i64: 8, 128>}]} {
    %c0 = arith.constant 0 : index
    %c0_0 = arith.constant 0 : index
    %0 = vector.load %arg1[%c0, %c0_0] : memref<8x128xf32, #tpu.memory_space<vmem>>, vector<8x128xf32>
    %1 = arith.truncf %0 : vector<8x128xf32> to vector<8x128xbf16>
    %c0_1 = arith.constant 0 : index
    %c0_2 = arith.constant 0 : index
    %2 = vector.load %arg2[%c0_1, %c0_2] : memref<8x128xf32, #tpu.memory_space<vmem>>, vector<8x128xf32>
    %3 = arith.truncf %2 : vector<8x128xf32> to vector<8x128xbf16>
    %4 = tpu.concatenate %3, %1 in 1 : vector<8x128xbf16>, vector<8x128xbf16> -> vector<8x256xbf16>
    %c0_3 = arith.constant 0 : index
    %c0_4 = arith.constant 0 : index
    %c0_5 = arith.constant 0 : index
    %5 = vector.load %arg4[%c0_3, %c0_4, %c0_5] : memref<2x256x128xbf16, #tpu.memory_space<vmem>>, vector<1x256x128xbf16>
    %6 = vector.shape_cast %5 : vector<1x256x128xbf16> to vector<256x128xbf16>
    %cst = arith.constant dense<0.000000e+00> : vector<8x128xf32>
    %7 = tpu.matmul %4, %6, %cst {dimension_numbers = #tpu.dot_dimension_numbers<[1], [0], [0], [1], [0, 0, 1, 1], [], []>} : vector<8x256xbf16>, vector<256x128xbf16>, vector<8x128xf32> -> vector<8x128xf32>
    %c0_6 = arith.constant 0 : index
    %c0_7 = arith.constant 0 : index
    %8 = vector.load %arg5[%c0_6, %c0_7] : memref<2x128xf32, #tpu.memory_space<vmem>>, vector<1x128xf32>
    %9 = vector.broadcast %8 : vector<1x128xf32> to vector<8x128xf32>
    %10 = arith.addf %7, %9 : vector<8x128xf32>
    %c0_8 = arith.constant 0 : index
    %c0_9 = arith.constant 0 : index
    %c0_10 = arith.constant 0 : index
    %11 = vector.load %arg6[%c0_8, %c0_9, %c0_10] : memref<2x128x128xbf16, #tpu.memory_space<vmem>>, vector<1x128x128xbf16>
    %12 = vector.shape_cast %11 : vector<1x128x128xbf16> to vector<128x128xbf16>
    %13 = arith.truncf %10 : vector<8x128xf32> to vector<8x128xbf16>
    %cst_11 = arith.constant dense<0.000000e+00> : vector<8x128xf32>
    %14 = tpu.matmul %13, %12, %cst_11 {dimension_numbers = #tpu.dot_dimension_numbers<[1], [0], [0], [1], [0, 0, 1, 1], [], []>} : vector<8x128xbf16>, vector<128x128xbf16>, vector<8x128xf32> -> vector<8x128xf32>
    %c0_12 = arith.constant 0 : index
    %c0_13 = arith.constant 0 : index
    %15 = vector.load %arg7[%c0_12, %c0_13] : memref<2x128xf32, #tpu.memory_space<vmem>>, vector<1x128xf32>
    %16 = vector.broadcast %15 : vector<1x128xf32> to vector<8x128xf32>
    %17 = arith.addf %14, %16 : vector<8x128xf32>
    %18 = arith.negf %17 : vector<8x128xf32>
    %19 = math.exp %18 : vector<8x128xf32>
    %cst_14 = arith.constant 1.000000e+00 : f32
    %20 = vector.broadcast %cst_14 : f32 to vector<8x128xf32>
    %21 = arith.addf %20, %19 : vector<8x128xf32>
    %22 = arith.divf %20, %21 : vector<8x128xf32>
    %23 = arith.mulf %17, %22 : vector<8x128xf32>
    %c0_15 = arith.constant 0 : index
    %c0_16 = arith.constant 0 : index
    %24 = vector.load %arg3[%c0_15, %c0_16] : memref<8x128xf32, #tpu.memory_space<vmem>>, vector<8x128xf32>
    %25 = arith.truncf %24 : vector<8x128xf32> to vector<8x128xbf16>
    %26 = tpu.concatenate %25, %1 in 1 : vector<8x128xbf16>, vector<8x128xbf16> -> vector<8x256xbf16>
    %c1 = arith.constant 1 : index
    %c0_17 = arith.constant 0 : index
    %c0_18 = arith.constant 0 : index
    %27 = vector.load %arg4[%c1, %c0_17, %c0_18] : memref<2x256x128xbf16, #tpu.memory_space<vmem>>, vector<1x256x128xbf16>
    %28 = vector.shape_cast %27 : vector<1x256x128xbf16> to vector<256x128xbf16>
    %cst_19 = arith.constant dense<0.000000e+00> : vector<8x128xf32>
    %29 = tpu.matmul %26, %28, %cst_19 {dimension_numbers = #tpu.dot_dimension_numbers<[1], [0], [0], [1], [0, 0, 1, 1], [], []>} : vector<8x256xbf16>, vector<256x128xbf16>, vector<8x128xf32> -> vector<8x128xf32>
    %c1_20 = arith.constant 1 : index
    %c0_21 = arith.constant 0 : index
    %30 = vector.load %arg5[%c1_20, %c0_21] : memref<2x128xf32, #tpu.memory_space<vmem>>, vector<1x128xf32>
    %31 = vector.broadcast %30 : vector<1x128xf32> to vector<8x128xf32>
    %32 = arith.addf %29, %31 : vector<8x128xf32>
    %c1_22 = arith.constant 1 : index
    %c0_23 = arith.constant 0 : index
    %c0_24 = arith.constant 0 : index
    %33 = vector.load %arg6[%c1_22, %c0_23, %c0_24] : memref<2x128x128xbf16, #tpu.memory_space<vmem>>, vector<1x128x128xbf16>
    %34 = vector.shape_cast %33 : vector<1x128x128xbf16> to vector<128x128xbf16>
    %35 = arith.truncf %32 : vector<8x128xf32> to vector<8x128xbf16>
    %cst_25 = arith.constant dense<0.000000e+00> : vector<8x128xf32>
    %36 = tpu.matmul %35, %34, %cst_25 {dimension_numbers = #tpu.dot_dimension_numbers<[1], [0], [0], [1], [0, 0, 1, 1], [], []>} : vector<8x128xbf16>, vector<128x128xbf16>, vector<8x128xf32> -> vector<8x128xf32>
    %c1_26 = arith.constant 1 : index
    %c0_27 = arith.constant 0 : index
    %37 = vector.load %arg7[%c1_26, %c0_27] : memref<2x128xf32, #tpu.memory_space<vmem>>, vector<1x128xf32>
    %38 = vector.broadcast %37 : vector<1x128xf32> to vector<8x128xf32>
    %39 = arith.addf %36, %38 : vector<8x128xf32>
    %40 = arith.negf %39 : vector<8x128xf32>
    %41 = math.exp %40 : vector<8x128xf32>
    %cst_28 = arith.constant 1.000000e+00 : f32
    %42 = vector.broadcast %cst_28 : f32 to vector<8x128xf32>
    %43 = arith.addf %42, %41 : vector<8x128xf32>
    %44 = arith.divf %42, %43 : vector<8x128xf32>
    %45 = arith.mulf %39, %44 : vector<8x128xf32>
    %46 = arith.truncf %23 : vector<8x128xf32> to vector<8x128xbf16>
    %47 = arith.truncf %45 : vector<8x128xf32> to vector<8x128xbf16>
    %48 = tpu.concatenate %46, %47 in 1 : vector<8x128xbf16>, vector<8x128xbf16> -> vector<8x256xbf16>
    %c0_29 = arith.constant 0 : index
    %c0_30 = arith.constant 0 : index
    %49 = vector.load %arg8[%c0_29, %c0_30] : memref<256x128xbf16, #tpu.memory_space<vmem>>, vector<256x128xbf16>
    %cst_31 = arith.constant dense<0.000000e+00> : vector<8x128xf32>
    %50 = tpu.matmul %48, %49, %cst_31 {dimension_numbers = #tpu.dot_dimension_numbers<[1], [0], [0], [1], [0, 0, 1, 1], [], []>} : vector<8x256xbf16>, vector<256x128xbf16>, vector<8x128xf32> -> vector<8x128xf32>
    %c0_32 = arith.constant 0 : index
    %c0_33 = arith.constant 0 : index
    %51 = vector.load %arg9[%c0_32, %c0_33] : memref<1x128xf32, #tpu.memory_space<vmem>>, vector<1x128xf32>
    %52 = vector.broadcast %51 : vector<1x128xf32> to vector<8x128xf32>
    %53 = arith.addf %50, %52 : vector<8x128xf32>
    %54 = arith.addf %53, %0 : vector<8x128xf32>
    %c0_34 = arith.constant 0 : index
    %c0_35 = arith.constant 0 : index
    %c0_36 = arith.constant 0 : index
    %55 = vector.load %arg10[%c0_34, %c0_35, %c0_36] : memref<2x128x128xbf16, #tpu.memory_space<vmem>>, vector<1x128x128xbf16>
    %56 = vector.shape_cast %55 : vector<1x128x128xbf16> to vector<128x128xbf16>
    %57 = arith.truncf %54 : vector<8x128xf32> to vector<8x128xbf16>
    %cst_37 = arith.constant dense<0.000000e+00> : vector<8x128xf32>
    %58 = tpu.matmul %57, %56, %cst_37 {dimension_numbers = #tpu.dot_dimension_numbers<[1], [0], [0], [1], [0, 0, 1, 1], [], []>} : vector<8x128xbf16>, vector<128x128xbf16>, vector<8x128xf32> -> vector<8x128xf32>
    %c0_38 = arith.constant 0 : index
    %c0_39 = arith.constant 0 : index
    %59 = vector.load %arg11[%c0_38, %c0_39] : memref<2x128xf32, #tpu.memory_space<vmem>>, vector<1x128xf32>
    %60 = vector.broadcast %59 : vector<1x128xf32> to vector<8x128xf32>
    %61 = arith.addf %58, %60 : vector<8x128xf32>
    %62 = arith.negf %61 : vector<8x128xf32>
    %63 = math.exp %62 : vector<8x128xf32>
    %cst_40 = arith.constant 1.000000e+00 : f32
    %64 = vector.broadcast %cst_40 : f32 to vector<8x128xf32>
    %65 = arith.addf %64, %63 : vector<8x128xf32>
    %66 = arith.divf %64, %65 : vector<8x128xf32>
    %67 = arith.mulf %61, %66 : vector<8x128xf32>
    %68 = arith.addf %67, %54 : vector<8x128xf32>
    %69 = arith.negf %68 : vector<8x128xf32>
    %70 = math.exp %69 : vector<8x128xf32>
    %cst_41 = arith.constant 1.000000e+00 : f32
    %71 = vector.broadcast %cst_41 : f32 to vector<8x128xf32>
    %72 = arith.addf %71, %70 : vector<8x128xf32>
    %73 = arith.divf %71, %72 : vector<8x128xf32>
    %74 = arith.mulf %68, %73 : vector<8x128xf32>
    %75 = arith.addf %74, %68 : vector<8x128xf32>
    %c1_42 = arith.constant 1 : index
    %c0_43 = arith.constant 0 : index
    %c0_44 = arith.constant 0 : index
    %76 = vector.load %arg10[%c1_42, %c0_43, %c0_44] : memref<2x128x128xbf16, #tpu.memory_space<vmem>>, vector<1x128x128xbf16>
    %77 = vector.shape_cast %76 : vector<1x128x128xbf16> to vector<128x128xbf16>
    %78 = arith.truncf %75 : vector<8x128xf32> to vector<8x128xbf16>
    %cst_45 = arith.constant dense<0.000000e+00> : vector<8x128xf32>
    %79 = tpu.matmul %78, %77, %cst_45 {dimension_numbers = #tpu.dot_dimension_numbers<[1], [0], [0], [1], [0, 0, 1, 1], [], []>} : vector<8x128xbf16>, vector<128x128xbf16>, vector<8x128xf32> -> vector<8x128xf32>
    %c1_46 = arith.constant 1 : index
    %c0_47 = arith.constant 0 : index
    %80 = vector.load %arg11[%c1_46, %c0_47] : memref<2x128xf32, #tpu.memory_space<vmem>>, vector<1x128xf32>
    %81 = vector.broadcast %80 : vector<1x128xf32> to vector<8x128xf32>
    %82 = arith.addf %79, %81 : vector<8x128xf32>
    %83 = arith.negf %82 : vector<8x128xf32>
    %84 = math.exp %83 : vector<8x128xf32>
    %cst_48 = arith.constant 1.000000e+00 : f32
    %85 = vector.broadcast %cst_48 : f32 to vector<8x128xf32>
    %86 = arith.addf %85, %84 : vector<8x128xf32>
    %87 = arith.divf %85, %86 : vector<8x128xf32>
    %88 = arith.mulf %82, %87 : vector<8x128xf32>
    %89 = arith.addf %88, %75 : vector<8x128xf32>
    %90 = arith.negf %89 : vector<8x128xf32>
    %91 = math.exp %90 : vector<8x128xf32>
    %cst_49 = arith.constant 1.000000e+00 : f32
    %92 = vector.broadcast %cst_49 : f32 to vector<8x128xf32>
    %93 = arith.addf %92, %91 : vector<8x128xf32>
    %94 = arith.divf %92, %93 : vector<8x128xf32>
    %95 = arith.mulf %89, %94 : vector<8x128xf32>
    %96 = arith.addf %95, %89 : vector<8x128xf32>
    %c0_50 = arith.constant 0 : index
    %c0_51 = arith.constant 0 : index
    %97 = vector.load %arg12[%c0_50, %c0_51] : memref<8x128xf32, #tpu.memory_space<vmem>>, vector<8x128xf32>
    tpu.vector_store %arg12[%c0_50, %c0_51], %96 {strides = array<i32>} : memref<8x128xf32, #tpu.memory_space<vmem>>, vector<8x128xf32>,
    return
  }
  func.func @transform_0(%arg0: i32) -> (i32, i32) {
    %c0_i32 = arith.constant 0 : i32
    %c0_i32_0 = arith.constant 0 : i32
    return %arg0, %c0_i32 : i32, i32
  }
  func.func @transform_1(%arg0: i32) -> (i32, i32) {
    %c0_i32 = arith.constant 0 : i32
    %c0_i32_0 = arith.constant 0 : i32
    return %arg0, %c0_i32 : i32, i32
  }
  func.func @transform_2(%arg0: i32) -> (i32, i32) {
    %c0_i32 = arith.constant 0 : i32
    %c0_i32_0 = arith.constant 0 : i32
    return %arg0, %c0_i32 : i32, i32
  }
  func.func @transform_3(%arg0: i32) -> (i32, i32, i32) {
    %c0_i32 = arith.constant 0 : i32
    %c0_i32_0 = arith.constant 0 : i32
    %c0_i32_1 = arith.constant 0 : i32
    %c0_i32_2 = arith.constant 0 : i32
    return %c0_i32, %c0_i32_0, %c0_i32_1 : i32, i32, i32
  }
  func.func @transform_4(%arg0: i32) -> (i32, i32) {
    %c0_i32 = arith.constant 0 : i32
    %c0_i32_0 = arith.constant 0 : i32
    %c0_i32_1 = arith.constant 0 : i32
    return %c0_i32, %c0_i32_0 : i32, i32
  }
  func.func @transform_5(%arg0: i32) -> (i32, i32, i32) {
    %c0_i32 = arith.constant 0 : i32
    %c0_i32_0 = arith.constant 0 : i32
    %c0_i32_1 = arith.constant 0 : i32
    %c0_i32_2 = arith.constant 0 : i32
    return %c0_i32, %c0_i32_0, %c0_i32_1 : i32, i32, i32
  }
  func.func @transform_6(%arg0: i32) -> (i32, i32) {
    %c0_i32 = arith.constant 0 : i32
    %c0_i32_0 = arith.constant 0 : i32
    %c0_i32_1 = arith.constant 0 : i32
    return %c0_i32, %c0_i32_0 : i32, i32
  }
  func.func @transform_7(%arg0: i32) -> (i32, i32) {
    %c0_i32 = arith.constant 0 : i32
    %c0_i32_0 = arith.constant 0 : i32
    %c0_i32_1 = arith.constant 0 : i32
    return %c0_i32, %c0_i32_0 : i32, i32
  }
  func.func @transform_8(%arg0: i32) -> (i32, i32) {
    %c0_i32 = arith.constant 0 : i32
    %c0_i32_0 = arith.constant 0 : i32
    %c0_i32_1 = arith.constant 0 : i32
    return %c0_i32, %c0_i32_0 : i32, i32
  }
  func.func @transform_9(%arg0: i32) -> (i32, i32, i32) {
    %c0_i32 = arith.constant 0 : i32
    %c0_i32_0 = arith.constant 0 : i32
    %c0_i32_1 = arith.constant 0 : i32
    %c0_i32_2 = arith.constant 0 : i32
    return %c0_i32, %c0_i32_0, %c0_i32_1 : i32, i32, i32
  }
  func.func @transform_10(%arg0: i32) -> (i32, i32) {
    %c0_i32 = arith.constant 0 : i32
    %c0_i32_0 = arith.constant 0 : i32
    %c0_i32_1 = arith.constant 0 : i32
    return %c0_i32, %c0_i32_0 : i32, i32
  }
  func.func @transform_11(%arg0: i32) -> (i32, i32) {
    %c0_i32 = arith.constant 0 : i32
    %c0_i32_0 = arith.constant 0 : i32
    return %arg0, %c0_i32 : i32, i32
  }
}

module attributes {stable_mosaic.version = 11 : i64} {
  func.func @_norm_final_kernel(%arg0: i32, %arg1: memref<8x128xf32, #tpu.memory_space<vmem>>, %arg2: memref<8x1xi32, #tpu.memory_space<vmem>>, %arg3: memref<128x128xf32, #tpu.memory_space<vmem>>, %arg4: memref<128x128xf32, #tpu.memory_space<vmem>>, %arg5: memref<1x128xf32, #tpu.memory_space<vmem>>, %arg6: memref<1x128xf32, #tpu.memory_space<vmem>>, %arg7: memref<1x128xf32, #tpu.memory_space<vmem>>, %arg8: memref<128x128xbf16, #tpu.memory_space<vmem>>, %arg9: memref<1x128xf32, #tpu.memory_space<vmem>>, %arg10: memref<8x128xf32, #tpu.memory_space<vmem>>) attributes {dimension_semantics = [#tpu.dimension_semantics<parallel>], iteration_bounds = array<i64: 2>, scalar_prefetch = 0 : i64, scratch_operands = 0 : i64, tpu.core_type = #tpu.core_type<tc>, window_params = [{transform_indices = @transform_0, window_bounds = array<i64: 8, 128>}, {transform_indices = @transform_1, window_bounds = array<i64: 8, 1>}, {pipeline_mode = #tpu.pipeline_mode<synchronous>, transform_indices = @transform_2, window_bounds = array<i64: 128, 128>}, {pipeline_mode = #tpu.pipeline_mode<synchronous>, transform_indices = @transform_3, window_bounds = array<i64: 128, 128>}, {pipeline_mode = #tpu.pipeline_mode<synchronous>, transform_indices = @transform_4, window_bounds = array<i64: 1, 128>}, {pipeline_mode = #tpu.pipeline_mode<synchronous>, transform_indices = @transform_5, window_bounds = array<i64: 1, 128>}, {pipeline_mode = #tpu.pipeline_mode<synchronous>, transform_indices = @transform_6, window_bounds = array<i64: 1, 128>}, {pipeline_mode = #tpu.pipeline_mode<synchronous>, transform_indices = @transform_7, window_bounds = array<i64: 128, 128>}, {pipeline_mode = #tpu.pipeline_mode<synchronous>, transform_indices = @transform_8, window_bounds = array<i64: 1, 128>}, {transform_indices = @transform_9, window_bounds = array<i64: 8, 128>}]} {
    %c0 = arith.constant 0 : index
    %c0_0 = arith.constant 0 : index
    %0 = vector.load %arg1[%c0, %c0_0] : memref<8x128xf32, #tpu.memory_space<vmem>>, vector<8x128xf32>
    %1 = tpu.iota {dimensions = array<i32: 1>} : vector<8x128xi32>
    %c0_1 = arith.constant 0 : index
    %c0_2 = arith.constant 0 : index
    %2 = vector.load %arg2[%c0_1, %c0_2] : memref<8x1xi32, #tpu.memory_space<vmem>>, vector<8x1xi32>
    %3 = vector.broadcast %2 : vector<8x1xi32> to vector<8x128xi32>
    %4 = arith.cmpi eq, %1, %3 : vector<8x128xi32>
    %5 = arith.extui %4 : vector<8x128xi1> to vector<8x128xi32>
    %6 = arith.sitofp %5 : vector<8x128xi32> to vector<8x128xf32>
    %c0_3 = arith.constant 0 : index
    %c0_4 = arith.constant 0 : index
    %7 = vector.load %arg3[%c0_3, %c0_4] : memref<128x128xf32, #tpu.memory_space<vmem>>, vector<128x128xf32>
    %cst = arith.constant dense<0.000000e+00> : vector<8x128xf32>
    %8 = tpu.matmul %6, %7, %cst {dimension_numbers = #tpu.dot_dimension_numbers<[1], [0], [0], [1], [0, 0, 1, 1], [], []>} : vector<8x128xf32>, vector<128x128xf32>, vector<8x128xf32> -> vector<8x128xf32>
    %c0_5 = arith.constant 0 : index
    %c0_6 = arith.constant 0 : index
    %9 = vector.load %arg4[%c0_5, %c0_6] : memref<128x128xf32, #tpu.memory_space<vmem>>, vector<128x128xf32>
    %cst_7 = arith.constant dense<0.000000e+00> : vector<8x128xf32>
    %10 = tpu.matmul %6, %9, %cst_7 {dimension_numbers = #tpu.dot_dimension_numbers<[1], [0], [0], [1], [0, 0, 1, 1], [], []>} : vector<8x128xf32>, vector<128x128xf32>, vector<8x128xf32> -> vector<8x128xf32>
    %c0_8 = arith.constant 0 : index
    %c0_9 = arith.constant 0 : index
    %11 = vector.load %arg7[%c0_8, %c0_9] : memref<1x128xf32, #tpu.memory_space<vmem>>, vector<1x128xf32>
    %12 = vector.broadcast %11 : vector<1x128xf32> to vector<8x128xf32>
    %13 = arith.mulf %8, %12 : vector<8x128xf32>
    %14 = arith.subf %0, %13 : vector<8x128xf32>
    %15 = arith.mulf %14, %10 : vector<8x128xf32>
    %c0_10 = arith.constant 0 : index
    %c0_11 = arith.constant 0 : index
    %16 = vector.load %arg5[%c0_10, %c0_11] : memref<1x128xf32, #tpu.memory_space<vmem>>, vector<1x128xf32>
    %17 = vector.broadcast %16 : vector<1x128xf32> to vector<8x128xf32>
    %18 = arith.mulf %15, %17 : vector<8x128xf32>
    %c0_12 = arith.constant 0 : index
    %c0_13 = arith.constant 0 : index
    %19 = vector.load %arg6[%c0_12, %c0_13] : memref<1x128xf32, #tpu.memory_space<vmem>>, vector<1x128xf32>
    %20 = vector.broadcast %19 : vector<1x128xf32> to vector<8x128xf32>
    %21 = arith.addf %18, %20 : vector<8x128xf32>
    %c0_14 = arith.constant 0 : index
    %c0_15 = arith.constant 0 : index
    %22 = vector.load %arg8[%c0_14, %c0_15] : memref<128x128xbf16, #tpu.memory_space<vmem>>, vector<128x128xbf16>
    %23 = arith.truncf %21 : vector<8x128xf32> to vector<8x128xbf16>
    %cst_16 = arith.constant dense<0.000000e+00> : vector<8x128xf32>
    %24 = tpu.matmul %23, %22, %cst_16 {dimension_numbers = #tpu.dot_dimension_numbers<[1], [0], [0], [1], [0, 0, 1, 1], [], []>} : vector<8x128xbf16>, vector<128x128xbf16>, vector<8x128xf32> -> vector<8x128xf32>
    %c0_17 = arith.constant 0 : index
    %c0_18 = arith.constant 0 : index
    %25 = vector.load %arg9[%c0_17, %c0_18] : memref<1x128xf32, #tpu.memory_space<vmem>>, vector<1x128xf32>
    %26 = vector.broadcast %25 : vector<1x128xf32> to vector<8x128xf32>
    %27 = arith.addf %24, %26 : vector<8x128xf32>
    %c0_19 = arith.constant 0 : index
    %c0_20 = arith.constant 0 : index
    %28 = vector.load %arg10[%c0_19, %c0_20] : memref<8x128xf32, #tpu.memory_space<vmem>>, vector<8x128xf32>
    tpu.vector_store %arg10[%c0_19, %c0_20], %27 {strides = array<i32>} : memref<8x128xf32, #tpu.memory_space<vmem>>, vector<8x128xf32>,
    return
  }
  func.func @transform_0(%arg0: i32) -> (i32, i32) {
    %c0_i32 = arith.constant 0 : i32
    %c0_i32_0 = arith.constant 0 : i32
    return %arg0, %c0_i32 : i32, i32
  }
  func.func @transform_1(%arg0: i32) -> (i32, i32) {
    %c0_i32 = arith.constant 0 : i32
    %c0_i32_0 = arith.constant 0 : i32
    return %arg0, %c0_i32 : i32, i32
  }
  func.func @transform_2(%arg0: i32) -> (i32, i32) {
    %c0_i32 = arith.constant 0 : i32
    %c0_i32_0 = arith.constant 0 : i32
    %c0_i32_1 = arith.constant 0 : i32
    return %c0_i32, %c0_i32_0 : i32, i32
  }
  func.func @transform_3(%arg0: i32) -> (i32, i32) {
    %c0_i32 = arith.constant 0 : i32
    %c0_i32_0 = arith.constant 0 : i32
    %c0_i32_1 = arith.constant 0 : i32
    return %c0_i32, %c0_i32_0 : i32, i32
  }
  func.func @transform_4(%arg0: i32) -> (i32, i32) {
    %c0_i32 = arith.constant 0 : i32
    %c0_i32_0 = arith.constant 0 : i32
    %c0_i32_1 = arith.constant 0 : i32
    return %c0_i32, %c0_i32_0 : i32, i32
  }
  func.func @transform_5(%arg0: i32) -> (i32, i32) {
    %c0_i32 = arith.constant 0 : i32
    %c0_i32_0 = arith.constant 0 : i32
    %c0_i32_1 = arith.constant 0 : i32
    return %c0_i32, %c0_i32_0 : i32, i32
  }
  func.func @transform_6(%arg0: i32) -> (i32, i32) {
    %c0_i32 = arith.constant 0 : i32
    %c0_i32_0 = arith.constant 0 : i32
    %c0_i32_1 = arith.constant 0 : i32
    return %c0_i32, %c0_i32_0 : i32, i32
  }
  func.func @transform_7(%arg0: i32) -> (i32, i32) {
    %c0_i32 = arith.constant 0 : i32
    %c0_i32_0 = arith.constant 0 : i32
    %c0_i32_1 = arith.constant 0 : i32
    return %c0_i32, %c0_i32_0 : i32, i32
  }
  func.func @transform_8(%arg0: i32) -> (i32, i32) {
    %c0_i32 = arith.constant 0 : i32
    %c0_i32_0 = arith.constant 0 : i32
    %c0_i32_1 = arith.constant 0 : i32
    return %c0_i32, %c0_i32_0 : i32, i32
  }
  func.func @transform_9(%arg0: i32) -> (i32, i32) {
    %c0_i32 = arith.constant 0 : i32
    %c0_i32_0 = arith.constant 0 : i32
    return %arg0, %c0_i32 : i32, i32
  }
}

module attributes {stable_mosaic.version = 11 : i64} {
  func.func @_mlp_chain_kernel(%arg0: i32, %arg1: memref<8x128xf32, #tpu.memory_space<vmem>>, %arg2: memref<3x128x128xbf16, #tpu.memory_space<vmem>>, %arg3: memref<3x128xf32, #tpu.memory_space<vmem>>, %arg4: memref<8x128xf32, #tpu.memory_space<vmem>>) attributes {dimension_semantics = [#tpu.dimension_semantics<parallel>], iteration_bounds = array<i64: 2>, scalar_prefetch = 0 : i64, scratch_operands = 0 : i64, tpu.core_type = #tpu.core_type<tc>, window_params = [{transform_indices = @transform_0, window_bounds = array<i64: 8, 128>}, {pipeline_mode = #tpu.pipeline_mode<synchronous>, transform_indices = @transform_1, window_bounds = array<i64: 3, 128, 128>}, {pipeline_mode = #tpu.pipeline_mode<synchronous>, transform_indices = @transform_2, window_bounds = array<i64: 3, 128>}, {transform_indices = @transform_3, window_bounds = array<i64: 8, 128>}]} {
    %c0 = arith.constant 0 : index
    %c0_0 = arith.constant 0 : index
    %0 = vector.load %arg1[%c0, %c0_0] : memref<8x128xf32, #tpu.memory_space<vmem>>, vector<8x128xf32>
    %c0_1 = arith.constant 0 : index
    %c0_2 = arith.constant 0 : index
    %c0_3 = arith.constant 0 : index
    %1 = vector.load %arg2[%c0_1, %c0_2, %c0_3] : memref<3x128x128xbf16, #tpu.memory_space<vmem>>, vector<1x128x128xbf16>
    %2 = vector.shape_cast %1 : vector<1x128x128xbf16> to vector<128x128xbf16>
    %3 = arith.truncf %0 : vector<8x128xf32> to vector<8x128xbf16>
    %cst = arith.constant dense<0.000000e+00> : vector<8x128xf32>
    %4 = tpu.matmul %3, %2, %cst {dimension_numbers = #tpu.dot_dimension_numbers<[1], [0], [0], [1], [0, 0, 1, 1], [], []>} : vector<8x128xbf16>, vector<128x128xbf16>, vector<8x128xf32> -> vector<8x128xf32>
    %c0_4 = arith.constant 0 : index
    %c0_5 = arith.constant 0 : index
    %5 = vector.load %arg3[%c0_4, %c0_5] : memref<3x128xf32, #tpu.memory_space<vmem>>, vector<1x128xf32>
    %6 = vector.broadcast %5 : vector<1x128xf32> to vector<8x128xf32>
    %7 = arith.addf %4, %6 : vector<8x128xf32>
    %8 = arith.negf %7 : vector<8x128xf32>
    %9 = math.exp %8 : vector<8x128xf32>
    %cst_6 = arith.constant 1.000000e+00 : f32
    %10 = vector.broadcast %cst_6 : f32 to vector<8x128xf32>
    %11 = arith.addf %10, %9 : vector<8x128xf32>
    %12 = arith.divf %10, %11 : vector<8x128xf32>
    %13 = arith.mulf %7, %12 : vector<8x128xf32>
    %c1 = arith.constant 1 : index
    %c0_7 = arith.constant 0 : index
    %c0_8 = arith.constant 0 : index
    %14 = vector.load %arg2[%c1, %c0_7, %c0_8] : memref<3x128x128xbf16, #tpu.memory_space<vmem>>, vector<1x128x128xbf16>
    %15 = vector.shape_cast %14 : vector<1x128x128xbf16> to vector<128x128xbf16>
    %16 = arith.truncf %13 : vector<8x128xf32> to vector<8x128xbf16>
    %cst_9 = arith.constant dense<0.000000e+00> : vector<8x128xf32>
    %17 = tpu.matmul %16, %15, %cst_9 {dimension_numbers = #tpu.dot_dimension_numbers<[1], [0], [0], [1], [0, 0, 1, 1], [], []>} : vector<8x128xbf16>, vector<128x128xbf16>, vector<8x128xf32> -> vector<8x128xf32>
    %c1_10 = arith.constant 1 : index
    %c0_11 = arith.constant 0 : index
    %18 = vector.load %arg3[%c1_10, %c0_11] : memref<3x128xf32, #tpu.memory_space<vmem>>, vector<1x128xf32>
    %19 = vector.broadcast %18 : vector<1x128xf32> to vector<8x128xf32>
    %20 = arith.addf %17, %19 : vector<8x128xf32>
    %21 = arith.negf %20 : vector<8x128xf32>
    %22 = math.exp %21 : vector<8x128xf32>
    %cst_12 = arith.constant 1.000000e+00 : f32
    %23 = vector.broadcast %cst_12 : f32 to vector<8x128xf32>
    %24 = arith.addf %23, %22 : vector<8x128xf32>
    %25 = arith.divf %23, %24 : vector<8x128xf32>
    %26 = arith.mulf %20, %25 : vector<8x128xf32>
    %c2 = arith.constant 2 : index
    %c0_13 = arith.constant 0 : index
    %c0_14 = arith.constant 0 : index
    %27 = vector.load %arg2[%c2, %c0_13, %c0_14] : memref<3x128x128xbf16, #tpu.memory_space<vmem>>, vector<1x128x128xbf16>
    %28 = vector.shape_cast %27 : vector<1x128x128xbf16> to vector<128x128xbf16>
    %29 = arith.truncf %26 : vector<8x128xf32> to vector<8x128xbf16>
    %cst_15 = arith.constant dense<0.000000e+00> : vector<8x128xf32>
    %30 = tpu.matmul %29, %28, %cst_15 {dimension_numbers = #tpu.dot_dimension_numbers<[1], [0], [0], [1], [0, 0, 1, 1], [], []>} : vector<8x128xbf16>, vector<128x128xbf16>, vector<8x128xf32> -> vector<8x128xf32>
    %c2_16 = arith.constant 2 : index
    %c0_17 = arith.constant 0 : index
    %31 = vector.load %arg3[%c2_16, %c0_17] : memref<3x128xf32, #tpu.memory_space<vmem>>, vector<1x128xf32>
    %32 = vector.broadcast %31 : vector<1x128xf32> to vector<8x128xf32>
    %33 = arith.addf %30, %32 : vector<8x128xf32>
    %c0_18 = arith.constant 0 : index
    %c0_19 = arith.constant 0 : index
    %34 = vector.load %arg4[%c0_18, %c0_19] : memref<8x128xf32, #tpu.memory_space<vmem>>, vector<8x128xf32>
    tpu.vector_store %arg4[%c0_18, %c0_19], %33 {strides = array<i32>} : memref<8x128xf32, #tpu.memory_space<vmem>>, vector<8x128xf32>,
    return
  }
  func.func @transform_0(%arg0: i32) -> (i32, i32) {
    %c0_i32 = arith.constant 0 : i32
    %c0_i32_0 = arith.constant 0 : i32
    return %arg0, %c0_i32 : i32, i32
  }
  func.func @transform_1(%arg0: i32) -> (i32, i32, i32) {
    %c0_i32 = arith.constant 0 : i32
    %c0_i32_0 = arith.constant 0 : i32
    %c0_i32_1 = arith.constant 0 : i32
    %c0_i32_2 = arith.constant 0 : i32
    return %c0_i32, %c0_i32_0, %c0_i32_1 : i32, i32, i32
  }
  func.func @transform_2(%arg0: i32) -> (i32, i32) {
    %c0_i32 = arith.constant 0 : i32
    %c0_i32_0 = arith.constant 0 : i32
    %c0_i32_1 = arith.constant 0 : i32
    return %c0_i32, %c0_i32_0 : i32, i32
  }
  func.func @transform_3(%arg0: i32) -> (i32, i32) {
    %c0_i32 = arith.constant 0 : i32
    %c0_i32_0 = arith.constant 0 : i32
    return %arg0, %c0_i32 : i32, i32
  }
}

</mosaic_0001>

<llo_original>
// kernel: mul.33
$region0: #{mul.33}
  #allocation0 [shape = 's32[1]{0}', space=sflag, size = 0x4, scoped, tag = 'scoped memory for mul.33']
  %s0 = inlined_call_operand.vmem [shape: f32[60,6], index: 0, kind: input, shape index: {}]
  %s1 = inlined_call_operand.vmem [shape: f32[60,6], index: 1, kind: input, shape index: {}]
  %s2 = inlined_call_operand.vmem [shape: f32[60,6], index: 2, kind: output, shape index: {}]
  %v3 = vld [vmem:[%s0] sm:$0x3f]
  %v4 = vld [vmem:[%s1] sm:$0x3f]
  %5 = xla_tuple %v3, %v4
  %6 = xla_tuple %5
  %v7 = vmul.f32 %v3, %v4
  %8 = xla_tuple %v7
  %9 = vst [vmem:[%s2] sm:$0xff] %v7

// kernel: mul.151
$region0: #{mul.151}
  %s0 = inlined_call_operand.vmem [shape: f32[60,6], index: 0, kind: input, shape index: {}]
  %s1 = inlined_call_operand.vmem [shape: f32[60,2,3], index: 1, kind: output, shape index: {}]
  $region1: #{mul.151} parent=0
    #allocation0 [shape = 'u8[8192]{0}', space=vmem, size = 0x2000, scoped, tag = 'scoped mem for output reshape']
    %v2 = vld [vmem:[%s0] sm:$0x3f]
    %vm3 = vcmask 490496
    %4 = vst.msk [vmem:[#allocation0] sm:$0x7] %vm3, %v2
    %s5 = scalar_lea.vmem [#allocation0], 5
    %6 = vst.msk [vmem:[%s5] sm:$0x38] %vm3, %v2
    %s8 = sshllo.u32 0, 4
    %v10 = vld [vmem:[#allocation0] sm:%s8]
    %s11 = sshllo.u32 0, 4
    %12 = vst [vmem:[%s1] sm:%s11] %v10
    %s13 = scalar_lea.vmem [#allocation0], 8
    %v14 = vld [vmem:[%s13] sm:%s8]
    %s15 = sshllo.u32 0, 4
    %s16 = scalar_lea.vmem %s1, 4
    %17 = vst [vmem:[%s16] sm:%s15] %v14

// kernel: comenet_forward.11
$region0: #{comenet_forward.11}
  #allocation0 [shape = 'u32[]', space=smem, size = 0x4, offset = 0x4, fixed_abs, tag = 'smem constant byte address 0x4 - core index']
  #allocation1 [shape = 'u32[144,128]{1,0:T(1,128)}', space=vmem, size = 0x12000, scoped, tag = 'internal scratch']
  %s0 = inlined_call_operand.vmem [shape: f32[16,128], index: 0, kind: input, shape index: {}]
  %s1 = inlined_call_operand.vmem [shape: bf16[1,128,128], index: 1, kind: input, shape index: {}]
  %s2 = inlined_call_operand.vmem [shape: f32[1,128], index: 2, kind: input, shape index: {}]
  %s3 = inlined_call_operand.vmem [shape: f32[16,128], index: 3, kind: output, shape index: {}]
  %s4 = sld [smem:[#allocation0]]
  $region45: #{comenet_forward.11} parent=0
    _
  %s6 = ssub.s32 1, %s4
  %s7 = scalar_select 0, %s6, %s4
  loop: start=0, step=1, limit=4
  $region2: #{comenet_forward.11} parent=0 // loop_pre_header
    _
  $region3: #{comenet_forward.11} parent=0 // loop_header
    %s9 = sphi 0, %s13
    %p10 = scmp.ge.s32.totalorder %s9, 4
    %s19 = sphi 0, %s21
    %s22 = sphi 0, %s19
    %s23 = sphi 0, %s22
    %s39 = sphi 0, %s23
    %s43 = sphi 0, %s43
    %s45 = sphi 0, %s43
    %s46 = sphi 0, %s45
    %s60 = sphi 0, %s46
    %s64 = sphi 0, %s64
    %s66 = sphi 0, %s64
    %s67 = sphi 0, %s66
    %s81 = sphi 0, %s67
    %s87 = sphi 0, %s89
    %s90 = sphi 0, %s87
    %s91 = sphi 0, %s90
    %s107 = sphi 0, %s91
  $region4: #{comenet_forward.11} parent=0 // loop_header_branch
    %12 = sbr.rel (%p10) target = $region8
  $region5: #{comenet_forward.11} parent=0 // loop_body
    %s14 = ssub.s32 %s9, 1
    %s15 = ssub.s32 %s9, 2
    %s16 = sadd.s32 %s9, 1
    %s17 = ssub.s32 %s9, %s16
    %p18 = scmp.eq.s32.totalorder %s17, 0
    %s20 = sadd.s32 %s19, 1
    %s21 = scalar_select %p18, %s19, %s20
    %p24 = pneg %p18
    %p25 = scmp.eq.s32.totalorder %s9, 1
    %p26 = por %p24, %p25
    %p27 = scmp.ne.s32.totalorder %s19, %s22
    %p28 = scmp.eq.s32.totalorder %s9, 0
    %p29 = por %p27, %p28
    %p30 = scmp.ne.s32.totalorder %s19, %s22
    %p31 = scmp.eq.s32.totalorder %s14, 1
    %p32 = por %p30, %p31
    %p33 = scmp.ne.s32.totalorder %s22, %s23
    %p34 = scmp.eq.s32.totalorder %s14, 0
    %p35 = por %p33, %p34
    %p36 = scmp.ne.s32.totalorder %s22, %s23
    %p37 = scmp.eq.s32.totalorder %s15, 1
    %p38 = por %p36, %p37
    %p40 = scmp.ne.s32.totalorder %s23, %s39
    %p41 = scmp.eq.s32.totalorder %s15, 0
    %p42 = por %p40, %p41
    %s44 = sadd.s32 %s43, 1
    %p47 = scmp.eq.s32.totalorder %s9, 1
    %p48 = scmp.ne.s32.totalorder %s43, %s45
    %p49 = scmp.eq.s32.totalorder %s9, 0
    %p50 = por %p48, %p49
    %p51 = scmp.ne.s32.totalorder %s43, %s45
    %p52 = scmp.eq.s32.totalorder %s14, 1
    %p53 = por %p51, %p52
    %p54 = scmp.ne.s32.totalorder %s45, %s46
    %p55 = scmp.eq.s32.totalorder %s14, 0
    %p56 = por %p54, %p55
    %p57 = scmp.ne.s32.totalorder %s45, %s46
    %p58 = scmp.eq.s32.totalorder %s15, 1
    %p59 = por %p57, %p58
    %p61 = scmp.ne.s32.totalorder %s46, %s60
    %p62 = scmp.eq.s32.totalorder %s15, 0
    %p63 = por %p61, %p62
    %s65 = sadd.s32 %s64, 1
    %p68 = scmp.eq.s32.totalorder %s9, 1
    %p69 = scmp.ne.s32.totalorder %s64, %s66
    %p70 = scmp.eq.s32.totalorder %s9, 0
    %p71 = por %p69, %p70
    %p72 = scmp.ne.s32.totalorder %s64, %s66
    %p73 = scmp.eq.s32.totalorder %s14, 1
    %p74 = por %p72, %p73
    %p75 = scmp.ne.s32.totalorder %s66, %s67
    %p76 = scmp.eq.s32.totalorder %s14, 0
    %p77 = por %p75, %p76
    %p78 = scmp.ne.s32.totalorder %s66, %s67
    %p79 = scmp.eq.s32.totalorder %s15, 1
    %p80 = por %p78, %p79
    %p82 = scmp.ne.s32.totalorder %s67, %s81
    %p83 = scmp.eq.s32.totalorder %s15, 0
    %p84 = por %p82, %p83
    %s85 = ssub.s32 %s9, %s16
    %p86 = scmp.eq.s32.totalorder %s85, 0
    %s88 = sadd.s32 %s87, 1
    %s89 = scalar_select %p86, %s87, %s88
    %p92 = pneg %p86
    %p93 = scmp.eq.s32.totalorder %s9, 1
    %p94 = por %p92, %p93
    %p95 = scmp.ne.s32.totalorder %s87, %s90
    %p96 = scmp.eq.s32.totalorder %s9, 0
    %p97 = por %p95, %p96
    %p98 = scmp.ne.s32.totalorder %s87, %s90
    %p99 = scmp.eq.s32.totalorder %s14, 1
    %p100 = por %p98, %p99
    %p101 = scmp.ne.s32.totalorder %s90, %s91
    %p102 = scmp.eq.s32.totalorder %s14, 0
    %p103 = por %p101, %p102
    %p104 = scmp.ne.s32.totalorder %s90, %s91
    %p105 = scmp.eq.s32.totalorder %s15, 1
    %p106 = por %p104, %p105
    %p108 = scmp.ne.s32.totalorder %s91, %s107
    %p109 = scmp.eq.s32.totalorder %s15, 0
    %p110 = por %p108, %p109
    %p111 = scmp.le.s32.totalorder 1, %s9
    %p112 = scmp.lt.s32.totalorder %s9, 3
    %p113 = pnand %p111, %p112
    %p114 = pneg %p113
    // Predicated region
    $region9: #{comenet_forward.11} parent=5 // pred_check
      _
    $region10: #{comenet_forward.11} parent=5 // pred_check_branch
      %116 = sbr.rel (%p113) target = $region12
    $region11: #{comenet_forward.11} parent=5 // pred_region
      %s117 = ssub.s32 %s9, 1
      // Predicated region
      $region13: #{comenet_forward.11} parent=11 // pred_check
        %p118 = pneg %p56
      $region14: #{comenet_forward.11} parent=11 // pred_check_branch
        %120 = sbr.rel (%p118) target = $region16
      $region15: #{comenet_forward.11} parent=11 // pred_region
        _
      $region16: #{comenet_forward.11} parent=11 // pred_fallthru
        _
      // Predicated region
      $region17: #{comenet_forward.11} parent=11 // pred_check
        %p121 = pneg %p77
      $region18: #{comenet_forward.11} parent=11 // pred_check_branch
        %123 = sbr.rel (%p121) target = $region20
      $region19: #{comenet_forward.11} parent=11 // pred_region
        _
      $region20: #{comenet_forward.11} parent=11 // pred_fallthru
        _
    $region12: #{comenet_forward.11} parent=5 // pred_fallthru
      _
    %p124 = scmp.lt.s32.totalorder %s9, 2
    // Predicated region
    $region21: #{comenet_forward.11} parent=5 // pred_check
      %p125 = pneg %p124
    $region22: #{comenet_forward.11} parent=5 // pred_check_branch
      %127 = sbr.rel (%p125) target = $region24
    $region23: #{comenet_forward.11} parent=5 // pred_region
      // Predicated region
      $region25: #{comenet_forward.11} parent=23 // pred_check
        %p128 = pneg %p29
      $region26: #{comenet_forward.11} parent=23 // pred_check_branch
        %130 = sbr.rel (%p128) target = $region28
      $region27: #{comenet_forward.11} parent=23 // pred_region
        %p131 = scmp.lt.s32.totalorder %s9, 1
        %s132 = scalar_select %p131, %s9, 1
        %s133 = smul.addr %s132, 8
        %s134 = scalar_lea.vmem %s0, %s133
      $region28: #{comenet_forward.11} parent=23 // pred_fallthru
        _
    $region24: #{comenet_forward.11} parent=5 // pred_fallthru
      _
    %p135 = scmp.le.s32.totalorder 1, %s9
    %p136 = scmp.lt.s32.totalorder %s9, 3
    %p137 = pnand %p135, %p136
    %p138 = pneg %p137
    // Predicated region
    $region29: #{comenet_forward.11} parent=5 // pred_check
      _
    $region30: #{comenet_forward.11} parent=5 // pred_check_branch
      %140 = sbr.rel (%p137) target = $region32
    $region31: #{comenet_forward.11} parent=5 // pred_region
      %s141 = ssub.s32 %s9, 1
      %p142 = scmp.lt.s32.totalorder %s14, 1
      %s143 = scalar_select %p142, %s14, 1
      %s144 = smul.addr %s143, 8
      %s145 = scalar_lea.vmem %s0, %s144
      %p146 = pneg %p35
      %p147 = pneg %p32
      %p148 = pneg %p56
      %p149 = pneg %p53
      %p150 = pneg %p77
      %p151 = pneg %p74
      %p152 = pneg %p103
      %p153 = pneg %p100
      %p154 = scmp.lt.s32.totalorder %s14, 1
      %s155 = scalar_select %p154, %s14, 1
      %s156 = smul.addr %s155, 8
      %s157 = scalar_lea.vmem %s3, %s156
      %p158 = scmp.lt.s32.totalorder %s14, 1
      %s159 = scalar_select %p158, %s14, 1
      %s160 = smul.addr %s159, 8
      %s161 = scalar_lea.vmem %s0, %s160
      %p162 = scmp.lt.s32.totalorder %s14, 1
      %s163 = scalar_select %p162, %s14, 1
      %s164 = smul.addr %s163, 8
      %s165 = scalar_lea.vmem %s3, %s164
      %v167 = vld [vmem:[%s161] sm:$0xff]
      %v168 = vld [vmem:[%s1] sm:$0xf]
      %v169 = vld [vmem:[%s1 + $0x4] sm:$0xf]
      %v170 = vld [vmem:[%s1 + $0x8] sm:$0xf]
      %v171 = vld [vmem:[%s1 + $0xc] sm:$0xf]
      %v172 = vld [vmem:[%s1 + $0x10] sm:$0xf]
      %v173 = vld [vmem:[%s1 + $0x14] sm:$0xf]
      %v174 = vld [vmem:[%s1 + $0x18] sm:$0xf]
      %v175 = vld [vmem:[%s1 + $0x1c] sm:$0xf]
      %v176 = vld [vmem:[%s1 + $0x20] sm:$0xf]
      %v177 = vld [vmem:[%s1 + $0x24] sm:$0xf]
      %v178 = vld [vmem:[%s1 + $0x28] sm:$0xf]
      %v179 = vld [vmem:[%s1 + $0x2c] sm:$0xf]
      %v180 = vld [vmem:[%s1 + $0x30] sm:$0xf]
      %v181 = vld [vmem:[%s1 + $0x34] sm:$0xf]
      %v182 = vld [vmem:[%s1 + $0x38] sm:$0xf]
      %v183 = vld [vmem:[%s1 + $0x3c] sm:$0xf]
      %v184 = vpack.c.bf16 %v167, %v167
      %v185 = vld [vmem:[%s2] sm:$0x1]
      %v187 = vlaneseq
      %v188 = vshrl.u32 %v187, 7
      %v189 = vsub.s32 0, %v188
      %v190 = vrot.slane %v185, %v189
      %v208 = vunpack.c.l.b16 %v168
      %v209 = vunpack.c.l.b16 %v169
      %v210 = vunpack.c.l.b16 %v170
      %v211 = vunpack.c.l.b16 %v171
      %v212 = vunpack.c.l.b16 %v172
      %v213 = vunpack.c.l.b16 %v173
      %v214 = vunpack.c.l.b16 %v174
      %v215 = vunpack.c.l.b16 %v175
      %v216 = vunpack.c.l.b16 %v176
      %v217 = vunpack.c.l.b16 %v177
      %v218 = vunpack.c.l.b16 %v178
      %v219 = vunpack.c.l.b16 %v179
      %v220 = vunpack.c.l.b16 %v180
      %v221 = vunpack.c.l.b16 %v181
      %v222 = vunpack.c.l.b16 %v182
      %v223 = vunpack.c.l.b16 %v183
      %v224 = vpack.c.b16 %v209, %v208
      %v225 = vpack.c.b16 %v211, %v210
      %v226 = vpack.c.b16 %v213, %v212
      %v227 = vpack.c.b16 %v215, %v214
      %v228 = vpack.c.b16 %v217, %v216
      %v229 = vpack.c.b16 %v219, %v218
      %v230 = vpack.c.b16 %v221, %v220
      %v231 = vpack.c.b16 %v223, %v222
      %240 = vmatprep.subr.bf16.mxu0 0
      %241 = vmatpush1.bf16.msra.mxu0 %v224
      %242 = vmatprep.subr.bf16.mxu0 0
      %243 = vmatpush1.bf16.msra.mxu0 %v225
      %244 = vmatprep.subr.bf16.mxu0 0
      %245 = vmatpush1.bf16.msra.mxu0 %v226
      %246 = vmatprep.subr.bf16.mxu0 0
      %247 = vmatpush1.bf16.msra.mxu0 %v227
      %248 = vmatprep.subr.bf16.mxu0 0
      %249 = vmatpush1.bf16.msra.mxu0 %v228
      %250 = vmatprep.subr.bf16.mxu0 0
      %251 = vmatpush1.bf16.msra.mxu0 %v229
      %252 = vmatprep.subr.bf16.mxu0 0
      %253 = vmatpush1.bf16.msra.mxu0 %v230
      %254 = vmatprep.subr.bf16.mxu0 0
      %255 = vmatpush1.bf16.msra.mxu0 %v231
      %256 = vmatprep.subr.bf16.mxu0 0
      %257 = vmatpush1.bf16.msra.mxu0 0
      %258 = vmatprep.subr.bf16.mxu0 0
      %259 = vmatpush1.bf16.msra.mxu0 0
      %260 = vmatprep.subr.bf16.mxu0 0
      %261 = vmatpush1.bf16.msra.mxu0 0
      %262 = vmatprep.subr.bf16.mxu0 0
      %263 = vmatpush1.bf16.msra.mxu0 0
      %264 = vmatprep.subr.bf16.mxu0 0
      %265 = vmatpush1.bf16.msra.mxu0 0
      %266 = vmatprep.subr.bf16.mxu0 0
      %267 = vmatpush1.bf16.msra.mxu0 0
      %268 = vmatprep.subr.bf16.mxu0 0
      %269 = vmatpush1.bf16.msra.mxu0 0
      %270 = vmatprep.subr.bf16.mxu0 0
      %271 = vmatpush1.bf16.msra.mxu0 0
      %272 = vmatprep.mubr.bf16.mxu0 0
      %273 = vmatmul.mubr.bf16.gmra.mrb[0].mxu0 %v184
      %v274 = vpop.f32.mrb[0].mxu0
      %v275 = vadd.f32 %v190, %v274
      %v276 = vpop.f32.mrb[0].mxu0
      %v277 = vpop.f32.mrb[0].mxu0
      %v278 = vpop.f32.mrb[0].mxu0
      %279 = vdwg.mxu0
      %v280 = vxor.u32 %v275, 2147483648
      %v281 = vmul.f32 %v280, 1.442695
      %v282 = vpow.pop %v281
      %v283 = vadd.f32 %v282, 1.0
      %v284 = vrcp.pop %v283
      %v285 = vmul.f32 1.0, %v284
      %v286 = vmul.f32 %v275, %v285
      %287 = vst [vmem:[%s165] sm:$0xff] %v286
      %p288 = scmp.lt.s32.totalorder %s14, 1
      %s289 = scalar_select %p288, %s14, 1
      %s290 = smul.addr %s289, 8
      %s291 = scalar_lea.vmem %s3, %s290
      // Predicated region
      $region33: #{comenet_forward.11} parent=31 // pred_check
        %p292 = pneg %p100
      $region34: #{comenet_forward.11} parent=31 // pred_check_branch
        %294 = sbr.rel (%p292) target = $region36
      $region35: #{comenet_forward.11} parent=31 // pred_region
        _
      $region36: #{comenet_forward.11} parent=31 // pred_fallthru
        _
    $region32: #{comenet_forward.11} parent=5 // pred_fallthru
      _
    %p295 = scmp.le.s32.totalorder 2, %s9
    // Predicated region
    $region37: #{comenet_forward.11} parent=5 // pred_check
      %p296 = pneg %p295
    $region38: #{comenet_forward.11} parent=5 // pred_check_branch
      %298 = sbr.rel (%p296) target = $region40
    $region39: #{comenet_forward.11} parent=5 // pred_region
      %s299 = ssub.s32 %s9, 2
      // Predicated region
      $region41: #{comenet_forward.11} parent=39 // pred_check
        %p300 = pneg %p106
      $region42: #{comenet_forward.11} parent=39 // pred_check_branch
        %302 = sbr.rel (%p300) target = $region44
      $region43: #{comenet_forward.11} parent=39 // pred_region
        %p303 = scmp.lt.s32.totalorder %s15, 1
        %s304 = scalar_select %p303, %s15, 1
        %s305 = smul.addr %s304, 8
        %s306 = scalar_lea.vmem %s3, %s305
      $region44: #{comenet_forward.11} parent=39 // pred_fallthru
        _
    $region40: #{comenet_forward.11} parent=5 // pred_fallthru
      _
  $region6: #{comenet_forward.11} parent=0 // loop_footer
    %s13 = sadd.s32 1, %s9
  $region7: #{comenet_forward.11} parent=0 // loop_footer_branch
    %8 = sbr.rel target = $region3
  $region8: #{comenet_forward.11} parent=0 // loop_exit
    _

// kernel: comenet_forward.12
$region0: #{comenet_forward.12}
  #allocation0 [shape = 'u32[]', space=smem, size = 0x4, offset = 0x4, fixed_abs, tag = 'smem constant byte address 0x4 - core index']
  #allocation1 [shape = 'u32[144,128]{1,0:T(1,128)}', space=vmem, size = 0x12000, scoped, tag = 'internal scratch']
  %s0 = inlined_call_operand.vmem [shape: f32[64,128], index: 0, kind: input, shape index: {}]
  %s1 = inlined_call_operand.vmem [shape: f32[64,128], index: 1, kind: input, shape index: {}]
  %s2 = inlined_call_operand.vmem [shape: f32[64,128], index: 2, kind: input, shape index: {}]
  %s3 = inlined_call_operand.vmem [shape: f32[64,128], index: 3, kind: input, shape index: {}]
  %s4 = inlined_call_operand.vmem [shape: bf16[2,256,128], index: 4, kind: input, shape index: {}]
  %s5 = inlined_call_operand.vmem [shape: bf16[2,128,128], index: 5, kind: input, shape index: {}]
  %s6 = inlined_call_operand.vmem [shape: f32[4,128], index: 6, kind: input, shape index: {}]
  %s7 = inlined_call_operand.vmem [shape: f32[2,128], index: 7, kind: input, shape index: {}]
  %s8 = inlined_call_operand.vmem [shape: f32[2,128], index: 8, kind: input, shape index: {}]
  %s9 = inlined_call_operand.vmem [shape: f32[64,128], index: 9, kind: output, shape index: {0}]
  %s10 = inlined_call_operand.vmem [shape: f32[64,128], index: 10, kind: output, shape index: {1}]
  %11 = xla_tuple %s9, %s10
  %s12 = sld [smem:[#allocation0]]
  $region77: #{comenet_forward.12} parent=0
    _
  %s14 = ssub.s32 1, %s12
  %s15 = scalar_select 0, %s14, %s12
  loop: start=0, step=1, limit=6
  $region2: #{comenet_forward.12} parent=0 // loop_pre_header
    _
  $region3: #{comenet_forward.12} parent=0 // loop_header
    %s17 = sphi 0, %s21
    %p18 = scmp.ge.s32.totalorder %s17, 6
    %s27 = sphi 0, %s29
    %s30 = sphi 0, %s27
    %s31 = sphi 0, %s30
    %s47 = sphi 0, %s31
    %s53 = sphi 0, %s55
    %s56 = sphi 0, %s53
    %s57 = sphi 0, %s56
    %s73 = sphi 0, %s57
    %s79 = sphi 0, %s81
    %s82 = sphi 0, %s79
    %s83 = sphi 0, %s82
    %s99 = sphi 0, %s83
    %s105 = sphi 0, %s107
    %s108 = sphi 0, %s105
    %s109 = sphi 0, %s108
    %s125 = sphi 0, %s109
    %s129 = sphi 0, %s129
    %s131 = sphi 0, %s129
    %s132 = sphi 0, %s131
    %s146 = sphi 0, %s132
    %s150 = sphi 0, %s150
    %s152 = sphi 0, %s150
    %s153 = sphi 0, %s152
    %s167 = sphi 0, %s153
    %s171 = sphi 0, %s171
    %s173 = sphi 0, %s171
    %s174 = sphi 0, %s173
    %s188 = sphi 0, %s174
    %s192 = sphi 0, %s192
    %s194 = sphi 0, %s192
    %s195 = sphi 0, %s194
    %s209 = sphi 0, %s195
    %s213 = sphi 0, %s213
    %s215 = sphi 0, %s213
    %s216 = sphi 0, %s215
    %s230 = sphi 0, %s216
    %s236 = sphi 0, %s238
    %s239 = sphi 0, %s236
    %s240 = sphi 0, %s239
    %s256 = sphi 0, %s240
    %s262 = sphi 0, %s264
    %s265 = sphi 0, %s262
    %s266 = sphi 0, %s265
    %s282 = sphi 0, %s266
  $region4: #{comenet_forward.12} parent=0 // loop_header_branch
    %20 = sbr.rel (%p18) target = $region8
  $region5: #{comenet_forward.12} parent=0 // loop_body
    %s22 = ssub.s32 %s17, 1
    %s23 = ssub.s32 %s17, 2
    %s24 = sadd.s32 %s17, 1
    %s25 = ssub.s32 %s17, %s24
    %p26 = scmp.eq.s32.totalorder %s25, 0
    %s28 = sadd.s32 %s27, 1
    %s29 = scalar_select %p26, %s27, %s28
    %p32 = pneg %p26
    %p33 = scmp.eq.s32.totalorder %s17, 3
    %p34 = por %p32, %p33
    %p35 = scmp.ne.s32.totalorder %s27, %s30
    %p36 = scmp.eq.s32.totalorder %s17, 0
    %p37 = por %p35, %p36
    %p38 = scmp.ne.s32.totalorder %s27, %s30
    %p39 = scmp.eq.s32.totalorder %s22, 3
    %p40 = por %p38, %p39
    %p41 = scmp.ne.s32.totalorder %s30, %s31
    %p42 = scmp.eq.s32.totalorder %s22, 0
    %p43 = por %p41, %p42
    %p44 = scmp.ne.s32.totalorder %s30, %s31
    %p45 = scmp.eq.s32.totalorder %s23, 3
    %p46 = por %p44, %p45
    %p48 = scmp.ne.s32.totalorder %s31, %s47
    %p49 = scmp.eq.s32.totalorder %s23, 0
    %p50 = por %p48, %p49
    %s51 = ssub.s32 %s17, %s24
    %p52 = scmp.eq.s32.totalorder %s51, 0
    %s54 = sadd.s32 %s53, 1
    %s55 = scalar_select %p52, %s53, %s54
    %p58 = pneg %p52
    %p59 = scmp.eq.s32.totalorder %s17, 3
    %p60 = por %p58, %p59
    %p61 = scmp.ne.s32.totalorder %s53, %s56
    %p62 = scmp.eq.s32.totalorder %s17, 0
    %p63 = por %p61, %p62
    %p64 = scmp.ne.s32.totalorder %s53, %s56
    %p65 = scmp.eq.s32.totalorder %s22, 3
    %p66 = por %p64, %p65
    %p67 = scmp.ne.s32.totalorder %s56, %s57
    %p68 = scmp.eq.s32.totalorder %s22, 0
    %p69 = por %p67, %p68
    %p70 = scmp.ne.s32.totalorder %s56, %s57
    %p71 = scmp.eq.s32.totalorder %s23, 3
    %p72 = por %p70, %p71
    %p74 = scmp.ne.s32.totalorder %s57, %s73
    %p75 = scmp.eq.s32.totalorder %s23, 0
    %p76 = por %p74, %p75
    %s77 = ssub.s32 %s17, %s24
    %p78 = scmp.eq.s32.totalorder %s77, 0
    %s80 = sadd.s32 %s79, 1
    %s81 = scalar_select %p78, %s79, %s80
    %p84 = pneg %p78
    %p85 = scmp.eq.s32.totalorder %s17, 3
    %p86 = por %p84, %p85
    %p87 = scmp.ne.s32.totalorder %s79, %s82
    %p88 = scmp.eq.s32.totalorder %s17, 0
    %p89 = por %p87, %p88
    %p90 = scmp.ne.s32.totalorder %s79, %s82
    %p91 = scmp.eq.s32.totalorder %s22, 3
    %p92 = por %p90, %p91
    %p93 = scmp.ne.s32.totalorder %s82, %s83
    %p94 = scmp.eq.s32.totalorder %s22, 0
    %p95 = por %p93, %p94
    %p96 = scmp.ne.s32.totalorder %s82, %s83
    %p97 = scmp.eq.s32.totalorder %s23, 3
    %p98 = por %p96, %p97
    %p100 = scmp.ne.s32.totalorder %s83, %s99
    %p101 = scmp.eq.s32.totalorder %s23, 0
    %p102 = por %p100, %p101
    %s103 = ssub.s32 %s17, %s24
    %p104 = scmp.eq.s32.totalorder %s103, 0
    %s106 = sadd.s32 %s105, 1
    %s107 = scalar_select %p104, %s105, %s106
    %p110 = pneg %p104
    %p111 = scmp.eq.s32.totalorder %s17, 3
    %p112 = por %p110, %p111
    %p113 = scmp.ne.s32.totalorder %s105, %s108
    %p114 = scmp.eq.s32.totalorder %s17, 0
    %p115 = por %p113, %p114
    %p116 = scmp.ne.s32.totalorder %s105, %s108
    %p117 = scmp.eq.s32.totalorder %s22, 3
    %p118 = por %p116, %p117
    %p119 = scmp.ne.s32.totalorder %s108, %s109
    %p120 = scmp.eq.s32.totalorder %s22, 0
    %p121 = por %p119, %p120
    %p122 = scmp.ne.s32.totalorder %s108, %s109
    %p123 = scmp.eq.s32.totalorder %s23, 3
    %p124 = por %p122, %p123
    %p126 = scmp.ne.s32.totalorder %s109, %s125
    %p127 = scmp.eq.s32.totalorder %s23, 0
    %p128 = por %p126, %p127
    %s130 = sadd.s32 %s129, 1
    %p133 = scmp.eq.s32.totalorder %s17, 3
    %p134 = scmp.ne.s32.totalorder %s129, %s131
    %p135 = scmp.eq.s32.totalorder %s17, 0
    %p136 = por %p134, %p135
    %p137 = scmp.ne.s32.totalorder %s129, %s131
    %p138 = scmp.eq.s32.totalorder %s22, 3
    %p139 = por %p137, %p138
    %p140 = scmp.ne.s32.totalorder %s131, %s132
    %p141 = scmp.eq.s32.totalorder %s22, 0
    %p142 = por %p140, %p141
    %p143 = scmp.ne.s32.totalorder %s131, %s132
    %p144 = scmp.eq.s32.totalorder %s23, 3
    %p145 = por %p143, %p144
    %p147 = scmp.ne.s32.totalorder %s132, %s146
    %p148 = scmp.eq.s32.totalorder %s23, 0
    %p149 = por %p147, %p148
    %s151 = sadd.s32 %s150, 1
    %p154 = scmp.eq.s32.totalorder %s17, 3
    %p155 = scmp.ne.s32.totalorder %s150, %s152
    %p156 = scmp.eq.s32.totalorder %s17, 0
    %p157 = por %p155, %p156
    %p158 = scmp.ne.s32.totalorder %s150, %s152
    %p159 = scmp.eq.s32.totalorder %s22, 3
    %p160 = por %p158, %p159
    %p161 = scmp.ne.s32.totalorder %s152, %s153
    %p162 = scmp.eq.s32.totalorder %s22, 0
    %p163 = por %p161, %p162
    %p164 = scmp.ne.s32.totalorder %s152, %s153
    %p165 = scmp.eq.s32.totalorder %s23, 3
    %p166 = por %p164, %p165
    %p168 = scmp.ne.s32.totalorder %s153, %s167
    %p169 = scmp.eq.s32.totalorder %s23, 0
    %p170 = por %p168, %p169
    %s172 = sadd.s32 %s171, 1
    %p175 = scmp.eq.s32.totalorder %s17, 3
    %p176 = scmp.ne.s32.totalorder %s171, %s173
    %p177 = scmp.eq.s32.totalorder %s17, 0
    %p178 = por %p176, %p177
    %p179 = scmp.ne.s32.totalorder %s171, %s173
    %p180 = scmp.eq.s32.totalorder %s22, 3
    %p181 = por %p179, %p180
    %p182 = scmp.ne.s32.totalorder %s173, %s174
    %p183 = scmp.eq.s32.totalorder %s22, 0
    %p184 = por %p182, %p183
    %p185 = scmp.ne.s32.totalorder %s173, %s174
    %p186 = scmp.eq.s32.totalorder %s23, 3
    %p187 = por %p185, %p186
    %p189 = scmp.ne.s32.totalorder %s174, %s188
    %p190 = scmp.eq.s32.totalorder %s23, 0
    %p191 = por %p189, %p190
    %s193 = sadd.s32 %s192, 1
    %p196 = scmp.eq.s32.totalorder %s17, 3
    %p197 = scmp.ne.s32.totalorder %s192, %s194
    %p198 = scmp.eq.s32.totalorder %s17, 0
    %p199 = por %p197, %p198
    %p200 = scmp.ne.s32.totalorder %s192, %s194
    %p201 = scmp.eq.s32.totalorder %s22, 3
    %p202 = por %p200, %p201
    %p203 = scmp.ne.s32.totalorder %s194, %s195
    %p204 = scmp.eq.s32.totalorder %s22, 0
    %p205 = por %p203, %p204
    %p206 = scmp.ne.s32.totalorder %s194, %s195
    %p207 = scmp.eq.s32.totalorder %s23, 3
    %p208 = por %p206, %p207
    %p210 = scmp.ne.s32.totalorder %s195, %s209
    %p211 = scmp.eq.s32.totalorder %s23, 0
    %p212 = por %p210, %p211
    %s214 = sadd.s32 %s213, 1
    %p217 = scmp.eq.s32.totalorder %s17, 3
    %p218 = scmp.ne.s32.totalorder %s213, %s215
    %p219 = scmp.eq.s32.totalorder %s17, 0
    %p220 = por %p218, %p219
    %p221 = scmp.ne.s32.totalorder %s213, %s215
    %p222 = scmp.eq.s32.totalorder %s22, 3
    %p223 = por %p221, %p222
    %p224 = scmp.ne.s32.totalorder %s215, %s216
    %p225 = scmp.eq.s32.totalorder %s22, 0
    %p226 = por %p224, %p225
    %p227 = scmp.ne.s32.totalorder %s215, %s216
    %p228 = scmp.eq.s32.totalorder %s23, 3
    %p229 = por %p227, %p228
    %p231 = scmp.ne.s32.totalorder %s216, %s230
    %p232 = scmp.eq.s32.totalorder %s23, 0
    %p233 = por %p231, %p232
    %s234 = ssub.s32 %s17, %s24
    %p235 = scmp.eq.s32.totalorder %s234, 0
    %s237 = sadd.s32 %s236, 1
    %s238 = scalar_select %p235, %s236, %s237
    %p241 = pneg %p235
    %p242 = scmp.eq.s32.totalorder %s17, 3
    %p243 = por %p241, %p242
    %p244 = scmp.ne.s32.totalorder %s236, %s239
    %p245 = scmp.eq.s32.totalorder %s17, 0
    %p246 = por %p244, %p245
    %p247 = scmp.ne.s32.totalorder %s236, %s239
    %p248 = scmp.eq.s32.totalorder %s22, 3
    %p249 = por %p247, %p248
    %p250 = scmp.ne.s32.totalorder %s239, %s240
    %p251 = scmp.eq.s32.totalorder %s22, 0
    %p252 = por %p250, %p251
    %p253 = scmp.ne.s32.totalorder %s239, %s240
    %p254 = scmp.eq.s32.totalorder %s23, 3
    %p255 = por %p253, %p254
    %p257 = scmp.ne.s32.totalorder %s240, %s256
    %p258 = scmp.eq.s32.totalorder %s23, 0
    %p259 = por %p257, %p258
    %s260 = ssub.s32 %s17, %s24
    %p261 = scmp.eq.s32.totalorder %s260, 0
    %s263 = sadd.s32 %s262, 1
    %s264 = scalar_select %p261, %s262, %s263
    %p267 = pneg %p261
    %p268 = scmp.eq.s32.totalorder %s17, 3
    %p269 = por %p267, %p268
    %p270 = scmp.ne.s32.totalorder %s262, %s265
    %p271 = scmp.eq.s32.totalorder %s17, 0
    %p272 = por %p270, %p271
    %p273 = scmp.ne.s32.totalorder %s262, %s265
    %p274 = scmp.eq.s32.totalorder %s22, 3
    %p275 = por %p273, %p274
    %p276 = scmp.ne.s32.totalorder %s265, %s266
    %p277 = scmp.eq.s32.totalorder %s22, 0
    %p278 = por %p276, %p277
    %p279 = scmp.ne.s32.totalorder %s265, %s266
    %p280 = scmp.eq.s32.totalorder %s23, 3
    %p281 = por %p279, %p280
    %p283 = scmp.ne.s32.totalorder %s266, %s282
    %p284 = scmp.eq.s32.totalorder %s23, 0
    %p285 = por %p283, %p284
    %p286 = scmp.le.s32.totalorder 1, %s17
    %p287 = scmp.lt.s32.totalorder %s17, 5
    %p288 = pnand %p286, %p287
    %p289 = pneg %p288
    // Predicated region
    $region9: #{comenet_forward.12} parent=5 // pred_check
      _
    $region10: #{comenet_forward.12} parent=5 // pred_check_branch
      %291 = sbr.rel (%p288) target = $region12
    $region11: #{comenet_forward.12} parent=5 // pred_region
      %s292 = ssub.s32 %s17, 1
      // Predicated region
      $region13: #{comenet_forward.12} parent=11 // pred_check
        %p293 = pneg %p142
      $region14: #{comenet_forward.12} parent=11 // pred_check_branch
        %295 = sbr.rel (%p293) target = $region16
      $region15: #{comenet_forward.12} parent=11 // pred_region
        _
      $region16: #{comenet_forward.12} parent=11 // pred_fallthru
        _
      // Predicated region
      $region17: #{comenet_forward.12} parent=11 // pred_check
        %p296 = pneg %p163
      $region18: #{comenet_forward.12} parent=11 // pred_check_branch
        %298 = sbr.rel (%p296) target = $region20
      $region19: #{comenet_forward.12} parent=11 // pred_region
        _
      $region20: #{comenet_forward.12} parent=11 // pred_fallthru
        _
      // Predicated region
      $region21: #{comenet_forward.12} parent=11 // pred_check
        %p299 = pneg %p184
      $region22: #{comenet_forward.12} parent=11 // pred_check_branch
        %301 = sbr.rel (%p299) target = $region24
      $region23: #{comenet_forward.12} parent=11 // pred_region
        _
      $region24: #{comenet_forward.12} parent=11 // pred_fallthru
        _
      // Predicated region
      $region25: #{comenet_forward.12} parent=11 // pred_check
        %p302 = pneg %p205
      $region26: #{comenet_forward.12} parent=11 // pred_check_branch
        %304 = sbr.rel (%p302) target = $region28
      $region27: #{comenet_forward.12} parent=11 // pred_region
        _
      $region28: #{comenet_forward.12} parent=11 // pred_fallthru
        _
      // Predicated region
      $region29: #{comenet_forward.12} parent=11 // pred_check
        %p305 = pneg %p226
      $region30: #{comenet_forward.12} parent=11 // pred_check_branch
        %307 = sbr.rel (%p305) target = $region32
      $region31: #{comenet_forward.12} parent=11 // pred_region
        _
      $region32: #{comenet_forward.12} parent=11 // pred_fallthru
        _
    $region12: #{comenet_forward.12} parent=5 // pred_fallthru
      _
    %p308 = scmp.lt.s32.totalorder %s17, 4
    // Predicated region
    $region33: #{comenet_forward.12} parent=5 // pred_check
      %p309 = pneg %p308
    $region34: #{comenet_forward.12} parent=5 // pred_check_branch
      %311 = sbr.rel (%p309) target = $region36
    $region35: #{comenet_forward.12} parent=5 // pred_region
      // Predicated region
      $region37: #{comenet_forward.12} parent=35 // pred_check
        %p312 = pneg %p37
      $region38: #{comenet_forward.12} parent=35 // pred_check_branch
        %314 = sbr.rel (%p312) target = $region40
      $region39: #{comenet_forward.12} parent=35 // pred_region
        %s315 = smul.u32 2, %s17
        %p316 = scmp.lt.s32.totalorder %s315, 7
        %s317 = scalar_select %p316, %s315, 7
        %s318 = smul.addr %s317, 8
        %s319 = scalar_lea.vmem %s0, %s318
        %s320 = smul.u32 2, %s17
      $region40: #{comenet_forward.12} parent=35 // pred_fallthru
        _
      // Predicated region
      $region41: #{comenet_forward.12} parent=35 // pred_check
        %p321 = pneg %p63
      $region42: #{comenet_forward.12} parent=35 // pred_check_branch
        %323 = sbr.rel (%p321) target = $region44
      $region43: #{comenet_forward.12} parent=35 // pred_region
        %s324 = smul.u32 2, %s17
        %p325 = scmp.lt.s32.totalorder %s324, 7
        %s326 = scalar_select %p325, %s324, 7
        %s327 = smul.addr %s326, 8
        %s328 = scalar_lea.vmem %s1, %s327
        %s329 = smul.u32 2, %s17
      $region44: #{comenet_forward.12} parent=35 // pred_fallthru
        _
      // Predicated region
      $region45: #{comenet_forward.12} parent=35 // pred_check
        %p330 = pneg %p89
      $region46: #{comenet_forward.12} parent=35 // pred_check_branch
        %332 = sbr.rel (%p330) target = $region48
      $region47: #{comenet_forward.12} parent=35 // pred_region
        %s333 = smul.u32 2, %s17
        %p334 = scmp.lt.s32.totalorder %s333, 7
        %s335 = scalar_select %p334, %s333, 7
        %s336 = smul.addr %s335, 8
        %s337 = scalar_lea.vmem %s2, %s336
        %s338 = smul.u32 2, %s17
      $region48: #{comenet_forward.12} parent=35 // pred_fallthru
        _
      // Predicated region
      $region49: #{comenet_forward.12} parent=35 // pred_check
        %p339 = pneg %p115
      $region50: #{comenet_forward.12} parent=35 // pred_check_branch
        %341 = sbr.rel (%p339) target = $region52
      $region51: #{comenet_forward.12} parent=35 // pred_region
        %s342 = smul.u32 2, %s17
        %p343 = scmp.lt.s32.totalorder %s342, 7
        %s344 = scalar_select %p343, %s342, 7
        %s345 = smul.addr %s344, 8
        %s346 = scalar_lea.vmem %s3, %s345
        %s347 = smul.u32 2, %s17
      $region52: #{comenet_forward.12} parent=35 // pred_fallthru
        _
    $region36: #{comenet_forward.12} parent=5 // pred_fallthru
      _
    %p348 = scmp.le.s32.totalorder 1, %s17
    %p349 = scmp.lt.s32.totalorder %s17, 5
    %p350 = pnand %p348, %p349
    %p351 = pneg %p350
    // Predicated region
    $region53: #{comenet_forward.12} parent=5 // pred_check
      _
    $region54: #{comenet_forward.12} parent=5 // pred_check_branch
      %353 = sbr.rel (%p350) target = $region56
    $region55: #{comenet_forward.12} parent=5 // pred_region
      %s354 = ssub.s32 %s17, 1
      %s355 = smul.u32 2, %s22
      %p356 = scmp.lt.s32.totalorder %s355, 7
      %s357 = scalar_select %p356, %s355, 7
      %s358 = smul.addr %s357, 8
      %s359 = scalar_lea.vmem %s0, %s358
      %p360 = pneg %p43
      %p361 = pneg %p40
      %s362 = smul.u32 2, %s22
      %p363 = scmp.lt.s32.totalorder %s362, 7
      %s364 = scalar_select %p363, %s362, 7
      %s365 = smul.addr %s364, 8
      %s366 = scalar_lea.vmem %s1, %s365
      %p367 = pneg %p69
      %p368 = pneg %p66
      %s369 = smul.u32 2, %s22
      %p370 = scmp.lt.s32.totalorder %s369, 7
      %s371 = scalar_select %p370, %s369, 7
      %s372 = smul.addr %s371, 8
      %s373 = scalar_lea.vmem %s2, %s372
      %p374 = pneg %p95
      %p375 = pneg %p92
      %s376 = smul.u32 2, %s22
      %p377 = scmp.lt.s32.totalorder %s376, 7
      %s378 = scalar_select %p377, %s376, 7
      %s379 = smul.addr %s378, 8
      %s380 = scalar_lea.vmem %s3, %s379
      %p381 = pneg %p121
      %p382 = pneg %p118
      %p383 = pneg %p142
      %p384 = pneg %p139
      %p385 = pneg %p163
      %p386 = pneg %p160
      %p387 = pneg %p184
      %p388 = pneg %p181
      %p389 = pneg %p205
      %p390 = pneg %p202
      %p391 = pneg %p226
      %p392 = pneg %p223
      %p393 = pneg %p252
      %p394 = pneg %p249
      %s395 = smul.u32 2, %s22
      %p396 = scmp.lt.s32.totalorder %s395, 7
      %s397 = scalar_select %p396, %s395, 7
      %s398 = smul.addr %s397, 8
      %s399 = scalar_lea.vmem %s9, %s398
      %p400 = pneg %p278
      %p401 = pneg %p275
      %s402 = smul.u32 2, %s22
      %p403 = scmp.lt.s32.totalorder %s402, 7
      %s404 = scalar_select %p403, %s402, 7
      %s405 = smul.addr %s404, 8
      %s406 = scalar_lea.vmem %s10, %s405
      %s407 = smul.u32 2, %s22
      %p408 = scmp.lt.s32.totalorder %s407, 7
      %s409 = scalar_select %p408, %s407, 7
      %s410 = smul.addr %s409, 8
      %s411 = scalar_lea.vmem %s0, %s410
      %s412 = smul.u32 2, %s22
      %s413 = smul.u32 2, %s22
      %p414 = scmp.lt.s32.totalorder %s413, 7
      %s415 = scalar_select %p414, %s413, 7
      %s416 = smul.addr %s415, 8
      %s417 = scalar_lea.vmem %s1, %s416
      %s418 = smul.u32 2, %s22
      %s419 = smul.u32 2, %s22
      %p420 = scmp.lt.s32.totalorder %s419, 7
      %s421 = scalar_select %p420, %s419, 7
      %s422 = smul.addr %s421, 8
      %s423 = scalar_lea.vmem %s2, %s422
      %s424 = smul.u32 2, %s22
      %s425 = smul.u32 2, %s22
      %p426 = scmp.lt.s32.totalorder %s425, 7
      %s427 = scalar_select %p426, %s425, 7
      %s428 = smul.addr %s427, 8
      %s429 = scalar_lea.vmem %s3, %s428
      %s430 = smul.u32 2, %s22
      %s431 = smul.u32 2, %s22
      %p432 = scmp.lt.s32.totalorder %s431, 7
      %s433 = scalar_select %p432, %s431, 7
      %s434 = smul.addr %s433, 8
      %s435 = scalar_lea.vmem %s9, %s434
      %s436 = smul.u32 2, %s22
      %s437 = smul.u32 2, %s22
      %p438 = scmp.lt.s32.totalorder %s437, 7
      %s439 = scalar_select %p438, %s437, 7
      %s440 = smul.addr %s439, 8
      %s441 = scalar_lea.vmem %s10, %s440
      %s442 = smul.u32 2, %s22
      %v444 = vld [vmem:[%s411] sm:$0xff]
      %v445 = vld [vmem:[%s411 + $0x8] sm:$0xff]
      %v446 = vpack.c.bf16 %v445, %v444
      %v447 = vld [vmem:[%s429] sm:$0xff]
      %v448 = vld [vmem:[%s429 + $0x8] sm:$0xff]
      %s449 = smul.u32 %s22, 16
      %v450 = vlaneseq
      %v451 = vshrl.u32 %v450, 7
      %v452 = vadd.s32 %v451, 8
      %v453 = vstv %s449
      %v454 = vadd.s32 %v451, %v453
      %v455 = vadd.s32 %v452, %v453
      %vm456 = vcmp.lt.s32.totalorder %v454, 60
      %vm457 = vcmp.lt.s32.totalorder %v455, 60
      %v458 = vsel %vm456, 1, 0
      %v459 = vsel %vm457, 1, 0
      %v460 = vcvt.s32.f32 %v458
      %v461 = vcvt.s32.f32 %v459
      %v462 = vld [vmem:[%s417] sm:$0xff]
      %v463 = vld [vmem:[%s417 + $0x8] sm:$0xff]
      %v464 = vpack.c.bf16 %v463, %v462
      %v465 = vld [vmem:[%s4] sm:$0xf]
      %v466 = vld [vmem:[%s4 + $0x4] sm:$0xf]
      %v467 = vld [vmem:[%s4 + $0x8] sm:$0xf]
      %v468 = vld [vmem:[%s4 + $0xc] sm:$0xf]
      %v469 = vld [vmem:[%s4 + $0x10] sm:$0xf]
      %v470 = vld [vmem:[%s4 + $0x14] sm:$0xf]
      %v471 = vld [vmem:[%s4 + $0x18] sm:$0xf]
      %v472 = vld [vmem:[%s4 + $0x1c] sm:$0xf]
      %v473 = vld [vmem:[%s4 + $0x20] sm:$0xf]
      %v474 = vld [vmem:[%s4 + $0x24] sm:$0xf]
      %v475 = vld [vmem:[%s4 + $0x28] sm:$0xf]
      %v476 = vld [vmem:[%s4 + $0x2c] sm:$0xf]
      %v477 = vld [vmem:[%s4 + $0x30] sm:$0xf]
      %v478 = vld [vmem:[%s4 + $0x34] sm:$0xf]
      %v479 = vld [vmem:[%s4 + $0x38] sm:$0xf]
      %v480 = vld [vmem:[%s4 + $0x3c] sm:$0xf]
      %v481 = vld [vmem:[%s4 + $0x40] sm:$0xf]
      %v482 = vld [vmem:[%s4 + $0x44] sm:$0xf]
      %v483 = vld [vmem:[%s4 + $0x48] sm:$0xf]
      %v484 = vld [vmem:[%s4 + $0x4c] sm:$0xf]
      %v485 = vld [vmem:[%s4 + $0x50] sm:$0xf]
      %v486 = vld [vmem:[%s4 + $0x54] sm:$0xf]
      %v487 = vld [vmem:[%s4 + $0x58] sm:$0xf]
      %v488 = vld [vmem:[%s4 + $0x5c] sm:$0xf]
      %v489 = vld [vmem:[%s4 + $0x60] sm:$0xf]
      %v490 = vld [vmem:[%s4 + $0x64] sm:$0xf]
      %v491 = vld [vmem:[%s4 + $0x68] sm:$0xf]
      %v492 = vld [vmem:[%s4 + $0x6c] sm:$0xf]
      %v493 = vld [vmem:[%s4 + $0x70] sm:$0xf]
      %v494 = vld [vmem:[%s4 + $0x74] sm:$0xf]
      %v495 = vld [vmem:[%s4 + $0x78] sm:$0xf]
      %v496 = vld [vmem:[%s4 + $0x7c] sm:$0xf]
      %v497 = vld [vmem:[%s6] sm:$0x1]
      %v498 = vlaneseq
      %v499 = vshrl.u32 %v498, 7
      %v500 = vsub.s32 0, %v499
      %v501 = vrot.slane %v497, %v500
      %v534 = vunpack.c.l.b16 %v465
      %v535 = vunpack.c.l.b16 %v466
      %v536 = vunpack.c.l.b16 %v467
      %v537 = vunpack.c.l.b16 %v468
      %v538 = vunpack.c.l.b16 %v469
      %v539 = vunpack.c.l.b16 %v470
      %v540 = vunpack.c.l.b16 %v471
      %v541 = vunpack.c.l.b16 %v472
      %v542 = vunpack.c.l.b16 %v473
      %v543 = vunpack.c.l.b16 %v474
      %v544 = vunpack.c.l.b16 %v475
      %v545 = vunpack.c.l.b16 %v476
      %v546 = vunpack.c.l.b16 %v477
      %v547 = vunpack.c.l.b16 %v478
      %v548 = vunpack.c.l.b16 %v479
      %v549 = vunpack.c.l.b16 %v480
      %v550 = vunpack.c.l.b16 %v481
      %v551 = vunpack.c.l.b16 %v482
      %v552 = vunpack.c.l.b16 %v483
      %v553 = vunpack.c.l.b16 %v484
      %v554 = vunpack.c.l.b16 %v485
      %v555 = vunpack.c.l.b16 %v486
      %v556 = vunpack.c.l.b16 %v487
      %v557 = vunpack.c.l.b16 %v488
      %v558 = vunpack.c.l.b16 %v489
      %v559 = vunpack.c.l.b16 %v490
      %v560 = vunpack.c.l.b16 %v491
      %v561 = vunpack.c.l.b16 %v492
      %v562 = vunpack.c.l.b16 %v493
      %v563 = vunpack.c.l.b16 %v494
      %v564 = vunpack.c.l.b16 %v495
      %v565 = vunpack.c.l.b16 %v496
      %v566 = vpack.c.b16 %v535, %v534
      %v567 = vpack.c.b16 %v537, %v536
      %v568 = vpack.c.b16 %v539, %v538
      %v569 = vpack.c.b16 %v541, %v540
      %v570 = vpack.c.b16 %v543, %v542
      %v571 = vpack.c.b16 %v545, %v544
      %v572 = vpack.c.b16 %v547, %v546
      %v573 = vpack.c.b16 %v549, %v548
      %v574 = vpack.c.b16 %v551, %v550
      %v575 = vpack.c.b16 %v553, %v552
      %v576 = vpack.c.b16 %v555, %v554
      %v577 = vpack.c.b16 %v557, %v556
      %v578 = vpack.c.b16 %v559, %v558
      %v579 = vpack.c.b16 %v561, %v560
      %v580 = vpack.c.b16 %v563, %v562
      %v581 = vpack.c.b16 %v565, %v564
      %598 = vmatprep.subr.bf16.mxu0 0
      %599 = vmatpush1.bf16.msra.mxu0 %v566
      %600 = vmatprep.subr.bf16.mxu0 0
      %601 = vmatpush1.bf16.msra.mxu0 %v567
      %602 = vmatprep.subr.bf16.mxu0 0
      %603 = vmatpush1.bf16.msra.mxu0 %v568
      %604 = vmatprep.subr.bf16.mxu0 0
      %605 = vmatpush1.bf16.msra.mxu0 %v569
      %606 = vmatprep.subr.bf16.mxu0 0
      %607 = vmatpush1.bf16.msra.mxu0 %v570
      %608 = vmatprep.subr.bf16.mxu0 0
      %609 = vmatpush1.bf16.msra.mxu0 %v571
      %610 = vmatprep.subr.bf16.mxu0 0
      %611 = vmatpush1.bf16.msra.mxu0 %v572
      %612 = vmatprep.subr.bf16.mxu0 0
      %613 = vmatpush1.bf16.msra.mxu0 %v573
      %614 = vmatprep.subr.bf16.mxu0 0
      %615 = vmatpush1.bf16.msra.mxu0 %v574
      %616 = vmatprep.subr.bf16.mxu0 0
      %617 = vmatpush1.bf16.msra.mxu0 %v575
      %618 = vmatprep.subr.bf16.mxu0 0
      %619 = vmatpush1.bf16.msra.mxu0 %v576
      %620 = vmatprep.subr.bf16.mxu0 0
      %621 = vmatpush1.bf16.msra.mxu0 %v577
      %622 = vmatprep.subr.bf16.mxu0 0
      %623 = vmatpush1.bf16.msra.mxu0 %v578
      %624 = vmatprep.subr.bf16.mxu0 0
      %625 = vmatpush1.bf16.msra.mxu0 %v579
      %626 = vmatprep.subr.bf16.mxu0 0
      %627 = vmatpush1.bf16.msra.mxu0 %v580
      %628 = vmatprep.subr.bf16.mxu0 0
      %629 = vmatpush1.bf16.msra.mxu0 %v581
      %630 = vmatprep.mubr.bf16.mxu0 %v464
      %631 = vmatmul.mubr.bf16.gmra.mrb[0].mxu0 %v446
      %v632 = vpop.f32.mrb[0].mxu0
      %v633 = vadd.f32 %v501, %v632
      %v634 = vpop.f32.mrb[0].mxu0
      %v635 = vpop.f32.mrb[0].mxu0
      %v636 = vadd.f32 %v501, %v635
      %v637 = vpop.f32.mrb[0].mxu0
      %638 = vdwg.mxu0
      %v639 = vxor.u32 %v633, 2147483648
      %v640 = vxor.u32 %v636, 2147483648
      %v641 = vmul.f32 %v639, 1.442695
      %v642 = vpow.pop %v641
      %v643 = vmul.f32 %v640, 1.442695
      %v644 = vpow.pop %v643
      %v645 = vadd.f32 %v642, 1.0
      %v646 = vadd.f32 %v644, 1.0
      %v647 = vrcp.pop %v645
      %v648 = vmul.f32 1.0, %v647
      %v649 = vrcp.pop %v646
      %v650 = vmul.f32 1.0, %v649
      %v651 = vmul.f32 %v633, %v648
      %v652 = vmul.f32 %v636, %v650
      %v653 = vld [vmem:[%s5] sm:$0xf]
      %v654 = vld [vmem:[%s5 + $0x4] sm:$0xf]
      %v655 = vld [vmem:[%s5 + $0x8] sm:$0xf]
      %v656 = vld [vmem:[%s5 + $0xc] sm:$0xf]
      %v657 = vld [vmem:[%s5 + $0x10] sm:$0xf]
      %v658 = vld [vmem:[%s5 + $0x14] sm:$0xf]
      %v659 = vld [vmem:[%s5 + $0x18] sm:$0xf]
      %v660 = vld [vmem:[%s5 + $0x1c] sm:$0xf]
      %v661 = vld [vmem:[%s5 + $0x20] sm:$0xf]
      %v662 = vld [vmem:[%s5 + $0x24] sm:$0xf]
      %v663 = vld [vmem:[%s5 + $0x28] sm:$0xf]
      %v664 = vld [vmem:[%s5 + $0x2c] sm:$0xf]
      %v665 = vld [vmem:[%s5 + $0x30] sm:$0xf]
      %v666 = vld [vmem:[%s5 + $0x34] sm:$0xf]
      %v667 = vld [vmem:[%s5 + $0x38] sm:$0xf]
      %v668 = vld [vmem:[%s5 + $0x3c] sm:$0xf]
      %v669 = vpack.c.bf16 %v652, %v651
      %v670 = vld [vmem:[%s6 + $0x1] sm:$0x1]
      %v671 = vlaneseq
      %v672 = vshrl.u32 %v671, 7
      %v673 = vsub.s32 0, %v672
      %v674 = vrot.slane %v670, %v673
      %v691 = vunpack.c.l.b16 %v653
      %v692 = vunpack.c.l.b16 %v654
      %v693 = vunpack.c.l.b16 %v655
      %v694 = vunpack.c.l.b16 %v656
      %v695 = vunpack.c.l.b16 %v657
      %v696 = vunpack.c.l.b16 %v658
      %v697 = vunpack.c.l.b16 %v659
      %v698 = vunpack.c.l.b16 %v660
      %v699 = vunpack.c.l.b16 %v661
      %v700 = vunpack.c.l.b16 %v662
      %v701 = vunpack.c.l.b16 %v663
      %v702 = vunpack.c.l.b16 %v664
      %v703 = vunpack.c.l.b16 %v665
      %v704 = vunpack.c.l.b16 %v666
      %v705 = vunpack.c.l.b16 %v667
      %v706 = vunpack.c.l.b16 %v668
      %v707 = vpack.c.b16 %v692, %v691
      %v708 = vpack.c.b16 %v694, %v693
      %v709 = vpack.c.b16 %v696, %v695
      %v710 = vpack.c.b16 %v698, %v697
      %v711 = vpack.c.b16 %v700, %v699
      %v712 = vpack.c.b16 %v702, %v701
      %v713 = vpack.c.b16 %v704, %v703
      %v714 = vpack.c.b16 %v706, %v705
      %723 = vmatprep.subr.bf16.mxu0 0
      %724 = vmatpush1.bf16.msra.mxu0 %v707
      %725 = vmatprep.subr.bf16.mxu0 0
      %726 = vmatpush1.bf16.msra.mxu0 %v708
      %727 = vmatprep.subr.bf16.mxu0 0
      %728 = vmatpush1.bf16.msra.mxu0 %v709
      %729 = vmatprep.subr.bf16.mxu0 0
      %730 = vmatpush1.bf16.msra.mxu0 %v710
      %731 = vmatprep.subr.bf16.mxu0 0
      %732 = vmatpush1.bf16.msra.mxu0 %v711
      %733 = vmatprep.subr.bf16.mxu0 0
      %734 = vmatpush1.bf16.msra.mxu0 %v712
      %735 = vmatprep.subr.bf16.mxu0 0
      %736 = vmatpush1.bf16.msra.mxu0 %v713
      %737 = vmatprep.subr.bf16.mxu0 0
      %738 = vmatpush1.bf16.msra.mxu0 %v714
      %739 = vmatprep.subr.bf16.mxu0 0
      %740 = vmatpush1.bf16.msra.mxu0 0
      %741 = vmatprep.subr.bf16.mxu0 0
      %742 = vmatpush1.bf16.msra.mxu0 0
      %743 = vmatprep.subr.bf16.mxu0 0
      %744 = vmatpush1.bf16.msra.mxu0 0
      %745 = vmatprep.subr.bf16.mxu0 0
      %746 = vmatpush1.bf16.msra.mxu0 0
      %747 = vmatprep.subr.bf16.mxu0 0
      %748 = vmatpush1.bf16.msra.mxu0 0
      %749 = vmatprep.subr.bf16.mxu0 0
      %750 = vmatpush1.bf16.msra.mxu0 0
      %751 = vmatprep.subr.bf16.mxu0 0
      %752 = vmatpush1.bf16.msra.mxu0 0
      %753 = vmatprep.subr.bf16.mxu0 0
      %754 = vmatpush1.bf16.msra.mxu0 0
      %755 = vmatprep.mubr.bf16.mxu0 0
      %756 = vmatmul.mubr.bf16.gmra.mrb[0].mxu0 %v669
      %v757 = vpop.f32.mrb[0].mxu0
      %v758 = vadd.f32 %v674, %v757
      %v759 = vpop.f32.mrb[0].mxu0
      %v760 = vpop.f32.mrb[0].mxu0
      %v761 = vadd.f32 %v674, %v760
      %v762 = vpop.f32.mrb[0].mxu0
      %763 = vdwg.mxu0
      %v764 = vmul.f32 %v758, %v447
      %v765 = vmul.f32 %v761, %v448
      %v766 = vld [vmem:[%s7] sm:$0x1]
      %v767 = vlaneseq
      %v768 = vshrl.u32 %v767, 7
      %v769 = vsub.s32 0, %v768
      %v770 = vrot.slane %v766, %v769
      %v771 = vmul.f32 %v764, %v770
      %v772 = vmul.f32 %v765, %v770
      %773 = vadd.xlane.f32.xlu0 %v771
      %v774 = vpop.xlane.xlu0 %773
      %775 = vadd.xlane.f32.xlu0 %v772
      %v776 = vpop.xlane.xlu0 %775
      %v777 = vld [vmem:[%s8] sm:$0x1]
      %v778 = vlaneseq
      %v779 = vshrl.u32 %v778, 7
      %v780 = vsub.s32 0, %v779
      %v781 = vrot.slane %v777, %v780
      %v782 = vadd.f32 %v774, %v781
      %v783 = vadd.f32 %v776, %v781
      %v784 = vxor.u32 %v782, 2147483648
      %v785 = vxor.u32 %v783, 2147483648
      %v786 = vmul.f32 %v784, 1.442695
      %v787 = vpow.pop %v786
      %v788 = vmul.f32 %v785, 1.442695
      %v789 = vpow.pop %v788
      %v790 = vadd.f32 %v787, 1.0
      %v791 = vadd.f32 %v789, 1.0
      %v792 = vrcp.pop %v790
      %v793 = vmul.f32 1.0, %v792
      %v794 = vrcp.pop %v791
      %v795 = vmul.f32 1.0, %v794
      %797 = vset.pattern.permute.xlu0 0
      %798 = vperm.xlu0 %797, %v793
      %v799 = vpop.permute.xlu0 %798
      %802 = vset.pattern.permute.xlu0 0
      %803 = vperm.xlu0 %802, %v795
      %v804 = vpop.permute.xlu0 %803
      %v806 = vmul.f32 %v764, %v799
      %v807 = vmul.f32 %v765, %v804
      %v808 = vmul.f32 %v806, %v460
      %v809 = vmul.f32 %v807, %v461
      %810 = vst [vmem:[%s435] sm:$0xff] %v808
      %811 = vst [vmem:[%s435 + $0x8] sm:$0xff] %v809
      %v812 = vld [vmem:[%s423] sm:$0xff]
      %v813 = vld [vmem:[%s423 + $0x8] sm:$0xff]
      %v814 = vpack.c.bf16 %v813, %v812
      %s815 = scalar_lea.vmem %s4, 128
      %v816 = vld [vmem:[%s815] sm:$0xf]
      %v817 = vld [vmem:[%s815 + $0x4] sm:$0xf]
      %v818 = vld [vmem:[%s815 + $0x8] sm:$0xf]
      %v819 = vld [vmem:[%s815 + $0xc] sm:$0xf]
      %v820 = vld [vmem:[%s815 + $0x10] sm:$0xf]
      %v821 = vld [vmem:[%s815 + $0x14] sm:$0xf]
      %v822 = vld [vmem:[%s815 + $0x18] sm:$0xf]
      %v823 = vld [vmem:[%s815 + $0x1c] sm:$0xf]
      %v824 = vld [vmem:[%s815 + $0x20] sm:$0xf]
      %v825 = vld [vmem:[%s815 + $0x24] sm:$0xf]
      %v826 = vld [vmem:[%s815 + $0x28] sm:$0xf]
      %v827 = vld [vmem:[%s815 + $0x2c] sm:$0xf]
      %v828 = vld [vmem:[%s815 + $0x30] sm:$0xf]
      %v829 = vld [vmem:[%s815 + $0x34] sm:$0xf]
      %v830 = vld [vmem:[%s815 + $0x38] sm:$0xf]
      %v831 = vld [vmem:[%s815 + $0x3c] sm:$0xf]
      %v832 = vld [vmem:[%s815 + $0x40] sm:$0xf]
      %v833 = vld [vmem:[%s815 + $0x44] sm:$0xf]
      %v834 = vld [vmem:[%s815 + $0x48] sm:$0xf]
      %v835 = vld [vmem:[%s815 + $0x4c] sm:$0xf]
      %v836 = vld [vmem:[%s815 + $0x50] sm:$0xf]
      %v837 = vld [vmem:[%s815 + $0x54] sm:$0xf]
      %v838 = vld [vmem:[%s815 + $0x58] sm:$0xf]
      %v839 = vld [vmem:[%s815 + $0x5c] sm:$0xf]
      %v840 = vld [vmem:[%s815 + $0x60] sm:$0xf]
      %v841 = vld [vmem:[%s815 + $0x64] sm:$0xf]
      %v842 = vld [vmem:[%s815 + $0x68] sm:$0xf]
      %v843 = vld [vmem:[%s815 + $0x6c] sm:$0xf]
      %v844 = vld [vmem:[%s815 + $0x70] sm:$0xf]
      %v845 = vld [vmem:[%s815 + $0x74] sm:$0xf]
      %v846 = vld [vmem:[%s815 + $0x78] sm:$0xf]
      %v847 = vld [vmem:[%s815 + $0x7c] sm:$0xf]
      %v848 = vld [vmem:[%s6 + $0x2] sm:$0x1]
      %v849 = vlaneseq
      %v850 = vshrl.u32 %v849, 7
      %v851 = vsub.s32 0, %v850
      %v852 = vrot.slane %v848, %v851
      %v885 = vunpack.c.l.b16 %v816
      %v886 = vunpack.c.l.b16 %v817
      %v887 = vunpack.c.l.b16 %v818
      %v888 = vunpack.c.l.b16 %v819
      %v889 = vunpack.c.l.b16 %v820
      %v890 = vunpack.c.l.b16 %v821
      %v891 = vunpack.c.l.b16 %v822
      %v892 = vunpack.c.l.b16 %v823
      %v893 = vunpack.c.l.b16 %v824
      %v894 = vunpack.c.l.b16 %v825
      %v895 = vunpack.c.l.b16 %v826
      %v896 = vunpack.c.l.b16 %v827
      %v897 = vunpack.c.l.b16 %v828
      %v898 = vunpack.c.l.b16 %v829
      %v899 = vunpack.c.l.b16 %v830
      %v900 = vunpack.c.l.b16 %v831
      %v901 = vunpack.c.l.b16 %v832
      %v902 = vunpack.c.l.b16 %v833
      %v903 = vunpack.c.l.b16 %v834
      %v904 = vunpack.c.l.b16 %v835
      %v905 = vunpack.c.l.b16 %v836
      %v906 = vunpack.c.l.b16 %v837
      %v907 = vunpack.c.l.b16 %v838
      %v908 = vunpack.c.l.b16 %v839
      %v909 = vunpack.c.l.b16 %v840
      %v910 = vunpack.c.l.b16 %v841
      %v911 = vunpack.c.l.b16 %v842
      %v912 = vunpack.c.l.b16 %v843
      %v913 = vunpack.c.l.b16 %v844
      %v914 = vunpack.c.l.b16 %v845
      %v915 = vunpack.c.l.b16 %v846
      %v916 = vunpack.c.l.b16 %v847
      %v917 = vpack.c.b16 %v886, %v885
      %v918 = vpack.c.b16 %v888, %v887
      %v919 = vpack.c.b16 %v890, %v889
      %v920 = vpack.c.b16 %v892, %v891
      %v921 = vpack.c.b16 %v894, %v893
      %v922 = vpack.c.b16 %v896, %v895
      %v923 = vpack.c.b16 %v898, %v897
      %v924 = vpack.c.b16 %v900, %v899
      %v925 = vpack.c.b16 %v902, %v901
      %v926 = vpack.c.b16 %v904, %v903
      %v927 = vpack.c.b16 %v906, %v905
      %v928 = vpack.c.b16 %v908, %v907
      %v929 = vpack.c.b16 %v910, %v909
      %v930 = vpack.c.b16 %v912, %v911
      %v931 = vpack.c.b16 %v914, %v913
      %v932 = vpack.c.b16 %v916, %v915
      %949 = vmatprep.subr.bf16.mxu0 0
      %950 = vmatpush1.bf16.msra.mxu0 %v917
      %951 = vmatprep.subr.bf16.mxu0 0
      %952 = vmatpush1.bf16.msra.mxu0 %v918
      %953 = vmatprep.subr.bf16.mxu0 0
      %954 = vmatpush1.bf16.msra.mxu0 %v919
      %955 = vmatprep.subr.bf16.mxu0 0
      %956 = vmatpush1.bf16.msra.mxu0 %v920
      %957 = vmatprep.subr.bf16.mxu0 0
      %958 = vmatpush1.bf16.msra.mxu0 %v921
      %959 = vmatprep.subr.bf16.mxu0 0
      %960 = vmatpush1.bf16.msra.mxu0 %v922
      %961 = vmatprep.subr.bf16.mxu0 0
      %962 = vmatpush1.bf16.msra.mxu0 %v923
      %963 = vmatprep.subr.bf16.mxu0 0
      %964 = vmatpush1.bf16.msra.mxu0 %v924
      %965 = vmatprep.subr.bf16.mxu0 0
      %966 = vmatpush1.bf16.msra.mxu0 %v925
      %967 = vmatprep.subr.bf16.mxu0 0
      %968 = vmatpush1.bf16.msra.mxu0 %v926
      %969 = vmatprep.subr.bf16.mxu0 0
      %970 = vmatpush1.bf16.msra.mxu0 %v927
      %971 = vmatprep.subr.bf16.mxu0 0
      %972 = vmatpush1.bf16.msra.mxu0 %v928
      %973 = vmatprep.subr.bf16.mxu0 0
      %974 = vmatpush1.bf16.msra.mxu0 %v929
      %975 = vmatprep.subr.bf16.mxu0 0
      %976 = vmatpush1.bf16.msra.mxu0 %v930
      %977 = vmatprep.subr.bf16.mxu0 0
      %978 = vmatpush1.bf16.msra.mxu0 %v931
      %979 = vmatprep.subr.bf16.mxu0 0
      %980 = vmatpush1.bf16.msra.mxu0 %v932
      %981 = vmatprep.mubr.bf16.mxu0 %v814
      %982 = vmatmul.mubr.bf16.gmra.mrb[0].mxu0 %v446
      %v983 = vpop.f32.mrb[0].mxu0
      %v984 = vadd.f32 %v852, %v983
      %v985 = vpop.f32.mrb[0].mxu0
      %v986 = vpop.f32.mrb[0].mxu0
      %v987 = vadd.f32 %v852, %v986
      %v988 = vpop.f32.mrb[0].mxu0
      %989 = vdwg.mxu0
      %v990 = vxor.u32 %v984, 2147483648
      %v991 = vxor.u32 %v987, 2147483648
      %v992 = vmul.f32 %v990, 1.442695
      %v993 = vpow.pop %v992
      %v994 = vmul.f32 %v991, 1.442695
      %v995 = vpow.pop %v994
      %v996 = vadd.f32 %v993, 1.0
      %v997 = vadd.f32 %v995, 1.0
      %v998 = vrcp.pop %v996
      %v999 = vmul.f32 1.0, %v998
      %v1000 = vrcp.pop %v997
      %v1001 = vmul.f32 1.0, %v1000
      %v1002 = vmul.f32 %v984, %v999
      %v1003 = vmul.f32 %v987, %v1001
      %s1004 = scalar_lea.vmem %s5, 64
      %v1005 = vld [vmem:[%s1004] sm:$0xf]
      %v1006 = vld [vmem:[%s1004 + $0x4] sm:$0xf]
      %v1007 = vld [vmem:[%s1004 + $0x8] sm:$0xf]
      %v1008 = vld [vmem:[%s1004 + $0xc] sm:$0xf]
      %v1009 = vld [vmem:[%s1004 + $0x10] sm:$0xf]
      %v1010 = vld [vmem:[%s1004 + $0x14] sm:$0xf]
      %v1011 = vld [vmem:[%s1004 + $0x18] sm:$0xf]
      %v1012 = vld [vmem:[%s1004 + $0x1c] sm:$0xf]
      %v1013 = vld [vmem:[%s1004 + $0x20] sm:$0xf]
      %v1014 = vld [vmem:[%s1004 + $0x24] sm:$0xf]
      %v1015 = vld [vmem:[%s1004 + $0x28] sm:$0xf]
      %v1016 = vld [vmem:[%s1004 + $0x2c] sm:$0xf]
      %v1017 = vld [vmem:[%s1004 + $0x30] sm:$0xf]
      %v1018 = vld [vmem:[%s1004 + $0x34] sm:$0xf]
      %v1019 = vld [vmem:[%s1004 + $0x38] sm:$0xf]
      %v1020 = vld [vmem:[%s1004 + $0x3c] sm:$0xf]
      %v1021 = vpack.c.bf16 %v1003, %v1002
      %v1022 = vld [vmem:[%s6 + $0x3] sm:$0x1]
      %v1023 = vlaneseq
      %v1024 = vshrl.u32 %v1023, 7
      %v1025 = vsub.s32 0, %v1024
      %v1026 = vrot.slane %v1022, %v1025
      %v1043 = vunpack.c.l.b16 %v1005
      %v1044 = vunpack.c.l.b16 %v1006
      %v1045 = vunpack.c.l.b16 %v1007
      %v1046 = vunpack.c.l.b16 %v1008
      %v1047 = vunpack.c.l.b16 %v1009
      %v1048 = vunpack.c.l.b16 %v1010
      %v1049 = vunpack.c.l.b16 %v1011
      %v1050 = vunpack.c.l.b16 %v1012
      %v1051 = vunpack.c.l.b16 %v1013
      %v1052 = vunpack.c.l.b16 %v1014
      %v1053 = vunpack.c.l.b16 %v1015
      %v1054 = vunpack.c.l.b16 %v1016
      %v1055 = vunpack.c.l.b16 %v1017
      %v1056 = vunpack.c.l.b16 %v1018
      %v1057 = vunpack.c.l.b16 %v1019
      %v1058 = vunpack.c.l.b16 %v1020
      %v1059 = vpack.c.b16 %v1044, %v1043
      %v1060 = vpack.c.b16 %v1046, %v1045
      %v1061 = vpack.c.b16 %v1048, %v1047
      %v1062 = vpack.c.b16 %v1050, %v1049
      %v1063 = vpack.c.b16 %v1052, %v1051
      %v1064 = vpack.c.b16 %v1054, %v1053
      %v1065 = vpack.c.b16 %v1056, %v1055
      %v1066 = vpack.c.b16 %v1058, %v1057
      %1075 = vmatprep.subr.bf16.mxu0 0
      %1076 = vmatpush1.bf16.msra.mxu0 %v1059
      %1077 = vmatprep.subr.bf16.mxu0 0
      %1078 = vmatpush1.bf16.msra.mxu0 %v1060
      %1079 = vmatprep.subr.bf16.mxu0 0
      %1080 = vmatpush1.bf16.msra.mxu0 %v1061
      %1081 = vmatprep.subr.bf16.mxu0 0
      %1082 = vmatpush1.bf16.msra.mxu0 %v1062
      %1083 = vmatprep.subr.bf16.mxu0 0
      %1084 = vmatpush1.bf16.msra.mxu0 %v1063
      %1085 = vmatprep.subr.bf16.mxu0 0
      %1086 = vmatpush1.bf16.msra.mxu0 %v1064
      %1087 = vmatprep.subr.bf16.mxu0 0
      %1088 = vmatpush1.bf16.msra.mxu0 %v1065
      %1089 = vmatprep.subr.bf16.mxu0 0
      %1090 = vmatpush1.bf16.msra.mxu0 %v1066
      %1091 = vmatprep.subr.bf16.mxu0 0
      %1092 = vmatpush1.bf16.msra.mxu0 0
      %1093 = vmatprep.subr.bf16.mxu0 0
      %1094 = vmatpush1.bf16.msra.mxu0 0
      %1095 = vmatprep.subr.bf16.mxu0 0
      %1096 = vmatpush1.bf16.msra.mxu0 0
      %1097 = vmatprep.subr.bf16.mxu0 0
      %1098 = vmatpush1.bf16.msra.mxu0 0
      %1099 = vmatprep.subr.bf16.mxu0 0
      %1100 = vmatpush1.bf16.msra.mxu0 0
      %1101 = vmatprep.subr.bf16.mxu0 0
      %1102 = vmatpush1.bf16.msra.mxu0 0
      %1103 = vmatprep.subr.bf16.mxu0 0
      %1104 = vmatpush1.bf16.msra.mxu0 0
      %1105 = vmatprep.subr.bf16.mxu0 0
      %1106 = vmatpush1.bf16.msra.mxu0 0
      %1107 = vmatprep.mubr.bf16.mxu0 0
      %1108 = vmatmul.mubr.bf16.gmra.mrb[0].mxu0 %v1021
      %v1109 = vpop.f32.mrb[0].mxu0
      %v1110 = vadd.f32 %v1026, %v1109
      %v1111 = vpop.f32.mrb[0].mxu0
      %v1112 = vpop.f32.mrb[0].mxu0
      %v1113 = vadd.f32 %v1026, %v1112
      %v1114 = vpop.f32.mrb[0].mxu0
      %1115 = vdwg.mxu0
      %v1116 = vmul.f32 %v1110, %v447
      %v1117 = vmul.f32 %v1113, %v448
      %v1118 = vld [vmem:[%s7 + $0x1] sm:$0x1]
      %v1119 = vlaneseq
      %v1120 = vshrl.u32 %v1119, 7
      %v1121 = vsub.s32 0, %v1120
      %v1122 = vrot.slane %v1118, %v1121
      %v1123 = vmul.f32 %v1116, %v1122
      %v1124 = vmul.f32 %v1117, %v1122
      %1125 = vadd.xlane.f32.xlu0 %v1123
      %v1126 = vpop.xlane.xlu0 %1125
      %1127 = vadd.xlane.f32.xlu0 %v1124
      %v1128 = vpop.xlane.xlu0 %1127
      %v1129 = vld [vmem:[%s8 + $0x1] sm:$0x1]
      %v1130 = vlaneseq
      %v1131 = vshrl.u32 %v1130, 7
      %v1132 = vsub.s32 0, %v1131
      %v1133 = vrot.slane %v1129, %v1132
      %v1134 = vadd.f32 %v1126, %v1133
      %v1135 = vadd.f32 %v1128, %v1133
      %v1136 = vxor.u32 %v1134, 2147483648
      %v1137 = vxor.u32 %v1135, 2147483648
      %v1138 = vmul.f32 %v1136, 1.442695
      %v1139 = vpow.pop %v1138
      %v1140 = vmul.f32 %v1137, 1.442695
      %v1141 = vpow.pop %v1140
      %v1142 = vadd.f32 %v1139, 1.0
      %v1143 = vadd.f32 %v1141, 1.0
      %v1144 = vrcp.pop %v1142
      %v1145 = vmul.f32 1.0, %v1144
      %v1146 = vrcp.pop %v1143
      %v1147 = vmul.f32 1.0, %v1146
      %1149 = vset.pattern.permute.xlu0 0
      %1150 = vperm.xlu0 %1149, %v1145
      %v1151 = vpop.permute.xlu0 %1150
      %1154 = vset.pattern.permute.xlu0 0
      %1155 = vperm.xlu0 %1154, %v1147
      %v1156 = vpop.permute.xlu0 %1155
      %v1158 = vmul.f32 %v1116, %v1151
      %v1159 = vmul.f32 %v1117, %v1156
      %v1160 = vmul.f32 %v1158, %v460
      %v1161 = vmul.f32 %v1159, %v461
      %1162 = vst [vmem:[%s441] sm:$0xff] %v1160
      %1163 = vst [vmem:[%s441 + $0x8] sm:$0xff] %v1161
      %s1164 = smul.u32 2, %s22
      %p1165 = scmp.lt.s32.totalorder %s1164, 7
      %s1166 = scalar_select %p1165, %s1164, 7
      %s1167 = smul.addr %s1166, 8
      %s1168 = scalar_lea.vmem %s9, %s1167
      %s1169 = smul.u32 2, %s22
      %p1170 = scmp.lt.s32.totalorder %s1169, 7
      %s1171 = scalar_select %p1170, %s1169, 7
      %s1172 = smul.addr %s1171, 8
      %s1173 = scalar_lea.vmem %s10, %s1172
      // Predicated region
      $region57: #{comenet_forward.12} parent=55 // pred_check
        %p1174 = pneg %p249
      $region58: #{comenet_forward.12} parent=55 // pred_check_branch
        %1176 = sbr.rel (%p1174) target = $region60
      $region59: #{comenet_forward.12} parent=55 // pred_region
        %s1177 = smul.u32 2, %s22
      $region60: #{comenet_forward.12} parent=55 // pred_fallthru
        _
      // Predicated region
      $region61: #{comenet_forward.12} parent=55 // pred_check
        %p1178 = pneg %p275
      $region62: #{comenet_forward.12} parent=55 // pred_check_branch
        %1180 = sbr.rel (%p1178) target = $region64
      $region63: #{comenet_forward.12} parent=55 // pred_region
        %s1181 = smul.u32 2, %s22
      $region64: #{comenet_forward.12} parent=55 // pred_fallthru
        _
    $region56: #{comenet_forward.12} parent=5 // pred_fallthru
      _
    %p1182 = scmp.le.s32.totalorder 2, %s17
    // Predicated region
    $region65: #{comenet_forward.12} parent=5 // pred_check
      %p1183 = pneg %p1182
    $region66: #{comenet_forward.12} parent=5 // pred_check_branch
      %1185 = sbr.rel (%p1183) target = $region68
    $region67: #{comenet_forward.12} parent=5 // pred_region
      %s1186 = ssub.s32 %s17, 2
      // Predicated region
      $region69: #{comenet_forward.12} parent=67 // pred_check
        %p1187 = pneg %p255
      $region70: #{comenet_forward.12} parent=67 // pred_check_branch
        %1189 = sbr.rel (%p1187) target = $region72
      $region71: #{comenet_forward.12} parent=67 // pred_region
        %s1190 = smul.u32 2, %s23
        %p1191 = scmp.lt.s32.totalorder %s1190, 7
        %s1192 = scalar_select %p1191, %s1190, 7
        %s1193 = smul.addr %s1192, 8
        %s1194 = scalar_lea.vmem %s9, %s1193
      $region72: #{comenet_forward.12} parent=67 // pred_fallthru
        _
      // Predicated region
      $region73: #{comenet_forward.12} parent=67 // pred_check
        %p1195 = pneg %p281
      $region74: #{comenet_forward.12} parent=67 // pred_check_branch
        %1197 = sbr.rel (%p1195) target = $region76
      $region75: #{comenet_forward.12} parent=67 // pred_region
        %s1198 = smul.u32 2, %s23
        %p1199 = scmp.lt.s32.totalorder %s1198, 7
        %s1200 = scalar_select %p1199, %s1198, 7
        %s1201 = smul.addr %s1200, 8
        %s1202 = scalar_lea.vmem %s10, %s1201
      $region76: #{comenet_forward.12} parent=67 // pred_fallthru
        _
    $region68: #{comenet_forward.12} parent=5 // pred_fallthru
      _
  $region6: #{comenet_forward.12} parent=0 // loop_footer
    %s21 = sadd.s32 1, %s17
  $region7: #{comenet_forward.12} parent=0 // loop_footer_branch
    %16 = sbr.rel target = $region3
  $region8: #{comenet_forward.12} parent=0 // loop_exit
    _

// kernel: comenet_forward.10
$region0: #{comenet_forward.10}
  #allocation0 [shape = 'u32[]', space=smem, size = 0x4, offset = 0x4, fixed_abs, tag = 'smem constant byte address 0x4 - core index']
  #allocation1 [shape = 'u32[144,128]{1,0:T(1,128)}', space=vmem, size = 0x12000, scoped, tag = 'internal scratch']
  %s0 = inlined_call_operand.vmem [shape: f32[64,128], index: 0, kind: input, shape index: {}]
  %s1 = inlined_call_operand.vmem [shape: f32[64,128], index: 1, kind: input, shape index: {}]
  %s2 = inlined_call_operand.vmem [shape: f32[64,128], index: 2, kind: input, shape index: {}]
  %s3 = inlined_call_operand.vmem [shape: f32[64,128], index: 3, kind: input, shape index: {}]
  %s4 = inlined_call_operand.vmem [shape: bf16[128,128], index: 4, kind: input, shape index: {}]
  %s5 = inlined_call_operand.vmem [shape: bf16[128,128], index: 5, kind: input, shape index: {}]
  %s6 = inlined_call_operand.vmem [shape: bf16[3,128,128], index: 6, kind: input, shape index: {}]
  %s7 = inlined_call_operand.vmem [shape: bf16[256,128], index: 7, kind: input, shape index: {}]
  %s8 = inlined_call_operand.vmem [shape: f32[6,128], index: 8, kind: input, shape index: {}]
  %s9 = inlined_call_operand.vmem [shape: f32[64,128], index: 9, kind: output, shape index: {0}]
  %s10 = inlined_call_operand.vmem [shape: f32[64,128], index: 10, kind: output, shape index: {1}]
  %s11 = inlined_call_operand.vmem [shape: f32[64,128], index: 11, kind: output, shape index: {2}]
  %12 = xla_tuple %s9, %s10, %s11
  %s13 = sld [smem:[#allocation0]]
  $region85: #{comenet_forward.10} parent=0
    _
  %s15 = ssub.s32 1, %s13
  %s16 = scalar_select 0, %s15, %s13
  loop: start=0, step=1, limit=6
  $region2: #{comenet_forward.10} parent=0 // loop_pre_header
    _
  $region3: #{comenet_forward.10} parent=0 // loop_header
    %s18 = sphi 0, %s22
    %p19 = scmp.ge.s32.totalorder %s18, 6
    %s28 = sphi 0, %s30
    %s31 = sphi 0, %s28
    %s32 = sphi 0, %s31
    %s48 = sphi 0, %s32
    %s54 = sphi 0, %s56
    %s57 = sphi 0, %s54
    %s58 = sphi 0, %s57
    %s74 = sphi 0, %s58
    %s80 = sphi 0, %s82
    %s83 = sphi 0, %s80
    %s84 = sphi 0, %s83
    %s100 = sphi 0, %s84
    %s106 = sphi 0, %s108
    %s109 = sphi 0, %s106
    %s110 = sphi 0, %s109
    %s126 = sphi 0, %s110
    %s130 = sphi 0, %s130
    %s132 = sphi 0, %s130
    %s133 = sphi 0, %s132
    %s147 = sphi 0, %s133
    %s151 = sphi 0, %s151
    %s153 = sphi 0, %s151
    %s154 = sphi 0, %s153
    %s168 = sphi 0, %s154
    %s172 = sphi 0, %s172
    %s174 = sphi 0, %s172
    %s175 = sphi 0, %s174
    %s189 = sphi 0, %s175
    %s193 = sphi 0, %s193
    %s195 = sphi 0, %s193
    %s196 = sphi 0, %s195
    %s210 = sphi 0, %s196
    %s214 = sphi 0, %s214
    %s216 = sphi 0, %s214
    %s217 = sphi 0, %s216
    %s231 = sphi 0, %s217
    %s237 = sphi 0, %s239
    %s240 = sphi 0, %s237
    %s241 = sphi 0, %s240
    %s257 = sphi 0, %s241
    %s263 = sphi 0, %s265
    %s266 = sphi 0, %s263
    %s267 = sphi 0, %s266
    %s283 = sphi 0, %s267
    %s289 = sphi 0, %s291
    %s292 = sphi 0, %s289
    %s293 = sphi 0, %s292
    %s309 = sphi 0, %s293
  $region4: #{comenet_forward.10} parent=0 // loop_header_branch
    %21 = sbr.rel (%p19) target = $region8
  $region5: #{comenet_forward.10} parent=0 // loop_body
    %s23 = ssub.s32 %s18, 1
    %s24 = ssub.s32 %s18, 2
    %s25 = sadd.s32 %s18, 1
    %s26 = ssub.s32 %s18, %s25
    %p27 = scmp.eq.s32.totalorder %s26, 0
    %s29 = sadd.s32 %s28, 1
    %s30 = scalar_select %p27, %s28, %s29
    %p33 = pneg %p27
    %p34 = scmp.eq.s32.totalorder %s18, 3
    %p35 = por %p33, %p34
    %p36 = scmp.ne.s32.totalorder %s28, %s31
    %p37 = scmp.eq.s32.totalorder %s18, 0
    %p38 = por %p36, %p37
    %p39 = scmp.ne.s32.totalorder %s28, %s31
    %p40 = scmp.eq.s32.totalorder %s23, 3
    %p41 = por %p39, %p40
    %p42 = scmp.ne.s32.totalorder %s31, %s32
    %p43 = scmp.eq.s32.totalorder %s23, 0
    %p44 = por %p42, %p43
    %p45 = scmp.ne.s32.totalorder %s31, %s32
    %p46 = scmp.eq.s32.totalorder %s24, 3
    %p47 = por %p45, %p46
    %p49 = scmp.ne.s32.totalorder %s32, %s48
    %p50 = scmp.eq.s32.totalorder %s24, 0
    %p51 = por %p49, %p50
    %s52 = ssub.s32 %s18, %s25
    %p53 = scmp.eq.s32.totalorder %s52, 0
    %s55 = sadd.s32 %s54, 1
    %s56 = scalar_select %p53, %s54, %s55
    %p59 = pneg %p53
    %p60 = scmp.eq.s32.totalorder %s18, 3
    %p61 = por %p59, %p60
    %p62 = scmp.ne.s32.totalorder %s54, %s57
    %p63 = scmp.eq.s32.totalorder %s18, 0
    %p64 = por %p62, %p63
    %p65 = scmp.ne.s32.totalorder %s54, %s57
    %p66 = scmp.eq.s32.totalorder %s23, 3
    %p67 = por %p65, %p66
    %p68 = scmp.ne.s32.totalorder %s57, %s58
    %p69 = scmp.eq.s32.totalorder %s23, 0
    %p70 = por %p68, %p69
    %p71 = scmp.ne.s32.totalorder %s57, %s58
    %p72 = scmp.eq.s32.totalorder %s24, 3
    %p73 = por %p71, %p72
    %p75 = scmp.ne.s32.totalorder %s58, %s74
    %p76 = scmp.eq.s32.totalorder %s24, 0
    %p77 = por %p75, %p76
    %s78 = ssub.s32 %s18, %s25
    %p79 = scmp.eq.s32.totalorder %s78, 0
    %s81 = sadd.s32 %s80, 1
    %s82 = scalar_select %p79, %s80, %s81
    %p85 = pneg %p79
    %p86 = scmp.eq.s32.totalorder %s18, 3
    %p87 = por %p85, %p86
    %p88 = scmp.ne.s32.totalorder %s80, %s83
    %p89 = scmp.eq.s32.totalorder %s18, 0
    %p90 = por %p88, %p89
    %p91 = scmp.ne.s32.totalorder %s80, %s83
    %p92 = scmp.eq.s32.totalorder %s23, 3
    %p93 = por %p91, %p92
    %p94 = scmp.ne.s32.totalorder %s83, %s84
    %p95 = scmp.eq.s32.totalorder %s23, 0
    %p96 = por %p94, %p95
    %p97 = scmp.ne.s32.totalorder %s83, %s84
    %p98 = scmp.eq.s32.totalorder %s24, 3
    %p99 = por %p97, %p98
    %p101 = scmp.ne.s32.totalorder %s84, %s100
    %p102 = scmp.eq.s32.totalorder %s24, 0
    %p103 = por %p101, %p102
    %s104 = ssub.s32 %s18, %s25
    %p105 = scmp.eq.s32.totalorder %s104, 0
    %s107 = sadd.s32 %s106, 1
    %s108 = scalar_select %p105, %s106, %s107
    %p111 = pneg %p105
    %p112 = scmp.eq.s32.totalorder %s18, 3
    %p113 = por %p111, %p112
    %p114 = scmp.ne.s32.totalorder %s106, %s109
    %p115 = scmp.eq.s32.totalorder %s18, 0
    %p116 = por %p114, %p115
    %p117 = scmp.ne.s32.totalorder %s106, %s109
    %p118 = scmp.eq.s32.totalorder %s23, 3
    %p119 = por %p117, %p118
    %p120 = scmp.ne.s32.totalorder %s109, %s110
    %p121 = scmp.eq.s32.totalorder %s23, 0
    %p122 = por %p120, %p121
    %p123 = scmp.ne.s32.totalorder %s109, %s110
    %p124 = scmp.eq.s32.totalorder %s24, 3
    %p125 = por %p123, %p124
    %p127 = scmp.ne.s32.totalorder %s110, %s126
    %p128 = scmp.eq.s32.totalorder %s24, 0
    %p129 = por %p127, %p128
    %s131 = sadd.s32 %s130, 1
    %p134 = scmp.eq.s32.totalorder %s18, 3
    %p135 = scmp.ne.s32.totalorder %s130, %s132
    %p136 = scmp.eq.s32.totalorder %s18, 0
    %p137 = por %p135, %p136
    %p138 = scmp.ne.s32.totalorder %s130, %s132
    %p139 = scmp.eq.s32.totalorder %s23, 3
    %p140 = por %p138, %p139
    %p141 = scmp.ne.s32.totalorder %s132, %s133
    %p142 = scmp.eq.s32.totalorder %s23, 0
    %p143 = por %p141, %p142
    %p144 = scmp.ne.s32.totalorder %s132, %s133
    %p145 = scmp.eq.s32.totalorder %s24, 3
    %p146 = por %p144, %p145
    %p148 = scmp.ne.s32.totalorder %s133, %s147
    %p149 = scmp.eq.s32.totalorder %s24, 0
    %p150 = por %p148, %p149
    %s152 = sadd.s32 %s151, 1
    %p155 = scmp.eq.s32.totalorder %s18, 3
    %p156 = scmp.ne.s32.totalorder %s151, %s153
    %p157 = scmp.eq.s32.totalorder %s18, 0
    %p158 = por %p156, %p157
    %p159 = scmp.ne.s32.totalorder %s151, %s153
    %p160 = scmp.eq.s32.totalorder %s23, 3
    %p161 = por %p159, %p160
    %p162 = scmp.ne.s32.totalorder %s153, %s154
    %p163 = scmp.eq.s32.totalorder %s23, 0
    %p164 = por %p162, %p163
    %p165 = scmp.ne.s32.totalorder %s153, %s154
    %p166 = scmp.eq.s32.totalorder %s24, 3
    %p167 = por %p165, %p166
    %p169 = scmp.ne.s32.totalorder %s154, %s168
    %p170 = scmp.eq.s32.totalorder %s24, 0
    %p171 = por %p169, %p170
    %s173 = sadd.s32 %s172, 1
    %p176 = scmp.eq.s32.totalorder %s18, 3
    %p177 = scmp.ne.s32.totalorder %s172, %s174
    %p178 = scmp.eq.s32.totalorder %s18, 0
    %p179 = por %p177, %p178
    %p180 = scmp.ne.s32.totalorder %s172, %s174
    %p181 = scmp.eq.s32.totalorder %s23, 3
    %p182 = por %p180, %p181
    %p183 = scmp.ne.s32.totalorder %s174, %s175
    %p184 = scmp.eq.s32.totalorder %s23, 0
    %p185 = por %p183, %p184
    %p186 = scmp.ne.s32.totalorder %s174, %s175
    %p187 = scmp.eq.s32.totalorder %s24, 3
    %p188 = por %p186, %p187
    %p190 = scmp.ne.s32.totalorder %s175, %s189
    %p191 = scmp.eq.s32.totalorder %s24, 0
    %p192 = por %p190, %p191
    %s194 = sadd.s32 %s193, 1
    %p197 = scmp.eq.s32.totalorder %s18, 3
    %p198 = scmp.ne.s32.totalorder %s193, %s195
    %p199 = scmp.eq.s32.totalorder %s18, 0
    %p200 = por %p198, %p199
    %p201 = scmp.ne.s32.totalorder %s193, %s195
    %p202 = scmp.eq.s32.totalorder %s23, 3
    %p203 = por %p201, %p202
    %p204 = scmp.ne.s32.totalorder %s195, %s196
    %p205 = scmp.eq.s32.totalorder %s23, 0
    %p206 = por %p204, %p205
    %p207 = scmp.ne.s32.totalorder %s195, %s196
    %p208 = scmp.eq.s32.totalorder %s24, 3
    %p209 = por %p207, %p208
    %p211 = scmp.ne.s32.totalorder %s196, %s210
    %p212 = scmp.eq.s32.totalorder %s24, 0
    %p213 = por %p211, %p212
    %s215 = sadd.s32 %s214, 1
    %p218 = scmp.eq.s32.totalorder %s18, 3
    %p219 = scmp.ne.s32.totalorder %s214, %s216
    %p220 = scmp.eq.s32.totalorder %s18, 0
    %p221 = por %p219, %p220
    %p222 = scmp.ne.s32.totalorder %s214, %s216
    %p223 = scmp.eq.s32.totalorder %s23, 3
    %p224 = por %p222, %p223
    %p225 = scmp.ne.s32.totalorder %s216, %s217
    %p226 = scmp.eq.s32.totalorder %s23, 0
    %p227 = por %p225, %p226
    %p228 = scmp.ne.s32.totalorder %s216, %s217
    %p229 = scmp.eq.s32.totalorder %s24, 3
    %p230 = por %p228, %p229
    %p232 = scmp.ne.s32.totalorder %s217, %s231
    %p233 = scmp.eq.s32.totalorder %s24, 0
    %p234 = por %p232, %p233
    %s235 = ssub.s32 %s18, %s25
    %p236 = scmp.eq.s32.totalorder %s235, 0
    %s238 = sadd.s32 %s237, 1
    %s239 = scalar_select %p236, %s237, %s238
    %p242 = pneg %p236
    %p243 = scmp.eq.s32.totalorder %s18, 3
    %p244 = por %p242, %p243
    %p245 = scmp.ne.s32.totalorder %s237, %s240
    %p246 = scmp.eq.s32.totalorder %s18, 0
    %p247 = por %p245, %p246
    %p248 = scmp.ne.s32.totalorder %s237, %s240
    %p249 = scmp.eq.s32.totalorder %s23, 3
    %p250 = por %p248, %p249
    %p251 = scmp.ne.s32.totalorder %s240, %s241
    %p252 = scmp.eq.s32.totalorder %s23, 0
    %p253 = por %p251, %p252
    %p254 = scmp.ne.s32.totalorder %s240, %s241
    %p255 = scmp.eq.s32.totalorder %s24, 3
    %p256 = por %p254, %p255
    %p258 = scmp.ne.s32.totalorder %s241, %s257
    %p259 = scmp.eq.s32.totalorder %s24, 0
    %p260 = por %p258, %p259
    %s261 = ssub.s32 %s18, %s25
    %p262 = scmp.eq.s32.totalorder %s261, 0
    %s264 = sadd.s32 %s263, 1
    %s265 = scalar_select %p262, %s263, %s264
    %p268 = pneg %p262
    %p269 = scmp.eq.s32.totalorder %s18, 3
    %p270 = por %p268, %p269
    %p271 = scmp.ne.s32.totalorder %s263, %s266
    %p272 = scmp.eq.s32.totalorder %s18, 0
    %p273 = por %p271, %p272
    %p274 = scmp.ne.s32.totalorder %s263, %s266
    %p275 = scmp.eq.s32.totalorder %s23, 3
    %p276 = por %p274, %p275
    %p277 = scmp.ne.s32.totalorder %s266, %s267
    %p278 = scmp.eq.s32.totalorder %s23, 0
    %p279 = por %p277, %p278
    %p280 = scmp.ne.s32.totalorder %s266, %s267
    %p281 = scmp.eq.s32.totalorder %s24, 3
    %p282 = por %p280, %p281
    %p284 = scmp.ne.s32.totalorder %s267, %s283
    %p285 = scmp.eq.s32.totalorder %s24, 0
    %p286 = por %p284, %p285
    %s287 = ssub.s32 %s18, %s25
    %p288 = scmp.eq.s32.totalorder %s287, 0
    %s290 = sadd.s32 %s289, 1
    %s291 = scalar_select %p288, %s289, %s290
    %p294 = pneg %p288
    %p295 = scmp.eq.s32.totalorder %s18, 3
    %p296 = por %p294, %p295
    %p297 = scmp.ne.s32.totalorder %s289, %s292
    %p298 = scmp.eq.s32.totalorder %s18, 0
    %p299 = por %p297, %p298
    %p300 = scmp.ne.s32.totalorder %s289, %s292
    %p301 = scmp.eq.s32.totalorder %s23, 3
    %p302 = por %p300, %p301
    %p303 = scmp.ne.s32.totalorder %s292, %s293
    %p304 = scmp.eq.s32.totalorder %s23, 0
    %p305 = por %p303, %p304
    %p306 = scmp.ne.s32.totalorder %s292, %s293
    %p307 = scmp.eq.s32.totalorder %s24, 3
    %p308 = por %p306, %p307
    %p310 = scmp.ne.s32.totalorder %s293, %s309
    %p311 = scmp.eq.s32.totalorder %s24, 0
    %p312 = por %p310, %p311
    %p313 = scmp.le.s32.totalorder 1, %s18
    %p314 = scmp.lt.s32.totalorder %s18, 5
    %p315 = pnand %p313, %p314
    %p316 = pneg %p315
    // Predicated region
    $region9: #{comenet_forward.10} parent=5 // pred_check
      _
    $region10: #{comenet_forward.10} parent=5 // pred_check_branch
      %318 = sbr.rel (%p315) target = $region12
    $region11: #{comenet_forward.10} parent=5 // pred_region
      %s319 = ssub.s32 %s18, 1
      // Predicated region
      $region13: #{comenet_forward.10} parent=11 // pred_check
        %p320 = pneg %p143
      $region14: #{comenet_forward.10} parent=11 // pred_check_branch
        %322 = sbr.rel (%p320) target = $region16
      $region15: #{comenet_forward.10} parent=11 // pred_region
        _
      $region16: #{comenet_forward.10} parent=11 // pred_fallthru
        _
      // Predicated region
      $region17: #{comenet_forward.10} parent=11 // pred_check
        %p323 = pneg %p164
      $region18: #{comenet_forward.10} parent=11 // pred_check_branch
        %325 = sbr.rel (%p323) target = $region20
      $region19: #{comenet_forward.10} parent=11 // pred_region
        _
      $region20: #{comenet_forward.10} parent=11 // pred_fallthru
        _
      // Predicated region
      $region21: #{comenet_forward.10} parent=11 // pred_check
        %p326 = pneg %p185
      $region22: #{comenet_forward.10} parent=11 // pred_check_branch
        %328 = sbr.rel (%p326) target = $region24
      $region23: #{comenet_forward.10} parent=11 // pred_region
        _
      $region24: #{comenet_forward.10} parent=11 // pred_fallthru
        _
      // Predicated region
      $region25: #{comenet_forward.10} parent=11 // pred_check
        %p329 = pneg %p206
      $region26: #{comenet_forward.10} parent=11 // pred_check_branch
        %331 = sbr.rel (%p329) target = $region28
      $region27: #{comenet_forward.10} parent=11 // pred_region
        _
      $region28: #{comenet_forward.10} parent=11 // pred_fallthru
        _
      // Predicated region
      $region29: #{comenet_forward.10} parent=11 // pred_check
        %p332 = pneg %p227
      $region30: #{comenet_forward.10} parent=11 // pred_check_branch
        %334 = sbr.rel (%p332) target = $region32
      $region31: #{comenet_forward.10} parent=11 // pred_region
        _
      $region32: #{comenet_forward.10} parent=11 // pred_fallthru
        _
    $region12: #{comenet_forward.10} parent=5 // pred_fallthru
      _
    %p335 = scmp.lt.s32.totalorder %s18, 4
    // Predicated region
    $region33: #{comenet_forward.10} parent=5 // pred_check
      %p336 = pneg %p335
    $region34: #{comenet_forward.10} parent=5 // pred_check_branch
      %338 = sbr.rel (%p336) target = $region36
    $region35: #{comenet_forward.10} parent=5 // pred_region
      // Predicated region
      $region37: #{comenet_forward.10} parent=35 // pred_check
        %p339 = pneg %p38
      $region38: #{comenet_forward.10} parent=35 // pred_check_branch
        %341 = sbr.rel (%p339) target = $region40
      $region39: #{comenet_forward.10} parent=35 // pred_region
        %s342 = smul.u32 2, %s18
        %p343 = scmp.lt.s32.totalorder %s342, 7
        %s344 = scalar_select %p343, %s342, 7
        %s345 = smul.addr %s344, 8
        %s346 = scalar_lea.vmem %s0, %s345
        %s347 = smul.u32 2, %s18
      $region40: #{comenet_forward.10} parent=35 // pred_fallthru
        _
      // Predicated region
      $region41: #{comenet_forward.10} parent=35 // pred_check
        %p348 = pneg %p64
      $region42: #{comenet_forward.10} parent=35 // pred_check_branch
        %350 = sbr.rel (%p348) target = $region44
      $region43: #{comenet_forward.10} parent=35 // pred_region
        %s351 = smul.u32 2, %s18
        %p352 = scmp.lt.s32.totalorder %s351, 7
        %s353 = scalar_select %p352, %s351, 7
        %s354 = smul.addr %s353, 8
        %s355 = scalar_lea.vmem %s1, %s354
        %s356 = smul.u32 2, %s18
      $region44: #{comenet_forward.10} parent=35 // pred_fallthru
        _
      // Predicated region
      $region45: #{comenet_forward.10} parent=35 // pred_check
        %p357 = pneg %p90
      $region46: #{comenet_forward.10} parent=35 // pred_check_branch
        %359 = sbr.rel (%p357) target = $region48
      $region47: #{comenet_forward.10} parent=35 // pred_region
        %s360 = smul.u32 2, %s18
        %p361 = scmp.lt.s32.totalorder %s360, 7
        %s362 = scalar_select %p361, %s360, 7
        %s363 = smul.addr %s362, 8
        %s364 = scalar_lea.vmem %s2, %s363
        %s365 = smul.u32 2, %s18
      $region48: #{comenet_forward.10} parent=35 // pred_fallthru
        _
      // Predicated region
      $region49: #{comenet_forward.10} parent=35 // pred_check
        %p366 = pneg %p116
      $region50: #{comenet_forward.10} parent=35 // pred_check_branch
        %368 = sbr.rel (%p366) target = $region52
      $region51: #{comenet_forward.10} parent=35 // pred_region
        %s369 = smul.u32 2, %s18
        %p370 = scmp.lt.s32.totalorder %s369, 7
        %s371 = scalar_select %p370, %s369, 7
        %s372 = smul.addr %s371, 8
        %s373 = scalar_lea.vmem %s3, %s372
        %s374 = smul.u32 2, %s18
      $region52: #{comenet_forward.10} parent=35 // pred_fallthru
        _
    $region36: #{comenet_forward.10} parent=5 // pred_fallthru
      _
    %p375 = scmp.le.s32.totalorder 1, %s18
    %p376 = scmp.lt.s32.totalorder %s18, 5
    %p377 = pnand %p375, %p376
    %p378 = pneg %p377
    // Predicated region
    $region53: #{comenet_forward.10} parent=5 // pred_check
      _
    $region54: #{comenet_forward.10} parent=5 // pred_check_branch
      %380 = sbr.rel (%p377) target = $region56
    $region55: #{comenet_forward.10} parent=5 // pred_region
      %s381 = ssub.s32 %s18, 1
      %s382 = smul.u32 2, %s23
      %p383 = scmp.lt.s32.totalorder %s382, 7
      %s384 = scalar_select %p383, %s382, 7
      %s385 = smul.addr %s384, 8
      %s386 = scalar_lea.vmem %s0, %s385
      %p387 = pneg %p44
      %p388 = pneg %p41
      %s389 = smul.u32 2, %s23
      %p390 = scmp.lt.s32.totalorder %s389, 7
      %s391 = scalar_select %p390, %s389, 7
      %s392 = smul.addr %s391, 8
      %s393 = scalar_lea.vmem %s1, %s392
      %p394 = pneg %p70
      %p395 = pneg %p67
      %s396 = smul.u32 2, %s23
      %p397 = scmp.lt.s32.totalorder %s396, 7
      %s398 = scalar_select %p397, %s396, 7
      %s399 = smul.addr %s398, 8
      %s400 = scalar_lea.vmem %s2, %s399
      %p401 = pneg %p96
      %p402 = pneg %p93
      %s403 = smul.u32 2, %s23
      %p404 = scmp.lt.s32.totalorder %s403, 7
      %s405 = scalar_select %p404, %s403, 7
      %s406 = smul.addr %s405, 8
      %s407 = scalar_lea.vmem %s3, %s406
      %p408 = pneg %p122
      %p409 = pneg %p119
      %p410 = pneg %p143
      %p411 = pneg %p140
      %p412 = pneg %p164
      %p413 = pneg %p161
      %p414 = pneg %p185
      %p415 = pneg %p182
      %p416 = pneg %p206
      %p417 = pneg %p203
      %p418 = pneg %p227
      %p419 = pneg %p224
      %p420 = pneg %p253
      %p421 = pneg %p250
      %s422 = smul.u32 2, %s23
      %p423 = scmp.lt.s32.totalorder %s422, 7
      %s424 = scalar_select %p423, %s422, 7
      %s425 = smul.addr %s424, 8
      %s426 = scalar_lea.vmem %s9, %s425
      %p427 = pneg %p279
      %p428 = pneg %p276
      %s429 = smul.u32 2, %s23
      %p430 = scmp.lt.s32.totalorder %s429, 7
      %s431 = scalar_select %p430, %s429, 7
      %s432 = smul.addr %s431, 8
      %s433 = scalar_lea.vmem %s10, %s432
      %p434 = pneg %p305
      %p435 = pneg %p302
      %s436 = smul.u32 2, %s23
      %p437 = scmp.lt.s32.totalorder %s436, 7
      %s438 = scalar_select %p437, %s436, 7
      %s439 = smul.addr %s438, 8
      %s440 = scalar_lea.vmem %s11, %s439
      %s441 = smul.u32 2, %s23
      %p442 = scmp.lt.s32.totalorder %s441, 7
      %s443 = scalar_select %p442, %s441, 7
      %s444 = smul.addr %s443, 8
      %s445 = scalar_lea.vmem %s0, %s444
      %s446 = smul.u32 2, %s23
      %s447 = smul.u32 2, %s23
      %p448 = scmp.lt.s32.totalorder %s447, 7
      %s449 = scalar_select %p448, %s447, 7
      %s450 = smul.addr %s449, 8
      %s451 = scalar_lea.vmem %s1, %s450
      %s452 = smul.u32 2, %s23
      %s453 = smul.u32 2, %s23
      %p454 = scmp.lt.s32.totalorder %s453, 7
      %s455 = scalar_select %p454, %s453, 7
      %s456 = smul.addr %s455, 8
      %s457 = scalar_lea.vmem %s2, %s456
      %s458 = smul.u32 2, %s23
      %s459 = smul.u32 2, %s23
      %p460 = scmp.lt.s32.totalorder %s459, 7
      %s461 = scalar_select %p460, %s459, 7
      %s462 = smul.addr %s461, 8
      %s463 = scalar_lea.vmem %s3, %s462
      %s464 = smul.u32 2, %s23
      %s465 = smul.u32 2, %s23
      %p466 = scmp.lt.s32.totalorder %s465, 7
      %s467 = scalar_select %p466, %s465, 7
      %s468 = smul.addr %s467, 8
      %s469 = scalar_lea.vmem %s9, %s468
      %s470 = smul.u32 2, %s23
      %s471 = smul.u32 2, %s23
      %p472 = scmp.lt.s32.totalorder %s471, 7
      %s473 = scalar_select %p472, %s471, 7
      %s474 = smul.addr %s473, 8
      %s475 = scalar_lea.vmem %s10, %s474
      %s476 = smul.u32 2, %s23
      %s477 = smul.u32 2, %s23
      %p478 = scmp.lt.s32.totalorder %s477, 7
      %s479 = scalar_select %p478, %s477, 7
      %s480 = smul.addr %s479, 8
      %s481 = scalar_lea.vmem %s11, %s480
      %s482 = smul.u32 2, %s23
      %v484 = vld [vmem:[%s457] sm:$0xff]
      %v485 = vld [vmem:[%s457 + $0x8] sm:$0xff]
      %v486 = vld [vmem:[%s463] sm:$0xff]
      %v487 = vld [vmem:[%s463 + $0x8] sm:$0xff]
      %v488 = vld [vmem:[%s445] sm:$0xff]
      %v489 = vld [vmem:[%s445 + $0x8] sm:$0xff]
      %v490 = vld [vmem:[%s4] sm:$0xf]
      %v491 = vld [vmem:[%s4 + $0x4] sm:$0xf]
      %v492 = vld [vmem:[%s4 + $0x8] sm:$0xf]
      %v493 = vld [vmem:[%s4 + $0xc] sm:$0xf]
      %v494 = vld [vmem:[%s4 + $0x10] sm:$0xf]
      %v495 = vld [vmem:[%s4 + $0x14] sm:$0xf]
      %v496 = vld [vmem:[%s4 + $0x18] sm:$0xf]
      %v497 = vld [vmem:[%s4 + $0x1c] sm:$0xf]
      %v498 = vld [vmem:[%s4 + $0x20] sm:$0xf]
      %v499 = vld [vmem:[%s4 + $0x24] sm:$0xf]
      %v500 = vld [vmem:[%s4 + $0x28] sm:$0xf]
      %v501 = vld [vmem:[%s4 + $0x2c] sm:$0xf]
      %v502 = vld [vmem:[%s4 + $0x30] sm:$0xf]
      %v503 = vld [vmem:[%s4 + $0x34] sm:$0xf]
      %v504 = vld [vmem:[%s4 + $0x38] sm:$0xf]
      %v505 = vld [vmem:[%s4 + $0x3c] sm:$0xf]
      %v506 = vpack.c.bf16 %v489, %v488
      %v507 = vld [vmem:[%s8] sm:$0x1]
      %v508 = vlaneseq
      %v509 = vshrl.u32 %v508, 7
      %v510 = vsub.s32 0, %v509
      %v511 = vrot.slane %v507, %v510
      %v528 = vunpack.c.l.b16 %v490
      %v529 = vunpack.c.l.b16 %v491
      %v530 = vunpack.c.l.b16 %v492
      %v531 = vunpack.c.l.b16 %v493
      %v532 = vunpack.c.l.b16 %v494
      %v533 = vunpack.c.l.b16 %v495
      %v534 = vunpack.c.l.b16 %v496
      %v535 = vunpack.c.l.b16 %v497
      %v536 = vunpack.c.l.b16 %v498
      %v537 = vunpack.c.l.b16 %v499
      %v538 = vunpack.c.l.b16 %v500
      %v539 = vunpack.c.l.b16 %v501
      %v540 = vunpack.c.l.b16 %v502
      %v541 = vunpack.c.l.b16 %v503
      %v542 = vunpack.c.l.b16 %v504
      %v543 = vunpack.c.l.b16 %v505
      %v544 = vpack.c.b16 %v529, %v528
      %v545 = vpack.c.b16 %v531, %v530
      %v546 = vpack.c.b16 %v533, %v532
      %v547 = vpack.c.b16 %v535, %v534
      %v548 = vpack.c.b16 %v537, %v536
      %v549 = vpack.c.b16 %v539, %v538
      %v550 = vpack.c.b16 %v541, %v540
      %v551 = vpack.c.b16 %v543, %v542
      %560 = vmatprep.subr.bf16.mxu0 0
      %561 = vmatpush1.bf16.msra.mxu0 %v544
      %562 = vmatprep.subr.bf16.mxu0 0
      %563 = vmatpush1.bf16.msra.mxu0 %v545
      %564 = vmatprep.subr.bf16.mxu0 0
      %565 = vmatpush1.bf16.msra.mxu0 %v546
      %566 = vmatprep.subr.bf16.mxu0 0
      %567 = vmatpush1.bf16.msra.mxu0 %v547
      %568 = vmatprep.subr.bf16.mxu0 0
      %569 = vmatpush1.bf16.msra.mxu0 %v548
      %570 = vmatprep.subr.bf16.mxu0 0
      %571 = vmatpush1.bf16.msra.mxu0 %v549
      %572 = vmatprep.subr.bf16.mxu0 0
      %573 = vmatpush1.bf16.msra.mxu0 %v550
      %574 = vmatprep.subr.bf16.mxu0 0
      %575 = vmatpush1.bf16.msra.mxu0 %v551
      %576 = vmatprep.subr.bf16.mxu0 0
      %577 = vmatpush1.bf16.msra.mxu0 0
      %578 = vmatprep.subr.bf16.mxu0 0
      %579 = vmatpush1.bf16.msra.mxu0 0
      %580 = vmatprep.subr.bf16.mxu0 0
      %581 = vmatpush1.bf16.msra.mxu0 0
      %582 = vmatprep.subr.bf16.mxu0 0
      %583 = vmatpush1.bf16.msra.mxu0 0
      %584 = vmatprep.subr.bf16.mxu0 0
      %585 = vmatpush1.bf16.msra.mxu0 0
      %586 = vmatprep.subr.bf16.mxu0 0
      %587 = vmatpush1.bf16.msra.mxu0 0
      %588 = vmatprep.subr.bf16.mxu0 0
      %589 = vmatpush1.bf16.msra.mxu0 0
      %590 = vmatprep.subr.bf16.mxu0 0
      %591 = vmatpush1.bf16.msra.mxu0 0
      %592 = vmatprep.mubr.bf16.mxu0 0
      %593 = vmatmul.mubr.bf16.gmra.mrb[0].mxu0 %v506
      %v594 = vpop.f32.mrb[0].mxu0
      %v595 = vadd.f32 %v511, %v594
      %v596 = vpop.f32.mrb[0].mxu0
      %v597 = vpop.f32.mrb[0].mxu0
      %v598 = vadd.f32 %v511, %v597
      %v599 = vpop.f32.mrb[0].mxu0
      %600 = vdwg.mxu0
      %v601 = vxor.u32 %v595, 2147483648
      %v602 = vxor.u32 %v598, 2147483648
      %v603 = vmul.f32 %v601, 1.442695
      %v604 = vpow.pop %v603
      %v605 = vmul.f32 %v602, 1.442695
      %v606 = vpow.pop %v605
      %v607 = vadd.f32 %v604, 1.0
      %v608 = vadd.f32 %v606, 1.0
      %v609 = vrcp.pop %v607
      %v610 = vmul.f32 1.0, %v609
      %v611 = vrcp.pop %v608
      %v612 = vmul.f32 1.0, %v611
      %v613 = vmul.f32 %v595, %v610
      %v614 = vmul.f32 %v598, %v612
      %v615 = vld [vmem:[%s6] sm:$0xf]
      %v616 = vld [vmem:[%s6 + $0x4] sm:$0xf]
      %v617 = vld [vmem:[%s6 + $0x8] sm:$0xf]
      %v618 = vld [vmem:[%s6 + $0xc] sm:$0xf]
      %v619 = vld [vmem:[%s6 + $0x10] sm:$0xf]
      %v620 = vld [vmem:[%s6 + $0x14] sm:$0xf]
      %v621 = vld [vmem:[%s6 + $0x18] sm:$0xf]
      %v622 = vld [vmem:[%s6 + $0x1c] sm:$0xf]
      %v623 = vld [vmem:[%s6 + $0x20] sm:$0xf]
      %v624 = vld [vmem:[%s6 + $0x24] sm:$0xf]
      %v625 = vld [vmem:[%s6 + $0x28] sm:$0xf]
      %v626 = vld [vmem:[%s6 + $0x2c] sm:$0xf]
      %v627 = vld [vmem:[%s6 + $0x30] sm:$0xf]
      %v628 = vld [vmem:[%s6 + $0x34] sm:$0xf]
      %v629 = vld [vmem:[%s6 + $0x38] sm:$0xf]
      %v630 = vld [vmem:[%s6 + $0x3c] sm:$0xf]
      %v631 = vpack.c.bf16 %v614, %v613
      %v632 = vld [vmem:[%s8 + $0x1] sm:$0x1]
      %v633 = vlaneseq
      %v634 = vshrl.u32 %v633, 7
      %v635 = vsub.s32 0, %v634
      %v636 = vrot.slane %v632, %v635
      %v653 = vunpack.c.l.b16 %v615
      %v654 = vunpack.c.l.b16 %v616
      %v655 = vunpack.c.l.b16 %v617
      %v656 = vunpack.c.l.b16 %v618
      %v657 = vunpack.c.l.b16 %v619
      %v658 = vunpack.c.l.b16 %v620
      %v659 = vunpack.c.l.b16 %v621
      %v660 = vunpack.c.l.b16 %v622
      %v661 = vunpack.c.l.b16 %v623
      %v662 = vunpack.c.l.b16 %v624
      %v663 = vunpack.c.l.b16 %v625
      %v664 = vunpack.c.l.b16 %v626
      %v665 = vunpack.c.l.b16 %v627
      %v666 = vunpack.c.l.b16 %v628
      %v667 = vunpack.c.l.b16 %v629
      %v668 = vunpack.c.l.b16 %v630
      %v669 = vpack.c.b16 %v654, %v653
      %v670 = vpack.c.b16 %v656, %v655
      %v671 = vpack.c.b16 %v658, %v657
      %v672 = vpack.c.b16 %v660, %v659
      %v673 = vpack.c.b16 %v662, %v661
      %v674 = vpack.c.b16 %v664, %v663
      %v675 = vpack.c.b16 %v666, %v665
      %v676 = vpack.c.b16 %v668, %v667
      %685 = vmatprep.subr.bf16.mxu0 0
      %686 = vmatpush1.bf16.msra.mxu0 %v669
      %687 = vmatprep.subr.bf16.mxu0 0
      %688 = vmatpush1.bf16.msra.mxu0 %v670
      %689 = vmatprep.subr.bf16.mxu0 0
      %690 = vmatpush1.bf16.msra.mxu0 %v671
      %691 = vmatprep.subr.bf16.mxu0 0
      %692 = vmatpush1.bf16.msra.mxu0 %v672
      %693 = vmatprep.subr.bf16.mxu0 0
      %694 = vmatpush1.bf16.msra.mxu0 %v673
      %695 = vmatprep.subr.bf16.mxu0 0
      %696 = vmatpush1.bf16.msra.mxu0 %v674
      %697 = vmatprep.subr.bf16.mxu0 0
      %698 = vmatpush1.bf16.msra.mxu0 %v675
      %699 = vmatprep.subr.bf16.mxu0 0
      %700 = vmatpush1.bf16.msra.mxu0 %v676
      %701 = vmatprep.subr.bf16.mxu0 0
      %702 = vmatpush1.bf16.msra.mxu0 0
      %703 = vmatprep.subr.bf16.mxu0 0
      %704 = vmatpush1.bf16.msra.mxu0 0
      %705 = vmatprep.subr.bf16.mxu0 0
      %706 = vmatpush1.bf16.msra.mxu0 0
      %707 = vmatprep.subr.bf16.mxu0 0
      %708 = vmatpush1.bf16.msra.mxu0 0
      %709 = vmatprep.subr.bf16.mxu0 0
      %710 = vmatpush1.bf16.msra.mxu0 0
      %711 = vmatprep.subr.bf16.mxu0 0
      %712 = vmatpush1.bf16.msra.mxu0 0
      %713 = vmatprep.subr.bf16.mxu0 0
      %714 = vmatpush1.bf16.msra.mxu0 0
      %715 = vmatprep.subr.bf16.mxu0 0
      %716 = vmatpush1.bf16.msra.mxu0 0
      %717 = vmatprep.mubr.bf16.mxu0 0
      %718 = vmatmul.mubr.bf16.gmra.mrb[0].mxu0 %v631
      %v719 = vpop.f32.mrb[0].mxu0
      %v720 = vadd.f32 %v636, %v719
      %v721 = vpop.f32.mrb[0].mxu0
      %v722 = vpop.f32.mrb[0].mxu0
      %v723 = vadd.f32 %v636, %v722
      %v724 = vpop.f32.mrb[0].mxu0
      %725 = vdwg.mxu0
      %v726 = vxor.u32 %v720, 2147483648
      %v727 = vxor.u32 %v723, 2147483648
      %v728 = vmul.f32 %v726, 1.442695
      %v729 = vpow.pop %v728
      %v730 = vmul.f32 %v727, 1.442695
      %v731 = vpow.pop %v730
      %v732 = vadd.f32 %v729, 1.0
      %v733 = vadd.f32 %v731, 1.0
      %v734 = vrcp.pop %v732
      %v735 = vmul.f32 1.0, %v734
      %v736 = vrcp.pop %v733
      %v737 = vmul.f32 1.0, %v736
      %v738 = vmul.f32 %v720, %v735
      %v739 = vmul.f32 %v723, %v737
      %v740 = vld [vmem:[%s451] sm:$0xff]
      %v741 = vld [vmem:[%s451 + $0x8] sm:$0xff]
      %v742 = vld [vmem:[%s5] sm:$0xf]
      %v743 = vld [vmem:[%s5 + $0x4] sm:$0xf]
      %v744 = vld [vmem:[%s5 + $0x8] sm:$0xf]
      %v745 = vld [vmem:[%s5 + $0xc] sm:$0xf]
      %v746 = vld [vmem:[%s5 + $0x10] sm:$0xf]
      %v747 = vld [vmem:[%s5 + $0x14] sm:$0xf]
      %v748 = vld [vmem:[%s5 + $0x18] sm:$0xf]
      %v749 = vld [vmem:[%s5 + $0x1c] sm:$0xf]
      %v750 = vld [vmem:[%s5 + $0x20] sm:$0xf]
      %v751 = vld [vmem:[%s5 + $0x24] sm:$0xf]
      %v752 = vld [vmem:[%s5 + $0x28] sm:$0xf]
      %v753 = vld [vmem:[%s5 + $0x2c] sm:$0xf]
      %v754 = vld [vmem:[%s5 + $0x30] sm:$0xf]
      %v755 = vld [vmem:[%s5 + $0x34] sm:$0xf]
      %v756 = vld [vmem:[%s5 + $0x38] sm:$0xf]
      %v757 = vld [vmem:[%s5 + $0x3c] sm:$0xf]
      %v758 = vpack.c.bf16 %v741, %v740
      %v759 = vld [vmem:[%s8 + $0x2] sm:$0x1]
      %v760 = vlaneseq
      %v761 = vshrl.u32 %v760, 7
      %v762 = vsub.s32 0, %v761
      %v763 = vrot.slane %v759, %v762
      %v780 = vunpack.c.l.b16 %v742
      %v781 = vunpack.c.l.b16 %v743
      %v782 = vunpack.c.l.b16 %v744
      %v783 = vunpack.c.l.b16 %v745
      %v784 = vunpack.c.l.b16 %v746
      %v785 = vunpack.c.l.b16 %v747
      %v786 = vunpack.c.l.b16 %v748
      %v787 = vunpack.c.l.b16 %v749
      %v788 = vunpack.c.l.b16 %v750
      %v789 = vunpack.c.l.b16 %v751
      %v790 = vunpack.c.l.b16 %v752
      %v791 = vunpack.c.l.b16 %v753
      %v792 = vunpack.c.l.b16 %v754
      %v793 = vunpack.c.l.b16 %v755
      %v794 = vunpack.c.l.b16 %v756
      %v795 = vunpack.c.l.b16 %v757
      %v796 = vpack.c.b16 %v781, %v780
      %v797 = vpack.c.b16 %v783, %v782
      %v798 = vpack.c.b16 %v785, %v784
      %v799 = vpack.c.b16 %v787, %v786
      %v800 = vpack.c.b16 %v789, %v788
      %v801 = vpack.c.b16 %v791, %v790
      %v802 = vpack.c.b16 %v793, %v792
      %v803 = vpack.c.b16 %v795, %v794
      %812 = vmatprep.subr.bf16.mxu0 0
      %813 = vmatpush1.bf16.msra.mxu0 %v796
      %814 = vmatprep.subr.bf16.mxu0 0
      %815 = vmatpush1.bf16.msra.mxu0 %v797
      %816 = vmatprep.subr.bf16.mxu0 0
      %817 = vmatpush1.bf16.msra.mxu0 %v798
      %818 = vmatprep.subr.bf16.mxu0 0
      %819 = vmatpush1.bf16.msra.mxu0 %v799
      %820 = vmatprep.subr.bf16.mxu0 0
      %821 = vmatpush1.bf16.msra.mxu0 %v800
      %822 = vmatprep.subr.bf16.mxu0 0
      %823 = vmatpush1.bf16.msra.mxu0 %v801
      %824 = vmatprep.subr.bf16.mxu0 0
      %825 = vmatpush1.bf16.msra.mxu0 %v802
      %826 = vmatprep.subr.bf16.mxu0 0
      %827 = vmatpush1.bf16.msra.mxu0 %v803
      %828 = vmatprep.subr.bf16.mxu0 0
      %829 = vmatpush1.bf16.msra.mxu0 0
      %830 = vmatprep.subr.bf16.mxu0 0
      %831 = vmatpush1.bf16.msra.mxu0 0
      %832 = vmatprep.subr.bf16.mxu0 0
      %833 = vmatpush1.bf16.msra.mxu0 0
      %834 = vmatprep.subr.bf16.mxu0 0
      %835 = vmatpush1.bf16.msra.mxu0 0
      %836 = vmatprep.subr.bf16.mxu0 0
      %837 = vmatpush1.bf16.msra.mxu0 0
      %838 = vmatprep.subr.bf16.mxu0 0
      %839 = vmatpush1.bf16.msra.mxu0 0
      %840 = vmatprep.subr.bf16.mxu0 0
      %841 = vmatpush1.bf16.msra.mxu0 0
      %842 = vmatprep.subr.bf16.mxu0 0
      %843 = vmatpush1.bf16.msra.mxu0 0
      %844 = vmatprep.mubr.bf16.mxu0 0
      %845 = vmatmul.mubr.bf16.gmra.mrb[0].mxu0 %v758
      %v846 = vpop.f32.mrb[0].mxu0
      %v847 = vadd.f32 %v763, %v846
      %v848 = vpop.f32.mrb[0].mxu0
      %v849 = vpop.f32.mrb[0].mxu0
      %v850 = vadd.f32 %v763, %v849
      %v851 = vpop.f32.mrb[0].mxu0
      %852 = vdwg.mxu0
      %v853 = vxor.u32 %v847, 2147483648
      %v854 = vxor.u32 %v850, 2147483648
      %v855 = vmul.f32 %v853, 1.442695
      %v856 = vpow.pop %v855
      %v857 = vmul.f32 %v854, 1.442695
      %v858 = vpow.pop %v857
      %v859 = vadd.f32 %v856, 1.0
      %v860 = vadd.f32 %v858, 1.0
      %v861 = vrcp.pop %v859
      %v862 = vmul.f32 1.0, %v861
      %v863 = vrcp.pop %v860
      %v864 = vmul.f32 1.0, %v863
      %v865 = vmul.f32 %v847, %v862
      %v866 = vmul.f32 %v850, %v864
      %s867 = scalar_lea.vmem %s6, 64
      %v868 = vld [vmem:[%s867] sm:$0xf]
      %v869 = vld [vmem:[%s867 + $0x4] sm:$0xf]
      %v870 = vld [vmem:[%s867 + $0x8] sm:$0xf]
      %v871 = vld [vmem:[%s867 + $0xc] sm:$0xf]
      %v872 = vld [vmem:[%s867 + $0x10] sm:$0xf]
      %v873 = vld [vmem:[%s867 + $0x14] sm:$0xf]
      %v874 = vld [vmem:[%s867 + $0x18] sm:$0xf]
      %v875 = vld [vmem:[%s867 + $0x1c] sm:$0xf]
      %v876 = vld [vmem:[%s867 + $0x20] sm:$0xf]
      %v877 = vld [vmem:[%s867 + $0x24] sm:$0xf]
      %v878 = vld [vmem:[%s867 + $0x28] sm:$0xf]
      %v879 = vld [vmem:[%s867 + $0x2c] sm:$0xf]
      %v880 = vld [vmem:[%s867 + $0x30] sm:$0xf]
      %v881 = vld [vmem:[%s867 + $0x34] sm:$0xf]
      %v882 = vld [vmem:[%s867 + $0x38] sm:$0xf]
      %v883 = vld [vmem:[%s867 + $0x3c] sm:$0xf]
      %v884 = vpack.c.bf16 %v866, %v865
      %v885 = vld [vmem:[%s8 + $0x3] sm:$0x1]
      %v886 = vlaneseq
      %v887 = vshrl.u32 %v886, 7
      %v888 = vsub.s32 0, %v887
      %v889 = vrot.slane %v885, %v888
      %v906 = vunpack.c.l.b16 %v868
      %v907 = vunpack.c.l.b16 %v869
      %v908 = vunpack.c.l.b16 %v870
      %v909 = vunpack.c.l.b16 %v871
      %v910 = vunpack.c.l.b16 %v872
      %v911 = vunpack.c.l.b16 %v873
      %v912 = vunpack.c.l.b16 %v874
      %v913 = vunpack.c.l.b16 %v875
      %v914 = vunpack.c.l.b16 %v876
      %v915 = vunpack.c.l.b16 %v877
      %v916 = vunpack.c.l.b16 %v878
      %v917 = vunpack.c.l.b16 %v879
      %v918 = vunpack.c.l.b16 %v880
      %v919 = vunpack.c.l.b16 %v881
      %v920 = vunpack.c.l.b16 %v882
      %v921 = vunpack.c.l.b16 %v883
      %v922 = vpack.c.b16 %v907, %v906
      %v923 = vpack.c.b16 %v909, %v908
      %v924 = vpack.c.b16 %v911, %v910
      %v925 = vpack.c.b16 %v913, %v912
      %v926 = vpack.c.b16 %v915, %v914
      %v927 = vpack.c.b16 %v917, %v916
      %v928 = vpack.c.b16 %v919, %v918
      %v929 = vpack.c.b16 %v921, %v920
      %938 = vmatprep.subr.bf16.mxu0 0
      %939 = vmatpush1.bf16.msra.mxu0 %v922
      %940 = vmatprep.subr.bf16.mxu0 0
      %941 = vmatpush1.bf16.msra.mxu0 %v923
      %942 = vmatprep.subr.bf16.mxu0 0
      %943 = vmatpush1.bf16.msra.mxu0 %v924
      %944 = vmatprep.subr.bf16.mxu0 0
      %945 = vmatpush1.bf16.msra.mxu0 %v925
      %946 = vmatprep.subr.bf16.mxu0 0
      %947 = vmatpush1.bf16.msra.mxu0 %v926
      %948 = vmatprep.subr.bf16.mxu0 0
      %949 = vmatpush1.bf16.msra.mxu0 %v927
      %950 = vmatprep.subr.bf16.mxu0 0
      %951 = vmatpush1.bf16.msra.mxu0 %v928
      %952 = vmatprep.subr.bf16.mxu0 0
      %953 = vmatpush1.bf16.msra.mxu0 %v929
      %954 = vmatprep.subr.bf16.mxu0 0
      %955 = vmatpush1.bf16.msra.mxu0 0
      %956 = vmatprep.subr.bf16.mxu0 0
      %957 = vmatpush1.bf16.msra.mxu0 0
      %958 = vmatprep.subr.bf16.mxu0 0
      %959 = vmatpush1.bf16.msra.mxu0 0
      %960 = vmatprep.subr.bf16.mxu0 0
      %961 = vmatpush1.bf16.msra.mxu0 0
      %962 = vmatprep.subr.bf16.mxu0 0
      %963 = vmatpush1.bf16.msra.mxu0 0
      %964 = vmatprep.subr.bf16.mxu0 0
      %965 = vmatpush1.bf16.msra.mxu0 0
      %966 = vmatprep.subr.bf16.mxu0 0
      %967 = vmatpush1.bf16.msra.mxu0 0
      %968 = vmatprep.subr.bf16.mxu0 0
      %969 = vmatpush1.bf16.msra.mxu0 0
      %970 = vmatprep.mubr.bf16.mxu0 0
      %971 = vmatmul.mubr.bf16.gmra.mrb[0].mxu0 %v884
      %v972 = vpop.f32.mrb[0].mxu0
      %v973 = vadd.f32 %v889, %v972
      %v974 = vpop.f32.mrb[0].mxu0
      %v975 = vpop.f32.mrb[0].mxu0
      %v976 = vadd.f32 %v889, %v975
      %v977 = vpop.f32.mrb[0].mxu0
      %978 = vdwg.mxu0
      %v979 = vxor.u32 %v973, 2147483648
      %v980 = vxor.u32 %v976, 2147483648
      %v981 = vmul.f32 %v979, 1.442695
      %v982 = vpow.pop %v981
      %v983 = vmul.f32 %v980, 1.442695
      %v984 = vpow.pop %v983
      %v985 = vadd.f32 %v982, 1.0
      %v986 = vadd.f32 %v984, 1.0
      %v987 = vrcp.pop %v985
      %v988 = vmul.f32 1.0, %v987
      %v989 = vrcp.pop %v986
      %v990 = vmul.f32 1.0, %v989
      %v991 = vmul.f32 %v973, %v988
      %v992 = vmul.f32 %v976, %v990
      %v993 = vmul.f32 %v738, %v484
      %v994 = vmul.f32 %v739, %v485
      %v995 = vmul.f32 %v738, %v486
      %v996 = vmul.f32 %v739, %v487
      %v997 = vpack.c.bf16 %v994, %v993
      %v998 = vpack.c.bf16 %v996, %v995
      %v999 = vld [vmem:[%s7] sm:$0xf]
      %v1000 = vld [vmem:[%s7 + $0x4] sm:$0xf]
      %v1001 = vld [vmem:[%s7 + $0x8] sm:$0xf]
      %v1002 = vld [vmem:[%s7 + $0xc] sm:$0xf]
      %v1003 = vld [vmem:[%s7 + $0x10] sm:$0xf]
      %v1004 = vld [vmem:[%s7 + $0x14] sm:$0xf]
      %v1005 = vld [vmem:[%s7 + $0x18] sm:$0xf]
      %v1006 = vld [vmem:[%s7 + $0x1c] sm:$0xf]
      %v1007 = vld [vmem:[%s7 + $0x20] sm:$0xf]
      %v1008 = vld [vmem:[%s7 + $0x24] sm:$0xf]
      %v1009 = vld [vmem:[%s7 + $0x28] sm:$0xf]
      %v1010 = vld [vmem:[%s7 + $0x2c] sm:$0xf]
      %v1011 = vld [vmem:[%s7 + $0x30] sm:$0xf]
      %v1012 = vld [vmem:[%s7 + $0x34] sm:$0xf]
      %v1013 = vld [vmem:[%s7 + $0x38] sm:$0xf]
      %v1014 = vld [vmem:[%s7 + $0x3c] sm:$0xf]
      %v1015 = vld [vmem:[%s7 + $0x40] sm:$0xf]
      %v1016 = vld [vmem:[%s7 + $0x44] sm:$0xf]
      %v1017 = vld [vmem:[%s7 + $0x48] sm:$0xf]
      %v1018 = vld [vmem:[%s7 + $0x4c] sm:$0xf]
      %v1019 = vld [vmem:[%s7 + $0x50] sm:$0xf]
      %v1020 = vld [vmem:[%s7 + $0x54] sm:$0xf]
      %v1021 = vld [vmem:[%s7 + $0x58] sm:$0xf]
      %v1022 = vld [vmem:[%s7 + $0x5c] sm:$0xf]
      %v1023 = vld [vmem:[%s7 + $0x60] sm:$0xf]
      %v1024 = vld [vmem:[%s7 + $0x64] sm:$0xf]
      %v1025 = vld [vmem:[%s7 + $0x68] sm:$0xf]
      %v1026 = vld [vmem:[%s7 + $0x6c] sm:$0xf]
      %v1027 = vld [vmem:[%s7 + $0x70] sm:$0xf]
      %v1028 = vld [vmem:[%s7 + $0x74] sm:$0xf]
      %v1029 = vld [vmem:[%s7 + $0x78] sm:$0xf]
      %v1030 = vld [vmem:[%s7 + $0x7c] sm:$0xf]
      %v1031 = vld [vmem:[%s8 + $0x4] sm:$0x1]
      %v1032 = vlaneseq
      %v1033 = vshrl.u32 %v1032, 7
      %v1034 = vsub.s32 0, %v1033
      %v1035 = vrot.slane %v1031, %v1034
      %v1068 = vunpack.c.l.b16 %v999
      %v1069 = vunpack.c.l.b16 %v1000
      %v1070 = vunpack.c.l.b16 %v1001
      %v1071 = vunpack.c.l.b16 %v1002
      %v1072 = vunpack.c.l.b16 %v1003
      %v1073 = vunpack.c.l.b16 %v1004
      %v1074 = vunpack.c.l.b16 %v1005
      %v1075 = vunpack.c.l.b16 %v1006
      %v1076 = vunpack.c.l.b16 %v1007
      %v1077 = vunpack.c.l.b16 %v1008
      %v1078 = vunpack.c.l.b16 %v1009
      %v1079 = vunpack.c.l.b16 %v1010
      %v1080 = vunpack.c.l.b16 %v1011
      %v1081 = vunpack.c.l.b16 %v1012
      %v1082 = vunpack.c.l.b16 %v1013
      %v1083 = vunpack.c.l.b16 %v1014
      %v1084 = vunpack.c.l.b16 %v1015
      %v1085 = vunpack.c.l.b16 %v1016
      %v1086 = vunpack.c.l.b16 %v1017
      %v1087 = vunpack.c.l.b16 %v1018
      %v1088 = vunpack.c.l.b16 %v1019
      %v1089 = vunpack.c.l.b16 %v1020
      %v1090 = vunpack.c.l.b16 %v1021
      %v1091 = vunpack.c.l.b16 %v1022
      %v1092 = vunpack.c.l.b16 %v1023
      %v1093 = vunpack.c.l.b16 %v1024
      %v1094 = vunpack.c.l.b16 %v1025
      %v1095 = vunpack.c.l.b16 %v1026
      %v1096 = vunpack.c.l.b16 %v1027
      %v1097 = vunpack.c.l.b16 %v1028
      %v1098 = vunpack.c.l.b16 %v1029
      %v1099 = vunpack.c.l.b16 %v1030
      %v1100 = vpack.c.b16 %v1069, %v1068
      %v1101 = vpack.c.b16 %v1071, %v1070
      %v1102 = vpack.c.b16 %v1073, %v1072
      %v1103 = vpack.c.b16 %v1075, %v1074
      %v1104 = vpack.c.b16 %v1077, %v1076
      %v1105 = vpack.c.b16 %v1079, %v1078
      %v1106 = vpack.c.b16 %v1081, %v1080
      %v1107 = vpack.c.b16 %v1083, %v1082
      %v1108 = vpack.c.b16 %v1085, %v1084
      %v1109 = vpack.c.b16 %v1087, %v1086
      %v1110 = vpack.c.b16 %v1089, %v1088
      %v1111 = vpack.c.b16 %v1091, %v1090
      %v1112 = vpack.c.b16 %v1093, %v1092
      %v1113 = vpack.c.b16 %v1095, %v1094
      %v1114 = vpack.c.b16 %v1097, %v1096
      %v1115 = vpack.c.b16 %v1099, %v1098
      %1132 = vmatprep.subr.bf16.mxu0 0
      %1133 = vmatpush1.bf16.msra.mxu0 %v1100
      %1134 = vmatprep.subr.bf16.mxu0 0
      %1135 = vmatpush1.bf16.msra.mxu0 %v1101
      %1136 = vmatprep.subr.bf16.mxu0 0
      %1137 = vmatpush1.bf16.msra.mxu0 %v1102
      %1138 = vmatprep.subr.bf16.mxu0 0
      %1139 = vmatpush1.bf16.msra.mxu0 %v1103
      %1140 = vmatprep.subr.bf16.mxu0 0
      %1141 = vmatpush1.bf16.msra.mxu0 %v1104
      %1142 = vmatprep.subr.bf16.mxu0 0
      %1143 = vmatpush1.bf16.msra.mxu0 %v1105
      %1144 = vmatprep.subr.bf16.mxu0 0
      %1145 = vmatpush1.bf16.msra.mxu0 %v1106
      %1146 = vmatprep.subr.bf16.mxu0 0
      %1147 = vmatpush1.bf16.msra.mxu0 %v1107
      %1148 = vmatprep.subr.bf16.mxu0 0
      %1149 = vmatpush1.bf16.msra.mxu0 %v1108
      %1150 = vmatprep.subr.bf16.mxu0 0
      %1151 = vmatpush1.bf16.msra.mxu0 %v1109
      %1152 = vmatprep.subr.bf16.mxu0 0
      %1153 = vmatpush1.bf16.msra.mxu0 %v1110
      %1154 = vmatprep.subr.bf16.mxu0 0
      %1155 = vmatpush1.bf16.msra.mxu0 %v1111
      %1156 = vmatprep.subr.bf16.mxu0 0
      %1157 = vmatpush1.bf16.msra.mxu0 %v1112
      %1158 = vmatprep.subr.bf16.mxu0 0
      %1159 = vmatpush1.bf16.msra.mxu0 %v1113
      %1160 = vmatprep.subr.bf16.mxu0 0
      %1161 = vmatpush1.bf16.msra.mxu0 %v1114
      %1162 = vmatprep.subr.bf16.mxu0 0
      %1163 = vmatpush1.bf16.msra.mxu0 %v1115
      %1164 = vmatprep.mubr.bf16.mxu0 %v998
      %1165 = vmatmul.mubr.bf16.gmra.mrb[0].mxu0 %v997
      %v1166 = vpop.f32.mrb[0].mxu0
      %v1167 = vadd.f32 %v1035, %v1166
      %v1168 = vpop.f32.mrb[0].mxu0
      %v1169 = vpop.f32.mrb[0].mxu0
      %v1170 = vadd.f32 %v1035, %v1169
      %v1171 = vpop.f32.mrb[0].mxu0
      %1172 = vdwg.mxu0
      %v1173 = vxor.u32 %v1167, 2147483648
      %v1174 = vxor.u32 %v1170, 2147483648
      %v1175 = vmul.f32 %v1173, 1.442695
      %v1176 = vpow.pop %v1175
      %v1177 = vmul.f32 %v1174, 1.442695
      %v1178 = vpow.pop %v1177
      %v1179 = vadd.f32 %v1176, 1.0
      %v1180 = vadd.f32 %v1178, 1.0
      %v1181 = vrcp.pop %v1179
      %v1182 = vmul.f32 1.0, %v1181
      %v1183 = vrcp.pop %v1180
      %v1184 = vmul.f32 1.0, %v1183
      %v1185 = vmul.f32 %v1167, %v1182
      %v1186 = vmul.f32 %v1170, %v1184
      %s1187 = scalar_lea.vmem %s6, 128
      %v1188 = vld [vmem:[%s1187] sm:$0xf]
      %v1189 = vld [vmem:[%s1187 + $0x4] sm:$0xf]
      %v1190 = vld [vmem:[%s1187 + $0x8] sm:$0xf]
      %v1191 = vld [vmem:[%s1187 + $0xc] sm:$0xf]
      %v1192 = vld [vmem:[%s1187 + $0x10] sm:$0xf]
      %v1193 = vld [vmem:[%s1187 + $0x14] sm:$0xf]
      %v1194 = vld [vmem:[%s1187 + $0x18] sm:$0xf]
      %v1195 = vld [vmem:[%s1187 + $0x1c] sm:$0xf]
      %v1196 = vld [vmem:[%s1187 + $0x20] sm:$0xf]
      %v1197 = vld [vmem:[%s1187 + $0x24] sm:$0xf]
      %v1198 = vld [vmem:[%s1187 + $0x28] sm:$0xf]
      %v1199 = vld [vmem:[%s1187 + $0x2c] sm:$0xf]
      %v1200 = vld [vmem:[%s1187 + $0x30] sm:$0xf]
      %v1201 = vld [vmem:[%s1187 + $0x34] sm:$0xf]
      %v1202 = vld [vmem:[%s1187 + $0x38] sm:$0xf]
      %v1203 = vld [vmem:[%s1187 + $0x3c] sm:$0xf]
      %v1204 = vpack.c.bf16 %v1186, %v1185
      %v1205 = vld [vmem:[%s8 + $0x5] sm:$0x1]
      %v1206 = vlaneseq
      %v1207 = vshrl.u32 %v1206, 7
      %v1208 = vsub.s32 0, %v1207
      %v1209 = vrot.slane %v1205, %v1208
      %v1226 = vunpack.c.l.b16 %v1188
      %v1227 = vunpack.c.l.b16 %v1189
      %v1228 = vunpack.c.l.b16 %v1190
      %v1229 = vunpack.c.l.b16 %v1191
      %v1230 = vunpack.c.l.b16 %v1192
      %v1231 = vunpack.c.l.b16 %v1193
      %v1232 = vunpack.c.l.b16 %v1194
      %v1233 = vunpack.c.l.b16 %v1195
      %v1234 = vunpack.c.l.b16 %v1196
      %v1235 = vunpack.c.l.b16 %v1197
      %v1236 = vunpack.c.l.b16 %v1198
      %v1237 = vunpack.c.l.b16 %v1199
      %v1238 = vunpack.c.l.b16 %v1200
      %v1239 = vunpack.c.l.b16 %v1201
      %v1240 = vunpack.c.l.b16 %v1202
      %v1241 = vunpack.c.l.b16 %v1203
      %v1242 = vpack.c.b16 %v1227, %v1226
      %v1243 = vpack.c.b16 %v1229, %v1228
      %v1244 = vpack.c.b16 %v1231, %v1230
      %v1245 = vpack.c.b16 %v1233, %v1232
      %v1246 = vpack.c.b16 %v1235, %v1234
      %v1247 = vpack.c.b16 %v1237, %v1236
      %v1248 = vpack.c.b16 %v1239, %v1238
      %v1249 = vpack.c.b16 %v1241, %v1240
      %1258 = vmatprep.subr.bf16.mxu0 0
      %1259 = vmatpush1.bf16.msra.mxu0 %v1242
      %1260 = vmatprep.subr.bf16.mxu0 0
      %1261 = vmatpush1.bf16.msra.mxu0 %v1243
      %1262 = vmatprep.subr.bf16.mxu0 0
      %1263 = vmatpush1.bf16.msra.mxu0 %v1244
      %1264 = vmatprep.subr.bf16.mxu0 0
      %1265 = vmatpush1.bf16.msra.mxu0 %v1245
      %1266 = vmatprep.subr.bf16.mxu0 0
      %1267 = vmatpush1.bf16.msra.mxu0 %v1246
      %1268 = vmatprep.subr.bf16.mxu0 0
      %1269 = vmatpush1.bf16.msra.mxu0 %v1247
      %1270 = vmatprep.subr.bf16.mxu0 0
      %1271 = vmatpush1.bf16.msra.mxu0 %v1248
      %1272 = vmatprep.subr.bf16.mxu0 0
      %1273 = vmatpush1.bf16.msra.mxu0 %v1249
      %1274 = vmatprep.subr.bf16.mxu0 0
      %1275 = vmatpush1.bf16.msra.mxu0 0
      %1276 = vmatprep.subr.bf16.mxu0 0
      %1277 = vmatpush1.bf16.msra.mxu0 0
      %1278 = vmatprep.subr.bf16.mxu0 0
      %1279 = vmatpush1.bf16.msra.mxu0 0
      %1280 = vmatprep.subr.bf16.mxu0 0
      %1281 = vmatpush1.bf16.msra.mxu0 0
      %1282 = vmatprep.subr.bf16.mxu0 0
      %1283 = vmatpush1.bf16.msra.mxu0 0
      %1284 = vmatprep.subr.bf16.mxu0 0
      %1285 = vmatpush1.bf16.msra.mxu0 0
      %1286 = vmatprep.subr.bf16.mxu0 0
      %1287 = vmatpush1.bf16.msra.mxu0 0
      %1288 = vmatprep.subr.bf16.mxu0 0
      %1289 = vmatpush1.bf16.msra.mxu0 0
      %1290 = vmatprep.mubr.bf16.mxu0 0
      %1291 = vmatmul.mubr.bf16.gmra.mrb[0].mxu0 %v1204
      %v1292 = vpop.f32.mrb[0].mxu0
      %v1293 = vadd.f32 %v1209, %v1292
      %v1294 = vpop.f32.mrb[0].mxu0
      %v1295 = vpop.f32.mrb[0].mxu0
      %v1296 = vadd.f32 %v1209, %v1295
      %v1297 = vpop.f32.mrb[0].mxu0
      %1298 = vdwg.mxu0
      %1299 = vst [vmem:[%s469] sm:$0xff] %v1293
      %1300 = vst [vmem:[%s469 + $0x8] sm:$0xff] %v1296
      %v1301 = vmul.f32 %v991, %v484
      %v1302 = vmul.f32 %v992, %v485
      %v1303 = vmul.f32 %v991, %v486
      %v1304 = vmul.f32 %v992, %v487
      %v1305 = vpack.c.bf16 %v1302, %v1301
      %v1306 = vpack.c.bf16 %v1304, %v1303
      %v1307 = vld [vmem:[%s7] sm:$0xf]
      %v1308 = vld [vmem:[%s7 + $0x4] sm:$0xf]
      %v1309 = vld [vmem:[%s7 + $0x8] sm:$0xf]
      %v1310 = vld [vmem:[%s7 + $0xc] sm:$0xf]
      %v1311 = vld [vmem:[%s7 + $0x10] sm:$0xf]
      %v1312 = vld [vmem:[%s7 + $0x14] sm:$0xf]
      %v1313 = vld [vmem:[%s7 + $0x18] sm:$0xf]
      %v1314 = vld [vmem:[%s7 + $0x1c] sm:$0xf]
      %v1315 = vld [vmem:[%s7 + $0x20] sm:$0xf]
      %v1316 = vld [vmem:[%s7 + $0x24] sm:$0xf]
      %v1317 = vld [vmem:[%s7 + $0x28] sm:$0xf]
      %v1318 = vld [vmem:[%s7 + $0x2c] sm:$0xf]
      %v1319 = vld [vmem:[%s7 + $0x30] sm:$0xf]
      %v1320 = vld [vmem:[%s7 + $0x34] sm:$0xf]
      %v1321 = vld [vmem:[%s7 + $0x38] sm:$0xf]
      %v1322 = vld [vmem:[%s7 + $0x3c] sm:$0xf]
      %v1323 = vld [vmem:[%s7 + $0x40] sm:$0xf]
      %v1324 = vld [vmem:[%s7 + $0x44] sm:$0xf]
      %v1325 = vld [vmem:[%s7 + $0x48] sm:$0xf]
      %v1326 = vld [vmem:[%s7 + $0x4c] sm:$0xf]
      %v1327 = vld [vmem:[%s7 + $0x50] sm:$0xf]
      %v1328 = vld [vmem:[%s7 + $0x54] sm:$0xf]
      %v1329 = vld [vmem:[%s7 + $0x58] sm:$0xf]
      %v1330 = vld [vmem:[%s7 + $0x5c] sm:$0xf]
      %v1331 = vld [vmem:[%s7 + $0x60] sm:$0xf]
      %v1332 = vld [vmem:[%s7 + $0x64] sm:$0xf]
      %v1333 = vld [vmem:[%s7 + $0x68] sm:$0xf]
      %v1334 = vld [vmem:[%s7 + $0x6c] sm:$0xf]
      %v1335 = vld [vmem:[%s7 + $0x70] sm:$0xf]
      %v1336 = vld [vmem:[%s7 + $0x74] sm:$0xf]
      %v1337 = vld [vmem:[%s7 + $0x78] sm:$0xf]
      %v1338 = vld [vmem:[%s7 + $0x7c] sm:$0xf]
      %v1339 = vld [vmem:[%s8 + $0x4] sm:$0x1]
      %v1340 = vlaneseq
      %v1341 = vshrl.u32 %v1340, 7
      %v1342 = vsub.s32 0, %v1341
      %v1343 = vrot.slane %v1339, %v1342
      %v1376 = vunpack.c.l.b16 %v1307
      %v1377 = vunpack.c.l.b16 %v1308
      %v1378 = vunpack.c.l.b16 %v1309
      %v1379 = vunpack.c.l.b16 %v1310
      %v1380 = vunpack.c.l.b16 %v1311
      %v1381 = vunpack.c.l.b16 %v1312
      %v1382 = vunpack.c.l.b16 %v1313
      %v1383 = vunpack.c.l.b16 %v1314
      %v1384 = vunpack.c.l.b16 %v1315
      %v1385 = vunpack.c.l.b16 %v1316
      %v1386 = vunpack.c.l.b16 %v1317
      %v1387 = vunpack.c.l.b16 %v1318
      %v1388 = vunpack.c.l.b16 %v1319
      %v1389 = vunpack.c.l.b16 %v1320
      %v1390 = vunpack.c.l.b16 %v1321
      %v1391 = vunpack.c.l.b16 %v1322
      %v1392 = vunpack.c.l.b16 %v1323
      %v1393 = vunpack.c.l.b16 %v1324
      %v1394 = vunpack.c.l.b16 %v1325
      %v1395 = vunpack.c.l.b16 %v1326
      %v1396 = vunpack.c.l.b16 %v1327
      %v1397 = vunpack.c.l.b16 %v1328
      %v1398 = vunpack.c.l.b16 %v1329
      %v1399 = vunpack.c.l.b16 %v1330
      %v1400 = vunpack.c.l.b16 %v1331
      %v1401 = vunpack.c.l.b16 %v1332
      %v1402 = vunpack.c.l.b16 %v1333
      %v1403 = vunpack.c.l.b16 %v1334
      %v1404 = vunpack.c.l.b16 %v1335
      %v1405 = vunpack.c.l.b16 %v1336
      %v1406 = vunpack.c.l.b16 %v1337
      %v1407 = vunpack.c.l.b16 %v1338
      %v1408 = vpack.c.b16 %v1377, %v1376
      %v1409 = vpack.c.b16 %v1379, %v1378
      %v1410 = vpack.c.b16 %v1381, %v1380
      %v1411 = vpack.c.b16 %v1383, %v1382
      %v1412 = vpack.c.b16 %v1385, %v1384
      %v1413 = vpack.c.b16 %v1387, %v1386
      %v1414 = vpack.c.b16 %v1389, %v1388
      %v1415 = vpack.c.b16 %v1391, %v1390
      %v1416 = vpack.c.b16 %v1393, %v1392
      %v1417 = vpack.c.b16 %v1395, %v1394
      %v1418 = vpack.c.b16 %v1397, %v1396
      %v1419 = vpack.c.b16 %v1399, %v1398
      %v1420 = vpack.c.b16 %v1401, %v1400
      %v1421 = vpack.c.b16 %v1403, %v1402
      %v1422 = vpack.c.b16 %v1405, %v1404
      %v1423 = vpack.c.b16 %v1407, %v1406
      %1440 = vmatprep.subr.bf16.mxu0 0
      %1441 = vmatpush1.bf16.msra.mxu0 %v1408
      %1442 = vmatprep.subr.bf16.mxu0 0
      %1443 = vmatpush1.bf16.msra.mxu0 %v1409
      %1444 = vmatprep.subr.bf16.mxu0 0
      %1445 = vmatpush1.bf16.msra.mxu0 %v1410
      %1446 = vmatprep.subr.bf16.mxu0 0
      %1447 = vmatpush1.bf16.msra.mxu0 %v1411
      %1448 = vmatprep.subr.bf16.mxu0 0
      %1449 = vmatpush1.bf16.msra.mxu0 %v1412
      %1450 = vmatprep.subr.bf16.mxu0 0
      %1451 = vmatpush1.bf16.msra.mxu0 %v1413
      %1452 = vmatprep.subr.bf16.mxu0 0
      %1453 = vmatpush1.bf16.msra.mxu0 %v1414
      %1454 = vmatprep.subr.bf16.mxu0 0
      %1455 = vmatpush1.bf16.msra.mxu0 %v1415
      %1456 = vmatprep.subr.bf16.mxu0 0
      %1457 = vmatpush1.bf16.msra.mxu0 %v1416
      %1458 = vmatprep.subr.bf16.mxu0 0
      %1459 = vmatpush1.bf16.msra.mxu0 %v1417
      %1460 = vmatprep.subr.bf16.mxu0 0
      %1461 = vmatpush1.bf16.msra.mxu0 %v1418
      %1462 = vmatprep.subr.bf16.mxu0 0
      %1463 = vmatpush1.bf16.msra.mxu0 %v1419
      %1464 = vmatprep.subr.bf16.mxu0 0
      %1465 = vmatpush1.bf16.msra.mxu0 %v1420
      %1466 = vmatprep.subr.bf16.mxu0 0
      %1467 = vmatpush1.bf16.msra.mxu0 %v1421
      %1468 = vmatprep.subr.bf16.mxu0 0
      %1469 = vmatpush1.bf16.msra.mxu0 %v1422
      %1470 = vmatprep.subr.bf16.mxu0 0
      %1471 = vmatpush1.bf16.msra.mxu0 %v1423
      %1472 = vmatprep.mubr.bf16.mxu0 %v1306
      %1473 = vmatmul.mubr.bf16.gmra.mrb[0].mxu0 %v1305
      %v1474 = vpop.f32.mrb[0].mxu0
      %v1475 = vadd.f32 %v1343, %v1474
      %v1476 = vpop.f32.mrb[0].mxu0
      %v1477 = vpop.f32.mrb[0].mxu0
      %v1478 = vadd.f32 %v1343, %v1477
      %v1479 = vpop.f32.mrb[0].mxu0
      %1480 = vdwg.mxu0
      %v1481 = vxor.u32 %v1475, 2147483648
      %v1482 = vxor.u32 %v1478, 2147483648
      %v1483 = vmul.f32 %v1481, 1.442695
      %v1484 = vpow.pop %v1483
      %v1485 = vmul.f32 %v1482, 1.442695
      %v1486 = vpow.pop %v1485
      %v1487 = vadd.f32 %v1484, 1.0
      %v1488 = vadd.f32 %v1486, 1.0
      %v1489 = vrcp.pop %v1487
      %v1490 = vmul.f32 1.0, %v1489
      %v1491 = vrcp.pop %v1488
      %v1492 = vmul.f32 1.0, %v1491
      %v1493 = vmul.f32 %v1475, %v1490
      %v1494 = vmul.f32 %v1478, %v1492
      %v1495 = vld [vmem:[%s1187] sm:$0xf]
      %v1496 = vld [vmem:[%s1187 + $0x4] sm:$0xf]
      %v1497 = vld [vmem:[%s1187 + $0x8] sm:$0xf]
      %v1498 = vld [vmem:[%s1187 + $0xc] sm:$0xf]
      %v1499 = vld [vmem:[%s1187 + $0x10] sm:$0xf]
      %v1500 = vld [vmem:[%s1187 + $0x14] sm:$0xf]
      %v1501 = vld [vmem:[%s1187 + $0x18] sm:$0xf]
      %v1502 = vld [vmem:[%s1187 + $0x1c] sm:$0xf]
      %v1503 = vld [vmem:[%s1187 + $0x20] sm:$0xf]
      %v1504 = vld [vmem:[%s1187 + $0x24] sm:$0xf]
      %v1505 = vld [vmem:[%s1187 + $0x28] sm:$0xf]
      %v1506 = vld [vmem:[%s1187 + $0x2c] sm:$0xf]
      %v1507 = vld [vmem:[%s1187 + $0x30] sm:$0xf]
      %v1508 = vld [vmem:[%s1187 + $0x34] sm:$0xf]
      %v1509 = vld [vmem:[%s1187 + $0x38] sm:$0xf]
      %v1510 = vld [vmem:[%s1187 + $0x3c] sm:$0xf]
      %v1511 = vpack.c.bf16 %v1494, %v1493
      %v1512 = vld [vmem:[%s8 + $0x5] sm:$0x1]
      %v1513 = vlaneseq
      %v1514 = vshrl.u32 %v1513, 7
      %v1515 = vsub.s32 0, %v1514
      %v1516 = vrot.slane %v1512, %v1515
      %v1533 = vunpack.c.l.b16 %v1495
      %v1534 = vunpack.c.l.b16 %v1496
      %v1535 = vunpack.c.l.b16 %v1497
      %v1536 = vunpack.c.l.b16 %v1498
      %v1537 = vunpack.c.l.b16 %v1499
      %v1538 = vunpack.c.l.b16 %v1500
      %v1539 = vunpack.c.l.b16 %v1501
      %v1540 = vunpack.c.l.b16 %v1502
      %v1541 = vunpack.c.l.b16 %v1503
      %v1542 = vunpack.c.l.b16 %v1504
      %v1543 = vunpack.c.l.b16 %v1505
      %v1544 = vunpack.c.l.b16 %v1506
      %v1545 = vunpack.c.l.b16 %v1507
      %v1546 = vunpack.c.l.b16 %v1508
      %v1547 = vunpack.c.l.b16 %v1509
      %v1548 = vunpack.c.l.b16 %v1510
      %v1549 = vpack.c.b16 %v1534, %v1533
      %v1550 = vpack.c.b16 %v1536, %v1535
      %v1551 = vpack.c.b16 %v1538, %v1537
      %v1552 = vpack.c.b16 %v1540, %v1539
      %v1553 = vpack.c.b16 %v1542, %v1541
      %v1554 = vpack.c.b16 %v1544, %v1543
      %v1555 = vpack.c.b16 %v1546, %v1545
      %v1556 = vpack.c.b16 %v1548, %v1547
      %1565 = vmatprep.subr.bf16.mxu0 0
      %1566 = vmatpush1.bf16.msra.mxu0 %v1549
      %1567 = vmatprep.subr.bf16.mxu0 0
      %1568 = vmatpush1.bf16.msra.mxu0 %v1550
      %1569 = vmatprep.subr.bf16.mxu0 0
      %1570 = vmatpush1.bf16.msra.mxu0 %v1551
      %1571 = vmatprep.subr.bf16.mxu0 0
      %1572 = vmatpush1.bf16.msra.mxu0 %v1552
      %1573 = vmatprep.subr.bf16.mxu0 0
      %1574 = vmatpush1.bf16.msra.mxu0 %v1553
      %1575 = vmatprep.subr.bf16.mxu0 0
      %1576 = vmatpush1.bf16.msra.mxu0 %v1554
      %1577 = vmatprep.subr.bf16.mxu0 0
      %1578 = vmatpush1.bf16.msra.mxu0 %v1555
      %1579 = vmatprep.subr.bf16.mxu0 0
      %1580 = vmatpush1.bf16.msra.mxu0 %v1556
      %1581 = vmatprep.subr.bf16.mxu0 0
      %1582 = vmatpush1.bf16.msra.mxu0 0
      %1583 = vmatprep.subr.bf16.mxu0 0
      %1584 = vmatpush1.bf16.msra.mxu0 0
      %1585 = vmatprep.subr.bf16.mxu0 0
      %1586 = vmatpush1.bf16.msra.mxu0 0
      %1587 = vmatprep.subr.bf16.mxu0 0
      %1588 = vmatpush1.bf16.msra.mxu0 0
      %1589 = vmatprep.subr.bf16.mxu0 0
      %1590 = vmatpush1.bf16.msra.mxu0 0
      %1591 = vmatprep.subr.bf16.mxu0 0
      %1592 = vmatpush1.bf16.msra.mxu0 0
      %1593 = vmatprep.subr.bf16.mxu0 0
      %1594 = vmatpush1.bf16.msra.mxu0 0
      %1595 = vmatprep.subr.bf16.mxu0 0
      %1596 = vmatpush1.bf16.msra.mxu0 0
      %1597 = vmatprep.mubr.bf16.mxu0 0
      %1598 = vmatmul.mubr.bf16.gmra.mrb[0].mxu0 %v1511
      %v1599 = vpop.f32.mrb[0].mxu0
      %v1600 = vadd.f32 %v1516, %v1599
      %v1601 = vpop.f32.mrb[0].mxu0
      %v1602 = vpop.f32.mrb[0].mxu0
      %v1603 = vadd.f32 %v1516, %v1602
      %v1604 = vpop.f32.mrb[0].mxu0
      %1605 = vdwg.mxu0
      %1606 = vst [vmem:[%s475] sm:$0xff] %v1600
      %1607 = vst [vmem:[%s475 + $0x8] sm:$0xff] %v1603
      %v1608 = vpack.c.bf16 %v485, %v484
      %v1609 = vpack.c.bf16 %v487, %v486
      %v1610 = vld [vmem:[%s7] sm:$0xf]
      %v1611 = vld [vmem:[%s7 + $0x4] sm:$0xf]
      %v1612 = vld [vmem:[%s7 + $0x8] sm:$0xf]
      %v1613 = vld [vmem:[%s7 + $0xc] sm:$0xf]
      %v1614 = vld [vmem:[%s7 + $0x10] sm:$0xf]
      %v1615 = vld [vmem:[%s7 + $0x14] sm:$0xf]
      %v1616 = vld [vmem:[%s7 + $0x18] sm:$0xf]
      %v1617 = vld [vmem:[%s7 + $0x1c] sm:$0xf]
      %v1618 = vld [vmem:[%s7 + $0x20] sm:$0xf]
      %v1619 = vld [vmem:[%s7 + $0x24] sm:$0xf]
      %v1620 = vld [vmem:[%s7 + $0x28] sm:$0xf]
      %v1621 = vld [vmem:[%s7 + $0x2c] sm:$0xf]
      %v1622 = vld [vmem:[%s7 + $0x30] sm:$0xf]
      %v1623 = vld [vmem:[%s7 + $0x34] sm:$0xf]
      %v1624 = vld [vmem:[%s7 + $0x38] sm:$0xf]
      %v1625 = vld [vmem:[%s7 + $0x3c] sm:$0xf]
      %v1626 = vld [vmem:[%s7 + $0x40] sm:$0xf]
      %v1627 = vld [vmem:[%s7 + $0x44] sm:$0xf]
      %v1628 = vld [vmem:[%s7 + $0x48] sm:$0xf]
      %v1629 = vld [vmem:[%s7 + $0x4c] sm:$0xf]
      %v1630 = vld [vmem:[%s7 + $0x50] sm:$0xf]
      %v1631 = vld [vmem:[%s7 + $0x54] sm:$0xf]
      %v1632 = vld [vmem:[%s7 + $0x58] sm:$0xf]
      %v1633 = vld [vmem:[%s7 + $0x5c] sm:$0xf]
      %v1634 = vld [vmem:[%s7 + $0x60] sm:$0xf]
      %v1635 = vld [vmem:[%s7 + $0x64] sm:$0xf]
      %v1636 = vld [vmem:[%s7 + $0x68] sm:$0xf]
      %v1637 = vld [vmem:[%s7 + $0x6c] sm:$0xf]
      %v1638 = vld [vmem:[%s7 + $0x70] sm:$0xf]
      %v1639 = vld [vmem:[%s7 + $0x74] sm:$0xf]
      %v1640 = vld [vmem:[%s7 + $0x78] sm:$0xf]
      %v1641 = vld [vmem:[%s7 + $0x7c] sm:$0xf]
      %v1642 = vld [vmem:[%s8 + $0x4] sm:$0x1]
      %v1643 = vlaneseq
      %v1644 = vshrl.u32 %v1643, 7
      %v1645 = vsub.s32 0, %v1644
      %v1646 = vrot.slane %v1642, %v1645
      %v1679 = vunpack.c.l.b16 %v1610
      %v1680 = vunpack.c.l.b16 %v1611
      %v1681 = vunpack.c.l.b16 %v1612
      %v1682 = vunpack.c.l.b16 %v1613
      %v1683 = vunpack.c.l.b16 %v1614
      %v1684 = vunpack.c.l.b16 %v1615
      %v1685 = vunpack.c.l.b16 %v1616
      %v1686 = vunpack.c.l.b16 %v1617
      %v1687 = vunpack.c.l.b16 %v1618
      %v1688 = vunpack.c.l.b16 %v1619
      %v1689 = vunpack.c.l.b16 %v1620
      %v1690 = vunpack.c.l.b16 %v1621
      %v1691 = vunpack.c.l.b16 %v1622
      %v1692 = vunpack.c.l.b16 %v1623
      %v1693 = vunpack.c.l.b16 %v1624
      %v1694 = vunpack.c.l.b16 %v1625
      %v1695 = vunpack.c.l.b16 %v1626
      %v1696 = vunpack.c.l.b16 %v1627
      %v1697 = vunpack.c.l.b16 %v1628
      %v1698 = vunpack.c.l.b16 %v1629
      %v1699 = vunpack.c.l.b16 %v1630
      %v1700 = vunpack.c.l.b16 %v1631
      %v1701 = vunpack.c.l.b16 %v1632
      %v1702 = vunpack.c.l.b16 %v1633
      %v1703 = vunpack.c.l.b16 %v1634
      %v1704 = vunpack.c.l.b16 %v1635
      %v1705 = vunpack.c.l.b16 %v1636
      %v1706 = vunpack.c.l.b16 %v1637
      %v1707 = vunpack.c.l.b16 %v1638
      %v1708 = vunpack.c.l.b16 %v1639
      %v1709 = vunpack.c.l.b16 %v1640
      %v1710 = vunpack.c.l.b16 %v1641
      %v1711 = vpack.c.b16 %v1680, %v1679
      %v1712 = vpack.c.b16 %v1682, %v1681
      %v1713 = vpack.c.b16 %v1684, %v1683
      %v1714 = vpack.c.b16 %v1686, %v1685
      %v1715 = vpack.c.b16 %v1688, %v1687
      %v1716 = vpack.c.b16 %v1690, %v1689
      %v1717 = vpack.c.b16 %v1692, %v1691
      %v1718 = vpack.c.b16 %v1694, %v1693
      %v1719 = vpack.c.b16 %v1696, %v1695
      %v1720 = vpack.c.b16 %v1698, %v1697
      %v1721 = vpack.c.b16 %v1700, %v1699
      %v1722 = vpack.c.b16 %v1702, %v1701
      %v1723 = vpack.c.b16 %v1704, %v1703
      %v1724 = vpack.c.b16 %v1706, %v1705
      %v1725 = vpack.c.b16 %v1708, %v1707
      %v1726 = vpack.c.b16 %v1710, %v1709
      %1743 = vmatprep.subr.bf16.mxu0 0
      %1744 = vmatpush1.bf16.msra.mxu0 %v1711
      %1745 = vmatprep.subr.bf16.mxu0 0
      %1746 = vmatpush1.bf16.msra.mxu0 %v1712
      %1747 = vmatprep.subr.bf16.mxu0 0
      %1748 = vmatpush1.bf16.msra.mxu0 %v1713
      %1749 = vmatprep.subr.bf16.mxu0 0
      %1750 = vmatpush1.bf16.msra.mxu0 %v1714
      %1751 = vmatprep.subr.bf16.mxu0 0
      %1752 = vmatpush1.bf16.msra.mxu0 %v1715
      %1753 = vmatprep.subr.bf16.mxu0 0
      %1754 = vmatpush1.bf16.msra.mxu0 %v1716
      %1755 = vmatprep.subr.bf16.mxu0 0
      %1756 = vmatpush1.bf16.msra.mxu0 %v1717
      %1757 = vmatprep.subr.bf16.mxu0 0
      %1758 = vmatpush1.bf16.msra.mxu0 %v1718
      %1759 = vmatprep.subr.bf16.mxu0 0
      %1760 = vmatpush1.bf16.msra.mxu0 %v1719
      %1761 = vmatprep.subr.bf16.mxu0 0
      %1762 = vmatpush1.bf16.msra.mxu0 %v1720
      %1763 = vmatprep.subr.bf16.mxu0 0
      %1764 = vmatpush1.bf16.msra.mxu0 %v1721
      %1765 = vmatprep.subr.bf16.mxu0 0
      %1766 = vmatpush1.bf16.msra.mxu0 %v1722
      %1767 = vmatprep.subr.bf16.mxu0 0
      %1768 = vmatpush1.bf16.msra.mxu0 %v1723
      %1769 = vmatprep.subr.bf16.mxu0 0
      %1770 = vmatpush1.bf16.msra.mxu0 %v1724
      %1771 = vmatprep.subr.bf16.mxu0 0
      %1772 = vmatpush1.bf16.msra.mxu0 %v1725
      %1773 = vmatprep.subr.bf16.mxu0 0
      %1774 = vmatpush1.bf16.msra.mxu0 %v1726
      %1775 = vmatprep.mubr.bf16.mxu0 %v1609
      %1776 = vmatmul.mubr.bf16.gmra.mrb[0].mxu0 %v1608
      %v1777 = vpop.f32.mrb[0].mxu0
      %v1778 = vadd.f32 %v1646, %v1777
      %v1779 = vpop.f32.mrb[0].mxu0
      %v1780 = vpop.f32.mrb[0].mxu0
      %v1781 = vadd.f32 %v1646, %v1780
      %v1782 = vpop.f32.mrb[0].mxu0
      %1783 = vdwg.mxu0
      %v1784 = vxor.u32 %v1778, 2147483648
      %v1785 = vxor.u32 %v1781, 2147483648
      %v1786 = vmul.f32 %v1784, 1.442695
      %v1787 = vpow.pop %v1786
      %v1788 = vmul.f32 %v1785, 1.442695
      %v1789 = vpow.pop %v1788
      %v1790 = vadd.f32 %v1787, 1.0
      %v1791 = vadd.f32 %v1789, 1.0
      %v1792 = vrcp.pop %v1790
      %v1793 = vmul.f32 1.0, %v1792
      %v1794 = vrcp.pop %v1791
      %v1795 = vmul.f32 1.0, %v1794
      %v1796 = vmul.f32 %v1778, %v1793
      %v1797 = vmul.f32 %v1781, %v1795
      %v1798 = vld [vmem:[%s1187] sm:$0xf]
      %v1799 = vld [vmem:[%s1187 + $0x4] sm:$0xf]
      %v1800 = vld [vmem:[%s1187 + $0x8] sm:$0xf]
      %v1801 = vld [vmem:[%s1187 + $0xc] sm:$0xf]
      %v1802 = vld [vmem:[%s1187 + $0x10] sm:$0xf]
      %v1803 = vld [vmem:[%s1187 + $0x14] sm:$0xf]
      %v1804 = vld [vmem:[%s1187 + $0x18] sm:$0xf]
      %v1805 = vld [vmem:[%s1187 + $0x1c] sm:$0xf]
      %v1806 = vld [vmem:[%s1187 + $0x20] sm:$0xf]
      %v1807 = vld [vmem:[%s1187 + $0x24] sm:$0xf]
      %v1808 = vld [vmem:[%s1187 + $0x28] sm:$0xf]
      %v1809 = vld [vmem:[%s1187 + $0x2c] sm:$0xf]
      %v1810 = vld [vmem:[%s1187 + $0x30] sm:$0xf]
      %v1811 = vld [vmem:[%s1187 + $0x34] sm:$0xf]
      %v1812 = vld [vmem:[%s1187 + $0x38] sm:$0xf]
      %v1813 = vld [vmem:[%s1187 + $0x3c] sm:$0xf]
      %v1814 = vpack.c.bf16 %v1797, %v1796
      %v1815 = vld [vmem:[%s8 + $0x5] sm:$0x1]
      %v1816 = vlaneseq
      %v1817 = vshrl.u32 %v1816, 7
      %v1818 = vsub.s32 0, %v1817
      %v1819 = vrot.slane %v1815, %v1818
      %v1836 = vunpack.c.l.b16 %v1798
      %v1837 = vunpack.c.l.b16 %v1799
      %v1838 = vunpack.c.l.b16 %v1800
      %v1839 = vunpack.c.l.b16 %v1801
      %v1840 = vunpack.c.l.b16 %v1802
      %v1841 = vunpack.c.l.b16 %v1803
      %v1842 = vunpack.c.l.b16 %v1804
      %v1843 = vunpack.c.l.b16 %v1805
      %v1844 = vunpack.c.l.b16 %v1806
      %v1845 = vunpack.c.l.b16 %v1807
      %v1846 = vunpack.c.l.b16 %v1808
      %v1847 = vunpack.c.l.b16 %v1809
      %v1848 = vunpack.c.l.b16 %v1810
      %v1849 = vunpack.c.l.b16 %v1811
      %v1850 = vunpack.c.l.b16 %v1812
      %v1851 = vunpack.c.l.b16 %v1813
      %v1852 = vpack.c.b16 %v1837, %v1836
      %v1853 = vpack.c.b16 %v1839, %v1838
      %v1854 = vpack.c.b16 %v1841, %v1840
      %v1855 = vpack.c.b16 %v1843, %v1842
      %v1856 = vpack.c.b16 %v1845, %v1844
      %v1857 = vpack.c.b16 %v1847, %v1846
      %v1858 = vpack.c.b16 %v1849, %v1848
      %v1859 = vpack.c.b16 %v1851, %v1850
      %1868 = vmatprep.subr.bf16.mxu0 0
      %1869 = vmatpush1.bf16.msra.mxu0 %v1852
      %1870 = vmatprep.subr.bf16.mxu0 0
      %1871 = vmatpush1.bf16.msra.mxu0 %v1853
      %1872 = vmatprep.subr.bf16.mxu0 0
      %1873 = vmatpush1.bf16.msra.mxu0 %v1854
      %1874 = vmatprep.subr.bf16.mxu0 0
      %1875 = vmatpush1.bf16.msra.mxu0 %v1855
      %1876 = vmatprep.subr.bf16.mxu0 0
      %1877 = vmatpush1.bf16.msra.mxu0 %v1856
      %1878 = vmatprep.subr.bf16.mxu0 0
      %1879 = vmatpush1.bf16.msra.mxu0 %v1857
      %1880 = vmatprep.subr.bf16.mxu0 0
      %1881 = vmatpush1.bf16.msra.mxu0 %v1858
      %1882 = vmatprep.subr.bf16.mxu0 0
      %1883 = vmatpush1.bf16.msra.mxu0 %v1859
      %1884 = vmatprep.subr.bf16.mxu0 0
      %1885 = vmatpush1.bf16.msra.mxu0 0
      %1886 = vmatprep.subr.bf16.mxu0 0
      %1887 = vmatpush1.bf16.msra.mxu0 0
      %1888 = vmatprep.subr.bf16.mxu0 0
      %1889 = vmatpush1.bf16.msra.mxu0 0
      %1890 = vmatprep.subr.bf16.mxu0 0
      %1891 = vmatpush1.bf16.msra.mxu0 0
      %1892 = vmatprep.subr.bf16.mxu0 0
      %1893 = vmatpush1.bf16.msra.mxu0 0
      %1894 = vmatprep.subr.bf16.mxu0 0
      %1895 = vmatpush1.bf16.msra.mxu0 0
      %1896 = vmatprep.subr.bf16.mxu0 0
      %1897 = vmatpush1.bf16.msra.mxu0 0
      %1898 = vmatprep.subr.bf16.mxu0 0
      %1899 = vmatpush1.bf16.msra.mxu0 0
      %1900 = vmatprep.mubr.bf16.mxu0 0
      %1901 = vmatmul.mubr.bf16.gmra.mrb[0].mxu0 %v1814
      %v1902 = vpop.f32.mrb[0].mxu0
      %v1903 = vadd.f32 %v1819, %v1902
      %v1904 = vpop.f32.mrb[0].mxu0
      %v1905 = vpop.f32.mrb[0].mxu0
      %v1906 = vadd.f32 %v1819, %v1905
      %v1907 = vpop.f32.mrb[0].mxu0
      %1908 = vdwg.mxu0
      %1909 = vst [vmem:[%s481] sm:$0xff] %v1903
      %1910 = vst [vmem:[%s481 + $0x8] sm:$0xff] %v1906
      %s1911 = smul.u32 2, %s23
      %p1912 = scmp.lt.s32.totalorder %s1911, 7
      %s1913 = scalar_select %p1912, %s1911, 7
      %s1914 = smul.addr %s1913, 8
      %s1915 = scalar_lea.vmem %s9, %s1914
      %s1916 = smul.u32 2, %s23
      %p1917 = scmp.lt.s32.totalorder %s1916, 7
      %s1918 = scalar_select %p1917, %s1916, 7
      %s1919 = smul.addr %s1918, 8
      %s1920 = scalar_lea.vmem %s10, %s1919
      %s1921 = smul.u32 2, %s23
      %p1922 = scmp.lt.s32.totalorder %s1921, 7
      %s1923 = scalar_select %p1922, %s1921, 7
      %s1924 = smul.addr %s1923, 8
      %s1925 = scalar_lea.vmem %s11, %s1924
      // Predicated region
      $region57: #{comenet_forward.10} parent=55 // pred_check
        %p1926 = pneg %p250
      $region58: #{comenet_forward.10} parent=55 // pred_check_branch
        %1928 = sbr.rel (%p1926) target = $region60
      $region59: #{comenet_forward.10} parent=55 // pred_region
        %s1929 = smul.u32 2, %s23
      $region60: #{comenet_forward.10} parent=55 // pred_fallthru
        _
      // Predicated region
      $region61: #{comenet_forward.10} parent=55 // pred_check
        %p1930 = pneg %p276
      $region62: #{comenet_forward.10} parent=55 // pred_check_branch
        %1932 = sbr.rel (%p1930) target = $region64
      $region63: #{comenet_forward.10} parent=55 // pred_region
        %s1933 = smul.u32 2, %s23
      $region64: #{comenet_forward.10} parent=55 // pred_fallthru
        _
      // Predicated region
      $region65: #{comenet_forward.10} parent=55 // pred_check
        %p1934 = pneg %p302
      $region66: #{comenet_forward.10} parent=55 // pred_check_branch
        %1936 = sbr.rel (%p1934) target = $region68
      $region67: #{comenet_forward.10} parent=55 // pred_region
        %s1937 = smul.u32 2, %s23
      $region68: #{comenet_forward.10} parent=55 // pred_fallthru
        _
    $region56: #{comenet_forward.10} parent=5 // pred_fallthru
      _
    %p1938 = scmp.le.s32.totalorder 2, %s18
    // Predicated region
    $region69: #{comenet_forward.10} parent=5 // pred_check
      %p1939 = pneg %p1938
    $region70: #{comenet_forward.10} parent=5 // pred_check_branch
      %1941 = sbr.rel (%p1939) target = $region72
    $region71: #{comenet_forward.10} parent=5 // pred_region
      %s1942 = ssub.s32 %s18, 2
      // Predicated region
      $region73: #{comenet_forward.10} parent=71 // pred_check
        %p1943 = pneg %p256
      $region74: #{comenet_forward.10} parent=71 // pred_check_branch
        %1945 = sbr.rel (%p1943) target = $region76
      $region75: #{comenet_forward.10} parent=71 // pred_region
        %s1946 = smul.u32 2, %s24
        %p1947 = scmp.lt.s32.totalorder %s1946, 7
        %s1948 = scalar_select %p1947, %s1946, 7
        %s1949 = smul.addr %s1948, 8
        %s1950 = scalar_lea.vmem %s9, %s1949
      $region76: #{comenet_forward.10} parent=71 // pred_fallthru
        _
      // Predicated region
      $region77: #{comenet_forward.10} parent=71 // pred_check
        %p1951 = pneg %p282
      $region78: #{comenet_forward.10} parent=71 // pred_check_branch
        %1953 = sbr.rel (%p1951) target = $region80
      $region79: #{comenet_forward.10} parent=71 // pred_region
        %s1954 = smul.u32 2, %s24
        %p1955 = scmp.lt.s32.totalorder %s1954, 7
        %s1956 = scalar_select %p1955, %s1954, 7
        %s1957 = smul.addr %s1956, 8
        %s1958 = scalar_lea.vmem %s10, %s1957
      $region80: #{comenet_forward.10} parent=71 // pred_fallthru
        _
      // Predicated region
      $region81: #{comenet_forward.10} parent=71 // pred_check
        %p1959 = pneg %p308
      $region82: #{comenet_forward.10} parent=71 // pred_check_branch
        %1961 = sbr.rel (%p1959) target = $region84
      $region83: #{comenet_forward.10} parent=71 // pred_region
        %s1962 = smul.u32 2, %s24
        %p1963 = scmp.lt.s32.totalorder %s1962, 7
        %s1964 = scalar_select %p1963, %s1962, 7
        %s1965 = smul.addr %s1964, 8
        %s1966 = scalar_lea.vmem %s11, %s1965
      $region84: #{comenet_forward.10} parent=71 // pred_fallthru
        _
    $region72: #{comenet_forward.10} parent=5 // pred_fallthru
      _
  $region6: #{comenet_forward.10} parent=0 // loop_footer
    %s22 = sadd.s32 1, %s18
  $region7: #{comenet_forward.10} parent=0 // loop_footer_branch
    %17 = sbr.rel target = $region3
  $region8: #{comenet_forward.10} parent=0 // loop_exit
    _

// kernel: comenet_forward.14
$region0: #{comenet_forward.14}
  #allocation0 [shape = 'u32[]', space=smem, size = 0x4, offset = 0x4, fixed_abs, tag = 'smem constant byte address 0x4 - core index']
  #allocation1 [shape = 'u32[144,128]{1,0:T(1,128)}', space=vmem, size = 0x12000, scoped, tag = 'internal scratch']
  %s0 = inlined_call_operand.vmem [shape: f32[16,128], index: 0, kind: input, shape index: {}]
  %s1 = inlined_call_operand.vmem [shape: s32[16,1], index: 1, kind: input, shape index: {}]
  %s2 = inlined_call_operand.vmem [shape: f32[128,128], index: 2, kind: input, shape index: {}]
  %s3 = inlined_call_operand.vmem [shape: f32[128,128], index: 3, kind: input, shape index: {}]
  %s4 = inlined_call_operand.vmem [shape: f32[1,128], index: 4, kind: input, shape index: {}]
  %s5 = inlined_call_operand.vmem [shape: f32[1,128], index: 5, kind: input, shape index: {}]
  %s6 = inlined_call_operand.vmem [shape: f32[1,128], index: 6, kind: input, shape index: {}]
  %s7 = inlined_call_operand.vmem [shape: bf16[128,128], index: 7, kind: input, shape index: {}]
  %s8 = inlined_call_operand.vmem [shape: f32[1,128], index: 8, kind: input, shape index: {}]
  %s9 = inlined_call_operand.vmem [shape: f32[16,128], index: 9, kind: output, shape index: {}]
  %s10 = sld [smem:[#allocation0]]
  $region69: #{comenet_forward.14} parent=0
    _
  %s12 = ssub.s32 1, %s10
  %s13 = scalar_select 0, %s12, %s10
  loop: start=0, step=1, limit=4
  $region2: #{comenet_forward.14} parent=0 // loop_pre_header
    _
  $region3: #{comenet_forward.14} parent=0 // loop_header
    %s15 = sphi 0, %s19
    %p16 = scmp.ge.s32.totalorder %s15, 4
    %s25 = sphi 0, %s27
    %s28 = sphi 0, %s25
    %s29 = sphi 0, %s28
    %s45 = sphi 0, %s29
    %s51 = sphi 0, %s53
    %s54 = sphi 0, %s51
    %s55 = sphi 0, %s54
    %s71 = sphi 0, %s55
    %s75 = sphi 0, %s75
    %s77 = sphi 0, %s75
    %s78 = sphi 0, %s77
    %s92 = sphi 0, %s78
    %s96 = sphi 0, %s96
    %s98 = sphi 0, %s96
    %s99 = sphi 0, %s98
    %s113 = sphi 0, %s99
    %s117 = sphi 0, %s117
    %s119 = sphi 0, %s117
    %s120 = sphi 0, %s119
    %s134 = sphi 0, %s120
    %s138 = sphi 0, %s138
    %s140 = sphi 0, %s138
    %s141 = sphi 0, %s140
    %s155 = sphi 0, %s141
    %s159 = sphi 0, %s159
    %s161 = sphi 0, %s159
    %s162 = sphi 0, %s161
    %s176 = sphi 0, %s162
    %s180 = sphi 0, %s180
    %s182 = sphi 0, %s180
    %s183 = sphi 0, %s182
    %s197 = sphi 0, %s183
    %s201 = sphi 0, %s201
    %s203 = sphi 0, %s201
    %s204 = sphi 0, %s203
    %s218 = sphi 0, %s204
    %s224 = sphi 0, %s226
    %s227 = sphi 0, %s224
    %s228 = sphi 0, %s227
    %s244 = sphi 0, %s228
  $region4: #{comenet_forward.14} parent=0 // loop_header_branch
    %18 = sbr.rel (%p16) target = $region8
  $region5: #{comenet_forward.14} parent=0 // loop_body
    %s20 = ssub.s32 %s15, 1
    %s21 = ssub.s32 %s15, 2
    %s22 = sadd.s32 %s15, 1
    %s23 = ssub.s32 %s15, %s22
    %p24 = scmp.eq.s32.totalorder %s23, 0
    %s26 = sadd.s32 %s25, 1
    %s27 = scalar_select %p24, %s25, %s26
    %p30 = pneg %p24
    %p31 = scmp.eq.s32.totalorder %s15, 1
    %p32 = por %p30, %p31
    %p33 = scmp.ne.s32.totalorder %s25, %s28
    %p34 = scmp.eq.s32.totalorder %s15, 0
    %p35 = por %p33, %p34
    %p36 = scmp.ne.s32.totalorder %s25, %s28
    %p37 = scmp.eq.s32.totalorder %s20, 1
    %p38 = por %p36, %p37
    %p39 = scmp.ne.s32.totalorder %s28, %s29
    %p40 = scmp.eq.s32.totalorder %s20, 0
    %p41 = por %p39, %p40
    %p42 = scmp.ne.s32.totalorder %s28, %s29
    %p43 = scmp.eq.s32.totalorder %s21, 1
    %p44 = por %p42, %p43
    %p46 = scmp.ne.s32.totalorder %s29, %s45
    %p47 = scmp.eq.s32.totalorder %s21, 0
    %p48 = por %p46, %p47
    %s49 = ssub.s32 %s15, %s22
    %p50 = scmp.eq.s32.totalorder %s49, 0
    %s52 = sadd.s32 %s51, 1
    %s53 = scalar_select %p50, %s51, %s52
    %p56 = pneg %p50
    %p57 = scmp.eq.s32.totalorder %s15, 1
    %p58 = por %p56, %p57
    %p59 = scmp.ne.s32.totalorder %s51, %s54
    %p60 = scmp.eq.s32.totalorder %s15, 0
    %p61 = por %p59, %p60
    %p62 = scmp.ne.s32.totalorder %s51, %s54
    %p63 = scmp.eq.s32.totalorder %s20, 1
    %p64 = por %p62, %p63
    %p65 = scmp.ne.s32.totalorder %s54, %s55
    %p66 = scmp.eq.s32.totalorder %s20, 0
    %p67 = por %p65, %p66
    %p68 = scmp.ne.s32.totalorder %s54, %s55
    %p69 = scmp.eq.s32.totalorder %s21, 1
    %p70 = por %p68, %p69
    %p72 = scmp.ne.s32.totalorder %s55, %s71
    %p73 = scmp.eq.s32.totalorder %s21, 0
    %p74 = por %p72, %p73
    %s76 = sadd.s32 %s75, 1
    %p79 = scmp.eq.s32.totalorder %s15, 1
    %p80 = scmp.ne.s32.totalorder %s75, %s77
    %p81 = scmp.eq.s32.totalorder %s15, 0
    %p82 = por %p80, %p81
    %p83 = scmp.ne.s32.totalorder %s75, %s77
    %p84 = scmp.eq.s32.totalorder %s20, 1
    %p85 = por %p83, %p84
    %p86 = scmp.ne.s32.totalorder %s77, %s78
    %p87 = scmp.eq.s32.totalorder %s20, 0
    %p88 = por %p86, %p87
    %p89 = scmp.ne.s32.totalorder %s77, %s78
    %p90 = scmp.eq.s32.totalorder %s21, 1
    %p91 = por %p89, %p90
    %p93 = scmp.ne.s32.totalorder %s78, %s92
    %p94 = scmp.eq.s32.totalorder %s21, 0
    %p95 = por %p93, %p94
    %s97 = sadd.s32 %s96, 1
    %p100 = scmp.eq.s32.totalorder %s15, 1
    %p101 = scmp.ne.s32.totalorder %s96, %s98
    %p102 = scmp.eq.s32.totalorder %s15, 0
    %p103 = por %p101, %p102
    %p104 = scmp.ne.s32.totalorder %s96, %s98
    %p105 = scmp.eq.s32.totalorder %s20, 1
    %p106 = por %p104, %p105
    %p107 = scmp.ne.s32.totalorder %s98, %s99
    %p108 = scmp.eq.s32.totalorder %s20, 0
    %p109 = por %p107, %p108
    %p110 = scmp.ne.s32.totalorder %s98, %s99
    %p111 = scmp.eq.s32.totalorder %s21, 1
    %p112 = por %p110, %p111
    %p114 = scmp.ne.s32.totalorder %s99, %s113
    %p115 = scmp.eq.s32.totalorder %s21, 0
    %p116 = por %p114, %p115
    %s118 = sadd.s32 %s117, 1
    %p121 = scmp.eq.s32.totalorder %s15, 1
    %p122 = scmp.ne.s32.totalorder %s117, %s119
    %p123 = scmp.eq.s32.totalorder %s15, 0
    %p124 = por %p122, %p123
    %p125 = scmp.ne.s32.totalorder %s117, %s119
    %p126 = scmp.eq.s32.totalorder %s20, 1
    %p127 = por %p125, %p126
    %p128 = scmp.ne.s32.totalorder %s119, %s120
    %p129 = scmp.eq.s32.totalorder %s20, 0
    %p130 = por %p128, %p129
    %p131 = scmp.ne.s32.totalorder %s119, %s120
    %p132 = scmp.eq.s32.totalorder %s21, 1
    %p133 = por %p131, %p132
    %p135 = scmp.ne.s32.totalorder %s120, %s134
    %p136 = scmp.eq.s32.totalorder %s21, 0
    %p137 = por %p135, %p136
    %s139 = sadd.s32 %s138, 1
    %p142 = scmp.eq.s32.totalorder %s15, 1
    %p143 = scmp.ne.s32.totalorder %s138, %s140
    %p144 = scmp.eq.s32.totalorder %s15, 0
    %p145 = por %p143, %p144
    %p146 = scmp.ne.s32.totalorder %s138, %s140
    %p147 = scmp.eq.s32.totalorder %s20, 1
    %p148 = por %p146, %p147
    %p149 = scmp.ne.s32.totalorder %s140, %s141
    %p150 = scmp.eq.s32.totalorder %s20, 0
    %p151 = por %p149, %p150
    %p152 = scmp.ne.s32.totalorder %s140, %s141
    %p153 = scmp.eq.s32.totalorder %s21, 1
    %p154 = por %p152, %p153
    %p156 = scmp.ne.s32.totalorder %s141, %s155
    %p157 = scmp.eq.s32.totalorder %s21, 0
    %p158 = por %p156, %p157
    %s160 = sadd.s32 %s159, 1
    %p163 = scmp.eq.s32.totalorder %s15, 1
    %p164 = scmp.ne.s32.totalorder %s159, %s161
    %p165 = scmp.eq.s32.totalorder %s15, 0
    %p166 = por %p164, %p165
    %p167 = scmp.ne.s32.totalorder %s159, %s161
    %p168 = scmp.eq.s32.totalorder %s20, 1
    %p169 = por %p167, %p168
    %p170 = scmp.ne.s32.totalorder %s161, %s162
    %p171 = scmp.eq.s32.totalorder %s20, 0
    %p172 = por %p170, %p171
    %p173 = scmp.ne.s32.totalorder %s161, %s162
    %p174 = scmp.eq.s32.totalorder %s21, 1
    %p175 = por %p173, %p174
    %p177 = scmp.ne.s32.totalorder %s162, %s176
    %p178 = scmp.eq.s32.totalorder %s21, 0
    %p179 = por %p177, %p178
    %s181 = sadd.s32 %s180, 1
    %p184 = scmp.eq.s32.totalorder %s15, 1
    %p185 = scmp.ne.s32.totalorder %s180, %s182
    %p186 = scmp.eq.s32.totalorder %s15, 0
    %p187 = por %p185, %p186
    %p188 = scmp.ne.s32.totalorder %s180, %s182
    %p189 = scmp.eq.s32.totalorder %s20, 1
    %p190 = por %p188, %p189
    %p191 = scmp.ne.s32.totalorder %s182, %s183
    %p192 = scmp.eq.s32.totalorder %s20, 0
    %p193 = por %p191, %p192
    %p194 = scmp.ne.s32.totalorder %s182, %s183
    %p195 = scmp.eq.s32.totalorder %s21, 1
    %p196 = por %p194, %p195
    %p198 = scmp.ne.s32.totalorder %s183, %s197
    %p199 = scmp.eq.s32.totalorder %s21, 0
    %p200 = por %p198, %p199
    %s202 = sadd.s32 %s201, 1
    %p205 = scmp.eq.s32.totalorder %s15, 1
    %p206 = scmp.ne.s32.totalorder %s201, %s203
    %p207 = scmp.eq.s32.totalorder %s15, 0
    %p208 = por %p206, %p207
    %p209 = scmp.ne.s32.totalorder %s201, %s203
    %p210 = scmp.eq.s32.totalorder %s20, 1
    %p211 = por %p209, %p210
    %p212 = scmp.ne.s32.totalorder %s203, %s204
    %p213 = scmp.eq.s32.totalorder %s20, 0
    %p214 = por %p212, %p213
    %p215 = scmp.ne.s32.totalorder %s203, %s204
    %p216 = scmp.eq.s32.totalorder %s21, 1
    %p217 = por %p215, %p216
    %p219 = scmp.ne.s32.totalorder %s204, %s218
    %p220 = scmp.eq.s32.totalorder %s21, 0
    %p221 = por %p219, %p220
    %s222 = ssub.s32 %s15, %s22
    %p223 = scmp.eq.s32.totalorder %s222, 0
    %s225 = sadd.s32 %s224, 1
    %s226 = scalar_select %p223, %s224, %s225
    %p229 = pneg %p223
    %p230 = scmp.eq.s32.totalorder %s15, 1
    %p231 = por %p229, %p230
    %p232 = scmp.ne.s32.totalorder %s224, %s227
    %p233 = scmp.eq.s32.totalorder %s15, 0
    %p234 = por %p232, %p233
    %p235 = scmp.ne.s32.totalorder %s224, %s227
    %p236 = scmp.eq.s32.totalorder %s20, 1
    %p237 = por %p235, %p236
    %p238 = scmp.ne.s32.totalorder %s227, %s228
    %p239 = scmp.eq.s32.totalorder %s20, 0
    %p240 = por %p238, %p239
    %p241 = scmp.ne.s32.totalorder %s227, %s228
    %p242 = scmp.eq.s32.totalorder %s21, 1
    %p243 = por %p241, %p242
    %p245 = scmp.ne.s32.totalorder %s228, %s244
    %p246 = scmp.eq.s32.totalorder %s21, 0
    %p247 = por %p245, %p246
    %p248 = scmp.le.s32.totalorder 1, %s15
    %p249 = scmp.lt.s32.totalorder %s15, 3
    %p250 = pnand %p248, %p249
    %p251 = pneg %p250
    // Predicated region
    $region9: #{comenet_forward.14} parent=5 // pred_check
      _
    $region10: #{comenet_forward.14} parent=5 // pred_check_branch
      %253 = sbr.rel (%p250) target = $region12
    $region11: #{comenet_forward.14} parent=5 // pred_region
      %s254 = ssub.s32 %s15, 1
      // Predicated region
      $region13: #{comenet_forward.14} parent=11 // pred_check
        %p255 = pneg %p88
      $region14: #{comenet_forward.14} parent=11 // pred_check_branch
        %257 = sbr.rel (%p255) target = $region16
      $region15: #{comenet_forward.14} parent=11 // pred_region
        _
      $region16: #{comenet_forward.14} parent=11 // pred_fallthru
        _
      // Predicated region
      $region17: #{comenet_forward.14} parent=11 // pred_check
        %p258 = pneg %p109
      $region18: #{comenet_forward.14} parent=11 // pred_check_branch
        %260 = sbr.rel (%p258) target = $region20
      $region19: #{comenet_forward.14} parent=11 // pred_region
        _
      $region20: #{comenet_forward.14} parent=11 // pred_fallthru
        _
      // Predicated region
      $region21: #{comenet_forward.14} parent=11 // pred_check
        %p261 = pneg %p130
      $region22: #{comenet_forward.14} parent=11 // pred_check_branch
        %263 = sbr.rel (%p261) target = $region24
      $region23: #{comenet_forward.14} parent=11 // pred_region
        _
      $region24: #{comenet_forward.14} parent=11 // pred_fallthru
        _
      // Predicated region
      $region25: #{comenet_forward.14} parent=11 // pred_check
        %p264 = pneg %p151
      $region26: #{comenet_forward.14} parent=11 // pred_check_branch
        %266 = sbr.rel (%p264) target = $region28
      $region27: #{comenet_forward.14} parent=11 // pred_region
        _
      $region28: #{comenet_forward.14} parent=11 // pred_fallthru
        _
      // Predicated region
      $region29: #{comenet_forward.14} parent=11 // pred_check
        %p267 = pneg %p172
      $region30: #{comenet_forward.14} parent=11 // pred_check_branch
        %269 = sbr.rel (%p267) target = $region32
      $region31: #{comenet_forward.14} parent=11 // pred_region
        _
      $region32: #{comenet_forward.14} parent=11 // pred_fallthru
        _
      // Predicated region
      $region33: #{comenet_forward.14} parent=11 // pred_check
        %p270 = pneg %p193
      $region34: #{comenet_forward.14} parent=11 // pred_check_branch
        %272 = sbr.rel (%p270) target = $region36
      $region35: #{comenet_forward.14} parent=11 // pred_region
        _
      $region36: #{comenet_forward.14} parent=11 // pred_fallthru
        _
      // Predicated region
      $region37: #{comenet_forward.14} parent=11 // pred_check
        %p273 = pneg %p214
      $region38: #{comenet_forward.14} parent=11 // pred_check_branch
        %275 = sbr.rel (%p273) target = $region40
      $region39: #{comenet_forward.14} parent=11 // pred_region
        _
      $region40: #{comenet_forward.14} parent=11 // pred_fallthru
        _
    $region12: #{comenet_forward.14} parent=5 // pred_fallthru
      _
    %p276 = scmp.lt.s32.totalorder %s15, 2
    // Predicated region
    $region41: #{comenet_forward.14} parent=5 // pred_check
      %p277 = pneg %p276
    $region42: #{comenet_forward.14} parent=5 // pred_check_branch
      %279 = sbr.rel (%p277) target = $region44
    $region43: #{comenet_forward.14} parent=5 // pred_region
      // Predicated region
      $region45: #{comenet_forward.14} parent=43 // pred_check
        %p280 = pneg %p35
      $region46: #{comenet_forward.14} parent=43 // pred_check_branch
        %282 = sbr.rel (%p280) target = $region48
      $region47: #{comenet_forward.14} parent=43 // pred_region
        %p283 = scmp.lt.s32.totalorder %s15, 1
        %s284 = scalar_select %p283, %s15, 1
        %s285 = smul.addr %s284, 8
        %s286 = scalar_lea.vmem %s0, %s285
      $region48: #{comenet_forward.14} parent=43 // pred_fallthru
        _
      // Predicated region
      $region49: #{comenet_forward.14} parent=43 // pred_check
        %p287 = pneg %p61
      $region50: #{comenet_forward.14} parent=43 // pred_check_branch
        %289 = sbr.rel (%p287) target = $region52
      $region51: #{comenet_forward.14} parent=43 // pred_region
        %p290 = scmp.lt.s32.totalorder %s15, 1
        %s291 = scalar_select %p290, %s15, 1
        %s292 = smul.addr %s291, 8
        %s293 = scalar_lea.vmem %s1, %s292
      $region52: #{comenet_forward.14} parent=43 // pred_fallthru
        _
    $region44: #{comenet_forward.14} parent=5 // pred_fallthru
      _
    %p294 = scmp.le.s32.totalorder 1, %s15
    %p295 = scmp.lt.s32.totalorder %s15, 3
    %p296 = pnand %p294, %p295
    %p297 = pneg %p296
    // Predicated region
    $region53: #{comenet_forward.14} parent=5 // pred_check
      _
    $region54: #{comenet_forward.14} parent=5 // pred_check_branch
      %299 = sbr.rel (%p296) target = $region56
    $region55: #{comenet_forward.14} parent=5 // pred_region
      %s300 = ssub.s32 %s15, 1
      %p301 = scmp.lt.s32.totalorder %s20, 1
      %s302 = scalar_select %p301, %s20, 1
      %s303 = smul.addr %s302, 8
      %s304 = scalar_lea.vmem %s0, %s303
      %p305 = pneg %p41
      %p306 = pneg %p38
      %p307 = scmp.lt.s32.totalorder %s20, 1
      %s308 = scalar_select %p307, %s20, 1
      %s309 = smul.addr %s308, 8
      %s310 = scalar_lea.vmem %s1, %s309
      %p311 = pneg %p67
      %p312 = pneg %p64
      %p313 = pneg %p88
      %p314 = pneg %p85
      %p315 = pneg %p109
      %p316 = pneg %p106
      %p317 = pneg %p130
      %p318 = pneg %p127
      %p319 = pneg %p151
      %p320 = pneg %p148
      %p321 = pneg %p172
      %p322 = pneg %p169
      %p323 = pneg %p193
      %p324 = pneg %p190
      %p325 = pneg %p214
      %p326 = pneg %p211
      %p327 = pneg %p240
      %p328 = pneg %p237
      %p329 = scmp.lt.s32.totalorder %s20, 1
      %s330 = scalar_select %p329, %s20, 1
      %s331 = smul.addr %s330, 8
      %s332 = scalar_lea.vmem %s9, %s331
      %p333 = scmp.lt.s32.totalorder %s20, 1
      %s334 = scalar_select %p333, %s20, 1
      %s335 = smul.addr %s334, 8
      %s336 = scalar_lea.vmem %s0, %s335
      %p337 = scmp.lt.s32.totalorder %s20, 1
      %s338 = scalar_select %p337, %s20, 1
      %s339 = smul.addr %s338, 8
      %s340 = scalar_lea.vmem %s1, %s339
      %p341 = scmp.lt.s32.totalorder %s20, 1
      %s342 = scalar_select %p341, %s20, 1
      %s343 = smul.addr %s342, 8
      %s344 = scalar_lea.vmem %s9, %s343
      %v346 = vld [vmem:[%s336] sm:$0xff]
      %v347 = vlaneseq
      %v348 = vand.u32 %v347, 127
      %v349 = vld [vmem:[%s340] sm:$0xff]
      %350 = vset.pattern.permute.xlu0 0
      %351 = vperm.xlu0 %350, %v349
      %v352 = vpop.permute.xlu0 %351
      %vm353 = vcmp.eq.s32.totalorder %v348, %v352
      %v354 = vsel %vm353, 1, 0
      %v355 = vcvt.s32.f32 %v354
      %v356 = vld [vmem:[%s2] sm:$0xff]
      %v357 = vld [vmem:[%s2 + $0x8] sm:$0xff]
      %v358 = vld [vmem:[%s2 + $0x10] sm:$0xff]
      %v359 = vld [vmem:[%s2 + $0x18] sm:$0xff]
      %v360 = vld [vmem:[%s2 + $0x20] sm:$0xff]
      %v361 = vld [vmem:[%s2 + $0x28] sm:$0xff]
      %v362 = vld [vmem:[%s2 + $0x30] sm:$0xff]
      %v363 = vld [vmem:[%s2 + $0x38] sm:$0xff]
      %v364 = vld [vmem:[%s2 + $0x40] sm:$0xff]
      %v365 = vld [vmem:[%s2 + $0x48] sm:$0xff]
      %v366 = vld [vmem:[%s2 + $0x50] sm:$0xff]
      %v367 = vld [vmem:[%s2 + $0x58] sm:$0xff]
      %v368 = vld [vmem:[%s2 + $0x60] sm:$0xff]
      %v369 = vld [vmem:[%s2 + $0x68] sm:$0xff]
      %v370 = vld [vmem:[%s2 + $0x70] sm:$0xff]
      %v371 = vld [vmem:[%s2 + $0x78] sm:$0xff]
      %372 = vmatprep.subr.mxu0 0.0
      %373 = vmatpush1.msra.mxu0 %v356
      %374 = vmatprep.subr.mxu0 0.0
      %375 = vmatpush1.msra.mxu0 %v357
      %376 = vmatprep.subr.mxu0 0.0
      %377 = vmatpush1.msra.mxu0 %v358
      %378 = vmatprep.subr.mxu0 0.0
      %379 = vmatpush1.msra.mxu0 %v359
      %380 = vmatprep.subr.mxu0 0.0
      %381 = vmatpush1.msra.mxu0 %v360
      %382 = vmatprep.subr.mxu0 0.0
      %383 = vmatpush1.msra.mxu0 %v361
      %384 = vmatprep.subr.mxu0 0.0
      %385 = vmatpush1.msra.mxu0 %v362
      %386 = vmatprep.subr.mxu0 0.0
      %387 = vmatpush1.msra.mxu0 %v363
      %388 = vmatprep.subr.mxu0 0.0
      %389 = vmatpush1.msra.mxu0 %v364
      %390 = vmatprep.subr.mxu0 0.0
      %391 = vmatpush1.msra.mxu0 %v365
      %392 = vmatprep.subr.mxu0 0.0
      %393 = vmatpush1.msra.mxu0 %v366
      %394 = vmatprep.subr.mxu0 0.0
      %395 = vmatpush1.msra.mxu0 %v367
      %396 = vmatprep.subr.mxu0 0.0
      %397 = vmatpush1.msra.mxu0 %v368
      %398 = vmatprep.subr.mxu0 0.0
      %399 = vmatpush1.msra.mxu0 %v369
      %400 = vmatprep.subr.mxu0 0.0
      %401 = vmatpush1.msra.mxu0 %v370
      %402 = vmatprep.subr.mxu0 0.0
      %403 = vmatpush1.msra.mxu0 %v371
      %404 = vmatprep.subr.mxu0 0.0
      %405 = vmatpush1.msra.mxu0 0.0
      %406 = vmatprep.subr.mxu0 0.0
      %407 = vmatpush1.msra.mxu0 0.0
      %408 = vmatprep.subr.mxu0 0.0
      %409 = vmatpush1.msra.mxu0 0.0
      %410 = vmatprep.subr.mxu0 0.0
      %411 = vmatpush1.msra.mxu0 0.0
      %412 = vmatprep.subr.mxu0 0.0
      %413 = vmatpush1.msra.mxu0 0.0
      %414 = vmatprep.subr.mxu0 0.0
      %415 = vmatpush1.msra.mxu0 0.0
      %416 = vmatprep.subr.mxu0 0.0
      %417 = vmatpush1.msra.mxu0 0.0
      %418 = vmatprep.subr.mxu0 0.0
      %419 = vmatpush1.msra.mxu0 0.0
      %420 = vmatprep.subr.mxu0 0.0
      %421 = vmatpush1.msra.mxu0 0.0
      %422 = vmatprep.subr.mxu0 0.0
      %423 = vmatpush1.msra.mxu0 0.0
      %424 = vmatprep.subr.mxu0 0.0
      %425 = vmatpush1.msra.mxu0 0.0
      %426 = vmatprep.subr.mxu0 0.0
      %427 = vmatpush1.msra.mxu0 0.0
      %428 = vmatprep.subr.mxu0 0.0
      %429 = vmatpush1.msra.mxu0 0.0
      %430 = vmatprep.subr.mxu0 0.0
      %431 = vmatpush1.msra.mxu0 0.0
      %432 = vmatprep.subr.mxu0 0.0
      %433 = vmatpush1.msra.mxu0 0.0
      %434 = vmatprep.subr.mxu0 0.0
      %435 = vmatpush1.msra.mxu0 0.0
      %436 = vmatprep.mubr.f32.mxu0 0.0
      %437 = vmatmul.mubr.f32.gmra.mrb[0].mxu0 %v355
      %v438 = vpop.f32.mrb[0].mxu0
      %v439 = vadd.f32 0.0, %v438
      %v440 = vpop.f32.mrb[0].mxu0
      %441 = vdwg.mxu0
      %v442 = vld [vmem:[%s3] sm:$0xff]
      %v443 = vld [vmem:[%s3 + $0x8] sm:$0xff]
      %v444 = vld [vmem:[%s3 + $0x10] sm:$0xff]
      %v445 = vld [vmem:[%s3 + $0x18] sm:$0xff]
      %v446 = vld [vmem:[%s3 + $0x20] sm:$0xff]
      %v447 = vld [vmem:[%s3 + $0x28] sm:$0xff]
      %v448 = vld [vmem:[%s3 + $0x30] sm:$0xff]
      %v449 = vld [vmem:[%s3 + $0x38] sm:$0xff]
      %v450 = vld [vmem:[%s3 + $0x40] sm:$0xff]
      %v451 = vld [vmem:[%s3 + $0x48] sm:$0xff]
      %v452 = vld [vmem:[%s3 + $0x50] sm:$0xff]
      %v453 = vld [vmem:[%s3 + $0x58] sm:$0xff]
      %v454 = vld [vmem:[%s3 + $0x60] sm:$0xff]
      %v455 = vld [vmem:[%s3 + $0x68] sm:$0xff]
      %v456 = vld [vmem:[%s3 + $0x70] sm:$0xff]
      %v457 = vld [vmem:[%s3 + $0x78] sm:$0xff]
      %458 = vmatprep.subr.mxu0 0.0
      %459 = vmatpush1.msra.mxu0 %v442
      %460 = vmatprep.subr.mxu0 0.0
      %461 = vmatpush1.msra.mxu0 %v443
      %462 = vmatprep.subr.mxu0 0.0
      %463 = vmatpush1.msra.mxu0 %v444
      %464 = vmatprep.subr.mxu0 0.0
      %465 = vmatpush1.msra.mxu0 %v445
      %466 = vmatprep.subr.mxu0 0.0
      %467 = vmatpush1.msra.mxu0 %v446
      %468 = vmatprep.subr.mxu0 0.0
      %469 = vmatpush1.msra.mxu0 %v447
      %470 = vmatprep.subr.mxu0 0.0
      %471 = vmatpush1.msra.mxu0 %v448
      %472 = vmatprep.subr.mxu0 0.0
      %473 = vmatpush1.msra.mxu0 %v449
      %474 = vmatprep.subr.mxu0 0.0
      %475 = vmatpush1.msra.mxu0 %v450
      %476 = vmatprep.subr.mxu0 0.0
      %477 = vmatpush1.msra.mxu0 %v451
      %478 = vmatprep.subr.mxu0 0.0
      %479 = vmatpush1.msra.mxu0 %v452
      %480 = vmatprep.subr.mxu0 0.0
      %481 = vmatpush1.msra.mxu0 %v453
      %482 = vmatprep.subr.mxu0 0.0
      %483 = vmatpush1.msra.mxu0 %v454
      %484 = vmatprep.subr.mxu0 0.0
      %485 = vmatpush1.msra.mxu0 %v455
      %486 = vmatprep.subr.mxu0 0.0
      %487 = vmatpush1.msra.mxu0 %v456
      %488 = vmatprep.subr.mxu0 0.0
      %489 = vmatpush1.msra.mxu0 %v457
      %490 = vmatprep.subr.mxu0 0.0
      %491 = vmatpush1.msra.mxu0 0.0
      %492 = vmatprep.subr.mxu0 0.0
      %493 = vmatpush1.msra.mxu0 0.0
      %494 = vmatprep.subr.mxu0 0.0
      %495 = vmatpush1.msra.mxu0 0.0
      %496 = vmatprep.subr.mxu0 0.0
      %497 = vmatpush1.msra.mxu0 0.0
      %498 = vmatprep.subr.mxu0 0.0
      %499 = vmatpush1.msra.mxu0 0.0
      %500 = vmatprep.subr.mxu0 0.0
      %501 = vmatpush1.msra.mxu0 0.0
      %502 = vmatprep.subr.mxu0 0.0
      %503 = vmatpush1.msra.mxu0 0.0
      %504 = vmatprep.subr.mxu0 0.0
      %505 = vmatpush1.msra.mxu0 0.0
      %506 = vmatprep.subr.mxu0 0.0
      %507 = vmatpush1.msra.mxu0 0.0
      %508 = vmatprep.subr.mxu0 0.0
      %509 = vmatpush1.msra.mxu0 0.0
      %510 = vmatprep.subr.mxu0 0.0
      %511 = vmatpush1.msra.mxu0 0.0
      %512 = vmatprep.subr.mxu0 0.0
      %513 = vmatpush1.msra.mxu0 0.0
      %514 = vmatprep.subr.mxu0 0.0
      %515 = vmatpush1.msra.mxu0 0.0
      %516 = vmatprep.subr.mxu0 0.0
      %517 = vmatpush1.msra.mxu0 0.0
      %518 = vmatprep.subr.mxu0 0.0
      %519 = vmatpush1.msra.mxu0 0.0
      %520 = vmatprep.subr.mxu0 0.0
      %521 = vmatpush1.msra.mxu0 0.0
      %522 = vmatprep.mubr.f32.mxu0 0.0
      %523 = vmatmul.mubr.f32.gmra.mrb[0].mxu0 %v355
      %v524 = vpop.f32.mrb[0].mxu0
      %v525 = vadd.f32 0.0, %v524
      %v526 = vpop.f32.mrb[0].mxu0
      %527 = vdwg.mxu0
      %v528 = vld [vmem:[%s6] sm:$0x1]
      %v530 = vlaneseq
      %v531 = vshrl.u32 %v530, 7
      %v532 = vsub.s32 0, %v531
      %v533 = vrot.slane %v528, %v532
      %v535 = vmul.f32 %v439, %v533
      %v536 = vsub.f32 %v346, %v535
      %v537 = vmul.f32 %v536, %v525
      %v538 = vld [vmem:[%s4] sm:$0x1]
      %v540 = vlaneseq
      %v541 = vshrl.u32 %v540, 7
      %v542 = vsub.s32 0, %v541
      %v543 = vrot.slane %v538, %v542
      %v545 = vmul.f32 %v537, %v543
      %v546 = vld [vmem:[%s5] sm:$0x1]
      %v548 = vlaneseq
      %v549 = vshrl.u32 %v548, 7
      %v550 = vsub.s32 0, %v549
      %v551 = vrot.slane %v546, %v550
      %v553 = vadd.f32 %v545, %v551
      %v554 = vld [vmem:[%s7] sm:$0xf]
      %v555 = vld [vmem:[%s7 + $0x4] sm:$0xf]
      %v556 = vld [vmem:[%s7 + $0x8] sm:$0xf]
      %v557 = vld [vmem:[%s7 + $0xc] sm:$0xf]
      %v558 = vld [vmem:[%s7 + $0x10] sm:$0xf]
      %v559 = vld [vmem:[%s7 + $0x14] sm:$0xf]
      %v560 = vld [vmem:[%s7 + $0x18] sm:$0xf]
      %v561 = vld [vmem:[%s7 + $0x1c] sm:$0xf]
      %v562 = vld [vmem:[%s7 + $0x20] sm:$0xf]
      %v563 = vld [vmem:[%s7 + $0x24] sm:$0xf]
      %v564 = vld [vmem:[%s7 + $0x28] sm:$0xf]
      %v565 = vld [vmem:[%s7 + $0x2c] sm:$0xf]
      %v566 = vld [vmem:[%s7 + $0x30] sm:$0xf]
      %v567 = vld [vmem:[%s7 + $0x34] sm:$0xf]
      %v568 = vld [vmem:[%s7 + $0x38] sm:$0xf]
      %v569 = vld [vmem:[%s7 + $0x3c] sm:$0xf]
      %v570 = vpack.c.bf16 %v553, %v553
      %v571 = vld [vmem:[%s8] sm:$0x1]
      %v573 = vlaneseq
      %v574 = vshrl.u32 %v573, 7
      %v575 = vsub.s32 0, %v574
      %v576 = vrot.slane %v571, %v575
      %v594 = vunpack.c.l.b16 %v554
      %v595 = vunpack.c.l.b16 %v555
      %v596 = vunpack.c.l.b16 %v556
      %v597 = vunpack.c.l.b16 %v557
      %v598 = vunpack.c.l.b16 %v558
      %v599 = vunpack.c.l.b16 %v559
      %v600 = vunpack.c.l.b16 %v560
      %v601 = vunpack.c.l.b16 %v561
      %v602 = vunpack.c.l.b16 %v562
      %v603 = vunpack.c.l.b16 %v563
      %v604 = vunpack.c.l.b16 %v564
      %v605 = vunpack.c.l.b16 %v565
      %v606 = vunpack.c.l.b16 %v566
      %v607 = vunpack.c.l.b16 %v567
      %v608 = vunpack.c.l.b16 %v568
      %v609 = vunpack.c.l.b16 %v569
      %v610 = vpack.c.b16 %v595, %v594
      %v611 = vpack.c.b16 %v597, %v596
      %v612 = vpack.c.b16 %v599, %v598
      %v613 = vpack.c.b16 %v601, %v600
      %v614 = vpack.c.b16 %v603, %v602
      %v615 = vpack.c.b16 %v605, %v604
      %v616 = vpack.c.b16 %v607, %v606
      %v617 = vpack.c.b16 %v609, %v608
      %626 = vmatprep.subr.bf16.mxu0 0
      %627 = vmatpush1.bf16.msra.mxu0 %v610
      %628 = vmatprep.subr.bf16.mxu0 0
      %629 = vmatpush1.bf16.msra.mxu0 %v611
      %630 = vmatprep.subr.bf16.mxu0 0
      %631 = vmatpush1.bf16.msra.mxu0 %v612
      %632 = vmatprep.subr.bf16.mxu0 0
      %633 = vmatpush1.bf16.msra.mxu0 %v613
      %634 = vmatprep.subr.bf16.mxu0 0
      %635 = vmatpush1.bf16.msra.mxu0 %v614
      %636 = vmatprep.subr.bf16.mxu0 0
      %637 = vmatpush1.bf16.msra.mxu0 %v615
      %638 = vmatprep.subr.bf16.mxu0 0
      %639 = vmatpush1.bf16.msra.mxu0 %v616
      %640 = vmatprep.subr.bf16.mxu0 0
      %641 = vmatpush1.bf16.msra.mxu0 %v617
      %642 = vmatprep.subr.bf16.mxu0 0
      %643 = vmatpush1.bf16.msra.mxu0 0
      %644 = vmatprep.subr.bf16.mxu0 0
      %645 = vmatpush1.bf16.msra.mxu0 0
      %646 = vmatprep.subr.bf16.mxu0 0
      %647 = vmatpush1.bf16.msra.mxu0 0
      %648 = vmatprep.subr.bf16.mxu0 0
      %649 = vmatpush1.bf16.msra.mxu0 0
      %650 = vmatprep.subr.bf16.mxu0 0
      %651 = vmatpush1.bf16.msra.mxu0 0
      %652 = vmatprep.subr.bf16.mxu0 0
      %653 = vmatpush1.bf16.msra.mxu0 0
      %654 = vmatprep.subr.bf16.mxu0 0
      %655 = vmatpush1.bf16.msra.mxu0 0
      %656 = vmatprep.subr.bf16.mxu0 0
      %657 = vmatpush1.bf16.msra.mxu0 0
      %658 = vmatprep.mubr.bf16.mxu0 0
      %659 = vmatmul.mubr.bf16.gmra.mrb[0].mxu0 %v570
      %v660 = vpop.f32.mrb[0].mxu0
      %v661 = vadd.f32 %v576, %v660
      %v662 = vpop.f32.mrb[0].mxu0
      %v663 = vpop.f32.mrb[0].mxu0
      %v664 = vpop.f32.mrb[0].mxu0
      %665 = vdwg.mxu0
      %666 = vst [vmem:[%s344] sm:$0xff] %v661
      %p667 = scmp.lt.s32.totalorder %s20, 1
      %s668 = scalar_select %p667, %s20, 1
      %s669 = smul.addr %s668, 8
      %s670 = scalar_lea.vmem %s9, %s669
      // Predicated region
      $region57: #{comenet_forward.14} parent=55 // pred_check
        %p671 = pneg %p237
      $region58: #{comenet_forward.14} parent=55 // pred_check_branch
        %673 = sbr.rel (%p671) target = $region60
      $region59: #{comenet_forward.14} parent=55 // pred_region
        _
      $region60: #{comenet_forward.14} parent=55 // pred_fallthru
        _
    $region56: #{comenet_forward.14} parent=5 // pred_fallthru
      _
    %p674 = scmp.le.s32.totalorder 2, %s15
    // Predicated region
    $region61: #{comenet_forward.14} parent=5 // pred_check
      %p675 = pneg %p674
    $region62: #{comenet_forward.14} parent=5 // pred_check_branch
      %677 = sbr.rel (%p675) target = $region64
    $region63: #{comenet_forward.14} parent=5 // pred_region
      %s678 = ssub.s32 %s15, 2
      // Predicated region
      $region65: #{comenet_forward.14} parent=63 // pred_check
        %p679 = pneg %p243
      $region66: #{comenet_forward.14} parent=63 // pred_check_branch
        %681 = sbr.rel (%p679) target = $region68
      $region67: #{comenet_forward.14} parent=63 // pred_region
        %p682 = scmp.lt.s32.totalorder %s21, 1
        %s683 = scalar_select %p682, %s21, 1
        %s684 = smul.addr %s683, 8
        %s685 = scalar_lea.vmem %s9, %s684
      $region68: #{comenet_forward.14} parent=63 // pred_fallthru
        _
    $region64: #{comenet_forward.14} parent=5 // pred_fallthru
      _
  $region6: #{comenet_forward.14} parent=0 // loop_footer
    %s19 = sadd.s32 1, %s15
  $region7: #{comenet_forward.14} parent=0 // loop_footer_branch
    %14 = sbr.rel target = $region3
  $region8: #{comenet_forward.14} parent=0 // loop_exit
    _

// kernel: comenet_forward.19
$region0: #{comenet_forward.19}
  #allocation0 [shape = 'u32[]', space=smem, size = 0x4, offset = 0x4, fixed_abs, tag = 'smem constant byte address 0x4 - core index']
  #allocation1 [shape = 'u32[144,128]{1,0:T(1,128)}', space=vmem, size = 0x12000, scoped, tag = 'internal scratch']
  %s0 = inlined_call_operand.vmem [shape: f32[16,128], index: 0, kind: input, shape index: {}]
  %s1 = inlined_call_operand.vmem [shape: bf16[3,128,128], index: 1, kind: input, shape index: {}]
  %s2 = inlined_call_operand.vmem [shape: f32[3,128], index: 2, kind: input, shape index: {}]
  %s3 = inlined_call_operand.vmem [shape: f32[16,128], index: 3, kind: output, shape index: {}]
  %s4 = sld [smem:[#allocation0]]
  $region45: #{comenet_forward.19} parent=0
    _
  %s6 = ssub.s32 1, %s4
  %s7 = scalar_select 0, %s6, %s4
  loop: start=0, step=1, limit=4
  $region2: #{comenet_forward.19} parent=0 // loop_pre_header
    _
  $region3: #{comenet_forward.19} parent=0 // loop_header
    %s9 = sphi 0, %s13
    %p10 = scmp.ge.s32.totalorder %s9, 4
    %s19 = sphi 0, %s21
    %s22 = sphi 0, %s19
    %s23 = sphi 0, %s22
    %s39 = sphi 0, %s23
    %s43 = sphi 0, %s43
    %s45 = sphi 0, %s43
    %s46 = sphi 0, %s45
    %s60 = sphi 0, %s46
    %s64 = sphi 0, %s64
    %s66 = sphi 0, %s64
    %s67 = sphi 0, %s66
    %s81 = sphi 0, %s67
    %s87 = sphi 0, %s89
    %s90 = sphi 0, %s87
    %s91 = sphi 0, %s90
    %s107 = sphi 0, %s91
  $region4: #{comenet_forward.19} parent=0 // loop_header_branch
    %12 = sbr.rel (%p10) target = $region8
  $region5: #{comenet_forward.19} parent=0 // loop_body
    %s14 = ssub.s32 %s9, 1
    %s15 = ssub.s32 %s9, 2
    %s16 = sadd.s32 %s9, 1
    %s17 = ssub.s32 %s9, %s16
    %p18 = scmp.eq.s32.totalorder %s17, 0
    %s20 = sadd.s32 %s19, 1
    %s21 = scalar_select %p18, %s19, %s20
    %p24 = pneg %p18
    %p25 = scmp.eq.s32.totalorder %s9, 1
    %p26 = por %p24, %p25
    %p27 = scmp.ne.s32.totalorder %s19, %s22
    %p28 = scmp.eq.s32.totalorder %s9, 0
    %p29 = por %p27, %p28
    %p30 = scmp.ne.s32.totalorder %s19, %s22
    %p31 = scmp.eq.s32.totalorder %s14, 1
    %p32 = por %p30, %p31
    %p33 = scmp.ne.s32.totalorder %s22, %s23
    %p34 = scmp.eq.s32.totalorder %s14, 0
    %p35 = por %p33, %p34
    %p36 = scmp.ne.s32.totalorder %s22, %s23
    %p37 = scmp.eq.s32.totalorder %s15, 1
    %p38 = por %p36, %p37
    %p40 = scmp.ne.s32.totalorder %s23, %s39
    %p41 = scmp.eq.s32.totalorder %s15, 0
    %p42 = por %p40, %p41
    %s44 = sadd.s32 %s43, 1
    %p47 = scmp.eq.s32.totalorder %s9, 1
    %p48 = scmp.ne.s32.totalorder %s43, %s45
    %p49 = scmp.eq.s32.totalorder %s9, 0
    %p50 = por %p48, %p49
    %p51 = scmp.ne.s32.totalorder %s43, %s45
    %p52 = scmp.eq.s32.totalorder %s14, 1
    %p53 = por %p51, %p52
    %p54 = scmp.ne.s32.totalorder %s45, %s46
    %p55 = scmp.eq.s32.totalorder %s14, 0
    %p56 = por %p54, %p55
    %p57 = scmp.ne.s32.totalorder %s45, %s46
    %p58 = scmp.eq.s32.totalorder %s15, 1
    %p59 = por %p57, %p58
    %p61 = scmp.ne.s32.totalorder %s46, %s60
    %p62 = scmp.eq.s32.totalorder %s15, 0
    %p63 = por %p61, %p62
    %s65 = sadd.s32 %s64, 1
    %p68 = scmp.eq.s32.totalorder %s9, 1
    %p69 = scmp.ne.s32.totalorder %s64, %s66
    %p70 = scmp.eq.s32.totalorder %s9, 0
    %p71 = por %p69, %p70
    %p72 = scmp.ne.s32.totalorder %s64, %s66
    %p73 = scmp.eq.s32.totalorder %s14, 1
    %p74 = por %p72, %p73
    %p75 = scmp.ne.s32.totalorder %s66, %s67
    %p76 = scmp.eq.s32.totalorder %s14, 0
    %p77 = por %p75, %p76
    %p78 = scmp.ne.s32.totalorder %s66, %s67
    %p79 = scmp.eq.s32.totalorder %s15, 1
    %p80 = por %p78, %p79
    %p82 = scmp.ne.s32.totalorder %s67, %s81
    %p83 = scmp.eq.s32.totalorder %s15, 0
    %p84 = por %p82, %p83
    %s85 = ssub.s32 %s9, %s16
    %p86 = scmp.eq.s32.totalorder %s85, 0
    %s88 = sadd.s32 %s87, 1
    %s89 = scalar_select %p86, %s87, %s88
    %p92 = pneg %p86
    %p93 = scmp.eq.s32.totalorder %s9, 1
    %p94 = por %p92, %p93
    %p95 = scmp.ne.s32.totalorder %s87, %s90
    %p96 = scmp.eq.s32.totalorder %s9, 0
    %p97 = por %p95, %p96
    %p98 = scmp.ne.s32.totalorder %s87, %s90
    %p99 = scmp.eq.s32.totalorder %s14, 1
    %p100 = por %p98, %p99
    %p101 = scmp.ne.s32.totalorder %s90, %s91
    %p102 = scmp.eq.s32.totalorder %s14, 0
    %p103 = por %p101, %p102
    %p104 = scmp.ne.s32.totalorder %s90, %s91
    %p105 = scmp.eq.s32.totalorder %s15, 1
    %p106 = por %p104, %p105
    %p108 = scmp.ne.s32.totalorder %s91, %s107
    %p109 = scmp.eq.s32.totalorder %s15, 0
    %p110 = por %p108, %p109
    %p111 = scmp.le.s32.totalorder 1, %s9
    %p112 = scmp.lt.s32.totalorder %s9, 3
    %p113 = pnand %p111, %p112
    %p114 = pneg %p113
    // Predicated region
    $region9: #{comenet_forward.19} parent=5 // pred_check
      _
    $region10: #{comenet_forward.19} parent=5 // pred_check_branch
      %116 = sbr.rel (%p113) target = $region12
    $region11: #{comenet_forward.19} parent=5 // pred_region
      %s117 = ssub.s32 %s9, 1
      // Predicated region
      $region13: #{comenet_forward.19} parent=11 // pred_check
        %p118 = pneg %p56
      $region14: #{comenet_forward.19} parent=11 // pred_check_branch
        %120 = sbr.rel (%p118) target = $region16
      $region15: #{comenet_forward.19} parent=11 // pred_region
        _
      $region16: #{comenet_forward.19} parent=11 // pred_fallthru
        _
      // Predicated region
      $region17: #{comenet_forward.19} parent=11 // pred_check
        %p121 = pneg %p77
      $region18: #{comenet_forward.19} parent=11 // pred_check_branch
        %123 = sbr.rel (%p121) target = $region20
      $region19: #{comenet_forward.19} parent=11 // pred_region
        _
      $region20: #{comenet_forward.19} parent=11 // pred_fallthru
        _
    $region12: #{comenet_forward.19} parent=5 // pred_fallthru
      _
    %p124 = scmp.lt.s32.totalorder %s9, 2
    // Predicated region
    $region21: #{comenet_forward.19} parent=5 // pred_check
      %p125 = pneg %p124
    $region22: #{comenet_forward.19} parent=5 // pred_check_branch
      %127 = sbr.rel (%p125) target = $region24
    $region23: #{comenet_forward.19} parent=5 // pred_region
      // Predicated region
      $region25: #{comenet_forward.19} parent=23 // pred_check
        %p128 = pneg %p29
      $region26: #{comenet_forward.19} parent=23 // pred_check_branch
        %130 = sbr.rel (%p128) target = $region28
      $region27: #{comenet_forward.19} parent=23 // pred_region
        %p131 = scmp.lt.s32.totalorder %s9, 1
        %s132 = scalar_select %p131, %s9, 1
        %s133 = smul.addr %s132, 8
        %s134 = scalar_lea.vmem %s0, %s133
      $region28: #{comenet_forward.19} parent=23 // pred_fallthru
        _
    $region24: #{comenet_forward.19} parent=5 // pred_fallthru
      _
    %p135 = scmp.le.s32.totalorder 1, %s9
    %p136 = scmp.lt.s32.totalorder %s9, 3
    %p137 = pnand %p135, %p136
    %p138 = pneg %p137
    // Predicated region
    $region29: #{comenet_forward.19} parent=5 // pred_check
      _
    $region30: #{comenet_forward.19} parent=5 // pred_check_branch
      %140 = sbr.rel (%p137) target = $region32
    $region31: #{comenet_forward.19} parent=5 // pred_region
      %s141 = ssub.s32 %s9, 1
      %p142 = scmp.lt.s32.totalorder %s14, 1
      %s143 = scalar_select %p142, %s14, 1
      %s144 = smul.addr %s143, 8
      %s145 = scalar_lea.vmem %s0, %s144
      %p146 = pneg %p35
      %p147 = pneg %p32
      %p148 = pneg %p56
      %p149 = pneg %p53
      %p150 = pneg %p77
      %p151 = pneg %p74
      %p152 = pneg %p103
      %p153 = pneg %p100
      %p154 = scmp.lt.s32.totalorder %s14, 1
      %s155 = scalar_select %p154, %s14, 1
      %s156 = smul.addr %s155, 8
      %s157 = scalar_lea.vmem %s3, %s156
      %p158 = scmp.lt.s32.totalorder %s14, 1
      %s159 = scalar_select %p158, %s14, 1
      %s160 = smul.addr %s159, 8
      %s161 = scalar_lea.vmem %s0, %s160
      %p162 = scmp.lt.s32.totalorder %s14, 1
      %s163 = scalar_select %p162, %s14, 1
      %s164 = smul.addr %s163, 8
      %s165 = scalar_lea.vmem %s3, %s164
      %v167 = vld [vmem:[%s161] sm:$0xff]
      %v168 = vld [vmem:[%s1] sm:$0xf]
      %v169 = vld [vmem:[%s1 + $0x4] sm:$0xf]
      %v170 = vld [vmem:[%s1 + $0x8] sm:$0xf]
      %v171 = vld [vmem:[%s1 + $0xc] sm:$0xf]
      %v172 = vld [vmem:[%s1 + $0x10] sm:$0xf]
      %v173 = vld [vmem:[%s1 + $0x14] sm:$0xf]
      %v174 = vld [vmem:[%s1 + $0x18] sm:$0xf]
      %v175 = vld [vmem:[%s1 + $0x1c] sm:$0xf]
      %v176 = vld [vmem:[%s1 + $0x20] sm:$0xf]
      %v177 = vld [vmem:[%s1 + $0x24] sm:$0xf]
      %v178 = vld [vmem:[%s1 + $0x28] sm:$0xf]
      %v179 = vld [vmem:[%s1 + $0x2c] sm:$0xf]
      %v180 = vld [vmem:[%s1 + $0x30] sm:$0xf]
      %v181 = vld [vmem:[%s1 + $0x34] sm:$0xf]
      %v182 = vld [vmem:[%s1 + $0x38] sm:$0xf]
      %v183 = vld [vmem:[%s1 + $0x3c] sm:$0xf]
      %v184 = vpack.c.bf16 %v167, %v167
      %v185 = vld [vmem:[%s2] sm:$0x1]
      %v186 = vlaneseq
      %v187 = vshrl.u32 %v186, 7
      %v188 = vsub.s32 0, %v187
      %v189 = vrot.slane %v185, %v188
      %v206 = vunpack.c.l.b16 %v168
      %v207 = vunpack.c.l.b16 %v169
      %v208 = vunpack.c.l.b16 %v170
      %v209 = vunpack.c.l.b16 %v171
      %v210 = vunpack.c.l.b16 %v172
      %v211 = vunpack.c.l.b16 %v173
      %v212 = vunpack.c.l.b16 %v174
      %v213 = vunpack.c.l.b16 %v175
      %v214 = vunpack.c.l.b16 %v176
      %v215 = vunpack.c.l.b16 %v177
      %v216 = vunpack.c.l.b16 %v178
      %v217 = vunpack.c.l.b16 %v179
      %v218 = vunpack.c.l.b16 %v180
      %v219 = vunpack.c.l.b16 %v181
      %v220 = vunpack.c.l.b16 %v182
      %v221 = vunpack.c.l.b16 %v183
      %v222 = vpack.c.b16 %v207, %v206
      %v223 = vpack.c.b16 %v209, %v208
      %v224 = vpack.c.b16 %v211, %v210
      %v225 = vpack.c.b16 %v213, %v212
      %v226 = vpack.c.b16 %v215, %v214
      %v227 = vpack.c.b16 %v217, %v216
      %v228 = vpack.c.b16 %v219, %v218
      %v229 = vpack.c.b16 %v221, %v220
      %238 = vmatprep.subr.bf16.mxu0 0
      %239 = vmatpush1.bf16.msra.mxu0 %v222
      %240 = vmatprep.subr.bf16.mxu0 0
      %241 = vmatpush1.bf16.msra.mxu0 %v223
      %242 = vmatprep.subr.bf16.mxu0 0
      %243 = vmatpush1.bf16.msra.mxu0 %v224
      %244 = vmatprep.subr.bf16.mxu0 0
      %245 = vmatpush1.bf16.msra.mxu0 %v225
      %246 = vmatprep.subr.bf16.mxu0 0
      %247 = vmatpush1.bf16.msra.mxu0 %v226
      %248 = vmatprep.subr.bf16.mxu0 0
      %249 = vmatpush1.bf16.msra.mxu0 %v227
      %250 = vmatprep.subr.bf16.mxu0 0
      %251 = vmatpush1.bf16.msra.mxu0 %v228
      %252 = vmatprep.subr.bf16.mxu0 0
      %253 = vmatpush1.bf16.msra.mxu0 %v229
      %254 = vmatprep.subr.bf16.mxu0 0
      %255 = vmatpush1.bf16.msra.mxu0 0
      %256 = vmatprep.subr.bf16.mxu0 0
      %257 = vmatpush1.bf16.msra.mxu0 0
      %258 = vmatprep.subr.bf16.mxu0 0
      %259 = vmatpush1.bf16.msra.mxu0 0
      %260 = vmatprep.subr.bf16.mxu0 0
      %261 = vmatpush1.bf16.msra.mxu0 0
      %262 = vmatprep.subr.bf16.mxu0 0
      %263 = vmatpush1.bf16.msra.mxu0 0
      %264 = vmatprep.subr.bf16.mxu0 0
      %265 = vmatpush1.bf16.msra.mxu0 0
      %266 = vmatprep.subr.bf16.mxu0 0
      %267 = vmatpush1.bf16.msra.mxu0 0
      %268 = vmatprep.subr.bf16.mxu0 0
      %269 = vmatpush1.bf16.msra.mxu0 0
      %270 = vmatprep.mubr.bf16.mxu0 0
      %271 = vmatmul.mubr.bf16.gmra.mrb[0].mxu0 %v184
      %v272 = vpop.f32.mrb[0].mxu0
      %v273 = vadd.f32 %v189, %v272
      %v274 = vpop.f32.mrb[0].mxu0
      %v275 = vpop.f32.mrb[0].mxu0
      %v276 = vpop.f32.mrb[0].mxu0
      %277 = vdwg.mxu0
      %v278 = vxor.u32 %v273, 2147483648
      %v279 = vmul.f32 %v278, 1.442695
      %v280 = vpow.pop %v279
      %v281 = vadd.f32 %v280, 1.0
      %v282 = vrcp.pop %v281
      %v283 = vmul.f32 1.0, %v282
      %v284 = vmul.f32 %v273, %v283
      %s285 = scalar_lea.vmem %s1, 64
      %v286 = vld [vmem:[%s285] sm:$0xf]
      %v287 = vld [vmem:[%s285 + $0x4] sm:$0xf]
      %v288 = vld [vmem:[%s285 + $0x8] sm:$0xf]
      %v289 = vld [vmem:[%s285 + $0xc] sm:$0xf]
      %v290 = vld [vmem:[%s285 + $0x10] sm:$0xf]
      %v291 = vld [vmem:[%s285 + $0x14] sm:$0xf]
      %v292 = vld [vmem:[%s285 + $0x18] sm:$0xf]
      %v293 = vld [vmem:[%s285 + $0x1c] sm:$0xf]
      %v294 = vld [vmem:[%s285 + $0x20] sm:$0xf]
      %v295 = vld [vmem:[%s285 + $0x24] sm:$0xf]
      %v296 = vld [vmem:[%s285 + $0x28] sm:$0xf]
      %v297 = vld [vmem:[%s285 + $0x2c] sm:$0xf]
      %v298 = vld [vmem:[%s285 + $0x30] sm:$0xf]
      %v299 = vld [vmem:[%s285 + $0x34] sm:$0xf]
      %v300 = vld [vmem:[%s285 + $0x38] sm:$0xf]
      %v301 = vld [vmem:[%s285 + $0x3c] sm:$0xf]
      %v302 = vpack.c.bf16 %v284, %v284
      %v303 = vld [vmem:[%s2 + $0x1] sm:$0x1]
      %v304 = vlaneseq
      %v305 = vshrl.u32 %v304, 7
      %v306 = vsub.s32 0, %v305
      %v307 = vrot.slane %v303, %v306
      %v324 = vunpack.c.l.b16 %v286
      %v325 = vunpack.c.l.b16 %v287
      %v326 = vunpack.c.l.b16 %v288
      %v327 = vunpack.c.l.b16 %v289
      %v328 = vunpack.c.l.b16 %v290
      %v329 = vunpack.c.l.b16 %v291
      %v330 = vunpack.c.l.b16 %v292
      %v331 = vunpack.c.l.b16 %v293
      %v332 = vunpack.c.l.b16 %v294
      %v333 = vunpack.c.l.b16 %v295
      %v334 = vunpack.c.l.b16 %v296
      %v335 = vunpack.c.l.b16 %v297
      %v336 = vunpack.c.l.b16 %v298
      %v337 = vunpack.c.l.b16 %v299
      %v338 = vunpack.c.l.b16 %v300
      %v339 = vunpack.c.l.b16 %v301
      %v340 = vpack.c.b16 %v325, %v324
      %v341 = vpack.c.b16 %v327, %v326
      %v342 = vpack.c.b16 %v329, %v328
      %v343 = vpack.c.b16 %v331, %v330
      %v344 = vpack.c.b16 %v333, %v332
      %v345 = vpack.c.b16 %v335, %v334
      %v346 = vpack.c.b16 %v337, %v336
      %v347 = vpack.c.b16 %v339, %v338
      %356 = vmatprep.subr.bf16.mxu0 0
      %357 = vmatpush1.bf16.msra.mxu0 %v340
      %358 = vmatprep.subr.bf16.mxu0 0
      %359 = vmatpush1.bf16.msra.mxu0 %v341
      %360 = vmatprep.subr.bf16.mxu0 0
      %361 = vmatpush1.bf16.msra.mxu0 %v342
      %362 = vmatprep.subr.bf16.mxu0 0
      %363 = vmatpush1.bf16.msra.mxu0 %v343
      %364 = vmatprep.subr.bf16.mxu0 0
      %365 = vmatpush1.bf16.msra.mxu0 %v344
      %366 = vmatprep.subr.bf16.mxu0 0
      %367 = vmatpush1.bf16.msra.mxu0 %v345
      %368 = vmatprep.subr.bf16.mxu0 0
      %369 = vmatpush1.bf16.msra.mxu0 %v346
      %370 = vmatprep.subr.bf16.mxu0 0
      %371 = vmatpush1.bf16.msra.mxu0 %v347
      %372 = vmatprep.subr.bf16.mxu0 0
      %373 = vmatpush1.bf16.msra.mxu0 0
      %374 = vmatprep.subr.bf16.mxu0 0
      %375 = vmatpush1.bf16.msra.mxu0 0
      %376 = vmatprep.subr.bf16.mxu0 0
      %377 = vmatpush1.bf16.msra.mxu0 0
      %378 = vmatprep.subr.bf16.mxu0 0
      %379 = vmatpush1.bf16.msra.mxu0 0
      %380 = vmatprep.subr.bf16.mxu0 0
      %381 = vmatpush1.bf16.msra.mxu0 0
      %382 = vmatprep.subr.bf16.mxu0 0
      %383 = vmatpush1.bf16.msra.mxu0 0
      %384 = vmatprep.subr.bf16.mxu0 0
      %385 = vmatpush1.bf16.msra.mxu0 0
      %386 = vmatprep.subr.bf16.mxu0 0
      %387 = vmatpush1.bf16.msra.mxu0 0
      %388 = vmatprep.mubr.bf16.mxu0 0
      %389 = vmatmul.mubr.bf16.gmra.mrb[0].mxu0 %v302
      %v390 = vpop.f32.mrb[0].mxu0
      %v391 = vadd.f32 %v307, %v390
      %v392 = vpop.f32.mrb[0].mxu0
      %v393 = vpop.f32.mrb[0].mxu0
      %v394 = vpop.f32.mrb[0].mxu0
      %395 = vdwg.mxu0
      %v396 = vxor.u32 %v391, 2147483648
      %v397 = vmul.f32 %v396, 1.442695
      %v398 = vpow.pop %v397
      %v399 = vadd.f32 %v398, 1.0
      %v400 = vrcp.pop %v399
      %v401 = vmul.f32 1.0, %v400
      %v402 = vmul.f32 %v391, %v401
      %s403 = scalar_lea.vmem %s1, 128
      %v404 = vld [vmem:[%s403] sm:$0xf]
      %v405 = vld [vmem:[%s403 + $0x4] sm:$0xf]
      %v406 = vld [vmem:[%s403 + $0x8] sm:$0xf]
      %v407 = vld [vmem:[%s403 + $0xc] sm:$0xf]
      %v408 = vld [vmem:[%s403 + $0x10] sm:$0xf]
      %v409 = vld [vmem:[%s403 + $0x14] sm:$0xf]
      %v410 = vld [vmem:[%s403 + $0x18] sm:$0xf]
      %v411 = vld [vmem:[%s403 + $0x1c] sm:$0xf]
      %v412 = vld [vmem:[%s403 + $0x20] sm:$0xf]
      %v413 = vld [vmem:[%s403 + $0x24] sm:$0xf]
      %v414 = vld [vmem:[%s403 + $0x28] sm:$0xf]
      %v415 = vld [vmem:[%s403 + $0x2c] sm:$0xf]
      %v416 = vld [vmem:[%s403 + $0x30] sm:$0xf]
      %v417 = vld [vmem:[%s403 + $0x34] sm:$0xf]
      %v418 = vld [vmem:[%s403 + $0x38] sm:$0xf]
      %v419 = vld [vmem:[%s403 + $0x3c] sm:$0xf]
      %v420 = vpack.c.bf16 %v402, %v402
      %v421 = vld [vmem:[%s2 + $0x2] sm:$0x1]
      %v422 = vlaneseq
      %v423 = vshrl.u32 %v422, 7
      %v424 = vsub.s32 0, %v423
      %v425 = vrot.slane %v421, %v424
      %v442 = vunpack.c.l.b16 %v404
      %v443 = vunpack.c.l.b16 %v405
      %v444 = vunpack.c.l.b16 %v406
      %v445 = vunpack.c.l.b16 %v407
      %v446 = vunpack.c.l.b16 %v408
      %v447 = vunpack.c.l.b16 %v409
      %v448 = vunpack.c.l.b16 %v410
      %v449 = vunpack.c.l.b16 %v411
      %v450 = vunpack.c.l.b16 %v412
      %v451 = vunpack.c.l.b16 %v413
      %v452 = vunpack.c.l.b16 %v414
      %v453 = vunpack.c.l.b16 %v415
      %v454 = vunpack.c.l.b16 %v416
      %v455 = vunpack.c.l.b16 %v417
      %v456 = vunpack.c.l.b16 %v418
      %v457 = vunpack.c.l.b16 %v419
      %v458 = vpack.c.b16 %v443, %v442
      %v459 = vpack.c.b16 %v445, %v444
      %v460 = vpack.c.b16 %v447, %v446
      %v461 = vpack.c.b16 %v449, %v448
      %v462 = vpack.c.b16 %v451, %v450
      %v463 = vpack.c.b16 %v453, %v452
      %v464 = vpack.c.b16 %v455, %v454
      %v465 = vpack.c.b16 %v457, %v456
      %474 = vmatprep.subr.bf16.mxu0 0
      %475 = vmatpush1.bf16.msra.mxu0 %v458
      %476 = vmatprep.subr.bf16.mxu0 0
      %477 = vmatpush1.bf16.msra.mxu0 %v459
      %478 = vmatprep.subr.bf16.mxu0 0
      %479 = vmatpush1.bf16.msra.mxu0 %v460
      %480 = vmatprep.subr.bf16.mxu0 0
      %481 = vmatpush1.bf16.msra.mxu0 %v461
      %482 = vmatprep.subr.bf16.mxu0 0
      %483 = vmatpush1.bf16.msra.mxu0 %v462
      %484 = vmatprep.subr.bf16.mxu0 0
      %485 = vmatpush1.bf16.msra.mxu0 %v463
      %486 = vmatprep.subr.bf16.mxu0 0
      %487 = vmatpush1.bf16.msra.mxu0 %v464
      %488 = vmatprep.subr.bf16.mxu0 0
      %489 = vmatpush1.bf16.msra.mxu0 %v465
      %490 = vmatprep.subr.bf16.mxu0 0
      %491 = vmatpush1.bf16.msra.mxu0 0
      %492 = vmatprep.subr.bf16.mxu0 0
      %493 = vmatpush1.bf16.msra.mxu0 0
      %494 = vmatprep.subr.bf16.mxu0 0
      %495 = vmatpush1.bf16.msra.mxu0 0
      %496 = vmatprep.subr.bf16.mxu0 0
      %497 = vmatpush1.bf16.msra.mxu0 0
      %498 = vmatprep.subr.bf16.mxu0 0
      %499 = vmatpush1.bf16.msra.mxu0 0
      %500 = vmatprep.subr.bf16.mxu0 0
      %501 = vmatpush1.bf16.msra.mxu0 0
      %502 = vmatprep.subr.bf16.mxu0 0
      %503 = vmatpush1.bf16.msra.mxu0 0
      %504 = vmatprep.subr.bf16.mxu0 0
      %505 = vmatpush1.bf16.msra.mxu0 0
      %506 = vmatprep.mubr.bf16.mxu0 0
      %507 = vmatmul.mubr.bf16.gmra.mrb[0].mxu0 %v420
      %v508 = vpop.f32.mrb[0].mxu0
      %v509 = vadd.f32 %v425, %v508
      %v510 = vpop.f32.mrb[0].mxu0
      %v511 = vpop.f32.mrb[0].mxu0
      %v512 = vpop.f32.mrb[0].mxu0
      %513 = vdwg.mxu0
      %514 = vst [vmem:[%s165] sm:$0xff] %v509
      %p515 = scmp.lt.s32.totalorder %s14, 1
      %s516 = scalar_select %p515, %s14, 1
      %s517 = smul.addr %s516, 8
      %s518 = scalar_lea.vmem %s3, %s517
      // Predicated region
      $region33: #{comenet_forward.19} parent=31 // pred_check
        %p519 = pneg %p100
      $region34: #{comenet_forward.19} parent=31 // pred_check_branch
        %521 = sbr.rel (%p519) target = $region36
      $region35: #{comenet_forward.19} parent=31 // pred_region
        _
      $region36: #{comenet_forward.19} parent=31 // pred_fallthru
        _
    $region32: #{comenet_forward.19} parent=5 // pred_fallthru
      _
    %p522 = scmp.le.s32.totalorder 2, %s9
    // Predicated region
    $region37: #{comenet_forward.19} parent=5 // pred_check
      %p523 = pneg %p522
    $region38: #{comenet_forward.19} parent=5 // pred_check_branch
      %525 = sbr.rel (%p523) target = $region40
    $region39: #{comenet_forward.19} parent=5 // pred_region
      %s526 = ssub.s32 %s9, 2
      // Predicated region
      $region41: #{comenet_forward.19} parent=39 // pred_check
        %p527 = pneg %p106
      $region42: #{comenet_forward.19} parent=39 // pred_check_branch
        %529 = sbr.rel (%p527) target = $region44
      $region43: #{comenet_forward.19} parent=39 // pred_region
        %p530 = scmp.lt.s32.totalorder %s15, 1
        %s531 = scalar_select %p530, %s15, 1
        %s532 = smul.addr %s531, 8
        %s533 = scalar_lea.vmem %s3, %s532
      $region44: #{comenet_forward.19} parent=39 // pred_fallthru
        _
    $region40: #{comenet_forward.19} parent=5 // pred_fallthru
      _
  $region6: #{comenet_forward.19} parent=0 // loop_footer
    %s13 = sadd.s32 1, %s9
  $region7: #{comenet_forward.19} parent=0 // loop_footer_branch
    %8 = sbr.rel target = $region3
  $region8: #{comenet_forward.19} parent=0 // loop_exit
    _

// kernel: comenet_forward.13
$region0: #{comenet_forward.13}
  #allocation0 [shape = 'u32[]', space=smem, size = 0x4, offset = 0x4, fixed_abs, tag = 'smem constant byte address 0x4 - core index']
  #allocation1 [shape = 'u32[144,128]{1,0:T(1,128)}', space=vmem, size = 0x12000, scoped, tag = 'internal scratch']
  %s0 = inlined_call_operand.vmem [shape: f32[16,128], index: 0, kind: input, shape index: {}]
  %s1 = inlined_call_operand.vmem [shape: f32[16,128], index: 1, kind: input, shape index: {}]
  %s2 = inlined_call_operand.vmem [shape: f32[16,128], index: 2, kind: input, shape index: {}]
  %s3 = inlined_call_operand.vmem [shape: bf16[2,256,128], index: 3, kind: input, shape index: {}]
  %s4 = inlined_call_operand.vmem [shape: f32[2,128], index: 4, kind: input, shape index: {}]
  %s5 = inlined_call_operand.vmem [shape: bf16[2,128,128], index: 5, kind: input, shape index: {}]
  %s6 = inlined_call_operand.vmem [shape: f32[2,128], index: 6, kind: input, shape index: {}]
  %s7 = inlined_call_operand.vmem [shape: bf16[256,128], index: 7, kind: input, shape index: {}]
  %s8 = inlined_call_operand.vmem [shape: f32[1,128], index: 8, kind: input, shape index: {}]
  %s9 = inlined_call_operand.vmem [shape: bf16[2,128,128], index: 9, kind: input, shape index: {}]
  %s10 = inlined_call_operand.vmem [shape: f32[2,128], index: 10, kind: input, shape index: {}]
  %s11 = inlined_call_operand.vmem [shape: f32[16,128], index: 11, kind: output, shape index: {}]
  %s12 = sld [smem:[#allocation0]]
  $region77: #{comenet_forward.13} parent=0
    _
  %s14 = ssub.s32 1, %s12
  %s15 = scalar_select 0, %s14, %s12
  loop: start=0, step=1, limit=4
  $region2: #{comenet_forward.13} parent=0 // loop_pre_header
    _
  $region3: #{comenet_forward.13} parent=0 // loop_header
    %s17 = sphi 0, %s21
    %p18 = scmp.ge.s32.totalorder %s17, 4
    %s27 = sphi 0, %s29
    %s30 = sphi 0, %s27
    %s31 = sphi 0, %s30
    %s47 = sphi 0, %s31
    %s53 = sphi 0, %s55
    %s56 = sphi 0, %s53
    %s57 = sphi 0, %s56
    %s73 = sphi 0, %s57
    %s79 = sphi 0, %s81
    %s82 = sphi 0, %s79
    %s83 = sphi 0, %s82
    %s99 = sphi 0, %s83
    %s103 = sphi 0, %s103
    %s105 = sphi 0, %s103
    %s106 = sphi 0, %s105
    %s120 = sphi 0, %s106
    %s124 = sphi 0, %s124
    %s126 = sphi 0, %s124
    %s127 = sphi 0, %s126
    %s141 = sphi 0, %s127
    %s145 = sphi 0, %s145
    %s147 = sphi 0, %s145
    %s148 = sphi 0, %s147
    %s162 = sphi 0, %s148
    %s166 = sphi 0, %s166
    %s168 = sphi 0, %s166
    %s169 = sphi 0, %s168
    %s183 = sphi 0, %s169
    %s187 = sphi 0, %s187
    %s189 = sphi 0, %s187
    %s190 = sphi 0, %s189
    %s204 = sphi 0, %s190
    %s208 = sphi 0, %s208
    %s210 = sphi 0, %s208
    %s211 = sphi 0, %s210
    %s225 = sphi 0, %s211
    %s229 = sphi 0, %s229
    %s231 = sphi 0, %s229
    %s232 = sphi 0, %s231
    %s246 = sphi 0, %s232
    %s250 = sphi 0, %s250
    %s252 = sphi 0, %s250
    %s253 = sphi 0, %s252
    %s267 = sphi 0, %s253
    %s273 = sphi 0, %s275
    %s276 = sphi 0, %s273
    %s277 = sphi 0, %s276
    %s293 = sphi 0, %s277
  $region4: #{comenet_forward.13} parent=0 // loop_header_branch
    %20 = sbr.rel (%p18) target = $region8
  $region5: #{comenet_forward.13} parent=0 // loop_body
    %s22 = ssub.s32 %s17, 1
    %s23 = ssub.s32 %s17, 2
    %s24 = sadd.s32 %s17, 1
    %s25 = ssub.s32 %s17, %s24
    %p26 = scmp.eq.s32.totalorder %s25, 0
    %s28 = sadd.s32 %s27, 1
    %s29 = scalar_select %p26, %s27, %s28
    %p32 = pneg %p26
    %p33 = scmp.eq.s32.totalorder %s17, 1
    %p34 = por %p32, %p33
    %p35 = scmp.ne.s32.totalorder %s27, %s30
    %p36 = scmp.eq.s32.totalorder %s17, 0
    %p37 = por %p35, %p36
    %p38 = scmp.ne.s32.totalorder %s27, %s30
    %p39 = scmp.eq.s32.totalorder %s22, 1
    %p40 = por %p38, %p39
    %p41 = scmp.ne.s32.totalorder %s30, %s31
    %p42 = scmp.eq.s32.totalorder %s22, 0
    %p43 = por %p41, %p42
    %p44 = scmp.ne.s32.totalorder %s30, %s31
    %p45 = scmp.eq.s32.totalorder %s23, 1
    %p46 = por %p44, %p45
    %p48 = scmp.ne.s32.totalorder %s31, %s47
    %p49 = scmp.eq.s32.totalorder %s23, 0
    %p50 = por %p48, %p49
    %s51 = ssub.s32 %s17, %s24
    %p52 = scmp.eq.s32.totalorder %s51, 0
    %s54 = sadd.s32 %s53, 1
    %s55 = scalar_select %p52, %s53, %s54
    %p58 = pneg %p52
    %p59 = scmp.eq.s32.totalorder %s17, 1
    %p60 = por %p58, %p59
    %p61 = scmp.ne.s32.totalorder %s53, %s56
    %p62 = scmp.eq.s32.totalorder %s17, 0
    %p63 = por %p61, %p62
    %p64 = scmp.ne.s32.totalorder %s53, %s56
    %p65 = scmp.eq.s32.totalorder %s22, 1
    %p66 = por %p64, %p65
    %p67 = scmp.ne.s32.totalorder %s56, %s57
    %p68 = scmp.eq.s32.totalorder %s22, 0
    %p69 = por %p67, %p68
    %p70 = scmp.ne.s32.totalorder %s56, %s57
    %p71 = scmp.eq.s32.totalorder %s23, 1
    %p72 = por %p70, %p71
    %p74 = scmp.ne.s32.totalorder %s57, %s73
    %p75 = scmp.eq.s32.totalorder %s23, 0
    %p76 = por %p74, %p75
    %s77 = ssub.s32 %s17, %s24
    %p78 = scmp.eq.s32.totalorder %s77, 0
    %s80 = sadd.s32 %s79, 1
    %s81 = scalar_select %p78, %s79, %s80
    %p84 = pneg %p78
    %p85 = scmp.eq.s32.totalorder %s17, 1
    %p86 = por %p84, %p85
    %p87 = scmp.ne.s32.totalorder %s79, %s82
    %p88 = scmp.eq.s32.totalorder %s17, 0
    %p89 = por %p87, %p88
    %p90 = scmp.ne.s32.totalorder %s79, %s82
    %p91 = scmp.eq.s32.totalorder %s22, 1
    %p92 = por %p90, %p91
    %p93 = scmp.ne.s32.totalorder %s82, %s83
    %p94 = scmp.eq.s32.totalorder %s22, 0
    %p95 = por %p93, %p94
    %p96 = scmp.ne.s32.totalorder %s82, %s83
    %p97 = scmp.eq.s32.totalorder %s23, 1
    %p98 = por %p96, %p97
    %p100 = scmp.ne.s32.totalorder %s83, %s99
    %p101 = scmp.eq.s32.totalorder %s23, 0
    %p102 = por %p100, %p101
    %s104 = sadd.s32 %s103, 1
    %p107 = scmp.eq.s32.totalorder %s17, 1
    %p108 = scmp.ne.s32.totalorder %s103, %s105
    %p109 = scmp.eq.s32.totalorder %s17, 0
    %p110 = por %p108, %p109
    %p111 = scmp.ne.s32.totalorder %s103, %s105
    %p112 = scmp.eq.s32.totalorder %s22, 1
    %p113 = por %p111, %p112
    %p114 = scmp.ne.s32.totalorder %s105, %s106
    %p115 = scmp.eq.s32.totalorder %s22, 0
    %p116 = por %p114, %p115
    %p117 = scmp.ne.s32.totalorder %s105, %s106
    %p118 = scmp.eq.s32.totalorder %s23, 1
    %p119 = por %p117, %p118
    %p121 = scmp.ne.s32.totalorder %s106, %s120
    %p122 = scmp.eq.s32.totalorder %s23, 0
    %p123 = por %p121, %p122
    %s125 = sadd.s32 %s124, 1
    %p128 = scmp.eq.s32.totalorder %s17, 1
    %p129 = scmp.ne.s32.totalorder %s124, %s126
    %p130 = scmp.eq.s32.totalorder %s17, 0
    %p131 = por %p129, %p130
    %p132 = scmp.ne.s32.totalorder %s124, %s126
    %p133 = scmp.eq.s32.totalorder %s22, 1
    %p134 = por %p132, %p133
    %p135 = scmp.ne.s32.totalorder %s126, %s127
    %p136 = scmp.eq.s32.totalorder %s22, 0
    %p137 = por %p135, %p136
    %p138 = scmp.ne.s32.totalorder %s126, %s127
    %p139 = scmp.eq.s32.totalorder %s23, 1
    %p140 = por %p138, %p139
    %p142 = scmp.ne.s32.totalorder %s127, %s141
    %p143 = scmp.eq.s32.totalorder %s23, 0
    %p144 = por %p142, %p143
    %s146 = sadd.s32 %s145, 1
    %p149 = scmp.eq.s32.totalorder %s17, 1
    %p150 = scmp.ne.s32.totalorder %s145, %s147
    %p151 = scmp.eq.s32.totalorder %s17, 0
    %p152 = por %p150, %p151
    %p153 = scmp.ne.s32.totalorder %s145, %s147
    %p154 = scmp.eq.s32.totalorder %s22, 1
    %p155 = por %p153, %p154
    %p156 = scmp.ne.s32.totalorder %s147, %s148
    %p157 = scmp.eq.s32.totalorder %s22, 0
    %p158 = por %p156, %p157
    %p159 = scmp.ne.s32.totalorder %s147, %s148
    %p160 = scmp.eq.s32.totalorder %s23, 1
    %p161 = por %p159, %p160
    %p163 = scmp.ne.s32.totalorder %s148, %s162
    %p164 = scmp.eq.s32.totalorder %s23, 0
    %p165 = por %p163, %p164
    %s167 = sadd.s32 %s166, 1
    %p170 = scmp.eq.s32.totalorder %s17, 1
    %p171 = scmp.ne.s32.totalorder %s166, %s168
    %p172 = scmp.eq.s32.totalorder %s17, 0
    %p173 = por %p171, %p172
    %p174 = scmp.ne.s32.totalorder %s166, %s168
    %p175 = scmp.eq.s32.totalorder %s22, 1
    %p176 = por %p174, %p175
    %p177 = scmp.ne.s32.totalorder %s168, %s169
    %p178 = scmp.eq.s32.totalorder %s22, 0
    %p179 = por %p177, %p178
    %p180 = scmp.ne.s32.totalorder %s168, %s169
    %p181 = scmp.eq.s32.totalorder %s23, 1
    %p182 = por %p180, %p181
    %p184 = scmp.ne.s32.totalorder %s169, %s183
    %p185 = scmp.eq.s32.totalorder %s23, 0
    %p186 = por %p184, %p185
    %s188 = sadd.s32 %s187, 1
    %p191 = scmp.eq.s32.totalorder %s17, 1
    %p192 = scmp.ne.s32.totalorder %s187, %s189
    %p193 = scmp.eq.s32.totalorder %s17, 0
    %p194 = por %p192, %p193
    %p195 = scmp.ne.s32.totalorder %s187, %s189
    %p196 = scmp.eq.s32.totalorder %s22, 1
    %p197 = por %p195, %p196
    %p198 = scmp.ne.s32.totalorder %s189, %s190
    %p199 = scmp.eq.s32.totalorder %s22, 0
    %p200 = por %p198, %p199
    %p201 = scmp.ne.s32.totalorder %s189, %s190
    %p202 = scmp.eq.s32.totalorder %s23, 1
    %p203 = por %p201, %p202
    %p205 = scmp.ne.s32.totalorder %s190, %s204
    %p206 = scmp.eq.s32.totalorder %s23, 0
    %p207 = por %p205, %p206
    %s209 = sadd.s32 %s208, 1
    %p212 = scmp.eq.s32.totalorder %s17, 1
    %p213 = scmp.ne.s32.totalorder %s208, %s210
    %p214 = scmp.eq.s32.totalorder %s17, 0
    %p215 = por %p213, %p214
    %p216 = scmp.ne.s32.totalorder %s208, %s210
    %p217 = scmp.eq.s32.totalorder %s22, 1
    %p218 = por %p216, %p217
    %p219 = scmp.ne.s32.totalorder %s210, %s211
    %p220 = scmp.eq.s32.totalorder %s22, 0
    %p221 = por %p219, %p220
    %p222 = scmp.ne.s32.totalorder %s210, %s211
    %p223 = scmp.eq.s32.totalorder %s23, 1
    %p224 = por %p222, %p223
    %p226 = scmp.ne.s32.totalorder %s211, %s225
    %p227 = scmp.eq.s32.totalorder %s23, 0
    %p228 = por %p226, %p227
    %s230 = sadd.s32 %s229, 1
    %p233 = scmp.eq.s32.totalorder %s17, 1
    %p234 = scmp.ne.s32.totalorder %s229, %s231
    %p235 = scmp.eq.s32.totalorder %s17, 0
    %p236 = por %p234, %p235
    %p237 = scmp.ne.s32.totalorder %s229, %s231
    %p238 = scmp.eq.s32.totalorder %s22, 1
    %p239 = por %p237, %p238
    %p240 = scmp.ne.s32.totalorder %s231, %s232
    %p241 = scmp.eq.s32.totalorder %s22, 0
    %p242 = por %p240, %p241
    %p243 = scmp.ne.s32.totalorder %s231, %s232
    %p244 = scmp.eq.s32.totalorder %s23, 1
    %p245 = por %p243, %p244
    %p247 = scmp.ne.s32.totalorder %s232, %s246
    %p248 = scmp.eq.s32.totalorder %s23, 0
    %p249 = por %p247, %p248
    %s251 = sadd.s32 %s250, 1
    %p254 = scmp.eq.s32.totalorder %s17, 1
    %p255 = scmp.ne.s32.totalorder %s250, %s252
    %p256 = scmp.eq.s32.totalorder %s17, 0
    %p257 = por %p255, %p256
    %p258 = scmp.ne.s32.totalorder %s250, %s252
    %p259 = scmp.eq.s32.totalorder %s22, 1
    %p260 = por %p258, %p259
    %p261 = scmp.ne.s32.totalorder %s252, %s253
    %p262 = scmp.eq.s32.totalorder %s22, 0
    %p263 = por %p261, %p262
    %p264 = scmp.ne.s32.totalorder %s252, %s253
    %p265 = scmp.eq.s32.totalorder %s23, 1
    %p266 = por %p264, %p265
    %p268 = scmp.ne.s32.totalorder %s253, %s267
    %p269 = scmp.eq.s32.totalorder %s23, 0
    %p270 = por %p268, %p269
    %s271 = ssub.s32 %s17, %s24
    %p272 = scmp.eq.s32.totalorder %s271, 0
    %s274 = sadd.s32 %s273, 1
    %s275 = scalar_select %p272, %s273, %s274
    %p278 = pneg %p272
    %p279 = scmp.eq.s32.totalorder %s17, 1
    %p280 = por %p278, %p279
    %p281 = scmp.ne.s32.totalorder %s273, %s276
    %p282 = scmp.eq.s32.totalorder %s17, 0
    %p283 = por %p281, %p282
    %p284 = scmp.ne.s32.totalorder %s273, %s276
    %p285 = scmp.eq.s32.totalorder %s22, 1
    %p286 = por %p284, %p285
    %p287 = scmp.ne.s32.totalorder %s276, %s277
    %p288 = scmp.eq.s32.totalorder %s22, 0
    %p289 = por %p287, %p288
    %p290 = scmp.ne.s32.totalorder %s276, %s277
    %p291 = scmp.eq.s32.totalorder %s23, 1
    %p292 = por %p290, %p291
    %p294 = scmp.ne.s32.totalorder %s277, %s293
    %p295 = scmp.eq.s32.totalorder %s23, 0
    %p296 = por %p294, %p295
    %p297 = scmp.le.s32.totalorder 1, %s17
    %p298 = scmp.lt.s32.totalorder %s17, 3
    %p299 = pnand %p297, %p298
    %p300 = pneg %p299
    // Predicated region
    $region9: #{comenet_forward.13} parent=5 // pred_check
      _
    $region10: #{comenet_forward.13} parent=5 // pred_check_branch
      %302 = sbr.rel (%p299) target = $region12
    $region11: #{comenet_forward.13} parent=5 // pred_region
      %s303 = ssub.s32 %s17, 1
      // Predicated region
      $region13: #{comenet_forward.13} parent=11 // pred_check
        %p304 = pneg %p116
      $region14: #{comenet_forward.13} parent=11 // pred_check_branch
        %306 = sbr.rel (%p304) target = $region16
      $region15: #{comenet_forward.13} parent=11 // pred_region
        _
      $region16: #{comenet_forward.13} parent=11 // pred_fallthru
        _
      // Predicated region
      $region17: #{comenet_forward.13} parent=11 // pred_check
        %p307 = pneg %p137
      $region18: #{comenet_forward.13} parent=11 // pred_check_branch
        %309 = sbr.rel (%p307) target = $region20
      $region19: #{comenet_forward.13} parent=11 // pred_region
        _
      $region20: #{comenet_forward.13} parent=11 // pred_fallthru
        _
      // Predicated region
      $region21: #{comenet_forward.13} parent=11 // pred_check
        %p310 = pneg %p158
      $region22: #{comenet_forward.13} parent=11 // pred_check_branch
        %312 = sbr.rel (%p310) target = $region24
      $region23: #{comenet_forward.13} parent=11 // pred_region
        _
      $region24: #{comenet_forward.13} parent=11 // pred_fallthru
        _
      // Predicated region
      $region25: #{comenet_forward.13} parent=11 // pred_check
        %p313 = pneg %p179
      $region26: #{comenet_forward.13} parent=11 // pred_check_branch
        %315 = sbr.rel (%p313) target = $region28
      $region27: #{comenet_forward.13} parent=11 // pred_region
        _
      $region28: #{comenet_forward.13} parent=11 // pred_fallthru
        _
      // Predicated region
      $region29: #{comenet_forward.13} parent=11 // pred_check
        %p316 = pneg %p200
      $region30: #{comenet_forward.13} parent=11 // pred_check_branch
        %318 = sbr.rel (%p316) target = $region32
      $region31: #{comenet_forward.13} parent=11 // pred_region
        _
      $region32: #{comenet_forward.13} parent=11 // pred_fallthru
        _
      // Predicated region
      $region33: #{comenet_forward.13} parent=11 // pred_check
        %p319 = pneg %p221
      $region34: #{comenet_forward.13} parent=11 // pred_check_branch
        %321 = sbr.rel (%p319) target = $region36
      $region35: #{comenet_forward.13} parent=11 // pred_region
        _
      $region36: #{comenet_forward.13} parent=11 // pred_fallthru
        _
      // Predicated region
      $region37: #{comenet_forward.13} parent=11 // pred_check
        %p322 = pneg %p242
      $region38: #{comenet_forward.13} parent=11 // pred_check_branch
        %324 = sbr.rel (%p322) target = $region40
      $region39: #{comenet_forward.13} parent=11 // pred_region
        _
      $region40: #{comenet_forward.13} parent=11 // pred_fallthru
        _
      // Predicated region
      $region41: #{comenet_forward.13} parent=11 // pred_check
        %p325 = pneg %p263
      $region42: #{comenet_forward.13} parent=11 // pred_check_branch
        %327 = sbr.rel (%p325) target = $region44
      $region43: #{comenet_forward.13} parent=11 // pred_region
        _
      $region44: #{comenet_forward.13} parent=11 // pred_fallthru
        _
    $region12: #{comenet_forward.13} parent=5 // pred_fallthru
      _
    %p328 = scmp.lt.s32.totalorder %s17, 2
    // Predicated region
    $region45: #{comenet_forward.13} parent=5 // pred_check
      %p329 = pneg %p328
    $region46: #{comenet_forward.13} parent=5 // pred_check_branch
      %331 = sbr.rel (%p329) target = $region48
    $region47: #{comenet_forward.13} parent=5 // pred_region
      // Predicated region
      $region49: #{comenet_forward.13} parent=47 // pred_check
        %p332 = pneg %p37
      $region50: #{comenet_forward.13} parent=47 // pred_check_branch
        %334 = sbr.rel (%p332) target = $region52
      $region51: #{comenet_forward.13} parent=47 // pred_region
        %p335 = scmp.lt.s32.totalorder %s17, 1
        %s336 = scalar_select %p335, %s17, 1
        %s337 = smul.addr %s336, 8
        %s338 = scalar_lea.vmem %s0, %s337
      $region52: #{comenet_forward.13} parent=47 // pred_fallthru
        _
      // Predicated region
      $region53: #{comenet_forward.13} parent=47 // pred_check
        %p339 = pneg %p63
      $region54: #{comenet_forward.13} parent=47 // pred_check_branch
        %341 = sbr.rel (%p339) target = $region56
      $region55: #{comenet_forward.13} parent=47 // pred_region
        %p342 = scmp.lt.s32.totalorder %s17, 1
        %s343 = scalar_select %p342, %s17, 1
        %s344 = smul.addr %s343, 8
        %s345 = scalar_lea.vmem %s1, %s344
      $region56: #{comenet_forward.13} parent=47 // pred_fallthru
        _
      // Predicated region
      $region57: #{comenet_forward.13} parent=47 // pred_check
        %p346 = pneg %p89
      $region58: #{comenet_forward.13} parent=47 // pred_check_branch
        %348 = sbr.rel (%p346) target = $region60
      $region59: #{comenet_forward.13} parent=47 // pred_region
        %p349 = scmp.lt.s32.totalorder %s17, 1
        %s350 = scalar_select %p349, %s17, 1
        %s351 = smul.addr %s350, 8
        %s352 = scalar_lea.vmem %s2, %s351
      $region60: #{comenet_forward.13} parent=47 // pred_fallthru
        _
    $region48: #{comenet_forward.13} parent=5 // pred_fallthru
      _
    %p353 = scmp.le.s32.totalorder 1, %s17
    %p354 = scmp.lt.s32.totalorder %s17, 3
    %p355 = pnand %p353, %p354
    %p356 = pneg %p355
    // Predicated region
    $region61: #{comenet_forward.13} parent=5 // pred_check
      _
    $region62: #{comenet_forward.13} parent=5 // pred_check_branch
      %358 = sbr.rel (%p355) target = $region64
    $region63: #{comenet_forward.13} parent=5 // pred_region
      %s359 = ssub.s32 %s17, 1
      %p360 = scmp.lt.s32.totalorder %s22, 1
      %s361 = scalar_select %p360, %s22, 1
      %s362 = smul.addr %s361, 8
      %s363 = scalar_lea.vmem %s0, %s362
      %p364 = pneg %p43
      %p365 = pneg %p40
      %p366 = scmp.lt.s32.totalorder %s22, 1
      %s367 = scalar_select %p366, %s22, 1
      %s368 = smul.addr %s367, 8
      %s369 = scalar_lea.vmem %s1, %s368
      %p370 = pneg %p69
      %p371 = pneg %p66
      %p372 = scmp.lt.s32.totalorder %s22, 1
      %s373 = scalar_select %p372, %s22, 1
      %s374 = smul.addr %s373, 8
      %s375 = scalar_lea.vmem %s2, %s374
      %p376 = pneg %p95
      %p377 = pneg %p92
      %p378 = pneg %p116
      %p379 = pneg %p113
      %p380 = pneg %p137
      %p381 = pneg %p134
      %p382 = pneg %p158
      %p383 = pneg %p155
      %p384 = pneg %p179
      %p385 = pneg %p176
      %p386 = pneg %p200
      %p387 = pneg %p197
      %p388 = pneg %p221
      %p389 = pneg %p218
      %p390 = pneg %p242
      %p391 = pneg %p239
      %p392 = pneg %p263
      %p393 = pneg %p260
      %p394 = pneg %p289
      %p395 = pneg %p286
      %p396 = scmp.lt.s32.totalorder %s22, 1
      %s397 = scalar_select %p396, %s22, 1
      %s398 = smul.addr %s397, 8
      %s399 = scalar_lea.vmem %s11, %s398
      %p400 = scmp.lt.s32.totalorder %s22, 1
      %s401 = scalar_select %p400, %s22, 1
      %s402 = smul.addr %s401, 8
      %s403 = scalar_lea.vmem %s0, %s402
      %p404 = scmp.lt.s32.totalorder %s22, 1
      %s405 = scalar_select %p404, %s22, 1
      %s406 = smul.addr %s405, 8
      %s407 = scalar_lea.vmem %s1, %s406
      %p408 = scmp.lt.s32.totalorder %s22, 1
      %s409 = scalar_select %p408, %s22, 1
      %s410 = smul.addr %s409, 8
      %s411 = scalar_lea.vmem %s2, %s410
      %p412 = scmp.lt.s32.totalorder %s22, 1
      %s413 = scalar_select %p412, %s22, 1
      %s414 = smul.addr %s413, 8
      %s415 = scalar_lea.vmem %s11, %s414
      %v417 = vld [vmem:[%s403] sm:$0xff]
      %v418 = vpack.c.bf16 %v417, %v417
      %v419 = vld [vmem:[%s407] sm:$0xff]
      %v420 = vpack.c.bf16 %v419, %v419
      %v421 = vld [vmem:[%s3] sm:$0xf]
      %v422 = vld [vmem:[%s3 + $0x4] sm:$0xf]
      %v423 = vld [vmem:[%s3 + $0x8] sm:$0xf]
      %v424 = vld [vmem:[%s3 + $0xc] sm:$0xf]
      %v425 = vld [vmem:[%s3 + $0x10] sm:$0xf]
      %v426 = vld [vmem:[%s3 + $0x14] sm:$0xf]
      %v427 = vld [vmem:[%s3 + $0x18] sm:$0xf]
      %v428 = vld [vmem:[%s3 + $0x1c] sm:$0xf]
      %v429 = vld [vmem:[%s3 + $0x20] sm:$0xf]
      %v430 = vld [vmem:[%s3 + $0x24] sm:$0xf]
      %v431 = vld [vmem:[%s3 + $0x28] sm:$0xf]
      %v432 = vld [vmem:[%s3 + $0x2c] sm:$0xf]
      %v433 = vld [vmem:[%s3 + $0x30] sm:$0xf]
      %v434 = vld [vmem:[%s3 + $0x34] sm:$0xf]
      %v435 = vld [vmem:[%s3 + $0x38] sm:$0xf]
      %v436 = vld [vmem:[%s3 + $0x3c] sm:$0xf]
      %v437 = vld [vmem:[%s3 + $0x40] sm:$0xf]
      %v438 = vld [vmem:[%s3 + $0x44] sm:$0xf]
      %v439 = vld [vmem:[%s3 + $0x48] sm:$0xf]
      %v440 = vld [vmem:[%s3 + $0x4c] sm:$0xf]
      %v441 = vld [vmem:[%s3 + $0x50] sm:$0xf]
      %v442 = vld [vmem:[%s3 + $0x54] sm:$0xf]
      %v443 = vld [vmem:[%s3 + $0x58] sm:$0xf]
      %v444 = vld [vmem:[%s3 + $0x5c] sm:$0xf]
      %v445 = vld [vmem:[%s3 + $0x60] sm:$0xf]
      %v446 = vld [vmem:[%s3 + $0x64] sm:$0xf]
      %v447 = vld [vmem:[%s3 + $0x68] sm:$0xf]
      %v448 = vld [vmem:[%s3 + $0x6c] sm:$0xf]
      %v449 = vld [vmem:[%s3 + $0x70] sm:$0xf]
      %v450 = vld [vmem:[%s3 + $0x74] sm:$0xf]
      %v451 = vld [vmem:[%s3 + $0x78] sm:$0xf]
      %v452 = vld [vmem:[%s3 + $0x7c] sm:$0xf]
      %v453 = vld [vmem:[%s4] sm:$0x1]
      %v454 = vlaneseq
      %v455 = vshrl.u32 %v454, 7
      %v456 = vsub.s32 0, %v455
      %v457 = vrot.slane %v453, %v456
      %v490 = vunpack.c.l.b16 %v421
      %v491 = vunpack.c.l.b16 %v422
      %v492 = vunpack.c.l.b16 %v423
      %v493 = vunpack.c.l.b16 %v424
      %v494 = vunpack.c.l.b16 %v425
      %v495 = vunpack.c.l.b16 %v426
      %v496 = vunpack.c.l.b16 %v427
      %v497 = vunpack.c.l.b16 %v428
      %v498 = vunpack.c.l.b16 %v429
      %v499 = vunpack.c.l.b16 %v430
      %v500 = vunpack.c.l.b16 %v431
      %v501 = vunpack.c.l.b16 %v432
      %v502 = vunpack.c.l.b16 %v433
      %v503 = vunpack.c.l.b16 %v434
      %v504 = vunpack.c.l.b16 %v435
      %v505 = vunpack.c.l.b16 %v436
      %v506 = vunpack.c.l.b16 %v437
      %v507 = vunpack.c.l.b16 %v438
      %v508 = vunpack.c.l.b16 %v439
      %v509 = vunpack.c.l.b16 %v440
      %v510 = vunpack.c.l.b16 %v441
      %v511 = vunpack.c.l.b16 %v442
      %v512 = vunpack.c.l.b16 %v443
      %v513 = vunpack.c.l.b16 %v444
      %v514 = vunpack.c.l.b16 %v445
      %v515 = vunpack.c.l.b16 %v446
      %v516 = vunpack.c.l.b16 %v447
      %v517 = vunpack.c.l.b16 %v448
      %v518 = vunpack.c.l.b16 %v449
      %v519 = vunpack.c.l.b16 %v450
      %v520 = vunpack.c.l.b16 %v451
      %v521 = vunpack.c.l.b16 %v452
      %v522 = vpack.c.b16 %v491, %v490
      %v523 = vpack.c.b16 %v493, %v492
      %v524 = vpack.c.b16 %v495, %v494
      %v525 = vpack.c.b16 %v497, %v496
      %v526 = vpack.c.b16 %v499, %v498
      %v527 = vpack.c.b16 %v501, %v500
      %v528 = vpack.c.b16 %v503, %v502
      %v529 = vpack.c.b16 %v505, %v504
      %v530 = vpack.c.b16 %v507, %v506
      %v531 = vpack.c.b16 %v509, %v508
      %v532 = vpack.c.b16 %v511, %v510
      %v533 = vpack.c.b16 %v513, %v512
      %v534 = vpack.c.b16 %v515, %v514
      %v535 = vpack.c.b16 %v517, %v516
      %v536 = vpack.c.b16 %v519, %v518
      %v537 = vpack.c.b16 %v521, %v520
      %554 = vmatprep.subr.bf16.mxu0 0
      %555 = vmatpush1.bf16.msra.mxu0 %v522
      %556 = vmatprep.subr.bf16.mxu0 0
      %557 = vmatpush1.bf16.msra.mxu0 %v523
      %558 = vmatprep.subr.bf16.mxu0 0
      %559 = vmatpush1.bf16.msra.mxu0 %v524
      %560 = vmatprep.subr.bf16.mxu0 0
      %561 = vmatpush1.bf16.msra.mxu0 %v525
      %562 = vmatprep.subr.bf16.mxu0 0
      %563 = vmatpush1.bf16.msra.mxu0 %v526
      %564 = vmatprep.subr.bf16.mxu0 0
      %565 = vmatpush1.bf16.msra.mxu0 %v527
      %566 = vmatprep.subr.bf16.mxu0 0
      %567 = vmatpush1.bf16.msra.mxu0 %v528
      %568 = vmatprep.subr.bf16.mxu0 0
      %569 = vmatpush1.bf16.msra.mxu0 %v529
      %570 = vmatprep.subr.bf16.mxu0 0
      %571 = vmatpush1.bf16.msra.mxu0 %v530
      %572 = vmatprep.subr.bf16.mxu0 0
      %573 = vmatpush1.bf16.msra.mxu0 %v531
      %574 = vmatprep.subr.bf16.mxu0 0
      %575 = vmatpush1.bf16.msra.mxu0 %v532
      %576 = vmatprep.subr.bf16.mxu0 0
      %577 = vmatpush1.bf16.msra.mxu0 %v533
      %578 = vmatprep.subr.bf16.mxu0 0
      %579 = vmatpush1.bf16.msra.mxu0 %v534
      %580 = vmatprep.subr.bf16.mxu0 0
      %581 = vmatpush1.bf16.msra.mxu0 %v535
      %582 = vmatprep.subr.bf16.mxu0 0
      %583 = vmatpush1.bf16.msra.mxu0 %v536
      %584 = vmatprep.subr.bf16.mxu0 0
      %585 = vmatpush1.bf16.msra.mxu0 %v537
      %586 = vmatprep.mubr.bf16.mxu0 %v418
      %587 = vmatmul.mubr.bf16.gmra.mrb[0].mxu0 %v420
      %v588 = vpop.f32.mrb[0].mxu0
      %v589 = vadd.f32 %v457, %v588
      %v590 = vpop.f32.mrb[0].mxu0
      %v591 = vpop.f32.mrb[0].mxu0
      %v592 = vpop.f32.mrb[0].mxu0
      %593 = vdwg.mxu0
      %v594 = vld [vmem:[%s5] sm:$0xf]
      %v595 = vld [vmem:[%s5 + $0x4] sm:$0xf]
      %v596 = vld [vmem:[%s5 + $0x8] sm:$0xf]
      %v597 = vld [vmem:[%s5 + $0xc] sm:$0xf]
      %v598 = vld [vmem:[%s5 + $0x10] sm:$0xf]
      %v599 = vld [vmem:[%s5 + $0x14] sm:$0xf]
      %v600 = vld [vmem:[%s5 + $0x18] sm:$0xf]
      %v601 = vld [vmem:[%s5 + $0x1c] sm:$0xf]
      %v602 = vld [vmem:[%s5 + $0x20] sm:$0xf]
      %v603 = vld [vmem:[%s5 + $0x24] sm:$0xf]
      %v604 = vld [vmem:[%s5 + $0x28] sm:$0xf]
      %v605 = vld [vmem:[%s5 + $0x2c] sm:$0xf]
      %v606 = vld [vmem:[%s5 + $0x30] sm:$0xf]
      %v607 = vld [vmem:[%s5 + $0x34] sm:$0xf]
      %v608 = vld [vmem:[%s5 + $0x38] sm:$0xf]
      %v609 = vld [vmem:[%s5 + $0x3c] sm:$0xf]
      %v610 = vpack.c.bf16 %v589, %v589
      %v611 = vld [vmem:[%s6] sm:$0x1]
      %v612 = vlaneseq
      %v613 = vshrl.u32 %v612, 7
      %v614 = vsub.s32 0, %v613
      %v615 = vrot.slane %v611, %v614
      %v632 = vunpack.c.l.b16 %v594
      %v633 = vunpack.c.l.b16 %v595
      %v634 = vunpack.c.l.b16 %v596
      %v635 = vunpack.c.l.b16 %v597
      %v636 = vunpack.c.l.b16 %v598
      %v637 = vunpack.c.l.b16 %v599
      %v638 = vunpack.c.l.b16 %v600
      %v639 = vunpack.c.l.b16 %v601
      %v640 = vunpack.c.l.b16 %v602
      %v641 = vunpack.c.l.b16 %v603
      %v642 = vunpack.c.l.b16 %v604
      %v643 = vunpack.c.l.b16 %v605
      %v644 = vunpack.c.l.b16 %v606
      %v645 = vunpack.c.l.b16 %v607
      %v646 = vunpack.c.l.b16 %v608
      %v647 = vunpack.c.l.b16 %v609
      %v648 = vpack.c.b16 %v633, %v632
      %v649 = vpack.c.b16 %v635, %v634
      %v650 = vpack.c.b16 %v637, %v636
      %v651 = vpack.c.b16 %v639, %v638
      %v652 = vpack.c.b16 %v641, %v640
      %v653 = vpack.c.b16 %v643, %v642
      %v654 = vpack.c.b16 %v645, %v644
      %v655 = vpack.c.b16 %v647, %v646
      %664 = vmatprep.subr.bf16.mxu0 0
      %665 = vmatpush1.bf16.msra.mxu0 %v648
      %666 = vmatprep.subr.bf16.mxu0 0
      %667 = vmatpush1.bf16.msra.mxu0 %v649
      %668 = vmatprep.subr.bf16.mxu0 0
      %669 = vmatpush1.bf16.msra.mxu0 %v650
      %670 = vmatprep.subr.bf16.mxu0 0
      %671 = vmatpush1.bf16.msra.mxu0 %v651
      %672 = vmatprep.subr.bf16.mxu0 0
      %673 = vmatpush1.bf16.msra.mxu0 %v652
      %674 = vmatprep.subr.bf16.mxu0 0
      %675 = vmatpush1.bf16.msra.mxu0 %v653
      %676 = vmatprep.subr.bf16.mxu0 0
      %677 = vmatpush1.bf16.msra.mxu0 %v654
      %678 = vmatprep.subr.bf16.mxu0 0
      %679 = vmatpush1.bf16.msra.mxu0 %v655
      %680 = vmatprep.subr.bf16.mxu0 0
      %681 = vmatpush1.bf16.msra.mxu0 0
      %682 = vmatprep.subr.bf16.mxu0 0
      %683 = vmatpush1.bf16.msra.mxu0 0
      %684 = vmatprep.subr.bf16.mxu0 0
      %685 = vmatpush1.bf16.msra.mxu0 0
      %686 = vmatprep.subr.bf16.mxu0 0
      %687 = vmatpush1.bf16.msra.mxu0 0
      %688 = vmatprep.subr.bf16.mxu0 0
      %689 = vmatpush1.bf16.msra.mxu0 0
      %690 = vmatprep.subr.bf16.mxu0 0
      %691 = vmatpush1.bf16.msra.mxu0 0
      %692 = vmatprep.subr.bf16.mxu0 0
      %693 = vmatpush1.bf16.msra.mxu0 0
      %694 = vmatprep.subr.bf16.mxu0 0
      %695 = vmatpush1.bf16.msra.mxu0 0
      %696 = vmatprep.mubr.bf16.mxu0 0
      %697 = vmatmul.mubr.bf16.gmra.mrb[0].mxu0 %v610
      %v698 = vpop.f32.mrb[0].mxu0
      %v699 = vadd.f32 %v615, %v698
      %v700 = vpop.f32.mrb[0].mxu0
      %v701 = vpop.f32.mrb[0].mxu0
      %v702 = vpop.f32.mrb[0].mxu0
      %703 = vdwg.mxu0
      %v704 = vxor.u32 %v699, 2147483648
      %v705 = vmul.f32 %v704, 1.442695
      %v706 = vpow.pop %v705
      %v707 = vadd.f32 %v706, 1.0
      %v708 = vrcp.pop %v707
      %v709 = vmul.f32 1.0, %v708
      %v710 = vmul.f32 %v699, %v709
      %v711 = vld [vmem:[%s411] sm:$0xff]
      %v712 = vpack.c.bf16 %v711, %v711
      %s713 = scalar_lea.vmem %s3, 128
      %v714 = vld [vmem:[%s713] sm:$0xf]
      %v715 = vld [vmem:[%s713 + $0x4] sm:$0xf]
      %v716 = vld [vmem:[%s713 + $0x8] sm:$0xf]
      %v717 = vld [vmem:[%s713 + $0xc] sm:$0xf]
      %v718 = vld [vmem:[%s713 + $0x10] sm:$0xf]
      %v719 = vld [vmem:[%s713 + $0x14] sm:$0xf]
      %v720 = vld [vmem:[%s713 + $0x18] sm:$0xf]
      %v721 = vld [vmem:[%s713 + $0x1c] sm:$0xf]
      %v722 = vld [vmem:[%s713 + $0x20] sm:$0xf]
      %v723 = vld [vmem:[%s713 + $0x24] sm:$0xf]
      %v724 = vld [vmem:[%s713 + $0x28] sm:$0xf]
      %v725 = vld [vmem:[%s713 + $0x2c] sm:$0xf]
      %v726 = vld [vmem:[%s713 + $0x30] sm:$0xf]
      %v727 = vld [vmem:[%s713 + $0x34] sm:$0xf]
      %v728 = vld [vmem:[%s713 + $0x38] sm:$0xf]
      %v729 = vld [vmem:[%s713 + $0x3c] sm:$0xf]
      %v730 = vld [vmem:[%s713 + $0x40] sm:$0xf]
      %v731 = vld [vmem:[%s713 + $0x44] sm:$0xf]
      %v732 = vld [vmem:[%s713 + $0x48] sm:$0xf]
      %v733 = vld [vmem:[%s713 + $0x4c] sm:$0xf]
      %v734 = vld [vmem:[%s713 + $0x50] sm:$0xf]
      %v735 = vld [vmem:[%s713 + $0x54] sm:$0xf]
      %v736 = vld [vmem:[%s713 + $0x58] sm:$0xf]
      %v737 = vld [vmem:[%s713 + $0x5c] sm:$0xf]
      %v738 = vld [vmem:[%s713 + $0x60] sm:$0xf]
      %v739 = vld [vmem:[%s713 + $0x64] sm:$0xf]
      %v740 = vld [vmem:[%s713 + $0x68] sm:$0xf]
      %v741 = vld [vmem:[%s713 + $0x6c] sm:$0xf]
      %v742 = vld [vmem:[%s713 + $0x70] sm:$0xf]
      %v743 = vld [vmem:[%s713 + $0x74] sm:$0xf]
      %v744 = vld [vmem:[%s713 + $0x78] sm:$0xf]
      %v745 = vld [vmem:[%s713 + $0x7c] sm:$0xf]
      %v746 = vld [vmem:[%s4 + $0x1] sm:$0x1]
      %v747 = vlaneseq
      %v748 = vshrl.u32 %v747, 7
      %v749 = vsub.s32 0, %v748
      %v750 = vrot.slane %v746, %v749
      %v783 = vunpack.c.l.b16 %v714
      %v784 = vunpack.c.l.b16 %v715
      %v785 = vunpack.c.l.b16 %v716
      %v786 = vunpack.c.l.b16 %v717
      %v787 = vunpack.c.l.b16 %v718
      %v788 = vunpack.c.l.b16 %v719
      %v789 = vunpack.c.l.b16 %v720
      %v790 = vunpack.c.l.b16 %v721
      %v791 = vunpack.c.l.b16 %v722
      %v792 = vunpack.c.l.b16 %v723
      %v793 = vunpack.c.l.b16 %v724
      %v794 = vunpack.c.l.b16 %v725
      %v795 = vunpack.c.l.b16 %v726
      %v796 = vunpack.c.l.b16 %v727
      %v797 = vunpack.c.l.b16 %v728
      %v798 = vunpack.c.l.b16 %v729
      %v799 = vunpack.c.l.b16 %v730
      %v800 = vunpack.c.l.b16 %v731
      %v801 = vunpack.c.l.b16 %v732
      %v802 = vunpack.c.l.b16 %v733
      %v803 = vunpack.c.l.b16 %v734
      %v804 = vunpack.c.l.b16 %v735
      %v805 = vunpack.c.l.b16 %v736
      %v806 = vunpack.c.l.b16 %v737
      %v807 = vunpack.c.l.b16 %v738
      %v808 = vunpack.c.l.b16 %v739
      %v809 = vunpack.c.l.b16 %v740
      %v810 = vunpack.c.l.b16 %v741
      %v811 = vunpack.c.l.b16 %v742
      %v812 = vunpack.c.l.b16 %v743
      %v813 = vunpack.c.l.b16 %v744
      %v814 = vunpack.c.l.b16 %v745
      %v815 = vpack.c.b16 %v784, %v783
      %v816 = vpack.c.b16 %v786, %v785
      %v817 = vpack.c.b16 %v788, %v787
      %v818 = vpack.c.b16 %v790, %v789
      %v819 = vpack.c.b16 %v792, %v791
      %v820 = vpack.c.b16 %v794, %v793
      %v821 = vpack.c.b16 %v796, %v795
      %v822 = vpack.c.b16 %v798, %v797
      %v823 = vpack.c.b16 %v800, %v799
      %v824 = vpack.c.b16 %v802, %v801
      %v825 = vpack.c.b16 %v804, %v803
      %v826 = vpack.c.b16 %v806, %v805
      %v827 = vpack.c.b16 %v808, %v807
      %v828 = vpack.c.b16 %v810, %v809
      %v829 = vpack.c.b16 %v812, %v811
      %v830 = vpack.c.b16 %v814, %v813
      %847 = vmatprep.subr.bf16.mxu0 0
      %848 = vmatpush1.bf16.msra.mxu0 %v815
      %849 = vmatprep.subr.bf16.mxu0 0
      %850 = vmatpush1.bf16.msra.mxu0 %v816
      %851 = vmatprep.subr.bf16.mxu0 0
      %852 = vmatpush1.bf16.msra.mxu0 %v817
      %853 = vmatprep.subr.bf16.mxu0 0
      %854 = vmatpush1.bf16.msra.mxu0 %v818
      %855 = vmatprep.subr.bf16.mxu0 0
      %856 = vmatpush1.bf16.msra.mxu0 %v819
      %857 = vmatprep.subr.bf16.mxu0 0
      %858 = vmatpush1.bf16.msra.mxu0 %v820
      %859 = vmatprep.subr.bf16.mxu0 0
      %860 = vmatpush1.bf16.msra.mxu0 %v821
      %861 = vmatprep.subr.bf16.mxu0 0
      %862 = vmatpush1.bf16.msra.mxu0 %v822
      %863 = vmatprep.subr.bf16.mxu0 0
      %864 = vmatpush1.bf16.msra.mxu0 %v823
      %865 = vmatprep.subr.bf16.mxu0 0
      %866 = vmatpush1.bf16.msra.mxu0 %v824
      %867 = vmatprep.subr.bf16.mxu0 0
      %868 = vmatpush1.bf16.msra.mxu0 %v825
      %869 = vmatprep.subr.bf16.mxu0 0
      %870 = vmatpush1.bf16.msra.mxu0 %v826
      %871 = vmatprep.subr.bf16.mxu0 0
      %872 = vmatpush1.bf16.msra.mxu0 %v827
      %873 = vmatprep.subr.bf16.mxu0 0
      %874 = vmatpush1.bf16.msra.mxu0 %v828
      %875 = vmatprep.subr.bf16.mxu0 0
      %876 = vmatpush1.bf16.msra.mxu0 %v829
      %877 = vmatprep.subr.bf16.mxu0 0
      %878 = vmatpush1.bf16.msra.mxu0 %v830
      %879 = vmatprep.mubr.bf16.mxu0 %v418
      %880 = vmatmul.mubr.bf16.gmra.mrb[0].mxu0 %v712
      %v881 = vpop.f32.mrb[0].mxu0
      %v882 = vadd.f32 %v750, %v881
      %v883 = vpop.f32.mrb[0].mxu0
      %v884 = vpop.f32.mrb[0].mxu0
      %v885 = vpop.f32.mrb[0].mxu0
      %886 = vdwg.mxu0
      %s887 = scalar_lea.vmem %s5, 64
      %v888 = vld [vmem:[%s887] sm:$0xf]
      %v889 = vld [vmem:[%s887 + $0x4] sm:$0xf]
      %v890 = vld [vmem:[%s887 + $0x8] sm:$0xf]
      %v891 = vld [vmem:[%s887 + $0xc] sm:$0xf]
      %v892 = vld [vmem:[%s887 + $0x10] sm:$0xf]
      %v893 = vld [vmem:[%s887 + $0x14] sm:$0xf]
      %v894 = vld [vmem:[%s887 + $0x18] sm:$0xf]
      %v895 = vld [vmem:[%s887 + $0x1c] sm:$0xf]
      %v896 = vld [vmem:[%s887 + $0x20] sm:$0xf]
      %v897 = vld [vmem:[%s887 + $0x24] sm:$0xf]
      %v898 = vld [vmem:[%s887 + $0x28] sm:$0xf]
      %v899 = vld [vmem:[%s887 + $0x2c] sm:$0xf]
      %v900 = vld [vmem:[%s887 + $0x30] sm:$0xf]
      %v901 = vld [vmem:[%s887 + $0x34] sm:$0xf]
      %v902 = vld [vmem:[%s887 + $0x38] sm:$0xf]
      %v903 = vld [vmem:[%s887 + $0x3c] sm:$0xf]
      %v904 = vpack.c.bf16 %v882, %v882
      %v905 = vld [vmem:[%s6 + $0x1] sm:$0x1]
      %v906 = vlaneseq
      %v907 = vshrl.u32 %v906, 7
      %v908 = vsub.s32 0, %v907
      %v909 = vrot.slane %v905, %v908
      %v926 = vunpack.c.l.b16 %v888
      %v927 = vunpack.c.l.b16 %v889
      %v928 = vunpack.c.l.b16 %v890
      %v929 = vunpack.c.l.b16 %v891
      %v930 = vunpack.c.l.b16 %v892
      %v931 = vunpack.c.l.b16 %v893
      %v932 = vunpack.c.l.b16 %v894
      %v933 = vunpack.c.l.b16 %v895
      %v934 = vunpack.c.l.b16 %v896
      %v935 = vunpack.c.l.b16 %v897
      %v936 = vunpack.c.l.b16 %v898
      %v937 = vunpack.c.l.b16 %v899
      %v938 = vunpack.c.l.b16 %v900
      %v939 = vunpack.c.l.b16 %v901
      %v940 = vunpack.c.l.b16 %v902
      %v941 = vunpack.c.l.b16 %v903
      %v942 = vpack.c.b16 %v927, %v926
      %v943 = vpack.c.b16 %v929, %v928
      %v944 = vpack.c.b16 %v931, %v930
      %v945 = vpack.c.b16 %v933, %v932
      %v946 = vpack.c.b16 %v935, %v934
      %v947 = vpack.c.b16 %v937, %v936
      %v948 = vpack.c.b16 %v939, %v938
      %v949 = vpack.c.b16 %v941, %v940
      %958 = vmatprep.subr.bf16.mxu0 0
      %959 = vmatpush1.bf16.msra.mxu0 %v942
      %960 = vmatprep.subr.bf16.mxu0 0
      %961 = vmatpush1.bf16.msra.mxu0 %v943
      %962 = vmatprep.subr.bf16.mxu0 0
      %963 = vmatpush1.bf16.msra.mxu0 %v944
      %964 = vmatprep.subr.bf16.mxu0 0
      %965 = vmatpush1.bf16.msra.mxu0 %v945
      %966 = vmatprep.subr.bf16.mxu0 0
      %967 = vmatpush1.bf16.msra.mxu0 %v946
      %968 = vmatprep.subr.bf16.mxu0 0
      %969 = vmatpush1.bf16.msra.mxu0 %v947
      %970 = vmatprep.subr.bf16.mxu0 0
      %971 = vmatpush1.bf16.msra.mxu0 %v948
      %972 = vmatprep.subr.bf16.mxu0 0
      %973 = vmatpush1.bf16.msra.mxu0 %v949
      %974 = vmatprep.subr.bf16.mxu0 0
      %975 = vmatpush1.bf16.msra.mxu0 0
      %976 = vmatprep.subr.bf16.mxu0 0
      %977 = vmatpush1.bf16.msra.mxu0 0
      %978 = vmatprep.subr.bf16.mxu0 0
      %979 = vmatpush1.bf16.msra.mxu0 0
      %980 = vmatprep.subr.bf16.mxu0 0
      %981 = vmatpush1.bf16.msra.mxu0 0
      %982 = vmatprep.subr.bf16.mxu0 0
      %983 = vmatpush1.bf16.msra.mxu0 0
      %984 = vmatprep.subr.bf16.mxu0 0
      %985 = vmatpush1.bf16.msra.mxu0 0
      %986 = vmatprep.subr.bf16.mxu0 0
      %987 = vmatpush1.bf16.msra.mxu0 0
      %988 = vmatprep.subr.bf16.mxu0 0
      %989 = vmatpush1.bf16.msra.mxu0 0
      %990 = vmatprep.mubr.bf16.mxu0 0
      %991 = vmatmul.mubr.bf16.gmra.mrb[0].mxu0 %v904
      %v992 = vpop.f32.mrb[0].mxu0
      %v993 = vadd.f32 %v909, %v992
      %v994 = vpop.f32.mrb[0].mxu0
      %v995 = vpop.f32.mrb[0].mxu0
      %v996 = vpop.f32.mrb[0].mxu0
      %997 = vdwg.mxu0
      %v998 = vxor.u32 %v993, 2147483648
      %v999 = vmul.f32 %v998, 1.442695
      %v1000 = vpow.pop %v999
      %v1001 = vadd.f32 %v1000, 1.0
      %v1002 = vrcp.pop %v1001
      %v1003 = vmul.f32 1.0, %v1002
      %v1004 = vmul.f32 %v993, %v1003
      %v1005 = vpack.c.bf16 %v710, %v710
      %v1006 = vpack.c.bf16 %v1004, %v1004
      %v1007 = vld [vmem:[%s7] sm:$0xf]
      %v1008 = vld [vmem:[%s7 + $0x4] sm:$0xf]
      %v1009 = vld [vmem:[%s7 + $0x8] sm:$0xf]
      %v1010 = vld [vmem:[%s7 + $0xc] sm:$0xf]
      %v1011 = vld [vmem:[%s7 + $0x10] sm:$0xf]
      %v1012 = vld [vmem:[%s7 + $0x14] sm:$0xf]
      %v1013 = vld [vmem:[%s7 + $0x18] sm:$0xf]
      %v1014 = vld [vmem:[%s7 + $0x1c] sm:$0xf]
      %v1015 = vld [vmem:[%s7 + $0x20] sm:$0xf]
      %v1016 = vld [vmem:[%s7 + $0x24] sm:$0xf]
      %v1017 = vld [vmem:[%s7 + $0x28] sm:$0xf]
      %v1018 = vld [vmem:[%s7 + $0x2c] sm:$0xf]
      %v1019 = vld [vmem:[%s7 + $0x30] sm:$0xf]
      %v1020 = vld [vmem:[%s7 + $0x34] sm:$0xf]
      %v1021 = vld [vmem:[%s7 + $0x38] sm:$0xf]
      %v1022 = vld [vmem:[%s7 + $0x3c] sm:$0xf]
      %v1023 = vld [vmem:[%s7 + $0x40] sm:$0xf]
      %v1024 = vld [vmem:[%s7 + $0x44] sm:$0xf]
      %v1025 = vld [vmem:[%s7 + $0x48] sm:$0xf]
      %v1026 = vld [vmem:[%s7 + $0x4c] sm:$0xf]
      %v1027 = vld [vmem:[%s7 + $0x50] sm:$0xf]
      %v1028 = vld [vmem:[%s7 + $0x54] sm:$0xf]
      %v1029 = vld [vmem:[%s7 + $0x58] sm:$0xf]
      %v1030 = vld [vmem:[%s7 + $0x5c] sm:$0xf]
      %v1031 = vld [vmem:[%s7 + $0x60] sm:$0xf]
      %v1032 = vld [vmem:[%s7 + $0x64] sm:$0xf]
      %v1033 = vld [vmem:[%s7 + $0x68] sm:$0xf]
      %v1034 = vld [vmem:[%s7 + $0x6c] sm:$0xf]
      %v1035 = vld [vmem:[%s7 + $0x70] sm:$0xf]
      %v1036 = vld [vmem:[%s7 + $0x74] sm:$0xf]
      %v1037 = vld [vmem:[%s7 + $0x78] sm:$0xf]
      %v1038 = vld [vmem:[%s7 + $0x7c] sm:$0xf]
      %v1039 = vld [vmem:[%s8] sm:$0x1]
      %v1041 = vlaneseq
      %v1042 = vshrl.u32 %v1041, 7
      %v1043 = vsub.s32 0, %v1042
      %v1044 = vrot.slane %v1039, %v1043
      %v1078 = vunpack.c.l.b16 %v1007
      %v1079 = vunpack.c.l.b16 %v1008
      %v1080 = vunpack.c.l.b16 %v1009
      %v1081 = vunpack.c.l.b16 %v1010
      %v1082 = vunpack.c.l.b16 %v1011
      %v1083 = vunpack.c.l.b16 %v1012
      %v1084 = vunpack.c.l.b16 %v1013
      %v1085 = vunpack.c.l.b16 %v1014
      %v1086 = vunpack.c.l.b16 %v1015
      %v1087 = vunpack.c.l.b16 %v1016
      %v1088 = vunpack.c.l.b16 %v1017
      %v1089 = vunpack.c.l.b16 %v1018
      %v1090 = vunpack.c.l.b16 %v1019
      %v1091 = vunpack.c.l.b16 %v1020
      %v1092 = vunpack.c.l.b16 %v1021
      %v1093 = vunpack.c.l.b16 %v1022
      %v1094 = vunpack.c.l.b16 %v1023
      %v1095 = vunpack.c.l.b16 %v1024
      %v1096 = vunpack.c.l.b16 %v1025
      %v1097 = vunpack.c.l.b16 %v1026
      %v1098 = vunpack.c.l.b16 %v1027
      %v1099 = vunpack.c.l.b16 %v1028
      %v1100 = vunpack.c.l.b16 %v1029
      %v1101 = vunpack.c.l.b16 %v1030
      %v1102 = vunpack.c.l.b16 %v1031
      %v1103 = vunpack.c.l.b16 %v1032
      %v1104 = vunpack.c.l.b16 %v1033
      %v1105 = vunpack.c.l.b16 %v1034
      %v1106 = vunpack.c.l.b16 %v1035
      %v1107 = vunpack.c.l.b16 %v1036
      %v1108 = vunpack.c.l.b16 %v1037
      %v1109 = vunpack.c.l.b16 %v1038
      %v1110 = vpack.c.b16 %v1079, %v1078
      %v1111 = vpack.c.b16 %v1081, %v1080
      %v1112 = vpack.c.b16 %v1083, %v1082
      %v1113 = vpack.c.b16 %v1085, %v1084
      %v1114 = vpack.c.b16 %v1087, %v1086
      %v1115 = vpack.c.b16 %v1089, %v1088
      %v1116 = vpack.c.b16 %v1091, %v1090
      %v1117 = vpack.c.b16 %v1093, %v1092
      %v1118 = vpack.c.b16 %v1095, %v1094
      %v1119 = vpack.c.b16 %v1097, %v1096
      %v1120 = vpack.c.b16 %v1099, %v1098
      %v1121 = vpack.c.b16 %v1101, %v1100
      %v1122 = vpack.c.b16 %v1103, %v1102
      %v1123 = vpack.c.b16 %v1105, %v1104
      %v1124 = vpack.c.b16 %v1107, %v1106
      %v1125 = vpack.c.b16 %v1109, %v1108
      %1142 = vmatprep.subr.bf16.mxu0 0
      %1143 = vmatpush1.bf16.msra.mxu0 %v1110
      %1144 = vmatprep.subr.bf16.mxu0 0
      %1145 = vmatpush1.bf16.msra.mxu0 %v1111
      %1146 = vmatprep.subr.bf16.mxu0 0
      %1147 = vmatpush1.bf16.msra.mxu0 %v1112
      %1148 = vmatprep.subr.bf16.mxu0 0
      %1149 = vmatpush1.bf16.msra.mxu0 %v1113
      %1150 = vmatprep.subr.bf16.mxu0 0
      %1151 = vmatpush1.bf16.msra.mxu0 %v1114
      %1152 = vmatprep.subr.bf16.mxu0 0
      %1153 = vmatpush1.bf16.msra.mxu0 %v1115
      %1154 = vmatprep.subr.bf16.mxu0 0
      %1155 = vmatpush1.bf16.msra.mxu0 %v1116
      %1156 = vmatprep.subr.bf16.mxu0 0
      %1157 = vmatpush1.bf16.msra.mxu0 %v1117
      %1158 = vmatprep.subr.bf16.mxu0 0
      %1159 = vmatpush1.bf16.msra.mxu0 %v1118
      %1160 = vmatprep.subr.bf16.mxu0 0
      %1161 = vmatpush1.bf16.msra.mxu0 %v1119
      %1162 = vmatprep.subr.bf16.mxu0 0
      %1163 = vmatpush1.bf16.msra.mxu0 %v1120
      %1164 = vmatprep.subr.bf16.mxu0 0
      %1165 = vmatpush1.bf16.msra.mxu0 %v1121
      %1166 = vmatprep.subr.bf16.mxu0 0
      %1167 = vmatpush1.bf16.msra.mxu0 %v1122
      %1168 = vmatprep.subr.bf16.mxu0 0
      %1169 = vmatpush1.bf16.msra.mxu0 %v1123
      %1170 = vmatprep.subr.bf16.mxu0 0
      %1171 = vmatpush1.bf16.msra.mxu0 %v1124
      %1172 = vmatprep.subr.bf16.mxu0 0
      %1173 = vmatpush1.bf16.msra.mxu0 %v1125
      %1174 = vmatprep.mubr.bf16.mxu0 %v1006
      %1175 = vmatmul.mubr.bf16.gmra.mrb[0].mxu0 %v1005
      %v1176 = vpop.f32.mrb[0].mxu0
      %v1177 = vadd.f32 %v1044, %v1176
      %v1178 = vpop.f32.mrb[0].mxu0
      %v1179 = vpop.f32.mrb[0].mxu0
      %v1180 = vpop.f32.mrb[0].mxu0
      %1181 = vdwg.mxu0
      %v1182 = vadd.f32 %v1177, %v417
      %v1183 = vld [vmem:[%s9] sm:$0xf]
      %v1184 = vld [vmem:[%s9 + $0x4] sm:$0xf]
      %v1185 = vld [vmem:[%s9 + $0x8] sm:$0xf]
      %v1186 = vld [vmem:[%s9 + $0xc] sm:$0xf]
      %v1187 = vld [vmem:[%s9 + $0x10] sm:$0xf]
      %v1188 = vld [vmem:[%s9 + $0x14] sm:$0xf]
      %v1189 = vld [vmem:[%s9 + $0x18] sm:$0xf]
      %v1190 = vld [vmem:[%s9 + $0x1c] sm:$0xf]
      %v1191 = vld [vmem:[%s9 + $0x20] sm:$0xf]
      %v1192 = vld [vmem:[%s9 + $0x24] sm:$0xf]
      %v1193 = vld [vmem:[%s9 + $0x28] sm:$0xf]
      %v1194 = vld [vmem:[%s9 + $0x2c] sm:$0xf]
      %v1195 = vld [vmem:[%s9 + $0x30] sm:$0xf]
      %v1196 = vld [vmem:[%s9 + $0x34] sm:$0xf]
      %v1197 = vld [vmem:[%s9 + $0x38] sm:$0xf]
      %v1198 = vld [vmem:[%s9 + $0x3c] sm:$0xf]
      %v1199 = vpack.c.bf16 %v1182, %v1182
      %v1200 = vld [vmem:[%s10] sm:$0x1]
      %v1201 = vlaneseq
      %v1202 = vshrl.u32 %v1201, 7
      %v1203 = vsub.s32 0, %v1202
      %v1204 = vrot.slane %v1200, %v1203
      %v1221 = vunpack.c.l.b16 %v1183
      %v1222 = vunpack.c.l.b16 %v1184
      %v1223 = vunpack.c.l.b16 %v1185
      %v1224 = vunpack.c.l.b16 %v1186
      %v1225 = vunpack.c.l.b16 %v1187
      %v1226 = vunpack.c.l.b16 %v1188
      %v1227 = vunpack.c.l.b16 %v1189
      %v1228 = vunpack.c.l.b16 %v1190
      %v1229 = vunpack.c.l.b16 %v1191
      %v1230 = vunpack.c.l.b16 %v1192
      %v1231 = vunpack.c.l.b16 %v1193
      %v1232 = vunpack.c.l.b16 %v1194
      %v1233 = vunpack.c.l.b16 %v1195
      %v1234 = vunpack.c.l.b16 %v1196
      %v1235 = vunpack.c.l.b16 %v1197
      %v1236 = vunpack.c.l.b16 %v1198
      %v1237 = vpack.c.b16 %v1222, %v1221
      %v1238 = vpack.c.b16 %v1224, %v1223
      %v1239 = vpack.c.b16 %v1226, %v1225
      %v1240 = vpack.c.b16 %v1228, %v1227
      %v1241 = vpack.c.b16 %v1230, %v1229
      %v1242 = vpack.c.b16 %v1232, %v1231
      %v1243 = vpack.c.b16 %v1234, %v1233
      %v1244 = vpack.c.b16 %v1236, %v1235
      %1253 = vmatprep.subr.bf16.mxu0 0
      %1254 = vmatpush1.bf16.msra.mxu0 %v1237
      %1255 = vmatprep.subr.bf16.mxu0 0
      %1256 = vmatpush1.bf16.msra.mxu0 %v1238
      %1257 = vmatprep.subr.bf16.mxu0 0
      %1258 = vmatpush1.bf16.msra.mxu0 %v1239
      %1259 = vmatprep.subr.bf16.mxu0 0
      %1260 = vmatpush1.bf16.msra.mxu0 %v1240
      %1261 = vmatprep.subr.bf16.mxu0 0
      %1262 = vmatpush1.bf16.msra.mxu0 %v1241
      %1263 = vmatprep.subr.bf16.mxu0 0
      %1264 = vmatpush1.bf16.msra.mxu0 %v1242
      %1265 = vmatprep.subr.bf16.mxu0 0
      %1266 = vmatpush1.bf16.msra.mxu0 %v1243
      %1267 = vmatprep.subr.bf16.mxu0 0
      %1268 = vmatpush1.bf16.msra.mxu0 %v1244
      %1269 = vmatprep.subr.bf16.mxu0 0
      %1270 = vmatpush1.bf16.msra.mxu0 0
      %1271 = vmatprep.subr.bf16.mxu0 0
      %1272 = vmatpush1.bf16.msra.mxu0 0
      %1273 = vmatprep.subr.bf16.mxu0 0
      %1274 = vmatpush1.bf16.msra.mxu0 0
      %1275 = vmatprep.subr.bf16.mxu0 0
      %1276 = vmatpush1.bf16.msra.mxu0 0
      %1277 = vmatprep.subr.bf16.mxu0 0
      %1278 = vmatpush1.bf16.msra.mxu0 0
      %1279 = vmatprep.subr.bf16.mxu0 0
      %1280 = vmatpush1.bf16.msra.mxu0 0
      %1281 = vmatprep.subr.bf16.mxu0 0
      %1282 = vmatpush1.bf16.msra.mxu0 0
      %1283 = vmatprep.subr.bf16.mxu0 0
      %1284 = vmatpush1.bf16.msra.mxu0 0
      %1285 = vmatprep.mubr.bf16.mxu0 0
      %1286 = vmatmul.mubr.bf16.gmra.mrb[0].mxu0 %v1199
      %v1287 = vpop.f32.mrb[0].mxu0
      %v1288 = vadd.f32 %v1204, %v1287
      %v1289 = vpop.f32.mrb[0].mxu0
      %v1290 = vpop.f32.mrb[0].mxu0
      %v1291 = vpop.f32.mrb[0].mxu0
      %1292 = vdwg.mxu0
      %v1293 = vxor.u32 %v1288, 2147483648
      %v1294 = vmul.f32 %v1293, 1.442695
      %v1295 = vpow.pop %v1294
      %v1296 = vadd.f32 %v1295, 1.0
      %v1297 = vrcp.pop %v1296
      %v1298 = vmul.f32 1.0, %v1297
      %v1299 = vmul.f32 %v1288, %v1298
      %v1300 = vadd.f32 %v1299, %v1182
      %v1301 = vxor.u32 %v1300, 2147483648
      %v1302 = vmul.f32 %v1301, 1.442695
      %v1303 = vpow.pop %v1302
      %v1304 = vadd.f32 %v1303, 1.0
      %v1305 = vrcp.pop %v1304
      %v1306 = vmul.f32 1.0, %v1305
      %v1307 = vmul.f32 %v1300, %v1306
      %v1308 = vadd.f32 %v1307, %v1300
      %s1309 = scalar_lea.vmem %s9, 64
      %v1310 = vld [vmem:[%s1309] sm:$0xf]
      %v1311 = vld [vmem:[%s1309 + $0x4] sm:$0xf]
      %v1312 = vld [vmem:[%s1309 + $0x8] sm:$0xf]
      %v1313 = vld [vmem:[%s1309 + $0xc] sm:$0xf]
      %v1314 = vld [vmem:[%s1309 + $0x10] sm:$0xf]
      %v1315 = vld [vmem:[%s1309 + $0x14] sm:$0xf]
      %v1316 = vld [vmem:[%s1309 + $0x18] sm:$0xf]
      %v1317 = vld [vmem:[%s1309 + $0x1c] sm:$0xf]
      %v1318 = vld [vmem:[%s1309 + $0x20] sm:$0xf]
      %v1319 = vld [vmem:[%s1309 + $0x24] sm:$0xf]
      %v1320 = vld [vmem:[%s1309 + $0x28] sm:$0xf]
      %v1321 = vld [vmem:[%s1309 + $0x2c] sm:$0xf]
      %v1322 = vld [vmem:[%s1309 + $0x30] sm:$0xf]
      %v1323 = vld [vmem:[%s1309 + $0x34] sm:$0xf]
      %v1324 = vld [vmem:[%s1309 + $0x38] sm:$0xf]
      %v1325 = vld [vmem:[%s1309 + $0x3c] sm:$0xf]
      %v1326 = vpack.c.bf16 %v1308, %v1308
      %v1327 = vld [vmem:[%s10 + $0x1] sm:$0x1]
      %v1328 = vlaneseq
      %v1329 = vshrl.u32 %v1328, 7
      %v1330 = vsub.s32 0, %v1329
      %v1331 = vrot.slane %v1327, %v1330
      %v1348 = vunpack.c.l.b16 %v1310
      %v1349 = vunpack.c.l.b16 %v1311
      %v1350 = vunpack.c.l.b16 %v1312
      %v1351 = vunpack.c.l.b16 %v1313
      %v1352 = vunpack.c.l.b16 %v1314
      %v1353 = vunpack.c.l.b16 %v1315
      %v1354 = vunpack.c.l.b16 %v1316
      %v1355 = vunpack.c.l.b16 %v1317
      %v1356 = vunpack.c.l.b16 %v1318
      %v1357 = vunpack.c.l.b16 %v1319
      %v1358 = vunpack.c.l.b16 %v1320
      %v1359 = vunpack.c.l.b16 %v1321
      %v1360 = vunpack.c.l.b16 %v1322
      %v1361 = vunpack.c.l.b16 %v1323
      %v1362 = vunpack.c.l.b16 %v1324
      %v1363 = vunpack.c.l.b16 %v1325
      %v1364 = vpack.c.b16 %v1349, %v1348
      %v1365 = vpack.c.b16 %v1351, %v1350
      %v1366 = vpack.c.b16 %v1353, %v1352
      %v1367 = vpack.c.b16 %v1355, %v1354
      %v1368 = vpack.c.b16 %v1357, %v1356
      %v1369 = vpack.c.b16 %v1359, %v1358
      %v1370 = vpack.c.b16 %v1361, %v1360
      %v1371 = vpack.c.b16 %v1363, %v1362
      %1380 = vmatprep.subr.bf16.mxu0 0
      %1381 = vmatpush1.bf16.msra.mxu0 %v1364
      %1382 = vmatprep.subr.bf16.mxu0 0
      %1383 = vmatpush1.bf16.msra.mxu0 %v1365
      %1384 = vmatprep.subr.bf16.mxu0 0
      %1385 = vmatpush1.bf16.msra.mxu0 %v1366
      %1386 = vmatprep.subr.bf16.mxu0 0
      %1387 = vmatpush1.bf16.msra.mxu0 %v1367
      %1388 = vmatprep.subr.bf16.mxu0 0
      %1389 = vmatpush1.bf16.msra.mxu0 %v1368
      %1390 = vmatprep.subr.bf16.mxu0 0
      %1391 = vmatpush1.bf16.msra.mxu0 %v1369
      %1392 = vmatprep.subr.bf16.mxu0 0
      %1393 = vmatpush1.bf16.msra.mxu0 %v1370
      %1394 = vmatprep.subr.bf16.mxu0 0
      %1395 = vmatpush1.bf16.msra.mxu0 %v1371
      %1396 = vmatprep.subr.bf16.mxu0 0
      %1397 = vmatpush1.bf16.msra.mxu0 0
      %1398 = vmatprep.subr.bf16.mxu0 0
      %1399 = vmatpush1.bf16.msra.mxu0 0
      %1400 = vmatprep.subr.bf16.mxu0 0
      %1401 = vmatpush1.bf16.msra.mxu0 0
      %1402 = vmatprep.subr.bf16.mxu0 0
      %1403 = vmatpush1.bf16.msra.mxu0 0
      %1404 = vmatprep.subr.bf16.mxu0 0
      %1405 = vmatpush1.bf16.msra.mxu0 0
      %1406 = vmatprep.subr.bf16.mxu0 0
      %1407 = vmatpush1.bf16.msra.mxu0 0
      %1408 = vmatprep.subr.bf16.mxu0 0
      %1409 = vmatpush1.bf16.msra.mxu0 0
      %1410 = vmatprep.subr.bf16.mxu0 0
      %1411 = vmatpush1.bf16.msra.mxu0 0
      %1412 = vmatprep.mubr.bf16.mxu0 0
      %1413 = vmatmul.mubr.bf16.gmra.mrb[0].mxu0 %v1326
      %v1414 = vpop.f32.mrb[0].mxu0
      %v1415 = vadd.f32 %v1331, %v1414
      %v1416 = vpop.f32.mrb[0].mxu0
      %v1417 = vpop.f32.mrb[0].mxu0
      %v1418 = vpop.f32.mrb[0].mxu0
      %1419 = vdwg.mxu0
      %v1420 = vxor.u32 %v1415, 2147483648
      %v1421 = vmul.f32 %v1420, 1.442695
      %v1422 = vpow.pop %v1421
      %v1423 = vadd.f32 %v1422, 1.0
      %v1424 = vrcp.pop %v1423
      %v1425 = vmul.f32 1.0, %v1424
      %v1426 = vmul.f32 %v1415, %v1425
      %v1427 = vadd.f32 %v1426, %v1308
      %v1428 = vxor.u32 %v1427, 2147483648
      %v1429 = vmul.f32 %v1428, 1.442695
      %v1430 = vpow.pop %v1429
      %v1431 = vadd.f32 %v1430, 1.0
      %v1432 = vrcp.pop %v1431
      %v1433 = vmul.f32 1.0, %v1432
      %v1434 = vmul.f32 %v1427, %v1433
      %v1435 = vadd.f32 %v1434, %v1427
      %1436 = vst [vmem:[%s415] sm:$0xff] %v1435
      %p1437 = scmp.lt.s32.totalorder %s22, 1
      %s1438 = scalar_select %p1437, %s22, 1
      %s1439 = smul.addr %s1438, 8
      %s1440 = scalar_lea.vmem %s11, %s1439
      // Predicated region
      $region65: #{comenet_forward.13} parent=63 // pred_check
        %p1441 = pneg %p286
      $region66: #{comenet_forward.13} parent=63 // pred_check_branch
        %1443 = sbr.rel (%p1441) target = $region68
      $region67: #{comenet_forward.13} parent=63 // pred_region
        _
      $region68: #{comenet_forward.13} parent=63 // pred_fallthru
        _
    $region64: #{comenet_forward.13} parent=5 // pred_fallthru
      _
    %p1444 = scmp.le.s32.totalorder 2, %s17
    // Predicated region
    $region69: #{comenet_forward.13} parent=5 // pred_check
      %p1445 = pneg %p1444
    $region70: #{comenet_forward.13} parent=5 // pred_check_branch
      %1447 = sbr.rel (%p1445) target = $region72
    $region71: #{comenet_forward.13} parent=5 // pred_region
      %s1448 = ssub.s32 %s17, 2
      // Predicated region
      $region73: #{comenet_forward.13} parent=71 // pred_check
        %p1449 = pneg %p292
      $region74: #{comenet_forward.13} parent=71 // pred_check_branch
        %1451 = sbr.rel (%p1449) target = $region76
      $region75: #{comenet_forward.13} parent=71 // pred_region
        %p1452 = scmp.lt.s32.totalorder %s23, 1
        %s1453 = scalar_select %p1452, %s23, 1
        %s1454 = smul.addr %s1453, 8
        %s1455 = scalar_lea.vmem %s11, %s1454
      $region76: #{comenet_forward.13} parent=71 // pred_fallthru
        _
    $region72: #{comenet_forward.13} parent=5 // pred_fallthru
      _
  $region6: #{comenet_forward.13} parent=0 // loop_footer
    %s21 = sadd.s32 1, %s17
  $region7: #{comenet_forward.13} parent=0 // loop_footer_branch
    %16 = sbr.rel target = $region3
  $region8: #{comenet_forward.13} parent=0 // loop_exit
    _

</llo_original>
